<compile_context>
chip_gen: v7x
topology: tpu7x:2x2x1
jax: 0.10.0
libtpu: 0.0.40
codegen_flags: <defaults>
</compile_context>

<pallas_src>
import functools

import jax
import jax.numpy as jnp
from jax.experimental import pallas as pl
from jax.experimental.pallas import tpu as pltpu


def _attention_kernel(x_ref, wqkv_ref, wproj_ref, bproj_ref, o_ref,
                      qkv_ref, ctx_ref, *, num_heads, scale, j_valid):
    # x_ref:    (T_TILE, J, C)        input joints for one batch, T_TILE timesteps
    # wqkv_ref: (C, 3C)               fused q/k/v projection weight
    # wproj_ref:(C, D_out)            output projection weight
    # bproj_ref:(1, D_out)            output projection bias
    # o_ref:    (T_TILE, J, D_out)
    # qkv_ref:  (T_TILE, J, 3C)       VMEM scratch, compute dtype
    # ctx_ref:  (T_TILE*J, C)         VMEM scratch, projection-weight dtype
    Tt, J, C = x_ref.shape
    hd = C // num_heads

    # ---- fused QKV projection: one big MXU matmul over all T_TILE*J rows ----
    x2d = x_ref[...].reshape(Tt * J, C)                      # native dtype -> MXU
    qkv = jnp.dot(x2d, wqkv_ref[...],
                  preferred_element_type=jnp.float32)        # (Tt*J, 3C) f32 acc
    # Land in scratch in the compute dtype (halves the live slab for bf16 inputs and
    # turns per-head slices into cheap vld's instead of long vreg live ranges).
    qkv_ref[...] = qkv.reshape(Tt, J, 3 * C).astype(qkv_ref.dtype)

    # ---- per-head spatial attention, batched over the T_TILE axis ----
    for h in range(num_heads):                               # static unroll, H small
        q_h = qkv_ref[:, :, 0 * C + h * hd: 0 * C + (h + 1) * hd]   # (Tt, J, hd)
        k_h = qkv_ref[:, :, 1 * C + h * hd: 1 * C + (h + 1) * hd]
        v_h = qkv_ref[:, :, 2 * C + h * hd: 2 * C + (h + 1) * hd]

        s = jnp.einsum('tjd,tkd->tjk', q_h, k_h,
                       preferred_element_type=jnp.float32) * scale   # (Tt, J, J) f32
        if j_valid < J:
            # Mask padded key columns (J padded to a multiple of 8 wrapper-side).
            kidx = jax.lax.broadcasted_iota(jnp.int32, (Tt, J, J), 2)
            s = jnp.where(kidx < j_valid, s, -1e30)
        s = s - jnp.max(s, axis=-1, keepdims=True)
        e = jnp.exp(s)
        inv = pl.reciprocal(jnp.sum(e, axis=-1, keepdims=True), approx=True)
        # Normalize the probabilities before the PV matmul and feed them to the MXU in
        # the value dtype; accumulation stays f32.
        p = (e * inv).astype(v_h.dtype)
        ctx_h = jnp.einsum('tjk,tkd->tjd', p, v_h,
                           preferred_element_type=jnp.float32)        # (Tt, J, hd)
        # Write this head's slab into the context scratch (== permute+reshape),
        # already in the projection-weight dtype.
        ctx_ref[:, h * hd:(h + 1) * hd] = (
            ctx_h.reshape(Tt * J, hd).astype(ctx_ref.dtype))

    # ---- output projection + bias: one big MXU matmul, lane-dense store ----
    out = jnp.dot(ctx_ref[...], wproj_ref[...],
                  preferred_element_type=jnp.float32)
    out = out + bproj_ref[...].astype(jnp.float32)
    o_ref[...] = out.reshape(Tt, J, -1).astype(o_ref.dtype)


def _tiling_for_chip():
    """(target_rows, vmem_limit_bytes) chosen per TPU generation."""
    try:
        vmem_bytes = pltpu.get_tpu_info().vmem_capacity_bytes
    except Exception:
        return 512, None
    if vmem_bytes >= (96 << 20):     # v5e / v6e: 128 MiB VMEM -> bigger slabs
        return 1024, 64 << 20
    return 512, None                  # v7x: 64 MiB VMEM, default scoped limit


def _pick_t_tile(T, J, B, target_rows):
    """Largest divisor of T with T_TILE*J <= target_rows, keeping >=2 grid steps."""
    divs = [d for d in range(1, T + 1) if T % d == 0]
    best = 1
    for d in divs:
        if d * J <= max(target_rows, J):
            best = d
    # Keep at least 2 grid steps so both v7x TensorCores get work.
    while best > 1 and B * (T // best) < 2:
        best = max(d for d in divs if d < best)
    return best


def attention_spatial(x, wqkv, wproj, bproj, *, num_heads, t_tile=None):
    """x: (B, T, J, C); wqkv: (C, 3C); wproj: (C, D_out); bproj: (1, D_out)."""
    B, T, J, C = x.shape
    D_out = wproj.shape[1]
    H = num_heads
    hd = C // H
    scale = hd ** (-0.5)

    # Pad J to a multiple of 8 so in-kernel (Tt,J,C)<->(Tt*J,C) reshapes are layout-free;
    # padded key columns are masked in-kernel, padded query rows are sliced off here.
    J_pad = -(-J // 8) * 8
    if J_pad != J:
        x = jnp.pad(x, ((0, 0), (0, 0), (0, J_pad - J), (0, 0)))

    target_rows, vmem_limit = _tiling_for_chip()
    if t_tile is None:
        t_tile = _pick_t_tile(T, J_pad, B, target_rows)
    assert T % t_tile == 0

    kernel = functools.partial(_attention_kernel, num_heads=H, scale=scale, j_valid=J)

    itemsize = jnp.dtype(x.dtype).itemsize
    cost = pl.CostEstimate(
        flops=int(2 * B * T * J_pad * C * 3 * C            # qkv projection
                  + 4 * B * T * H * J_pad * J_pad * hd     # scores + attn@v
                  + 2 * B * T * J_pad * C * D_out),        # output projection
        transcendentals=int(B * T * H * J_pad * J_pad),    # exp
        bytes_accessed=int(x.size * itemsize
                           + B * T * J_pad * D_out * itemsize
                           + wqkv.size * wqkv.dtype.itemsize
                           + wproj.size * wproj.dtype.itemsize
                           + bproj.size * bproj.dtype.itemsize),
    )

    out = pl.pallas_call(
        kernel,
        out_shape=jax.ShapeDtypeStruct((B, T, J_pad, D_out), x.dtype),
        grid_spec=pltpu.PrefetchScalarGridSpec(
            num_scalar_prefetch=0,
            grid=(B, T // t_tile),
            in_specs=[
                pl.BlockSpec((None, t_tile, J_pad, C), lambda b, t: (b, t, 0, 0)),
                pl.BlockSpec((C, 3 * C), lambda b, t: (0, 0)),
                pl.BlockSpec((C, D_out), lambda b, t: (0, 0)),
                pl.BlockSpec((1, D_out), lambda b, t: (0, 0)),
            ],
            out_specs=pl.BlockSpec((None, t_tile, J_pad, D_out),
                                   lambda b, t: (b, t, 0, 0)),
            scratch_shapes=[
                pltpu.VMEM((t_tile, J_pad, 3 * C), x.dtype),        # qkv slab
                pltpu.VMEM((t_tile * J_pad, C), wproj.dtype),       # context slab
            ],
        ),
        compiler_params=pltpu.CompilerParams(
            dimension_semantics=("parallel", "parallel"),
            vmem_limit_bytes=vmem_limit),
        cost_estimate=cost,
    )(x, wqkv, wproj, bproj)

    if J_pad != J:
        out = out[:, :, :J, :]
    return out


def attention_reference(x, wqkv, wproj, bproj, *, num_heads):
    """Pure-JAX reference mirroring the PyTorch forward (spatial mode, eval)."""
    B, T, J, C = x.shape
    hd = C // num_heads
    scale = hd ** (-0.5)
    qkv = x @ wqkv                                            # (B,T,J,3C)
    qkv = qkv.reshape(B, T, J, 3, num_heads, hd)
    qkv = jnp.transpose(qkv, (3, 0, 4, 1, 2, 5))              # (3,B,H,T,J,hd)
    q, k, v = qkv[0], qkv[1], qkv[2]
    attn = jnp.einsum('bhtjd,bhtkd->bhtjk', q, k) * scale
    attn = jax.nn.softmax(attn, axis=-1)
    ctx = jnp.einsum('bhtjk,bhtkd->bhtjd', attn, v)           # (B,H,T,J,hd)
    ctx = jnp.transpose(ctx, (0, 2, 3, 1, 4)).reshape(B, T, J, C)
    return ctx @ wproj + bproj[0]


if __name__ == "__main__":
    # Small shapes consistent with (B, T, J, C).
    B, T, J, C = 2, 8, 16, 32
    num_heads = 4
    dim_out = 32

    key = jax.random.PRNGKey(0)
    k_x, k_qkv, k_p, k_b = jax.random.split(key, 4)

    x = jax.random.normal(k_x, (B, T, J, C), dtype=jnp.float32)
    # qkv Linear (bias=False): weight stored as (C, 3C); columns laid out [q | k | v],
    # each block contiguous by head (matches the PyTorch reshape(..., 3, H, hd)).
    wqkv = jax.random.normal(k_qkv, (C, 3 * C), dtype=jnp.float32) * 0.05
    # proj Linear: weight (C, dim_out), bias (1, dim_out).
    wproj = jax.random.normal(k_p, (C, dim_out), dtype=jnp.float32) * 0.05
    bproj = jax.random.normal(k_b, (1, dim_out), dtype=jnp.float32) * 0.05

    out = attention_spatial(x, wqkv, wproj, bproj, num_heads=num_heads)
    out = jax.block_until_ready(out)
    ref = attention_reference(x, wqkv, wproj, bproj, num_heads=num_heads)
    assert out.shape == (B, T, J, dim_out)
    # Tolerance accounts for pl.reciprocal(approx=True) in the softmax denominator.
    assert jnp.allclose(out, ref, rtol=1e-3, atol=1e-3), "mismatch vs reference (J=16)"

    # Ragged-J path (e.g. 17 COCO-style joints): wrapper pads 17 -> 24, kernel masks
    # the padded key columns, padded query rows are sliced off.
    J2 = 17
    x2 = jax.random.normal(jax.random.PRNGKey(1), (B, T, J2, C), dtype=jnp.float32)
    out2 = attention_spatial(x2, wqkv, wproj, bproj, num_heads=num_heads)
    out2 = jax.block_until_ready(out2)
    ref2 = attention_reference(x2, wqkv, wproj, bproj, num_heads=num_heads)
    assert out2.shape == (B, T, J2, dim_out)
    assert jnp.allclose(out2, ref2, rtol=1e-3, atol=1e-3), "mismatch vs reference (J=17)"

    print("KERNEL_OK")
</pallas_src>

<mosaic_0001>
module attributes {stable_mosaic.version = 11 : i64} {
  func.func @_attention_kernel(%arg0: i32, %arg1: i32, %arg2: memref<1x8x16x32xf32, #tpu.memory_space<vmem>>, %arg3: memref<32x96xf32, #tpu.memory_space<vmem>>, %arg4: memref<32x32xf32, #tpu.memory_space<vmem>>, %arg5: memref<1x32xf32, #tpu.memory_space<vmem>>, %arg6: memref<1x8x16x32xf32, #tpu.memory_space<vmem>>, %arg7: memref<8x16x96xf32, #tpu.memory_space<vmem>>, %arg8: memref<128x32xf32, #tpu.memory_space<vmem>>) attributes {dimension_semantics = [#tpu.dimension_semantics<parallel>, #tpu.dimension_semantics<parallel>], iteration_bounds = array<i64: 2, 1>, scalar_prefetch = 0 : i64, scratch_operands = 2 : i64, tpu.core_type = #tpu.core_type<tc>, window_params = [{transform_indices = @transform_0, window_bounds = array<i64: 1, 8, 16, 32>}, {pipeline_mode = #tpu.pipeline_mode<synchronous>, transform_indices = @transform_1, window_bounds = array<i64: 32, 96>}, {pipeline_mode = #tpu.pipeline_mode<synchronous>, transform_indices = @transform_2, window_bounds = array<i64: 32, 32>}, {pipeline_mode = #tpu.pipeline_mode<synchronous>, transform_indices = @transform_3, window_bounds = array<i64: 1, 32>}, {transform_indices = @transform_4, window_bounds = array<i64: 1, 8, 16, 32>}]} {
    %c0 = arith.constant 0 : index
    %c0_0 = arith.constant 0 : index
    %c0_1 = arith.constant 0 : index
    %c0_2 = arith.constant 0 : index
    %0 = vector.load %arg2[%c0, %c0_0, %c0_1, %c0_2] : memref<1x8x16x32xf32, #tpu.memory_space<vmem>>, vector<1x8x16x32xf32>
    %1 = vector.shape_cast %0 : vector<1x8x16x32xf32> to vector<8x16x32xf32>
    %2 = vector.shape_cast %1 : vector<8x16x32xf32> to vector<128x32xf32>
    %c0_3 = arith.constant 0 : index
    %c0_4 = arith.constant 0 : index
    %3 = vector.load %arg3[%c0_3, %c0_4] : memref<32x96xf32, #tpu.memory_space<vmem>>, vector<32x96xf32>
    %cst = arith.constant dense<0.000000e+00> : vector<128x96xf32>
    %4 = tpu.matmul %2, %3, %cst {dimension_numbers = #tpu.dot_dimension_numbers<[1], [0], [0], [1], [0, 0, 1, 1], [], []>} : vector<128x32xf32>, vector<32x96xf32>, vector<128x96xf32> -> vector<128x96xf32>
    %5 = vector.shape_cast %4 : vector<128x96xf32> to vector<8x16x96xf32>
    %c0_5 = arith.constant 0 : index
    %c0_6 = arith.constant 0 : index
    %c0_7 = arith.constant 0 : index
    %6 = vector.load %arg7[%c0_5, %c0_6, %c0_7] : memref<8x16x96xf32, #tpu.memory_space<vmem>>, vector<8x16x96xf32>
    tpu.vector_store %arg7[%c0_5, %c0_6, %c0_7], %5 {strides = array<i32>} : memref<8x16x96xf32, #tpu.memory_space<vmem>>, vector<8x16x96xf32>,
    %c0_8 = arith.constant 0 : index
    %c0_9 = arith.constant 0 : index
    %c0_10 = arith.constant 0 : index
    %7 = vector.load %arg7[%c0_8, %c0_9, %c0_10] : memref<8x16x96xf32, #tpu.memory_space<vmem>>, vector<8x16x8xf32>
    %c0_11 = arith.constant 0 : index
    %c0_12 = arith.constant 0 : index
    %c32 = arith.constant 32 : index
    %8 = vector.load %arg7[%c0_11, %c0_12, %c32] : memref<8x16x96xf32, #tpu.memory_space<vmem>>, vector<8x16x8xf32>
    %c0_13 = arith.constant 0 : index
    %c0_14 = arith.constant 0 : index
    %c64 = arith.constant 64 : index
    %9 = vector.load %arg7[%c0_13, %c0_14, %c64] : memref<8x16x96xf32, #tpu.memory_space<vmem>>, vector<8x16x8xf32>
    "tpu.trace_start"() <{level = 10 : i32, message = "tjd,tkd->tjk"}> : () -> ()
    %cst_15 = arith.constant dense<0.000000e+00> : vector<8x16x16xf32>
    %10 = tpu.matmul %7, %8, %cst_15 {dimension_numbers = #tpu.dot_dimension_numbers<[2], [2], [1], [1], [0, 0, 0, 1, 1, 1], [0], [0]>} : vector<8x16x8xf32>, vector<8x16x8xf32>, vector<8x16x16xf32> -> vector<8x16x16xf32>
    "tpu.trace_stop"() : () -> ()
    %cst_16 = arith.constant 0.353553385 : f32
    %11 = vector.broadcast %cst_16 : f32 to vector<8x16x16xf32>
    %12 = arith.mulf %10, %11 : vector<8x16x16xf32>
    %cst_17 = arith.constant dense<0xFF800000> : vector<8x16xf32>
    %13 = vector.multi_reduction <maximumf>, %12, %cst_17 [2] : vector<8x16x16xf32> to vector<8x16xf32>
    %14 = vector.shape_cast %13 : vector<8x16xf32> to vector<8x16x1xf32>
    %15 = vector.broadcast %14 : vector<8x16x1xf32> to vector<8x16x16xf32>
    %16 = arith.subf %12, %15 : vector<8x16x16xf32>
    %17 = math.exp %16 : vector<8x16x16xf32>
    %cst_18 = arith.constant dense<0.000000e+00> : vector<8x16xf32>
    %18 = vector.multi_reduction <add>, %17, %cst_18 [2] : vector<8x16x16xf32> to vector<8x16xf32>
    %19 = vector.shape_cast %18 : vector<8x16xf32> to vector<8x16x1xf32>
    %20 = tpu.reciprocal %19 {approx = true} : vector<8x16x1xf32> -> vector<8x16x1xf32>
    %21 = vector.broadcast %20 : vector<8x16x1xf32> to vector<8x16x16xf32>
    %22 = arith.mulf %17, %21 : vector<8x16x16xf32>
    "tpu.trace_start"() <{level = 10 : i32, message = "tjk,tkd->tjd"}> : () -> ()
    %cst_19 = arith.constant dense<0.000000e+00> : vector<8x16x8xf32>
    %23 = tpu.matmul %22, %9, %cst_19 {dimension_numbers = #tpu.dot_dimension_numbers<[2], [1], [1], [2], [0, 0, 0, 1, 1, 2], [0], [0]>} : vector<8x16x16xf32>, vector<8x16x8xf32>, vector<8x16x8xf32> -> vector<8x16x8xf32>
    "tpu.trace_stop"() : () -> ()
    %24 = vector.shape_cast %23 : vector<8x16x8xf32> to vector<128x8xf32>
    %c0_20 = arith.constant 0 : index
    %c0_21 = arith.constant 0 : index
    %25 = vector.load %arg8[%c0_20, %c0_21] : memref<128x32xf32, #tpu.memory_space<vmem>>, vector<128x8xf32>
    tpu.vector_store %arg8[%c0_20, %c0_21], %24 {strides = array<i32>} : memref<128x32xf32, #tpu.memory_space<vmem>>, vector<128x8xf32>,
    %c0_22 = arith.constant 0 : index
    %c0_23 = arith.constant 0 : index
    %c8 = arith.constant 8 : index
    %26 = vector.load %arg7[%c0_22, %c0_23, %c8] : memref<8x16x96xf32, #tpu.memory_space<vmem>>, vector<8x16x8xf32>
    %c0_24 = arith.constant 0 : index
    %c0_25 = arith.constant 0 : index
    %c40 = arith.constant 40 : index
    %27 = vector.load %arg7[%c0_24, %c0_25, %c40] : memref<8x16x96xf32, #tpu.memory_space<vmem>>, vector<8x16x8xf32>
    %c0_26 = arith.constant 0 : index
    %c0_27 = arith.constant 0 : index
    %c72 = arith.constant 72 : index
    %28 = vector.load %arg7[%c0_26, %c0_27, %c72] : memref<8x16x96xf32, #tpu.memory_space<vmem>>, vector<8x16x8xf32>
    "tpu.trace_start"() <{level = 10 : i32, message = "tjd,tkd->tjk"}> : () -> ()
    %cst_28 = arith.constant dense<0.000000e+00> : vector<8x16x16xf32>
    %29 = tpu.matmul %26, %27, %cst_28 {dimension_numbers = #tpu.dot_dimension_numbers<[2], [2], [1], [1], [0, 0, 0, 1, 1, 1], [0], [0]>} : vector<8x16x8xf32>, vector<8x16x8xf32>, vector<8x16x16xf32> -> vector<8x16x16xf32>
    "tpu.trace_stop"() : () -> ()
    %cst_29 = arith.constant 0.353553385 : f32
    %30 = vector.broadcast %cst_29 : f32 to vector<8x16x16xf32>
    %31 = arith.mulf %29, %30 : vector<8x16x16xf32>
    %cst_30 = arith.constant dense<0xFF800000> : vector<8x16xf32>
    %32 = vector.multi_reduction <maximumf>, %31, %cst_30 [2] : vector<8x16x16xf32> to vector<8x16xf32>
    %33 = vector.shape_cast %32 : vector<8x16xf32> to vector<8x16x1xf32>
    %34 = vector.broadcast %33 : vector<8x16x1xf32> to vector<8x16x16xf32>
    %35 = arith.subf %31, %34 : vector<8x16x16xf32>
    %36 = math.exp %35 : vector<8x16x16xf32>
    %cst_31 = arith.constant dense<0.000000e+00> : vector<8x16xf32>
    %37 = vector.multi_reduction <add>, %36, %cst_31 [2] : vector<8x16x16xf32> to vector<8x16xf32>
    %38 = vector.shape_cast %37 : vector<8x16xf32> to vector<8x16x1xf32>
    %39 = tpu.reciprocal %38 {approx = true} : vector<8x16x1xf32> -> vector<8x16x1xf32>
    %40 = vector.broadcast %39 : vector<8x16x1xf32> to vector<8x16x16xf32>
    %41 = arith.mulf %36, %40 : vector<8x16x16xf32>
    "tpu.trace_start"() <{level = 10 : i32, message = "tjk,tkd->tjd"}> : () -> ()
    %cst_32 = arith.constant dense<0.000000e+00> : vector<8x16x8xf32>
    %42 = tpu.matmul %41, %28, %cst_32 {dimension_numbers = #tpu.dot_dimension_numbers<[2], [1], [1], [2], [0, 0, 0, 1, 1, 2], [0], [0]>} : vector<8x16x16xf32>, vector<8x16x8xf32>, vector<8x16x8xf32> -> vector<8x16x8xf32>
    "tpu.trace_stop"() : () -> ()
    %43 = vector.shape_cast %42 : vector<8x16x8xf32> to vector<128x8xf32>
    %c0_33 = arith.constant 0 : index
    %c8_34 = arith.constant 8 : index
    %44 = vector.load %arg8[%c0_33, %c8_34] : memref<128x32xf32, #tpu.memory_space<vmem>>, vector<128x8xf32>
    tpu.vector_store %arg8[%c0_33, %c8_34], %43 {strides = array<i32>} : memref<128x32xf32, #tpu.memory_space<vmem>>, vector<128x8xf32>,
    %c0_35 = arith.constant 0 : index
    %c0_36 = arith.constant 0 : index
    %c16 = arith.constant 16 : index
    %45 = vector.load %arg7[%c0_35, %c0_36, %c16] : memref<8x16x96xf32, #tpu.memory_space<vmem>>, vector<8x16x8xf32>
    %c0_37 = arith.constant 0 : index
    %c0_38 = arith.constant 0 : index
    %c48 = arith.constant 48 : index
    %46 = vector.load %arg7[%c0_37, %c0_38, %c48] : memref<8x16x96xf32, #tpu.memory_space<vmem>>, vector<8x16x8xf32>
    %c0_39 = arith.constant 0 : index
    %c0_40 = arith.constant 0 : index
    %c80 = arith.constant 80 : index
    %47 = vector.load %arg7[%c0_39, %c0_40, %c80] : memref<8x16x96xf32, #tpu.memory_space<vmem>>, vector<8x16x8xf32>
    "tpu.trace_start"() <{level = 10 : i32, message = "tjd,tkd->tjk"}> : () -> ()
    %cst_41 = arith.constant dense<0.000000e+00> : vector<8x16x16xf32>
    %48 = tpu.matmul %45, %46, %cst_41 {dimension_numbers = #tpu.dot_dimension_numbers<[2], [2], [1], [1], [0, 0, 0, 1, 1, 1], [0], [0]>} : vector<8x16x8xf32>, vector<8x16x8xf32>, vector<8x16x16xf32> -> vector<8x16x16xf32>
    "tpu.trace_stop"() : () -> ()
    %cst_42 = arith.constant 0.353553385 : f32
    %49 = vector.broadcast %cst_42 : f32 to vector<8x16x16xf32>
    %50 = arith.mulf %48, %49 : vector<8x16x16xf32>
    %cst_43 = arith.constant dense<0xFF800000> : vector<8x16xf32>
    %51 = vector.multi_reduction <maximumf>, %50, %cst_43 [2] : vector<8x16x16xf32> to vector<8x16xf32>
    %52 = vector.shape_cast %51 : vector<8x16xf32> to vector<8x16x1xf32>
    %53 = vector.broadcast %52 : vector<8x16x1xf32> to vector<8x16x16xf32>
    %54 = arith.subf %50, %53 : vector<8x16x16xf32>
    %55 = math.exp %54 : vector<8x16x16xf32>
    %cst_44 = arith.constant dense<0.000000e+00> : vector<8x16xf32>
    %56 = vector.multi_reduction <add>, %55, %cst_44 [2] : vector<8x16x16xf32> to vector<8x16xf32>
    %57 = vector.shape_cast %56 : vector<8x16xf32> to vector<8x16x1xf32>
    %58 = tpu.reciprocal %57 {approx = true} : vector<8x16x1xf32> -> vector<8x16x1xf32>
    %59 = vector.broadcast %58 : vector<8x16x1xf32> to vector<8x16x16xf32>
    %60 = arith.mulf %55, %59 : vector<8x16x16xf32>
    "tpu.trace_start"() <{level = 10 : i32, message = "tjk,tkd->tjd"}> : () -> ()
    %cst_45 = arith.constant dense<0.000000e+00> : vector<8x16x8xf32>
    %61 = tpu.matmul %60, %47, %cst_45 {dimension_numbers = #tpu.dot_dimension_numbers<[2], [1], [1], [2], [0, 0, 0, 1, 1, 2], [0], [0]>} : vector<8x16x16xf32>, vector<8x16x8xf32>, vector<8x16x8xf32> -> vector<8x16x8xf32>
    "tpu.trace_stop"() : () -> ()
    %62 = vector.shape_cast %61 : vector<8x16x8xf32> to vector<128x8xf32>
    %c0_46 = arith.constant 0 : index
    %c16_47 = arith.constant 16 : index
    %63 = vector.load %arg8[%c0_46, %c16_47] : memref<128x32xf32, #tpu.memory_space<vmem>>, vector<128x8xf32>
    tpu.vector_store %arg8[%c0_46, %c16_47], %62 {strides = array<i32>} : memref<128x32xf32, #tpu.memory_space<vmem>>, vector<128x8xf32>,
    %c0_48 = arith.constant 0 : index
    %c0_49 = arith.constant 0 : index
    %c24 = arith.constant 24 : index
    %64 = vector.load %arg7[%c0_48, %c0_49, %c24] : memref<8x16x96xf32, #tpu.memory_space<vmem>>, vector<8x16x8xf32>
    %c0_50 = arith.constant 0 : index
    %c0_51 = arith.constant 0 : index
    %c56 = arith.constant 56 : index
    %65 = vector.load %arg7[%c0_50, %c0_51, %c56] : memref<8x16x96xf32, #tpu.memory_space<vmem>>, vector<8x16x8xf32>
    %c0_52 = arith.constant 0 : index
    %c0_53 = arith.constant 0 : index
    %c88 = arith.constant 88 : index
    %66 = vector.load %arg7[%c0_52, %c0_53, %c88] : memref<8x16x96xf32, #tpu.memory_space<vmem>>, vector<8x16x8xf32>
    "tpu.trace_start"() <{level = 10 : i32, message = "tjd,tkd->tjk"}> : () -> ()
    %cst_54 = arith.constant dense<0.000000e+00> : vector<8x16x16xf32>
    %67 = tpu.matmul %64, %65, %cst_54 {dimension_numbers = #tpu.dot_dimension_numbers<[2], [2], [1], [1], [0, 0, 0, 1, 1, 1], [0], [0]>} : vector<8x16x8xf32>, vector<8x16x8xf32>, vector<8x16x16xf32> -> vector<8x16x16xf32>
    "tpu.trace_stop"() : () -> ()
    %cst_55 = arith.constant 0.353553385 : f32
    %68 = vector.broadcast %cst_55 : f32 to vector<8x16x16xf32>
    %69 = arith.mulf %67, %68 : vector<8x16x16xf32>
    %cst_56 = arith.constant dense<0xFF800000> : vector<8x16xf32>
    %70 = vector.multi_reduction <maximumf>, %69, %cst_56 [2] : vector<8x16x16xf32> to vector<8x16xf32>
    %71 = vector.shape_cast %70 : vector<8x16xf32> to vector<8x16x1xf32>
    %72 = vector.broadcast %71 : vector<8x16x1xf32> to vector<8x16x16xf32>
    %73 = arith.subf %69, %72 : vector<8x16x16xf32>
    %74 = math.exp %73 : vector<8x16x16xf32>
    %cst_57 = arith.constant dense<0.000000e+00> : vector<8x16xf32>
    %75 = vector.multi_reduction <add>, %74, %cst_57 [2] : vector<8x16x16xf32> to vector<8x16xf32>
    %76 = vector.shape_cast %75 : vector<8x16xf32> to vector<8x16x1xf32>
    %77 = tpu.reciprocal %76 {approx = true} : vector<8x16x1xf32> -> vector<8x16x1xf32>
    %78 = vector.broadcast %77 : vector<8x16x1xf32> to vector<8x16x16xf32>
    %79 = arith.mulf %74, %78 : vector<8x16x16xf32>
    "tpu.trace_start"() <{level = 10 : i32, message = "tjk,tkd->tjd"}> : () -> ()
    %cst_58 = arith.constant dense<0.000000e+00> : vector<8x16x8xf32>
    %80 = tpu.matmul %79, %66, %cst_58 {dimension_numbers = #tpu.dot_dimension_numbers<[2], [1], [1], [2], [0, 0, 0, 1, 1, 2], [0], [0]>} : vector<8x16x16xf32>, vector<8x16x8xf32>, vector<8x16x8xf32> -> vector<8x16x8xf32>
    "tpu.trace_stop"() : () -> ()
    %81 = vector.shape_cast %80 : vector<8x16x8xf32> to vector<128x8xf32>
    %c0_59 = arith.constant 0 : index
    %c24_60 = arith.constant 24 : index
    %82 = vector.load %arg8[%c0_59, %c24_60] : memref<128x32xf32, #tpu.memory_space<vmem>>, vector<128x8xf32>
    tpu.vector_store %arg8[%c0_59, %c24_60], %81 {strides = array<i32>} : memref<128x32xf32, #tpu.memory_space<vmem>>, vector<128x8xf32>,
    %c0_61 = arith.constant 0 : index
    %c0_62 = arith.constant 0 : index
    %83 = vector.load %arg8[%c0_61, %c0_62] : memref<128x32xf32, #tpu.memory_space<vmem>>, vector<128x32xf32>
    %c0_63 = arith.constant 0 : index
    %c0_64 = arith.constant 0 : index
    %84 = vector.load %arg4[%c0_63, %c0_64] : memref<32x32xf32, #tpu.memory_space<vmem>>, vector<32x32xf32>
    %cst_65 = arith.constant dense<0.000000e+00> : vector<128x32xf32>
    %85 = tpu.matmul %83, %84, %cst_65 {dimension_numbers = #tpu.dot_dimension_numbers<[1], [0], [0], [1], [0, 0, 1, 1], [], []>} : vector<128x32xf32>, vector<32x32xf32>, vector<128x32xf32> -> vector<128x32xf32>
    %c0_66 = arith.constant 0 : index
    %c0_67 = arith.constant 0 : index
    %86 = vector.load %arg5[%c0_66, %c0_67] : memref<1x32xf32, #tpu.memory_space<vmem>>, vector<1x32xf32>
    %87 = vector.broadcast %86 : vector<1x32xf32> to vector<128x32xf32>
    %88 = arith.addf %85, %87 : vector<128x32xf32>
    %89 = vector.shape_cast %88 : vector<128x32xf32> to vector<8x16x32xf32>
    %c0_68 = arith.constant 0 : index
    %c0_69 = arith.constant 0 : index
    %c0_70 = arith.constant 0 : index
    %c0_71 = arith.constant 0 : index
    %90 = vector.load %arg6[%c0_68, %c0_69, %c0_70, %c0_71] : memref<1x8x16x32xf32, #tpu.memory_space<vmem>>, vector<1x8x16x32xf32>
    %91 = vector.shape_cast %90 : vector<1x8x16x32xf32> to vector<8x16x32xf32>
    %92 = vector.shape_cast %89 : vector<8x16x32xf32> to vector<1x8x16x32xf32>
    tpu.vector_store %arg6[%c0_68, %c0_69, %c0_70, %c0_71], %92 {strides = array<i32>} : memref<1x8x16x32xf32, #tpu.memory_space<vmem>>, vector<1x8x16x32xf32>,
    return
  }
  func.func @transform_0(%arg0: i32, %arg1: i32) -> (i32, i32, i32, i32) {
    %c0_i32 = arith.constant 0 : i32
    %c0_i32_0 = arith.constant 0 : i32
    %c0_i32_1 = arith.constant 0 : i32
    return %arg0, %arg1, %c0_i32, %c0_i32_0 : i32, i32, i32, i32
  }
  func.func @transform_1(%arg0: i32, %arg1: i32) -> (i32, i32) {
    %c0_i32 = arith.constant 0 : i32
    %c0_i32_0 = arith.constant 0 : i32
    %c0_i32_1 = arith.constant 0 : i32
    return %c0_i32, %c0_i32_0 : i32, i32
  }
  func.func @transform_2(%arg0: i32, %arg1: i32) -> (i32, i32) {
    %c0_i32 = arith.constant 0 : i32
    %c0_i32_0 = arith.constant 0 : i32
    %c0_i32_1 = arith.constant 0 : i32
    return %c0_i32, %c0_i32_0 : i32, i32
  }
  func.func @transform_3(%arg0: i32, %arg1: i32) -> (i32, i32) {
    %c0_i32 = arith.constant 0 : i32
    %c0_i32_0 = arith.constant 0 : i32
    %c0_i32_1 = arith.constant 0 : i32
    return %c0_i32, %c0_i32_0 : i32, i32
  }
  func.func @transform_4(%arg0: i32, %arg1: i32) -> (i32, i32, i32, i32) {
    %c0_i32 = arith.constant 0 : i32
    %c0_i32_0 = arith.constant 0 : i32
    %c0_i32_1 = arith.constant 0 : i32
    return %arg0, %arg1, %c0_i32, %c0_i32_0 : i32, i32, i32, i32
  }
}

</mosaic_0001>

<llo_original>
// kernel: tpu_custom_call.1
$region0: #{tpu_custom_call.1}
  #allocation0 [shape = 'u32[]', space=smem, size = 0x4, offset = 0x4, fixed_abs, tag = 'smem constant byte address 0x4 - core index']
  #allocation1 [shape = 'u32[144,128]{1,0:T(1,128)}', space=vmem, size = 0x12000, scoped, tag = 'internal scratch']
  #allocation2 [shape = 'f32[8,16,96]{2,1,0:T(8,128)}', space=vmem, size = 0x10000, scoped, tag = 'scratch operand']
  #allocation3 [shape = 'f32[128,32]{1,0:T(8,128)}', space=vmem, size = 0x10000, scoped, tag = 'scratch operand']
  %s0 = inlined_call_operand.hbm [shape: f32[2,8,16,32], index: 0, kind: input, shape index: {}]
  %s1 = inlined_call_operand.hbm [shape: f32[32,96], index: 1, kind: input, shape index: {}]
  %s2 = inlined_call_operand.hbm [shape: f32[32,32], index: 2, kind: input, shape index: {}]
  %s3 = inlined_call_operand.vmem [shape: f32[1,32], index: 3, kind: input, shape index: {}]
  %s4 = inlined_call_operand.hbm [shape: f32[2,8,16,32], index: 4, kind: output, shape index: {}]
  %s5 = sld [smem:[#allocation0]]
  $region61: #{tpu_custom_call.1} parent=0
    _
  %s7 = ssub.s32 1, %s5
  %s8 = scalar_select 0, %s7, %s5
  $region1: #{tpu_custom_call.1} parent=0
    #allocation4 [shape = 'u8[131072]{0}', space=vmem, size = 0x20000, scoped, tag = 'input window, operand 0']
    #allocation5 [shape = 's32[2]{0}', space=sflag, size = 0x8, scoped, tag = 'scoped memory for tpu_custom_call.1']
    #allocation6 [shape = 's32[2]{0}', space=sflag, size = 0x8, scoped, tag = 'scoped memory for tpu_custom_call.1']
    #allocation7 [shape = 'u8[16384]{0}', space=vmem, size = 0x4000, scoped, tag = 'input window, operand 1, single buffered']
    #allocation8 [shape = 's32[1]{0}', space=sflag, size = 0x4, scoped, tag = 'scoped memory for tpu_custom_call.1']
    #allocation9 [shape = 'u8[16384]{0}', space=vmem, size = 0x4000, scoped, tag = 'input window, operand 2, single buffered']
    #allocation10 [shape = 'u8[131072]{0}', space=vmem, size = 0x20000, scoped, tag = 'output window, operand 0']
    %9 = vsyncpa [#allocation5], 0
    %s10 = scalar_lea.sflag [#allocation5], 1
    %11 = vsyncpa %s10, 0
    %12 = vsyncpa [#allocation8], 0
    %13 = vsyncpa [#allocation6], 0
    %s14 = scalar_lea.sflag [#allocation6], 1
    %15 = vsyncpa %s14, 0
    loop: start=0, step=1, limit=4
    $region2: #{tpu_custom_call.1} parent=1 // loop_pre_header
      _
    $region3: #{tpu_custom_call.1} parent=1 // loop_header
      %s17 = sphi 0, %s21
      %p18 = scmp.ge.s32.totalorder %s17, 4
      %s24 = sphi 0, %s36
      %s25 = sphi 0, %s32
      %s26 = sphi 0, %s24
      %s27 = sphi 0, %s25
      %s28 = sphi 0, %s26
      %s29 = sphi 0, %s27
      %s41 = sphi 0, %s43
      %s44 = sphi 0, %s41
      %s45 = sphi 0, %s44
      %s61 = sphi 0, %s45
      %s65 = sphi 0, %s65
      %s67 = sphi 0, %s65
      %s68 = sphi 0, %s67
      %s82 = sphi 0, %s68
      %s86 = sphi 0, %s86
      %s88 = sphi 0, %s86
      %s89 = sphi 0, %s88
      %s103 = sphi 0, %s89
      %s107 = sphi 0, %s107
      %s109 = sphi 0, %s107
      %s110 = sphi 0, %s109
      %s124 = sphi 0, %s110
      %s132 = sphi 0, %s134
      %s135 = sphi 0, %s132
      %s136 = sphi 0, %s135
      %s152 = sphi 0, %s136
    $region4: #{tpu_custom_call.1} parent=1 // loop_header_branch
      %20 = sbr.rel (%p18) target = $region8
    $region5: #{tpu_custom_call.1} parent=1 // loop_body
      %s22 = ssub.s32 %s17, 1
      %s23 = ssub.s32 %s17, 2
      %s30 = sadd.s32 1, %s25
      %p31 = scmp.ge.s32.totalorder %s30, 1
      %s32 = scalar_select %p31, 0, %s30
      %s33 = sadd.s32 1, %s24
      %s34 = scalar_select %p31, %s33, %s24
      %p35 = scmp.ge.s32.totalorder %s34, 2
      %s36 = scalar_select %p35, 0, %s34
      %s37 = ssub.s32 %s24, %s36
      %s38 = ssub.s32 %s25, %s32
      %s39 = sor.u32 %s37, %s38
      %p40 = scmp.eq.s32.totalorder %s39, 0
      %s42 = sadd.s32 %s41, 1
      %s43 = scalar_select %p40, %s41, %s42
      %p46 = pneg %p40
      %p47 = scmp.eq.s32.totalorder %s17, 1
      %p48 = por %p46, %p47
      %p49 = scmp.ne.s32.totalorder %s41, %s44
      %p50 = scmp.eq.s32.totalorder %s17, 0
      %p51 = por %p49, %p50
      %p52 = scmp.ne.s32.totalorder %s41, %s44
      %p53 = scmp.eq.s32.totalorder %s22, 1
      %p54 = por %p52, %p53
      %p55 = scmp.ne.s32.totalorder %s44, %s45
      %p56 = scmp.eq.s32.totalorder %s22, 0
      %p57 = por %p55, %p56
      %p58 = scmp.ne.s32.totalorder %s44, %s45
      %p59 = scmp.eq.s32.totalorder %s23, 1
      %p60 = por %p58, %p59
      %p62 = scmp.ne.s32.totalorder %s45, %s61
      %p63 = scmp.eq.s32.totalorder %s23, 0
      %p64 = por %p62, %p63
      %s66 = sadd.s32 %s65, 1
      %p69 = scmp.eq.s32.totalorder %s17, 1
      %p70 = scmp.ne.s32.totalorder %s65, %s67
      %p71 = scmp.eq.s32.totalorder %s17, 0
      %p72 = por %p70, %p71
      %p73 = scmp.ne.s32.totalorder %s65, %s67
      %p74 = scmp.eq.s32.totalorder %s22, 1
      %p75 = por %p73, %p74
      %p76 = scmp.ne.s32.totalorder %s67, %s68
      %p77 = scmp.eq.s32.totalorder %s22, 0
      %p78 = por %p76, %p77
      %p79 = scmp.ne.s32.totalorder %s67, %s68
      %p80 = scmp.eq.s32.totalorder %s23, 1
      %p81 = por %p79, %p80
      %p83 = scmp.ne.s32.totalorder %s68, %s82
      %p84 = scmp.eq.s32.totalorder %s23, 0
      %p85 = por %p83, %p84
      %s87 = sadd.s32 %s86, 1
      %p90 = scmp.eq.s32.totalorder %s17, 1
      %p91 = scmp.ne.s32.totalorder %s86, %s88
      %p92 = scmp.eq.s32.totalorder %s17, 0
      %p93 = por %p91, %p92
      %p94 = scmp.ne.s32.totalorder %s86, %s88
      %p95 = scmp.eq.s32.totalorder %s22, 1
      %p96 = por %p94, %p95
      %p97 = scmp.ne.s32.totalorder %s88, %s89
      %p98 = scmp.eq.s32.totalorder %s22, 0
      %p99 = por %p97, %p98
      %p100 = scmp.ne.s32.totalorder %s88, %s89
      %p101 = scmp.eq.s32.totalorder %s23, 1
      %p102 = por %p100, %p101
      %p104 = scmp.ne.s32.totalorder %s89, %s103
      %p105 = scmp.eq.s32.totalorder %s23, 0
      %p106 = por %p104, %p105
      %s108 = sadd.s32 %s107, 1
      %p111 = scmp.eq.s32.totalorder %s17, 1
      %p112 = scmp.ne.s32.totalorder %s107, %s109
      %p113 = scmp.eq.s32.totalorder %s17, 0
      %p114 = por %p112, %p113
      %p115 = scmp.ne.s32.totalorder %s107, %s109
      %p116 = scmp.eq.s32.totalorder %s22, 1
      %p117 = por %p115, %p116
      %p118 = scmp.ne.s32.totalorder %s109, %s110
      %p119 = scmp.eq.s32.totalorder %s22, 0
      %p120 = por %p118, %p119
      %p121 = scmp.ne.s32.totalorder %s109, %s110
      %p122 = scmp.eq.s32.totalorder %s23, 1
      %p123 = por %p121, %p122
      %p125 = scmp.ne.s32.totalorder %s110, %s124
      %p126 = scmp.eq.s32.totalorder %s23, 0
      %p127 = por %p125, %p126
      %s128 = ssub.s32 %s24, %s36
      %s129 = ssub.s32 %s25, %s32
      %s130 = sor.u32 %s128, %s129
      %p131 = scmp.eq.s32.totalorder %s130, 0
      %s133 = sadd.s32 %s132, 1
      %s134 = scalar_select %p131, %s132, %s133
      %p137 = pneg %p131
      %p138 = scmp.eq.s32.totalorder %s17, 1
      %p139 = por %p137, %p138
      %p140 = scmp.ne.s32.totalorder %s132, %s135
      %p141 = scmp.eq.s32.totalorder %s17, 0
      %p142 = por %p140, %p141
      %p143 = scmp.ne.s32.totalorder %s132, %s135
      %p144 = scmp.eq.s32.totalorder %s22, 1
      %p145 = por %p143, %p144
      %p146 = scmp.ne.s32.totalorder %s135, %s136
      %p147 = scmp.eq.s32.totalorder %s22, 0
      %p148 = por %p146, %p147
      %p149 = scmp.ne.s32.totalorder %s135, %s136
      %p150 = scmp.eq.s32.totalorder %s23, 1
      %p151 = por %p149, %p150
      %p153 = scmp.ne.s32.totalorder %s136, %s152
      %p154 = scmp.eq.s32.totalorder %s23, 0
      %p155 = por %p153, %p154
      %p156 = scmp.le.s32.totalorder 1, %s17
      %p157 = scmp.lt.s32.totalorder %s17, 3
      %p158 = pnand %p156, %p157
      %p159 = pneg %p158
      // Predicated region
      $region9: #{tpu_custom_call.1} parent=5 // pred_check
        _
      $region10: #{tpu_custom_call.1} parent=5 // pred_check_branch
        %161 = sbr.rel (%p158) target = $region12
      $region11: #{tpu_custom_call.1} parent=5 // pred_region
        %s162 = ssub.s32 %s17, 1
        // Predicated region
        $region13: #{tpu_custom_call.1} parent=11 // pred_check
          %p163 = pneg %p78
        $region14: #{tpu_custom_call.1} parent=11 // pred_check_branch
          %165 = sbr.rel (%p163) target = $region16
        $region15: #{tpu_custom_call.1} parent=11 // pred_region
          %s167 = ssub.s32 512, 512
          %168 = vsyncadd [#allocation8], %s167
          %s169 = sshll.u32 [#allocation7], 4
          %s170 = int_to_ptr.vmem [resolvable:$true] %s169
          %175 = dma.hbm_to_vmem [thread:$0]  %s1, 512, %s170, [#allocation8], 128, 128, 8
        $region16: #{tpu_custom_call.1} parent=11 // pred_fallthru
          _
        // Predicated region
        $region17: #{tpu_custom_call.1} parent=11 // pred_check
          %p176 = pneg %p99
        $region18: #{tpu_custom_call.1} parent=11 // pred_check_branch
          %178 = sbr.rel (%p176) target = $region20
        $region19: #{tpu_custom_call.1} parent=11 // pred_region
          %s180 = ssub.s32 512, 512
          %181 = vsyncadd [#allocation8], %s180
          %s182 = sshll.u32 [#allocation9], 4
          %s183 = int_to_ptr.vmem [resolvable:$true] %s182
          %188 = dma.hbm_to_vmem [thread:$0]  %s2, 512, %s183, [#allocation8], 128, 128, 8
        $region20: #{tpu_custom_call.1} parent=11 // pred_fallthru
          _
        // Predicated region
        $region21: #{tpu_custom_call.1} parent=11 // pred_check
          %p189 = pneg %p120
        $region22: #{tpu_custom_call.1} parent=11 // pred_check_branch
          %191 = sbr.rel (%p189) target = $region24
        $region23: #{tpu_custom_call.1} parent=11 // pred_region
          _
        $region24: #{tpu_custom_call.1} parent=11 // pred_fallthru
          _
      $region12: #{tpu_custom_call.1} parent=5 // pred_fallthru
        _
      %p192 = scmp.lt.s32.totalorder %s17, 2
      // Predicated region
      $region25: #{tpu_custom_call.1} parent=5 // pred_check
        %p193 = pneg %p192
      $region26: #{tpu_custom_call.1} parent=5 // pred_check_branch
        %195 = sbr.rel (%p193) target = $region28
      $region27: #{tpu_custom_call.1} parent=5 // pred_region
        // Predicated region
        $region29: #{tpu_custom_call.1} parent=27 // pred_check
          %p196 = pneg %p51
        $region30: #{tpu_custom_call.1} parent=27 // pred_check_branch
          %198 = sbr.rel (%p196) target = $region32
        $region31: #{tpu_custom_call.1} parent=27 // pred_region
          %s199 = sand.u32 %s41, 1
          %s200 = scalar_lea.sflag [#allocation5], %s199
          %s201 = sand.u32 %s41, 1
          %s202 = smul.addr %s201, 128
          %s203 = scalar_lea.vmem [#allocation4], %s202
          %s204 = smul.u32 8, %s25
          %s206 = ssub.s32 2048, 2048
          %207 = vsyncadd %s200, %s206
          %s208 = smul.addr %s204, 2
          %s209 = smul.addr %s24, 16
          %s210 = sadd.s32 %s208, %s209
          %s211 = smul.addr %s210, 128
          %s212 = scalar_lea.hbm %s0, %s211
          %s213 = sshll.u32 %s203, 4
          %s214 = int_to_ptr.vmem [resolvable:$true] %s213
          %219 = dma.hbm_to_vmem [thread:$0]  %s212, 2048, %s214, %s200, 128, 128, 8
        $region32: #{tpu_custom_call.1} parent=27 // pred_fallthru
          _
      $region28: #{tpu_custom_call.1} parent=5 // pred_fallthru
        _
      %p220 = scmp.le.s32.totalorder 1, %s17
      %p221 = scmp.lt.s32.totalorder %s17, 3
      %p222 = pnand %p220, %p221
      %p223 = pneg %p222
      // Predicated region
      $region33: #{tpu_custom_call.1} parent=5 // pred_check
        _
      $region34: #{tpu_custom_call.1} parent=5 // pred_check_branch
        %225 = sbr.rel (%p222) target = $region36
      $region35: #{tpu_custom_call.1} parent=5 // pred_region
        %s226 = ssub.s32 %s17, 1
        %s227 = sand.u32 %s44, 1
        %s228 = scalar_lea.sflag [#allocation5], %s227
        %s229 = sand.u32 %s44, 1
        %s230 = smul.addr %s229, 128
        %s231 = scalar_lea.vmem [#allocation4], %s230
        // Predicated region
        $region37: #{tpu_custom_call.1} parent=35 // pred_check
          %p232 = pneg %p57
        $region38: #{tpu_custom_call.1} parent=35 // pred_check_branch
          %234 = sbr.rel (%p232) target = $region40
        $region39: #{tpu_custom_call.1} parent=35 // pred_region
          %235 = dma.done %s228, 2048
        $region40: #{tpu_custom_call.1} parent=35 // pred_fallthru
          _
        // Predicated region
        $region41: #{tpu_custom_call.1} parent=35 // pred_check
          %p236 = pneg %p78
        $region42: #{tpu_custom_call.1} parent=35 // pred_check_branch
          %238 = sbr.rel (%p236) target = $region44
        $region43: #{tpu_custom_call.1} parent=35 // pred_region
          %239 = dma.done [#allocation8], 512
        $region44: #{tpu_custom_call.1} parent=35 // pred_fallthru
          _
        // Predicated region
        $region45: #{tpu_custom_call.1} parent=35 // pred_check
          %p240 = pneg %p99
        $region46: #{tpu_custom_call.1} parent=35 // pred_check_branch
          %242 = sbr.rel (%p240) target = $region48
        $region47: #{tpu_custom_call.1} parent=35 // pred_region
          %243 = dma.done [#allocation8], 512
        $region48: #{tpu_custom_call.1} parent=35 // pred_fallthru
          _
        %s244 = sand.u32 %s44, 1
        %s245 = scalar_lea.sflag [#allocation5], %s244
        %s246 = sand.u32 %s44, 1
        %s247 = smul.addr %s246, 128
        %s248 = scalar_lea.vmem [#allocation4], %s247
        %p249 = pneg %p57
        %p250 = pneg %p54
        %p251 = pneg %p78
        %p252 = pneg %p75
        %p253 = pneg %p99
        %p254 = pneg %p96
        %p255 = pneg %p120
        %p256 = pneg %p117
        %p257 = pneg %p148
        %p258 = pneg %p145
        %s259 = sand.u32 %s135, 1
        %s260 = scalar_lea.sflag [#allocation6], %s259
        %s261 = sand.u32 %s135, 1
        %s262 = smul.addr %s261, 128
        %s263 = scalar_lea.vmem [#allocation10], %s262
        %s264 = smul.u32 8, %s27
        %s265 = smul.u32 8, %s27
        %v266 = vld [vmem:[%s231] sm:$0xff]
        %v267 = vld [vmem:[%s231 + $0x8] sm:$0xff]
        %v268 = vld [vmem:[%s231 + $0x10] sm:$0xff]
        %v269 = vld [vmem:[%s231 + $0x18] sm:$0xff]
        %v270 = vld [vmem:[%s231 + $0x20] sm:$0xff]
        %v271 = vld [vmem:[%s231 + $0x28] sm:$0xff]
        %v272 = vld [vmem:[%s231 + $0x30] sm:$0xff]
        %v273 = vld [vmem:[%s231 + $0x38] sm:$0xff]
        %v274 = vld [vmem:[%s231 + $0x40] sm:$0xff]
        %v275 = vld [vmem:[%s231 + $0x48] sm:$0xff]
        %v276 = vld [vmem:[%s231 + $0x50] sm:$0xff]
        %v277 = vld [vmem:[%s231 + $0x58] sm:$0xff]
        %v278 = vld [vmem:[%s231 + $0x60] sm:$0xff]
        %v279 = vld [vmem:[%s231 + $0x68] sm:$0xff]
        %v280 = vld [vmem:[%s231 + $0x70] sm:$0xff]
        %v281 = vld [vmem:[%s231 + $0x78] sm:$0xff]
        %v282 = vld [vmem:[#allocation7] sm:$0xff]
        %v283 = vld [vmem:[#allocation7 + $0x8] sm:$0xff]
        %v284 = vld [vmem:[#allocation7 + $0x10] sm:$0xff]
        %v285 = vld [vmem:[#allocation7 + $0x18] sm:$0xff]
        %vm286 = vcmask 261120
        %v288 = vsel %vm286, %v266, 0
        %v291 = vsel %vm286, %v267, 0
        %v294 = vsel %vm286, %v268, 0
        %v297 = vsel %vm286, %v269, 0
        %v300 = vsel %vm286, %v270, 0
        %v303 = vsel %vm286, %v271, 0
        %v306 = vsel %vm286, %v272, 0
        %v309 = vsel %vm286, %v273, 0
        %v312 = vsel %vm286, %v274, 0
        %v315 = vsel %vm286, %v275, 0
        %v318 = vsel %vm286, %v276, 0
        %v321 = vsel %vm286, %v277, 0
        %v324 = vsel %vm286, %v278, 0
        %v327 = vsel %vm286, %v279, 0
        %v330 = vsel %vm286, %v280, 0
        %v333 = vsel %vm286, %v281, 0
        %335 = vmatprep.subr.mxu0 0.0
        %336 = vmatpush1.msra.mxu0 %v282
        %337 = vmatprep.subr.mxu0 0.0
        %338 = vmatpush1.msra.mxu0 %v283
        %339 = vmatprep.subr.mxu0 0.0
        %340 = vmatpush1.msra.mxu0 %v284
        %341 = vmatprep.subr.mxu0 0.0
        %342 = vmatpush1.msra.mxu0 %v285
        %343 = vmatprep.subr.mxu0 0.0
        %344 = vmatpush1.msra.mxu0 0.0
        %345 = vmatprep.subr.mxu0 0.0
        %346 = vmatpush1.msra.mxu0 0.0
        %347 = vmatprep.subr.mxu0 0.0
        %348 = vmatpush1.msra.mxu0 0.0
        %349 = vmatprep.subr.mxu0 0.0
        %350 = vmatpush1.msra.mxu0 0.0
        %351 = vmatprep.subr.mxu0 0.0
        %352 = vmatpush1.msra.mxu0 0.0
        %353 = vmatprep.subr.mxu0 0.0
        %354 = vmatpush1.msra.mxu0 0.0
        %355 = vmatprep.subr.mxu0 0.0
        %356 = vmatpush1.msra.mxu0 0.0
        %357 = vmatprep.subr.mxu0 0.0
        %358 = vmatpush1.msra.mxu0 0.0
        %359 = vmatprep.subr.mxu0 0.0
        %360 = vmatpush1.msra.mxu0 0.0
        %361 = vmatprep.subr.mxu0 0.0
        %362 = vmatpush1.msra.mxu0 0.0
        %363 = vmatprep.subr.mxu0 0.0
        %364 = vmatpush1.msra.mxu0 0.0
        %365 = vmatprep.subr.mxu0 0.0
        %366 = vmatpush1.msra.mxu0 0.0
        %367 = vmatprep.subr.mxu0 0.0
        %368 = vmatpush1.msra.mxu0 0.0
        %369 = vmatprep.subr.mxu0 0.0
        %370 = vmatpush1.msra.mxu0 0.0
        %371 = vmatprep.subr.mxu0 0.0
        %372 = vmatpush1.msra.mxu0 0.0
        %373 = vmatprep.subr.mxu0 0.0
        %374 = vmatpush1.msra.mxu0 0.0
        %375 = vmatprep.subr.mxu0 0.0
        %376 = vmatpush1.msra.mxu0 0.0
        %377 = vmatprep.subr.mxu0 0.0
        %378 = vmatpush1.msra.mxu0 0.0
        %379 = vmatprep.subr.mxu0 0.0
        %380 = vmatpush1.msra.mxu0 0.0
        %381 = vmatprep.subr.mxu0 0.0
        %382 = vmatpush1.msra.mxu0 0.0
        %383 = vmatprep.subr.mxu0 0.0
        %384 = vmatpush1.msra.mxu0 0.0
        %385 = vmatprep.subr.mxu0 0.0
        %386 = vmatpush1.msra.mxu0 0.0
        %387 = vmatprep.subr.mxu0 0.0
        %388 = vmatpush1.msra.mxu0 0.0
        %389 = vmatprep.subr.mxu0 0.0
        %390 = vmatpush1.msra.mxu0 0.0
        %391 = vmatprep.subr.mxu0 0.0
        %392 = vmatpush1.msra.mxu0 0.0
        %393 = vmatprep.subr.mxu0 0.0
        %394 = vmatpush1.msra.mxu0 0.0
        %395 = vmatprep.subr.mxu0 0.0
        %396 = vmatpush1.msra.mxu0 0.0
        %397 = vmatprep.subr.mxu0 0.0
        %398 = vmatpush1.msra.mxu0 0.0
        %399 = vmatprep.mubr.f32.mxu0 0.0
        %400 = vmatmul.mubr.f32.gmra.mrb[0].mxu0 %v288
        %v401 = vpop.f32.mrb[0].mxu0
        %v402 = vadd.f32 0.0, %v401
        %v403 = vpop.f32.mrb[0].mxu0
        %404 = vmatprep.mubr.f32.mxu0 0.0
        %405 = vmatmul.mubr.f32.gmra.mrb[0].mxu0 %v291
        %v406 = vpop.f32.mrb[0].mxu0
        %v407 = vadd.f32 0.0, %v406
        %v408 = vpop.f32.mrb[0].mxu0
        %409 = vmatprep.mubr.f32.mxu0 0.0
        %410 = vmatmul.mubr.f32.gmra.mrb[0].mxu0 %v294
        %v411 = vpop.f32.mrb[0].mxu0
        %v412 = vadd.f32 0.0, %v411
        %v413 = vpop.f32.mrb[0].mxu0
        %414 = vmatprep.mubr.f32.mxu0 0.0
        %415 = vmatmul.mubr.f32.gmra.mrb[0].mxu0 %v297
        %v416 = vpop.f32.mrb[0].mxu0
        %v417 = vadd.f32 0.0, %v416
        %v418 = vpop.f32.mrb[0].mxu0
        %419 = vmatprep.mubr.f32.mxu0 0.0
        %420 = vmatmul.mubr.f32.gmra.mrb[0].mxu0 %v300
        %v421 = vpop.f32.mrb[0].mxu0
        %v422 = vadd.f32 0.0, %v421
        %v423 = vpop.f32.mrb[0].mxu0
        %424 = vmatprep.mubr.f32.mxu0 0.0
        %425 = vmatmul.mubr.f32.gmra.mrb[0].mxu0 %v303
        %v426 = vpop.f32.mrb[0].mxu0
        %v427 = vadd.f32 0.0, %v426
        %v428 = vpop.f32.mrb[0].mxu0
        %429 = vmatprep.mubr.f32.mxu0 0.0
        %430 = vmatmul.mubr.f32.gmra.mrb[0].mxu0 %v306
        %v431 = vpop.f32.mrb[0].mxu0
        %v432 = vadd.f32 0.0, %v431
        %v433 = vpop.f32.mrb[0].mxu0
        %434 = vmatprep.mubr.f32.mxu0 0.0
        %435 = vmatmul.mubr.f32.gmra.mrb[0].mxu0 %v309
        %v436 = vpop.f32.mrb[0].mxu0
        %v437 = vadd.f32 0.0, %v436
        %v438 = vpop.f32.mrb[0].mxu0
        %439 = vmatprep.mubr.f32.mxu0 0.0
        %440 = vmatmul.mubr.f32.gmra.mrb[0].mxu0 %v312
        %v441 = vpop.f32.mrb[0].mxu0
        %v442 = vadd.f32 0.0, %v441
        %v443 = vpop.f32.mrb[0].mxu0
        %444 = vmatprep.mubr.f32.mxu0 0.0
        %445 = vmatmul.mubr.f32.gmra.mrb[0].mxu0 %v315
        %v446 = vpop.f32.mrb[0].mxu0
        %v447 = vadd.f32 0.0, %v446
        %v448 = vpop.f32.mrb[0].mxu0
        %449 = vmatprep.mubr.f32.mxu0 0.0
        %450 = vmatmul.mubr.f32.gmra.mrb[0].mxu0 %v318
        %v451 = vpop.f32.mrb[0].mxu0
        %v452 = vadd.f32 0.0, %v451
        %v453 = vpop.f32.mrb[0].mxu0
        %454 = vmatprep.mubr.f32.mxu0 0.0
        %455 = vmatmul.mubr.f32.gmra.mrb[0].mxu0 %v321
        %v456 = vpop.f32.mrb[0].mxu0
        %v457 = vadd.f32 0.0, %v456
        %v458 = vpop.f32.mrb[0].mxu0
        %459 = vmatprep.mubr.f32.mxu0 0.0
        %460 = vmatmul.mubr.f32.gmra.mrb[0].mxu0 %v324
        %v461 = vpop.f32.mrb[0].mxu0
        %v462 = vadd.f32 0.0, %v461
        %v463 = vpop.f32.mrb[0].mxu0
        %464 = vmatprep.mubr.f32.mxu0 0.0
        %465 = vmatmul.mubr.f32.gmra.mrb[0].mxu0 %v327
        %v466 = vpop.f32.mrb[0].mxu0
        %v467 = vadd.f32 0.0, %v466
        %v468 = vpop.f32.mrb[0].mxu0
        %469 = vmatprep.mubr.f32.mxu0 0.0
        %470 = vmatmul.mubr.f32.gmra.mrb[0].mxu0 %v330
        %v471 = vpop.f32.mrb[0].mxu0
        %v472 = vadd.f32 0.0, %v471
        %v473 = vpop.f32.mrb[0].mxu0
        %474 = vmatprep.mubr.f32.mxu0 0.0
        %475 = vmatmul.mubr.f32.gmra.mrb[0].mxu0 %v333
        %v476 = vpop.f32.mrb[0].mxu0
        %v477 = vadd.f32 0.0, %v476
        %v478 = vpop.f32.mrb[0].mxu0
        %479 = vdwg.mxu0
        %vm480 = vcmask 785408
        %481 = vst.msk [vmem:[#allocation2] sm:$0xff] %vm480, %v402
        %482 = vst.msk [vmem:[#allocation2 + $0x8] sm:$0xff] %vm480, %v407
        %483 = vst.msk [vmem:[#allocation2 + $0x10] sm:$0xff] %vm480, %v412
        %484 = vst.msk [vmem:[#allocation2 + $0x18] sm:$0xff] %vm480, %v417
        %485 = vst.msk [vmem:[#allocation2 + $0x20] sm:$0xff] %vm480, %v422
        %486 = vst.msk [vmem:[#allocation2 + $0x28] sm:$0xff] %vm480, %v427
        %487 = vst.msk [vmem:[#allocation2 + $0x30] sm:$0xff] %vm480, %v432
        %488 = vst.msk [vmem:[#allocation2 + $0x38] sm:$0xff] %vm480, %v437
        %489 = vst.msk [vmem:[#allocation2 + $0x40] sm:$0xff] %vm480, %v442
        %490 = vst.msk [vmem:[#allocation2 + $0x48] sm:$0xff] %vm480, %v447
        %491 = vst.msk [vmem:[#allocation2 + $0x50] sm:$0xff] %vm480, %v452
        %492 = vst.msk [vmem:[#allocation2 + $0x58] sm:$0xff] %vm480, %v457
        %493 = vst.msk [vmem:[#allocation2 + $0x60] sm:$0xff] %vm480, %v462
        %494 = vst.msk [vmem:[#allocation2 + $0x68] sm:$0xff] %vm480, %v467
        %495 = vst.msk [vmem:[#allocation2 + $0x70] sm:$0xff] %vm480, %v472
        %496 = vst.msk [vmem:[#allocation2 + $0x78] sm:$0xff] %vm480, %v477
        %v497 = vld [vmem:[#allocation2] sm:$0xff]
        %v498 = vld [vmem:[#allocation2 + $0x8] sm:$0xff]
        %v499 = vld [vmem:[#allocation2 + $0x10] sm:$0xff]
        %v500 = vld [vmem:[#allocation2 + $0x18] sm:$0xff]
        %v501 = vld [vmem:[#allocation2 + $0x20] sm:$0xff]
        %v502 = vld [vmem:[#allocation2 + $0x28] sm:$0xff]
        %v503 = vld [vmem:[#allocation2 + $0x30] sm:$0xff]
        %v504 = vld [vmem:[#allocation2 + $0x38] sm:$0xff]
        %v505 = vld [vmem:[#allocation2 + $0x40] sm:$0xff]
        %v506 = vld [vmem:[#allocation2 + $0x48] sm:$0xff]
        %v507 = vld [vmem:[#allocation2 + $0x50] sm:$0xff]
        %v508 = vld [vmem:[#allocation2 + $0x58] sm:$0xff]
        %v509 = vld [vmem:[#allocation2 + $0x60] sm:$0xff]
        %v510 = vld [vmem:[#allocation2 + $0x68] sm:$0xff]
        %v511 = vld [vmem:[#allocation2 + $0x70] sm:$0xff]
        %v512 = vld [vmem:[#allocation2 + $0x78] sm:$0xff]
        %515 = vrot.lane.b32.xlu0 %v497, 96
        %v516 = vpop.permute.xlu0 %515
        %517 = vrot.lane.b32.xlu0 %v498, 96
        %v518 = vpop.permute.xlu0 %517
        %vm519 = vcmask 64512
        %v520 = vsel %vm519, %v497, 0
        %v522 = vsel %vm519, %v498, 0
        %v524 = vsel %vm519, %v516, 0
        %v526 = vsel %vm519, %v518, 0
        %528 = vmatprep.subr.mxu0 0.0
        %529 = vmatpush1.xpose.msra.mxu0 %v524
        %530 = vmatprep.subr.mxu0 0.0
        %531 = vmatpush1.xpose.msra.mxu0 %v526
        %532 = vmatprep.subr.mxu0 0.0
        %533 = vmatpush1.xpose.msra.mxu0 0.0
        %534 = vmatprep.subr.mxu0 0.0
        %535 = vmatpush1.xpose.msra.mxu0 0.0
        %536 = vmatprep.subr.mxu0 0.0
        %537 = vmatpush1.xpose.msra.mxu0 0.0
        %538 = vmatprep.subr.mxu0 0.0
        %539 = vmatpush1.xpose.msra.mxu0 0.0
        %540 = vmatprep.subr.mxu0 0.0
        %541 = vmatpush1.xpose.msra.mxu0 0.0
        %542 = vmatprep.subr.mxu0 0.0
        %543 = vmatpush1.xpose.msra.mxu0 0.0
        %544 = vmatprep.subr.mxu0 0.0
        %545 = vmatpush1.xpose.msra.mxu0 0.0
        %546 = vmatprep.subr.mxu0 0.0
        %547 = vmatpush1.xpose.msra.mxu0 0.0
        %548 = vmatprep.subr.mxu0 0.0
        %549 = vmatpush1.xpose.msra.mxu0 0.0
        %550 = vmatprep.subr.mxu0 0.0
        %551 = vmatpush1.xpose.msra.mxu0 0.0
        %552 = vmatprep.subr.mxu0 0.0
        %553 = vmatpush1.xpose.msra.mxu0 0.0
        %554 = vmatprep.subr.mxu0 0.0
        %555 = vmatpush1.xpose.msra.mxu0 0.0
        %556 = vmatprep.subr.mxu0 0.0
        %557 = vmatpush1.xpose.msra.mxu0 0.0
        %558 = vmatprep.subr.mxu0 0.0
        %559 = vmatpush1.xpose.msra.mxu0 0.0
        %560 = vmatprep.subr.mxu0 0.0
        %561 = vmatpush1.xpose.msra.mxu0 0.0
        %562 = vmatprep.subr.mxu0 0.0
        %563 = vmatpush1.xpose.msra.mxu0 0.0
        %564 = vmatprep.subr.mxu0 0.0
        %565 = vmatpush1.xpose.msra.mxu0 0.0
        %566 = vmatprep.subr.mxu0 0.0
        %567 = vmatpush1.xpose.msra.mxu0 0.0
        %568 = vmatprep.subr.mxu0 0.0
        %569 = vmatpush1.xpose.msra.mxu0 0.0
        %570 = vmatprep.subr.mxu0 0.0
        %571 = vmatpush1.xpose.msra.mxu0 0.0
        %572 = vmatprep.subr.mxu0 0.0
        %573 = vmatpush1.xpose.msra.mxu0 0.0
        %574 = vmatprep.subr.mxu0 0.0
        %575 = vmatpush1.xpose.msra.mxu0 0.0
        %576 = vmatprep.subr.mxu0 0.0
        %577 = vmatpush1.xpose.msra.mxu0 0.0
        %578 = vmatprep.subr.mxu0 0.0
        %579 = vmatpush1.xpose.msra.mxu0 0.0
        %580 = vmatprep.subr.mxu0 0.0
        %581 = vmatpush1.xpose.msra.mxu0 0.0
        %582 = vmatprep.subr.mxu0 0.0
        %583 = vmatpush1.xpose.msra.mxu0 0.0
        %584 = vmatprep.subr.mxu0 0.0
        %585 = vmatpush1.xpose.msra.mxu0 0.0
        %586 = vmatprep.subr.mxu0 0.0
        %587 = vmatpush1.xpose.msra.mxu0 0.0
        %588 = vmatprep.subr.mxu0 0.0
        %589 = vmatpush1.xpose.msra.mxu0 0.0
        %590 = vmatprep.subr.mxu0 0.0
        %591 = vmatpush1.xpose.msra.mxu0 0.0
        %592 = vmatprep.mubr.f32.mxu0 0.0
        %593 = vmatmul.mubr.f32.gmra.mrb[0].mxu0 %v520
        %v594 = vpop.f32.mrb[0].mxu0
        %v595 = vadd.f32 0.0, %v594
        %v596 = vpop.f32.mrb[0].mxu0
        %597 = vmatprep.mubr.f32.mxu0 0.0
        %598 = vmatmul.mubr.f32.gmra.mrb[0].mxu0 %v522
        %v599 = vpop.f32.mrb[0].mxu0
        %v600 = vadd.f32 0.0, %v599
        %v601 = vpop.f32.mrb[0].mxu0
        %602 = vdwg.mxu0
        %605 = vrot.lane.b32.xlu0 %v499, 96
        %v606 = vpop.permute.xlu0 %605
        %607 = vrot.lane.b32.xlu0 %v500, 96
        %v608 = vpop.permute.xlu0 %607
        %v609 = vsel %vm519, %v499, 0
        %v611 = vsel %vm519, %v500, 0
        %v613 = vsel %vm519, %v606, 0
        %v615 = vsel %vm519, %v608, 0
        %617 = vmatprep.subr.mxu0 0.0
        %618 = vmatpush1.xpose.msra.mxu0 %v613
        %619 = vmatprep.subr.mxu0 0.0
        %620 = vmatpush1.xpose.msra.mxu0 %v615
        %621 = vmatprep.subr.mxu0 0.0
        %622 = vmatpush1.xpose.msra.mxu0 0.0
        %623 = vmatprep.subr.mxu0 0.0
        %624 = vmatpush1.xpose.msra.mxu0 0.0
        %625 = vmatprep.subr.mxu0 0.0
        %626 = vmatpush1.xpose.msra.mxu0 0.0
        %627 = vmatprep.subr.mxu0 0.0
        %628 = vmatpush1.xpose.msra.mxu0 0.0
        %629 = vmatprep.subr.mxu0 0.0
        %630 = vmatpush1.xpose.msra.mxu0 0.0
        %631 = vmatprep.subr.mxu0 0.0
        %632 = vmatpush1.xpose.msra.mxu0 0.0
        %633 = vmatprep.subr.mxu0 0.0
        %634 = vmatpush1.xpose.msra.mxu0 0.0
        %635 = vmatprep.subr.mxu0 0.0
        %636 = vmatpush1.xpose.msra.mxu0 0.0
        %637 = vmatprep.subr.mxu0 0.0
        %638 = vmatpush1.xpose.msra.mxu0 0.0
        %639 = vmatprep.subr.mxu0 0.0
        %640 = vmatpush1.xpose.msra.mxu0 0.0
        %641 = vmatprep.subr.mxu0 0.0
        %642 = vmatpush1.xpose.msra.mxu0 0.0
        %643 = vmatprep.subr.mxu0 0.0
        %644 = vmatpush1.xpose.msra.mxu0 0.0
        %645 = vmatprep.subr.mxu0 0.0
        %646 = vmatpush1.xpose.msra.mxu0 0.0
        %647 = vmatprep.subr.mxu0 0.0
        %648 = vmatpush1.xpose.msra.mxu0 0.0
        %649 = vmatprep.subr.mxu0 0.0
        %650 = vmatpush1.xpose.msra.mxu0 0.0
        %651 = vmatprep.subr.mxu0 0.0
        %652 = vmatpush1.xpose.msra.mxu0 0.0
        %653 = vmatprep.subr.mxu0 0.0
        %654 = vmatpush1.xpose.msra.mxu0 0.0
        %655 = vmatprep.subr.mxu0 0.0
        %656 = vmatpush1.xpose.msra.mxu0 0.0
        %657 = vmatprep.subr.mxu0 0.0
        %658 = vmatpush1.xpose.msra.mxu0 0.0
        %659 = vmatprep.subr.mxu0 0.0
        %660 = vmatpush1.xpose.msra.mxu0 0.0
        %661 = vmatprep.subr.mxu0 0.0
        %662 = vmatpush1.xpose.msra.mxu0 0.0
        %663 = vmatprep.subr.mxu0 0.0
        %664 = vmatpush1.xpose.msra.mxu0 0.0
        %665 = vmatprep.subr.mxu0 0.0
        %666 = vmatpush1.xpose.msra.mxu0 0.0
        %667 = vmatprep.subr.mxu0 0.0
        %668 = vmatpush1.xpose.msra.mxu0 0.0
        %669 = vmatprep.subr.mxu0 0.0
        %670 = vmatpush1.xpose.msra.mxu0 0.0
        %671 = vmatprep.subr.mxu0 0.0
        %672 = vmatpush1.xpose.msra.mxu0 0.0
        %673 = vmatprep.subr.mxu0 0.0
        %674 = vmatpush1.xpose.msra.mxu0 0.0
        %675 = vmatprep.subr.mxu0 0.0
        %676 = vmatpush1.xpose.msra.mxu0 0.0
        %677 = vmatprep.subr.mxu0 0.0
        %678 = vmatpush1.xpose.msra.mxu0 0.0
        %679 = vmatprep.subr.mxu0 0.0
        %680 = vmatpush1.xpose.msra.mxu0 0.0
        %681 = vmatprep.mubr.f32.mxu0 0.0
        %682 = vmatmul.mubr.f32.gmra.mrb[0].mxu0 %v609
        %v683 = vpop.f32.mrb[0].mxu0
        %v684 = vadd.f32 0.0, %v683
        %v685 = vpop.f32.mrb[0].mxu0
        %686 = vmatprep.mubr.f32.mxu0 0.0
        %687 = vmatmul.mubr.f32.gmra.mrb[0].mxu0 %v611
        %v688 = vpop.f32.mrb[0].mxu0
        %v689 = vadd.f32 0.0, %v688
        %v690 = vpop.f32.mrb[0].mxu0
        %691 = vdwg.mxu0
        %694 = vrot.lane.b32.xlu0 %v501, 96
        %v695 = vpop.permute.xlu0 %694
        %696 = vrot.lane.b32.xlu0 %v502, 96
        %v697 = vpop.permute.xlu0 %696
        %v698 = vsel %vm519, %v501, 0
        %v700 = vsel %vm519, %v502, 0
        %v702 = vsel %vm519, %v695, 0
        %v704 = vsel %vm519, %v697, 0
        %706 = vmatprep.subr.mxu0 0.0
        %707 = vmatpush1.xpose.msra.mxu0 %v702
        %708 = vmatprep.subr.mxu0 0.0
        %709 = vmatpush1.xpose.msra.mxu0 %v704
        %710 = vmatprep.subr.mxu0 0.0
        %711 = vmatpush1.xpose.msra.mxu0 0.0
        %712 = vmatprep.subr.mxu0 0.0
        %713 = vmatpush1.xpose.msra.mxu0 0.0
        %714 = vmatprep.subr.mxu0 0.0
        %715 = vmatpush1.xpose.msra.mxu0 0.0
        %716 = vmatprep.subr.mxu0 0.0
        %717 = vmatpush1.xpose.msra.mxu0 0.0
        %718 = vmatprep.subr.mxu0 0.0
        %719 = vmatpush1.xpose.msra.mxu0 0.0
        %720 = vmatprep.subr.mxu0 0.0
        %721 = vmatpush1.xpose.msra.mxu0 0.0
        %722 = vmatprep.subr.mxu0 0.0
        %723 = vmatpush1.xpose.msra.mxu0 0.0
        %724 = vmatprep.subr.mxu0 0.0
        %725 = vmatpush1.xpose.msra.mxu0 0.0
        %726 = vmatprep.subr.mxu0 0.0
        %727 = vmatpush1.xpose.msra.mxu0 0.0
        %728 = vmatprep.subr.mxu0 0.0
        %729 = vmatpush1.xpose.msra.mxu0 0.0
        %730 = vmatprep.subr.mxu0 0.0
        %731 = vmatpush1.xpose.msra.mxu0 0.0
        %732 = vmatprep.subr.mxu0 0.0
        %733 = vmatpush1.xpose.msra.mxu0 0.0
        %734 = vmatprep.subr.mxu0 0.0
        %735 = vmatpush1.xpose.msra.mxu0 0.0
        %736 = vmatprep.subr.mxu0 0.0
        %737 = vmatpush1.xpose.msra.mxu0 0.0
        %738 = vmatprep.subr.mxu0 0.0
        %739 = vmatpush1.xpose.msra.mxu0 0.0
        %740 = vmatprep.subr.mxu0 0.0
        %741 = vmatpush1.xpose.msra.mxu0 0.0
        %742 = vmatprep.subr.mxu0 0.0
        %743 = vmatpush1.xpose.msra.mxu0 0.0
        %744 = vmatprep.subr.mxu0 0.0
        %745 = vmatpush1.xpose.msra.mxu0 0.0
        %746 = vmatprep.subr.mxu0 0.0
        %747 = vmatpush1.xpose.msra.mxu0 0.0
        %748 = vmatprep.subr.mxu0 0.0
        %749 = vmatpush1.xpose.msra.mxu0 0.0
        %750 = vmatprep.subr.mxu0 0.0
        %751 = vmatpush1.xpose.msra.mxu0 0.0
        %752 = vmatprep.subr.mxu0 0.0
        %753 = vmatpush1.xpose.msra.mxu0 0.0
        %754 = vmatprep.subr.mxu0 0.0
        %755 = vmatpush1.xpose.msra.mxu0 0.0
        %756 = vmatprep.subr.mxu0 0.0
        %757 = vmatpush1.xpose.msra.mxu0 0.0
        %758 = vmatprep.subr.mxu0 0.0
        %759 = vmatpush1.xpose.msra.mxu0 0.0
        %760 = vmatprep.subr.mxu0 0.0
        %761 = vmatpush1.xpose.msra.mxu0 0.0
        %762 = vmatprep.subr.mxu0 0.0
        %763 = vmatpush1.xpose.msra.mxu0 0.0
        %764 = vmatprep.subr.mxu0 0.0
        %765 = vmatpush1.xpose.msra.mxu0 0.0
        %766 = vmatprep.subr.mxu0 0.0
        %767 = vmatpush1.xpose.msra.mxu0 0.0
        %768 = vmatprep.subr.mxu0 0.0
        %769 = vmatpush1.xpose.msra.mxu0 0.0
        %770 = vmatprep.mubr.f32.mxu0 0.0
        %771 = vmatmul.mubr.f32.gmra.mrb[0].mxu0 %v698
        %v772 = vpop.f32.mrb[0].mxu0
        %v773 = vadd.f32 0.0, %v772
        %v774 = vpop.f32.mrb[0].mxu0
        %775 = vmatprep.mubr.f32.mxu0 0.0
        %776 = vmatmul.mubr.f32.gmra.mrb[0].mxu0 %v700
        %v777 = vpop.f32.mrb[0].mxu0
        %v778 = vadd.f32 0.0, %v777
        %v779 = vpop.f32.mrb[0].mxu0
        %780 = vdwg.mxu0
        %783 = vrot.lane.b32.xlu0 %v503, 96
        %v784 = vpop.permute.xlu0 %783
        %785 = vrot.lane.b32.xlu0 %v504, 96
        %v786 = vpop.permute.xlu0 %785
        %v787 = vsel %vm519, %v503, 0
        %v789 = vsel %vm519, %v504, 0
        %v791 = vsel %vm519, %v784, 0
        %v793 = vsel %vm519, %v786, 0
        %795 = vmatprep.subr.mxu0 0.0
        %796 = vmatpush1.xpose.msra.mxu0 %v791
        %797 = vmatprep.subr.mxu0 0.0
        %798 = vmatpush1.xpose.msra.mxu0 %v793
        %799 = vmatprep.subr.mxu0 0.0
        %800 = vmatpush1.xpose.msra.mxu0 0.0
        %801 = vmatprep.subr.mxu0 0.0
        %802 = vmatpush1.xpose.msra.mxu0 0.0
        %803 = vmatprep.subr.mxu0 0.0
        %804 = vmatpush1.xpose.msra.mxu0 0.0
        %805 = vmatprep.subr.mxu0 0.0
        %806 = vmatpush1.xpose.msra.mxu0 0.0
        %807 = vmatprep.subr.mxu0 0.0
        %808 = vmatpush1.xpose.msra.mxu0 0.0
        %809 = vmatprep.subr.mxu0 0.0
        %810 = vmatpush1.xpose.msra.mxu0 0.0
        %811 = vmatprep.subr.mxu0 0.0
        %812 = vmatpush1.xpose.msra.mxu0 0.0
        %813 = vmatprep.subr.mxu0 0.0
        %814 = vmatpush1.xpose.msra.mxu0 0.0
        %815 = vmatprep.subr.mxu0 0.0
        %816 = vmatpush1.xpose.msra.mxu0 0.0
        %817 = vmatprep.subr.mxu0 0.0
        %818 = vmatpush1.xpose.msra.mxu0 0.0
        %819 = vmatprep.subr.mxu0 0.0
        %820 = vmatpush1.xpose.msra.mxu0 0.0
        %821 = vmatprep.subr.mxu0 0.0
        %822 = vmatpush1.xpose.msra.mxu0 0.0
        %823 = vmatprep.subr.mxu0 0.0
        %824 = vmatpush1.xpose.msra.mxu0 0.0
        %825 = vmatprep.subr.mxu0 0.0
        %826 = vmatpush1.xpose.msra.mxu0 0.0
        %827 = vmatprep.subr.mxu0 0.0
        %828 = vmatpush1.xpose.msra.mxu0 0.0
        %829 = vmatprep.subr.mxu0 0.0
        %830 = vmatpush1.xpose.msra.mxu0 0.0
        %831 = vmatprep.subr.mxu0 0.0
        %832 = vmatpush1.xpose.msra.mxu0 0.0
        %833 = vmatprep.subr.mxu0 0.0
        %834 = vmatpush1.xpose.msra.mxu0 0.0
        %835 = vmatprep.subr.mxu0 0.0
        %836 = vmatpush1.xpose.msra.mxu0 0.0
        %837 = vmatprep.subr.mxu0 0.0
        %838 = vmatpush1.xpose.msra.mxu0 0.0
        %839 = vmatprep.subr.mxu0 0.0
        %840 = vmatpush1.xpose.msra.mxu0 0.0
        %841 = vmatprep.subr.mxu0 0.0
        %842 = vmatpush1.xpose.msra.mxu0 0.0
        %843 = vmatprep.subr.mxu0 0.0
        %844 = vmatpush1.xpose.msra.mxu0 0.0
        %845 = vmatprep.subr.mxu0 0.0
        %846 = vmatpush1.xpose.msra.mxu0 0.0
        %847 = vmatprep.subr.mxu0 0.0
        %848 = vmatpush1.xpose.msra.mxu0 0.0
        %849 = vmatprep.subr.mxu0 0.0
        %850 = vmatpush1.xpose.msra.mxu0 0.0
        %851 = vmatprep.subr.mxu0 0.0
        %852 = vmatpush1.xpose.msra.mxu0 0.0
        %853 = vmatprep.subr.mxu0 0.0
        %854 = vmatpush1.xpose.msra.mxu0 0.0
        %855 = vmatprep.subr.mxu0 0.0
        %856 = vmatpush1.xpose.msra.mxu0 0.0
        %857 = vmatprep.subr.mxu0 0.0
        %858 = vmatpush1.xpose.msra.mxu0 0.0
        %859 = vmatprep.mubr.f32.mxu0 0.0
        %860 = vmatmul.mubr.f32.gmra.mrb[0].mxu0 %v787
        %v861 = vpop.f32.mrb[0].mxu0
        %v862 = vadd.f32 0.0, %v861
        %v863 = vpop.f32.mrb[0].mxu0
        %864 = vmatprep.mubr.f32.mxu0 0.0
        %865 = vmatmul.mubr.f32.gmra.mrb[0].mxu0 %v789
        %v866 = vpop.f32.mrb[0].mxu0
        %v867 = vadd.f32 0.0, %v866
        %v868 = vpop.f32.mrb[0].mxu0
        %869 = vdwg.mxu0
        %872 = vrot.lane.b32.xlu0 %v505, 96
        %v873 = vpop.permute.xlu0 %872
        %874 = vrot.lane.b32.xlu0 %v506, 96
        %v875 = vpop.permute.xlu0 %874
        %v876 = vsel %vm519, %v505, 0
        %v878 = vsel %vm519, %v506, 0
        %v880 = vsel %vm519, %v873, 0
        %v882 = vsel %vm519, %v875, 0
        %884 = vmatprep.subr.mxu0 0.0
        %885 = vmatpush1.xpose.msra.mxu0 %v880
        %886 = vmatprep.subr.mxu0 0.0
        %887 = vmatpush1.xpose.msra.mxu0 %v882
        %888 = vmatprep.subr.mxu0 0.0
        %889 = vmatpush1.xpose.msra.mxu0 0.0
        %890 = vmatprep.subr.mxu0 0.0
        %891 = vmatpush1.xpose.msra.mxu0 0.0
        %892 = vmatprep.subr.mxu0 0.0
        %893 = vmatpush1.xpose.msra.mxu0 0.0
        %894 = vmatprep.subr.mxu0 0.0
        %895 = vmatpush1.xpose.msra.mxu0 0.0
        %896 = vmatprep.subr.mxu0 0.0
        %897 = vmatpush1.xpose.msra.mxu0 0.0
        %898 = vmatprep.subr.mxu0 0.0
        %899 = vmatpush1.xpose.msra.mxu0 0.0
        %900 = vmatprep.subr.mxu0 0.0
        %901 = vmatpush1.xpose.msra.mxu0 0.0
        %902 = vmatprep.subr.mxu0 0.0
        %903 = vmatpush1.xpose.msra.mxu0 0.0
        %904 = vmatprep.subr.mxu0 0.0
        %905 = vmatpush1.xpose.msra.mxu0 0.0
        %906 = vmatprep.subr.mxu0 0.0
        %907 = vmatpush1.xpose.msra.mxu0 0.0
        %908 = vmatprep.subr.mxu0 0.0
        %909 = vmatpush1.xpose.msra.mxu0 0.0
        %910 = vmatprep.subr.mxu0 0.0
        %911 = vmatpush1.xpose.msra.mxu0 0.0
        %912 = vmatprep.subr.mxu0 0.0
        %913 = vmatpush1.xpose.msra.mxu0 0.0
        %914 = vmatprep.subr.mxu0 0.0
        %915 = vmatpush1.xpose.msra.mxu0 0.0
        %916 = vmatprep.subr.mxu0 0.0
        %917 = vmatpush1.xpose.msra.mxu0 0.0
        %918 = vmatprep.subr.mxu0 0.0
        %919 = vmatpush1.xpose.msra.mxu0 0.0
        %920 = vmatprep.subr.mxu0 0.0
        %921 = vmatpush1.xpose.msra.mxu0 0.0
        %922 = vmatprep.subr.mxu0 0.0
        %923 = vmatpush1.xpose.msra.mxu0 0.0
        %924 = vmatprep.subr.mxu0 0.0
        %925 = vmatpush1.xpose.msra.mxu0 0.0
        %926 = vmatprep.subr.mxu0 0.0
        %927 = vmatpush1.xpose.msra.mxu0 0.0
        %928 = vmatprep.subr.mxu0 0.0
        %929 = vmatpush1.xpose.msra.mxu0 0.0
        %930 = vmatprep.subr.mxu0 0.0
        %931 = vmatpush1.xpose.msra.mxu0 0.0
        %932 = vmatprep.subr.mxu0 0.0
        %933 = vmatpush1.xpose.msra.mxu0 0.0
        %934 = vmatprep.subr.mxu0 0.0
        %935 = vmatpush1.xpose.msra.mxu0 0.0
        %936 = vmatprep.subr.mxu0 0.0
        %937 = vmatpush1.xpose.msra.mxu0 0.0
        %938 = vmatprep.subr.mxu0 0.0
        %939 = vmatpush1.xpose.msra.mxu0 0.0
        %940 = vmatprep.subr.mxu0 0.0
        %941 = vmatpush1.xpose.msra.mxu0 0.0
        %942 = vmatprep.subr.mxu0 0.0
        %943 = vmatpush1.xpose.msra.mxu0 0.0
        %944 = vmatprep.subr.mxu0 0.0
        %945 = vmatpush1.xpose.msra.mxu0 0.0
        %946 = vmatprep.subr.mxu0 0.0
        %947 = vmatpush1.xpose.msra.mxu0 0.0
        %948 = vmatprep.mubr.f32.mxu0 0.0
        %949 = vmatmul.mubr.f32.gmra.mrb[0].mxu0 %v876
        %v950 = vpop.f32.mrb[0].mxu0
        %v951 = vadd.f32 0.0, %v950
        %v952 = vpop.f32.mrb[0].mxu0
        %953 = vmatprep.mubr.f32.mxu0 0.0
        %954 = vmatmul.mubr.f32.gmra.mrb[0].mxu0 %v878
        %v955 = vpop.f32.mrb[0].mxu0
        %v956 = vadd.f32 0.0, %v955
        %v957 = vpop.f32.mrb[0].mxu0
        %958 = vdwg.mxu0
        %961 = vrot.lane.b32.xlu0 %v507, 96
        %v962 = vpop.permute.xlu0 %961
        %963 = vrot.lane.b32.xlu0 %v508, 96
        %v964 = vpop.permute.xlu0 %963
        %v965 = vsel %vm519, %v507, 0
        %v967 = vsel %vm519, %v508, 0
        %v969 = vsel %vm519, %v962, 0
        %v971 = vsel %vm519, %v964, 0
        %973 = vmatprep.subr.mxu0 0.0
        %974 = vmatpush1.xpose.msra.mxu0 %v969
        %975 = vmatprep.subr.mxu0 0.0
        %976 = vmatpush1.xpose.msra.mxu0 %v971
        %977 = vmatprep.subr.mxu0 0.0
        %978 = vmatpush1.xpose.msra.mxu0 0.0
        %979 = vmatprep.subr.mxu0 0.0
        %980 = vmatpush1.xpose.msra.mxu0 0.0
        %981 = vmatprep.subr.mxu0 0.0
        %982 = vmatpush1.xpose.msra.mxu0 0.0
        %983 = vmatprep.subr.mxu0 0.0
        %984 = vmatpush1.xpose.msra.mxu0 0.0
        %985 = vmatprep.subr.mxu0 0.0
        %986 = vmatpush1.xpose.msra.mxu0 0.0
        %987 = vmatprep.subr.mxu0 0.0
        %988 = vmatpush1.xpose.msra.mxu0 0.0
        %989 = vmatprep.subr.mxu0 0.0
        %990 = vmatpush1.xpose.msra.mxu0 0.0
        %991 = vmatprep.subr.mxu0 0.0
        %992 = vmatpush1.xpose.msra.mxu0 0.0
        %993 = vmatprep.subr.mxu0 0.0
        %994 = vmatpush1.xpose.msra.mxu0 0.0
        %995 = vmatprep.subr.mxu0 0.0
        %996 = vmatpush1.xpose.msra.mxu0 0.0
        %997 = vmatprep.subr.mxu0 0.0
        %998 = vmatpush1.xpose.msra.mxu0 0.0
        %999 = vmatprep.subr.mxu0 0.0
        %1000 = vmatpush1.xpose.msra.mxu0 0.0
        %1001 = vmatprep.subr.mxu0 0.0
        %1002 = vmatpush1.xpose.msra.mxu0 0.0
        %1003 = vmatprep.subr.mxu0 0.0
        %1004 = vmatpush1.xpose.msra.mxu0 0.0
        %1005 = vmatprep.subr.mxu0 0.0
        %1006 = vmatpush1.xpose.msra.mxu0 0.0
        %1007 = vmatprep.subr.mxu0 0.0
        %1008 = vmatpush1.xpose.msra.mxu0 0.0
        %1009 = vmatprep.subr.mxu0 0.0
        %1010 = vmatpush1.xpose.msra.mxu0 0.0
        %1011 = vmatprep.subr.mxu0 0.0
        %1012 = vmatpush1.xpose.msra.mxu0 0.0
        %1013 = vmatprep.subr.mxu0 0.0
        %1014 = vmatpush1.xpose.msra.mxu0 0.0
        %1015 = vmatprep.subr.mxu0 0.0
        %1016 = vmatpush1.xpose.msra.mxu0 0.0
        %1017 = vmatprep.subr.mxu0 0.0
        %1018 = vmatpush1.xpose.msra.mxu0 0.0
        %1019 = vmatprep.subr.mxu0 0.0
        %1020 = vmatpush1.xpose.msra.mxu0 0.0
        %1021 = vmatprep.subr.mxu0 0.0
        %1022 = vmatpush1.xpose.msra.mxu0 0.0
        %1023 = vmatprep.subr.mxu0 0.0
        %1024 = vmatpush1.xpose.msra.mxu0 0.0
        %1025 = vmatprep.subr.mxu0 0.0
        %1026 = vmatpush1.xpose.msra.mxu0 0.0
        %1027 = vmatprep.subr.mxu0 0.0
        %1028 = vmatpush1.xpose.msra.mxu0 0.0
        %1029 = vmatprep.subr.mxu0 0.0
        %1030 = vmatpush1.xpose.msra.mxu0 0.0
        %1031 = vmatprep.subr.mxu0 0.0
        %1032 = vmatpush1.xpose.msra.mxu0 0.0
        %1033 = vmatprep.subr.mxu0 0.0
        %1034 = vmatpush1.xpose.msra.mxu0 0.0
        %1035 = vmatprep.subr.mxu0 0.0
        %1036 = vmatpush1.xpose.msra.mxu0 0.0
        %1037 = vmatprep.mubr.f32.mxu0 0.0
        %1038 = vmatmul.mubr.f32.gmra.mrb[0].mxu0 %v965
        %v1039 = vpop.f32.mrb[0].mxu0
        %v1040 = vadd.f32 0.0, %v1039
        %v1041 = vpop.f32.mrb[0].mxu0
        %1042 = vmatprep.mubr.f32.mxu0 0.0
        %1043 = vmatmul.mubr.f32.gmra.mrb[0].mxu0 %v967
        %v1044 = vpop.f32.mrb[0].mxu0
        %v1045 = vadd.f32 0.0, %v1044
        %v1046 = vpop.f32.mrb[0].mxu0
        %1047 = vdwg.mxu0
        %1050 = vrot.lane.b32.xlu0 %v509, 96
        %v1051 = vpop.permute.xlu0 %1050
        %1052 = vrot.lane.b32.xlu0 %v510, 96
        %v1053 = vpop.permute.xlu0 %1052
        %v1054 = vsel %vm519, %v509, 0
        %v1056 = vsel %vm519, %v510, 0
        %v1058 = vsel %vm519, %v1051, 0
        %v1060 = vsel %vm519, %v1053, 0
        %1062 = vmatprep.subr.mxu0 0.0
        %1063 = vmatpush1.xpose.msra.mxu0 %v1058
        %1064 = vmatprep.subr.mxu0 0.0
        %1065 = vmatpush1.xpose.msra.mxu0 %v1060
        %1066 = vmatprep.subr.mxu0 0.0
        %1067 = vmatpush1.xpose.msra.mxu0 0.0
        %1068 = vmatprep.subr.mxu0 0.0
        %1069 = vmatpush1.xpose.msra.mxu0 0.0
        %1070 = vmatprep.subr.mxu0 0.0
        %1071 = vmatpush1.xpose.msra.mxu0 0.0
        %1072 = vmatprep.subr.mxu0 0.0
        %1073 = vmatpush1.xpose.msra.mxu0 0.0
        %1074 = vmatprep.subr.mxu0 0.0
        %1075 = vmatpush1.xpose.msra.mxu0 0.0
        %1076 = vmatprep.subr.mxu0 0.0
        %1077 = vmatpush1.xpose.msra.mxu0 0.0
        %1078 = vmatprep.subr.mxu0 0.0
        %1079 = vmatpush1.xpose.msra.mxu0 0.0
        %1080 = vmatprep.subr.mxu0 0.0
        %1081 = vmatpush1.xpose.msra.mxu0 0.0
        %1082 = vmatprep.subr.mxu0 0.0
        %1083 = vmatpush1.xpose.msra.mxu0 0.0
        %1084 = vmatprep.subr.mxu0 0.0
        %1085 = vmatpush1.xpose.msra.mxu0 0.0
        %1086 = vmatprep.subr.mxu0 0.0
        %1087 = vmatpush1.xpose.msra.mxu0 0.0
        %1088 = vmatprep.subr.mxu0 0.0
        %1089 = vmatpush1.xpose.msra.mxu0 0.0
        %1090 = vmatprep.subr.mxu0 0.0
        %1091 = vmatpush1.xpose.msra.mxu0 0.0
        %1092 = vmatprep.subr.mxu0 0.0
        %1093 = vmatpush1.xpose.msra.mxu0 0.0
        %1094 = vmatprep.subr.mxu0 0.0
        %1095 = vmatpush1.xpose.msra.mxu0 0.0
        %1096 = vmatprep.subr.mxu0 0.0
        %1097 = vmatpush1.xpose.msra.mxu0 0.0
        %1098 = vmatprep.subr.mxu0 0.0
        %1099 = vmatpush1.xpose.msra.mxu0 0.0
        %1100 = vmatprep.subr.mxu0 0.0
        %1101 = vmatpush1.xpose.msra.mxu0 0.0
        %1102 = vmatprep.subr.mxu0 0.0
        %1103 = vmatpush1.xpose.msra.mxu0 0.0
        %1104 = vmatprep.subr.mxu0 0.0
        %1105 = vmatpush1.xpose.msra.mxu0 0.0
        %1106 = vmatprep.subr.mxu0 0.0
        %1107 = vmatpush1.xpose.msra.mxu0 0.0
        %1108 = vmatprep.subr.mxu0 0.0
        %1109 = vmatpush1.xpose.msra.mxu0 0.0
        %1110 = vmatprep.subr.mxu0 0.0
        %1111 = vmatpush1.xpose.msra.mxu0 0.0
        %1112 = vmatprep.subr.mxu0 0.0
        %1113 = vmatpush1.xpose.msra.mxu0 0.0
        %1114 = vmatprep.subr.mxu0 0.0
        %1115 = vmatpush1.xpose.msra.mxu0 0.0
        %1116 = vmatprep.subr.mxu0 0.0
        %1117 = vmatpush1.xpose.msra.mxu0 0.0
        %1118 = vmatprep.subr.mxu0 0.0
        %1119 = vmatpush1.xpose.msra.mxu0 0.0
        %1120 = vmatprep.subr.mxu0 0.0
        %1121 = vmatpush1.xpose.msra.mxu0 0.0
        %1122 = vmatprep.subr.mxu0 0.0
        %1123 = vmatpush1.xpose.msra.mxu0 0.0
        %1124 = vmatprep.subr.mxu0 0.0
        %1125 = vmatpush1.xpose.msra.mxu0 0.0
        %1126 = vmatprep.mubr.f32.mxu0 0.0
        %1127 = vmatmul.mubr.f32.gmra.mrb[0].mxu0 %v1054
        %v1128 = vpop.f32.mrb[0].mxu0
        %v1129 = vadd.f32 0.0, %v1128
        %v1130 = vpop.f32.mrb[0].mxu0
        %1131 = vmatprep.mubr.f32.mxu0 0.0
        %1132 = vmatmul.mubr.f32.gmra.mrb[0].mxu0 %v1056
        %v1133 = vpop.f32.mrb[0].mxu0
        %v1134 = vadd.f32 0.0, %v1133
        %v1135 = vpop.f32.mrb[0].mxu0
        %1136 = vdwg.mxu0
        %1139 = vrot.lane.b32.xlu0 %v511, 96
        %v1140 = vpop.permute.xlu0 %1139
        %1141 = vrot.lane.b32.xlu0 %v512, 96
        %v1142 = vpop.permute.xlu0 %1141
        %v1143 = vsel %vm519, %v511, 0
        %v1145 = vsel %vm519, %v512, 0
        %v1147 = vsel %vm519, %v1140, 0
        %v1149 = vsel %vm519, %v1142, 0
        %1151 = vmatprep.subr.mxu0 0.0
        %1152 = vmatpush1.xpose.msra.mxu0 %v1147
        %1153 = vmatprep.subr.mxu0 0.0
        %1154 = vmatpush1.xpose.msra.mxu0 %v1149
        %1155 = vmatprep.subr.mxu0 0.0
        %1156 = vmatpush1.xpose.msra.mxu0 0.0
        %1157 = vmatprep.subr.mxu0 0.0
        %1158 = vmatpush1.xpose.msra.mxu0 0.0
        %1159 = vmatprep.subr.mxu0 0.0
        %1160 = vmatpush1.xpose.msra.mxu0 0.0
        %1161 = vmatprep.subr.mxu0 0.0
        %1162 = vmatpush1.xpose.msra.mxu0 0.0
        %1163 = vmatprep.subr.mxu0 0.0
        %1164 = vmatpush1.xpose.msra.mxu0 0.0
        %1165 = vmatprep.subr.mxu0 0.0
        %1166 = vmatpush1.xpose.msra.mxu0 0.0
        %1167 = vmatprep.subr.mxu0 0.0
        %1168 = vmatpush1.xpose.msra.mxu0 0.0
        %1169 = vmatprep.subr.mxu0 0.0
        %1170 = vmatpush1.xpose.msra.mxu0 0.0
        %1171 = vmatprep.subr.mxu0 0.0
        %1172 = vmatpush1.xpose.msra.mxu0 0.0
        %1173 = vmatprep.subr.mxu0 0.0
        %1174 = vmatpush1.xpose.msra.mxu0 0.0
        %1175 = vmatprep.subr.mxu0 0.0
        %1176 = vmatpush1.xpose.msra.mxu0 0.0
        %1177 = vmatprep.subr.mxu0 0.0
        %1178 = vmatpush1.xpose.msra.mxu0 0.0
        %1179 = vmatprep.subr.mxu0 0.0
        %1180 = vmatpush1.xpose.msra.mxu0 0.0
        %1181 = vmatprep.subr.mxu0 0.0
        %1182 = vmatpush1.xpose.msra.mxu0 0.0
        %1183 = vmatprep.subr.mxu0 0.0
        %1184 = vmatpush1.xpose.msra.mxu0 0.0
        %1185 = vmatprep.subr.mxu0 0.0
        %1186 = vmatpush1.xpose.msra.mxu0 0.0
        %1187 = vmatprep.subr.mxu0 0.0
        %1188 = vmatpush1.xpose.msra.mxu0 0.0
        %1189 = vmatprep.subr.mxu0 0.0
        %1190 = vmatpush1.xpose.msra.mxu0 0.0
        %1191 = vmatprep.subr.mxu0 0.0
        %1192 = vmatpush1.xpose.msra.mxu0 0.0
        %1193 = vmatprep.subr.mxu0 0.0
        %1194 = vmatpush1.xpose.msra.mxu0 0.0
        %1195 = vmatprep.subr.mxu0 0.0
        %1196 = vmatpush1.xpose.msra.mxu0 0.0
        %1197 = vmatprep.subr.mxu0 0.0
        %1198 = vmatpush1.xpose.msra.mxu0 0.0
        %1199 = vmatprep.subr.mxu0 0.0
        %1200 = vmatpush1.xpose.msra.mxu0 0.0
        %1201 = vmatprep.subr.mxu0 0.0
        %1202 = vmatpush1.xpose.msra.mxu0 0.0
        %1203 = vmatprep.subr.mxu0 0.0
        %1204 = vmatpush1.xpose.msra.mxu0 0.0
        %1205 = vmatprep.subr.mxu0 0.0
        %1206 = vmatpush1.xpose.msra.mxu0 0.0
        %1207 = vmatprep.subr.mxu0 0.0
        %1208 = vmatpush1.xpose.msra.mxu0 0.0
        %1209 = vmatprep.subr.mxu0 0.0
        %1210 = vmatpush1.xpose.msra.mxu0 0.0
        %1211 = vmatprep.subr.mxu0 0.0
        %1212 = vmatpush1.xpose.msra.mxu0 0.0
        %1213 = vmatprep.subr.mxu0 0.0
        %1214 = vmatpush1.xpose.msra.mxu0 0.0
        %1215 = vmatprep.mubr.f32.mxu0 0.0
        %1216 = vmatmul.mubr.f32.gmra.mrb[0].mxu0 %v1143
        %v1217 = vpop.f32.mrb[0].mxu0
        %v1218 = vadd.f32 0.0, %v1217
        %v1219 = vpop.f32.mrb[0].mxu0
        %1220 = vmatprep.mubr.f32.mxu0 0.0
        %1221 = vmatmul.mubr.f32.gmra.mrb[0].mxu0 %v1145
        %v1222 = vpop.f32.mrb[0].mxu0
        %v1223 = vadd.f32 0.0, %v1222
        %v1224 = vpop.f32.mrb[0].mxu0
        %1225 = vdwg.mxu0
        %v1226 = vmul.f32 %v595, 0.35355338
        %v1227 = vmul.f32 %v600, 0.35355338
        %v1228 = vmul.f32 %v684, 0.35355338
        %v1229 = vmul.f32 %v689, 0.35355338
        %v1230 = vmul.f32 %v773, 0.35355338
        %v1231 = vmul.f32 %v778, 0.35355338
        %v1232 = vmul.f32 %v862, 0.35355338
        %v1233 = vmul.f32 %v867, 0.35355338
        %v1234 = vmul.f32 %v951, 0.35355338
        %v1235 = vmul.f32 %v956, 0.35355338
        %v1236 = vmul.f32 %v1040, 0.35355338
        %v1237 = vmul.f32 %v1045, 0.35355338
        %v1238 = vmul.f32 %v1129, 0.35355338
        %v1239 = vmul.f32 %v1134, 0.35355338
        %v1240 = vmul.f32 %v1218, 0.35355338
        %v1241 = vmul.f32 %v1223, 0.35355338
        %vm1242 = vcmask 130048
        %v1243 = vsel %vm1242, %v1226, -inf
        %1244 = vmax.xlane.f32.xlu0 %v1243
        %v1245 = vpop.xlane.xlu0 %1244
        %v1246 = vsel %vm1242, %v1227, -inf
        %1247 = vmax.xlane.f32.xlu0 %v1246
        %v1248 = vpop.xlane.xlu0 %1247
        %v1249 = vsel %vm1242, %v1228, -inf
        %1250 = vmax.xlane.f32.xlu0 %v1249
        %v1251 = vpop.xlane.xlu0 %1250
        %v1252 = vsel %vm1242, %v1229, -inf
        %1253 = vmax.xlane.f32.xlu0 %v1252
        %v1254 = vpop.xlane.xlu0 %1253
        %v1255 = vsel %vm1242, %v1230, -inf
        %1256 = vmax.xlane.f32.xlu0 %v1255
        %v1257 = vpop.xlane.xlu0 %1256
        %v1258 = vsel %vm1242, %v1231, -inf
        %1259 = vmax.xlane.f32.xlu0 %v1258
        %v1260 = vpop.xlane.xlu0 %1259
        %v1261 = vsel %vm1242, %v1232, -inf
        %1262 = vmax.xlane.f32.xlu0 %v1261
        %v1263 = vpop.xlane.xlu0 %1262
        %v1264 = vsel %vm1242, %v1233, -inf
        %1265 = vmax.xlane.f32.xlu0 %v1264
        %v1266 = vpop.xlane.xlu0 %1265
        %v1267 = vsel %vm1242, %v1234, -inf
        %1268 = vmax.xlane.f32.xlu0 %v1267
        %v1269 = vpop.xlane.xlu0 %1268
        %v1270 = vsel %vm1242, %v1235, -inf
        %1271 = vmax.xlane.f32.xlu0 %v1270
        %v1272 = vpop.xlane.xlu0 %1271
        %v1273 = vsel %vm1242, %v1236, -inf
        %1274 = vmax.xlane.f32.xlu0 %v1273
        %v1275 = vpop.xlane.xlu0 %1274
        %v1276 = vsel %vm1242, %v1237, -inf
        %1277 = vmax.xlane.f32.xlu0 %v1276
        %v1278 = vpop.xlane.xlu0 %1277
        %v1279 = vsel %vm1242, %v1238, -inf
        %1280 = vmax.xlane.f32.xlu0 %v1279
        %v1281 = vpop.xlane.xlu0 %1280
        %v1282 = vsel %vm1242, %v1239, -inf
        %1283 = vmax.xlane.f32.xlu0 %v1282
        %v1284 = vpop.xlane.xlu0 %1283
        %v1285 = vsel %vm1242, %v1240, -inf
        %1286 = vmax.xlane.f32.xlu0 %v1285
        %v1287 = vpop.xlane.xlu0 %1286
        %v1288 = vsel %vm1242, %v1241, -inf
        %1289 = vmax.xlane.f32.xlu0 %v1288
        %v1290 = vpop.xlane.xlu0 %1289
        %v1291 = vsub.f32 %v1226, %v1245
        %v1292 = vsub.f32 %v1227, %v1248
        %v1293 = vsub.f32 %v1228, %v1251
        %v1294 = vsub.f32 %v1229, %v1254
        %v1295 = vsub.f32 %v1230, %v1257
        %v1296 = vsub.f32 %v1231, %v1260
        %v1297 = vsub.f32 %v1232, %v1263
        %v1298 = vsub.f32 %v1233, %v1266
        %v1299 = vsub.f32 %v1234, %v1269
        %v1300 = vsub.f32 %v1235, %v1272
        %v1301 = vsub.f32 %v1236, %v1275
        %v1302 = vsub.f32 %v1237, %v1278
        %v1303 = vsub.f32 %v1238, %v1281
        %v1304 = vsub.f32 %v1239, %v1284
        %v1305 = vsub.f32 %v1240, %v1287
        %v1306 = vsub.f32 %v1241, %v1290
        %v1307 = vmul.f32 %v1291, 1.442695
        %v1308 = vpow.pop %v1307
        %v1309 = vmul.f32 %v1292, 1.442695
        %v1310 = vpow.pop %v1309
        %v1311 = vmul.f32 %v1293, 1.442695
        %v1312 = vpow.pop %v1311
        %v1313 = vmul.f32 %v1294, 1.442695
        %v1314 = vpow.pop %v1313
        %v1315 = vmul.f32 %v1295, 1.442695
        %v1316 = vpow.pop %v1315
        %v1317 = vmul.f32 %v1296, 1.442695
        %v1318 = vpow.pop %v1317
        %v1319 = vmul.f32 %v1297, 1.442695
        %v1320 = vpow.pop %v1319
        %v1321 = vmul.f32 %v1298, 1.442695
        %v1322 = vpow.pop %v1321
        %v1323 = vmul.f32 %v1299, 1.442695
        %v1324 = vpow.pop %v1323
        %v1325 = vmul.f32 %v1300, 1.442695
        %v1326 = vpow.pop %v1325
        %v1327 = vmul.f32 %v1301, 1.442695
        %v1328 = vpow.pop %v1327
        %v1329 = vmul.f32 %v1302, 1.442695
        %v1330 = vpow.pop %v1329
        %v1331 = vmul.f32 %v1303, 1.442695
        %v1332 = vpow.pop %v1331
        %v1333 = vmul.f32 %v1304, 1.442695
        %v1334 = vpow.pop %v1333
        %v1335 = vmul.f32 %v1305, 1.442695
        %v1336 = vpow.pop %v1335
        %v1337 = vmul.f32 %v1306, 1.442695
        %v1338 = vpow.pop %v1337
        %v1339 = vsel %vm1242, %v1308, 0.0
        %1340 = vadd.xlane.f32.xlu0 %v1339
        %v1341 = vpop.xlane.xlu0 %1340
        %v1342 = vsel %vm1242, %v1310, 0.0
        %1343 = vadd.xlane.f32.xlu0 %v1342
        %v1344 = vpop.xlane.xlu0 %1343
        %v1345 = vsel %vm1242, %v1312, 0.0
        %1346 = vadd.xlane.f32.xlu0 %v1345
        %v1347 = vpop.xlane.xlu0 %1346
        %v1348 = vsel %vm1242, %v1314, 0.0
        %1349 = vadd.xlane.f32.xlu0 %v1348
        %v1350 = vpop.xlane.xlu0 %1349
        %v1351 = vsel %vm1242, %v1316, 0.0
        %1352 = vadd.xlane.f32.xlu0 %v1351
        %v1353 = vpop.xlane.xlu0 %1352
        %v1354 = vsel %vm1242, %v1318, 0.0
        %1355 = vadd.xlane.f32.xlu0 %v1354
        %v1356 = vpop.xlane.xlu0 %1355
        %v1357 = vsel %vm1242, %v1320, 0.0
        %1358 = vadd.xlane.f32.xlu0 %v1357
        %v1359 = vpop.xlane.xlu0 %1358
        %v1360 = vsel %vm1242, %v1322, 0.0
        %1361 = vadd.xlane.f32.xlu0 %v1360
        %v1362 = vpop.xlane.xlu0 %1361
        %v1363 = vsel %vm1242, %v1324, 0.0
        %1364 = vadd.xlane.f32.xlu0 %v1363
        %v1365 = vpop.xlane.xlu0 %1364
        %v1366 = vsel %vm1242, %v1326, 0.0
        %1367 = vadd.xlane.f32.xlu0 %v1366
        %v1368 = vpop.xlane.xlu0 %1367
        %v1369 = vsel %vm1242, %v1328, 0.0
        %1370 = vadd.xlane.f32.xlu0 %v1369
        %v1371 = vpop.xlane.xlu0 %1370
        %v1372 = vsel %vm1242, %v1330, 0.0
        %1373 = vadd.xlane.f32.xlu0 %v1372
        %v1374 = vpop.xlane.xlu0 %1373
        %v1375 = vsel %vm1242, %v1332, 0.0
        %1376 = vadd.xlane.f32.xlu0 %v1375
        %v1377 = vpop.xlane.xlu0 %1376
        %v1378 = vsel %vm1242, %v1334, 0.0
        %1379 = vadd.xlane.f32.xlu0 %v1378
        %v1380 = vpop.xlane.xlu0 %1379
        %v1381 = vsel %vm1242, %v1336, 0.0
        %1382 = vadd.xlane.f32.xlu0 %v1381
        %v1383 = vpop.xlane.xlu0 %1382
        %v1384 = vsel %vm1242, %v1338, 0.0
        %1385 = vadd.xlane.f32.xlu0 %v1384
        %v1386 = vpop.xlane.xlu0 %1385
        %v1387 = vrcp.pop %v1341
        %v1388 = vrcp.pop %v1344
        %v1389 = vrcp.pop %v1347
        %v1390 = vrcp.pop %v1350
        %v1391 = vrcp.pop %v1353
        %v1392 = vrcp.pop %v1356
        %v1393 = vrcp.pop %v1359
        %v1394 = vrcp.pop %v1362
        %v1395 = vrcp.pop %v1365
        %v1396 = vrcp.pop %v1368
        %v1397 = vrcp.pop %v1371
        %v1398 = vrcp.pop %v1374
        %v1399 = vrcp.pop %v1377
        %v1400 = vrcp.pop %v1380
        %v1401 = vrcp.pop %v1383
        %v1402 = vrcp.pop %v1386
        %v1403 = vmul.f32 %v1308, %v1387
        %v1404 = vmul.f32 %v1310, %v1388
        %v1405 = vmul.f32 %v1312, %v1389
        %v1406 = vmul.f32 %v1314, %v1390
        %v1407 = vmul.f32 %v1316, %v1391
        %v1408 = vmul.f32 %v1318, %v1392
        %v1409 = vmul.f32 %v1320, %v1393
        %v1410 = vmul.f32 %v1322, %v1394
        %v1411 = vmul.f32 %v1324, %v1395
        %v1412 = vmul.f32 %v1326, %v1396
        %v1413 = vmul.f32 %v1328, %v1397
        %v1414 = vmul.f32 %v1330, %v1398
        %v1415 = vmul.f32 %v1332, %v1399
        %v1416 = vmul.f32 %v1334, %v1400
        %v1417 = vmul.f32 %v1336, %v1401
        %v1418 = vmul.f32 %v1338, %v1402
        %1419 = vrot.lane.b32.xlu0 %v497, 64
        %v1420 = vpop.permute.xlu0 %1419
        %1421 = vrot.lane.b32.xlu0 %v498, 64
        %v1422 = vpop.permute.xlu0 %1421
        %v1426 = vsel %vm1242, %v1403, 0
        %v1429 = vsel %vm1242, %v1404, 0
        %1431 = vmatprep.subr.mxu0 0.0
        %1432 = vmatpush1.msra.mxu0 %v1420
        %1433 = vmatprep.subr.mxu0 0.0
        %1434 = vmatpush1.msra.mxu0 %v1422
        %1435 = vmatprep.subr.mxu0 0.0
        %1436 = vmatpush1.msra.mxu0 0.0
        %1437 = vmatprep.subr.mxu0 0.0
        %1438 = vmatpush1.msra.mxu0 0.0
        %1439 = vmatprep.subr.mxu0 0.0
        %1440 = vmatpush1.msra.mxu0 0.0
        %1441 = vmatprep.subr.mxu0 0.0
        %1442 = vmatpush1.msra.mxu0 0.0
        %1443 = vmatprep.subr.mxu0 0.0
        %1444 = vmatpush1.msra.mxu0 0.0
        %1445 = vmatprep.subr.mxu0 0.0
        %1446 = vmatpush1.msra.mxu0 0.0
        %1447 = vmatprep.subr.mxu0 0.0
        %1448 = vmatpush1.msra.mxu0 0.0
        %1449 = vmatprep.subr.mxu0 0.0
        %1450 = vmatpush1.msra.mxu0 0.0
        %1451 = vmatprep.subr.mxu0 0.0
        %1452 = vmatpush1.msra.mxu0 0.0
        %1453 = vmatprep.subr.mxu0 0.0
        %1454 = vmatpush1.msra.mxu0 0.0
        %1455 = vmatprep.subr.mxu0 0.0
        %1456 = vmatpush1.msra.mxu0 0.0
        %1457 = vmatprep.subr.mxu0 0.0
        %1458 = vmatpush1.msra.mxu0 0.0
        %1459 = vmatprep.subr.mxu0 0.0
        %1460 = vmatpush1.msra.mxu0 0.0
        %1461 = vmatprep.subr.mxu0 0.0
        %1462 = vmatpush1.msra.mxu0 0.0
        %1463 = vmatprep.subr.mxu0 0.0
        %1464 = vmatpush1.msra.mxu0 0.0
        %1465 = vmatprep.subr.mxu0 0.0
        %1466 = vmatpush1.msra.mxu0 0.0
        %1467 = vmatprep.subr.mxu0 0.0
        %1468 = vmatpush1.msra.mxu0 0.0
        %1469 = vmatprep.subr.mxu0 0.0
        %1470 = vmatpush1.msra.mxu0 0.0
        %1471 = vmatprep.subr.mxu0 0.0
        %1472 = vmatpush1.msra.mxu0 0.0
        %1473 = vmatprep.subr.mxu0 0.0
        %1474 = vmatpush1.msra.mxu0 0.0
        %1475 = vmatprep.subr.mxu0 0.0
        %1476 = vmatpush1.msra.mxu0 0.0
        %1477 = vmatprep.subr.mxu0 0.0
        %1478 = vmatpush1.msra.mxu0 0.0
        %1479 = vmatprep.subr.mxu0 0.0
        %1480 = vmatpush1.msra.mxu0 0.0
        %1481 = vmatprep.subr.mxu0 0.0
        %1482 = vmatpush1.msra.mxu0 0.0
        %1483 = vmatprep.subr.mxu0 0.0
        %1484 = vmatpush1.msra.mxu0 0.0
        %1485 = vmatprep.subr.mxu0 0.0
        %1486 = vmatpush1.msra.mxu0 0.0
        %1487 = vmatprep.subr.mxu0 0.0
        %1488 = vmatpush1.msra.mxu0 0.0
        %1489 = vmatprep.subr.mxu0 0.0
        %1490 = vmatpush1.msra.mxu0 0.0
        %1491 = vmatprep.subr.mxu0 0.0
        %1492 = vmatpush1.msra.mxu0 0.0
        %1493 = vmatprep.subr.mxu0 0.0
        %1494 = vmatpush1.msra.mxu0 0.0
        %1495 = vmatprep.mubr.f32.mxu0 0.0
        %1496 = vmatmul.mubr.f32.gmra.mrb[0].mxu0 %v1426
        %v1497 = vpop.f32.mrb[0].mxu0
        %v1498 = vadd.f32 0.0, %v1497
        %v1499 = vpop.f32.mrb[0].mxu0
        %1500 = vmatprep.mubr.f32.mxu0 0.0
        %1501 = vmatmul.mubr.f32.gmra.mrb[0].mxu0 %v1429
        %v1502 = vpop.f32.mrb[0].mxu0
        %v1503 = vadd.f32 0.0, %v1502
        %v1504 = vpop.f32.mrb[0].mxu0
        %1505 = vdwg.mxu0
        %1506 = vrot.lane.b32.xlu0 %v499, 64
        %v1507 = vpop.permute.xlu0 %1506
        %1508 = vrot.lane.b32.xlu0 %v500, 64
        %v1509 = vpop.permute.xlu0 %1508
        %v1513 = vsel %vm1242, %v1405, 0
        %v1516 = vsel %vm1242, %v1406, 0
        %1518 = vmatprep.subr.mxu0 0.0
        %1519 = vmatpush1.msra.mxu0 %v1507
        %1520 = vmatprep.subr.mxu0 0.0
        %1521 = vmatpush1.msra.mxu0 %v1509
        %1522 = vmatprep.subr.mxu0 0.0
        %1523 = vmatpush1.msra.mxu0 0.0
        %1524 = vmatprep.subr.mxu0 0.0
        %1525 = vmatpush1.msra.mxu0 0.0
        %1526 = vmatprep.subr.mxu0 0.0
        %1527 = vmatpush1.msra.mxu0 0.0
        %1528 = vmatprep.subr.mxu0 0.0
        %1529 = vmatpush1.msra.mxu0 0.0
        %1530 = vmatprep.subr.mxu0 0.0
        %1531 = vmatpush1.msra.mxu0 0.0
        %1532 = vmatprep.subr.mxu0 0.0
        %1533 = vmatpush1.msra.mxu0 0.0
        %1534 = vmatprep.subr.mxu0 0.0
        %1535 = vmatpush1.msra.mxu0 0.0
        %1536 = vmatprep.subr.mxu0 0.0
        %1537 = vmatpush1.msra.mxu0 0.0
        %1538 = vmatprep.subr.mxu0 0.0
        %1539 = vmatpush1.msra.mxu0 0.0
        %1540 = vmatprep.subr.mxu0 0.0
        %1541 = vmatpush1.msra.mxu0 0.0
        %1542 = vmatprep.subr.mxu0 0.0
        %1543 = vmatpush1.msra.mxu0 0.0
        %1544 = vmatprep.subr.mxu0 0.0
        %1545 = vmatpush1.msra.mxu0 0.0
        %1546 = vmatprep.subr.mxu0 0.0
        %1547 = vmatpush1.msra.mxu0 0.0
        %1548 = vmatprep.subr.mxu0 0.0
        %1549 = vmatpush1.msra.mxu0 0.0
        %1550 = vmatprep.subr.mxu0 0.0
        %1551 = vmatpush1.msra.mxu0 0.0
        %1552 = vmatprep.subr.mxu0 0.0
        %1553 = vmatpush1.msra.mxu0 0.0
        %1554 = vmatprep.subr.mxu0 0.0
        %1555 = vmatpush1.msra.mxu0 0.0
        %1556 = vmatprep.subr.mxu0 0.0
        %1557 = vmatpush1.msra.mxu0 0.0
        %1558 = vmatprep.subr.mxu0 0.0
        %1559 = vmatpush1.msra.mxu0 0.0
        %1560 = vmatprep.subr.mxu0 0.0
        %1561 = vmatpush1.msra.mxu0 0.0
        %1562 = vmatprep.subr.mxu0 0.0
        %1563 = vmatpush1.msra.mxu0 0.0
        %1564 = vmatprep.subr.mxu0 0.0
        %1565 = vmatpush1.msra.mxu0 0.0
        %1566 = vmatprep.subr.mxu0 0.0
        %1567 = vmatpush1.msra.mxu0 0.0
        %1568 = vmatprep.subr.mxu0 0.0
        %1569 = vmatpush1.msra.mxu0 0.0
        %1570 = vmatprep.subr.mxu0 0.0
        %1571 = vmatpush1.msra.mxu0 0.0
        %1572 = vmatprep.subr.mxu0 0.0
        %1573 = vmatpush1.msra.mxu0 0.0
        %1574 = vmatprep.subr.mxu0 0.0
        %1575 = vmatpush1.msra.mxu0 0.0
        %1576 = vmatprep.subr.mxu0 0.0
        %1577 = vmatpush1.msra.mxu0 0.0
        %1578 = vmatprep.subr.mxu0 0.0
        %1579 = vmatpush1.msra.mxu0 0.0
        %1580 = vmatprep.subr.mxu0 0.0
        %1581 = vmatpush1.msra.mxu0 0.0
        %1582 = vmatprep.mubr.f32.mxu0 0.0
        %1583 = vmatmul.mubr.f32.gmra.mrb[0].mxu0 %v1513
        %v1584 = vpop.f32.mrb[0].mxu0
        %v1585 = vadd.f32 0.0, %v1584
        %v1586 = vpop.f32.mrb[0].mxu0
        %1587 = vmatprep.mubr.f32.mxu0 0.0
        %1588 = vmatmul.mubr.f32.gmra.mrb[0].mxu0 %v1516
        %v1589 = vpop.f32.mrb[0].mxu0
        %v1590 = vadd.f32 0.0, %v1589
        %v1591 = vpop.f32.mrb[0].mxu0
        %1592 = vdwg.mxu0
        %1593 = vrot.lane.b32.xlu0 %v501, 64
        %v1594 = vpop.permute.xlu0 %1593
        %1595 = vrot.lane.b32.xlu0 %v502, 64
        %v1596 = vpop.permute.xlu0 %1595
        %v1600 = vsel %vm1242, %v1407, 0
        %v1603 = vsel %vm1242, %v1408, 0
        %1605 = vmatprep.subr.mxu0 0.0
        %1606 = vmatpush1.msra.mxu0 %v1594
        %1607 = vmatprep.subr.mxu0 0.0
        %1608 = vmatpush1.msra.mxu0 %v1596
        %1609 = vmatprep.subr.mxu0 0.0
        %1610 = vmatpush1.msra.mxu0 0.0
        %1611 = vmatprep.subr.mxu0 0.0
        %1612 = vmatpush1.msra.mxu0 0.0
        %1613 = vmatprep.subr.mxu0 0.0
        %1614 = vmatpush1.msra.mxu0 0.0
        %1615 = vmatprep.subr.mxu0 0.0
        %1616 = vmatpush1.msra.mxu0 0.0
        %1617 = vmatprep.subr.mxu0 0.0
        %1618 = vmatpush1.msra.mxu0 0.0
        %1619 = vmatprep.subr.mxu0 0.0
        %1620 = vmatpush1.msra.mxu0 0.0
        %1621 = vmatprep.subr.mxu0 0.0
        %1622 = vmatpush1.msra.mxu0 0.0
        %1623 = vmatprep.subr.mxu0 0.0
        %1624 = vmatpush1.msra.mxu0 0.0
        %1625 = vmatprep.subr.mxu0 0.0
        %1626 = vmatpush1.msra.mxu0 0.0
        %1627 = vmatprep.subr.mxu0 0.0
        %1628 = vmatpush1.msra.mxu0 0.0
        %1629 = vmatprep.subr.mxu0 0.0
        %1630 = vmatpush1.msra.mxu0 0.0
        %1631 = vmatprep.subr.mxu0 0.0
        %1632 = vmatpush1.msra.mxu0 0.0
        %1633 = vmatprep.subr.mxu0 0.0
        %1634 = vmatpush1.msra.mxu0 0.0
        %1635 = vmatprep.subr.mxu0 0.0
        %1636 = vmatpush1.msra.mxu0 0.0
        %1637 = vmatprep.subr.mxu0 0.0
        %1638 = vmatpush1.msra.mxu0 0.0
        %1639 = vmatprep.subr.mxu0 0.0
        %1640 = vmatpush1.msra.mxu0 0.0
        %1641 = vmatprep.subr.mxu0 0.0
        %1642 = vmatpush1.msra.mxu0 0.0
        %1643 = vmatprep.subr.mxu0 0.0
        %1644 = vmatpush1.msra.mxu0 0.0
        %1645 = vmatprep.subr.mxu0 0.0
        %1646 = vmatpush1.msra.mxu0 0.0
        %1647 = vmatprep.subr.mxu0 0.0
        %1648 = vmatpush1.msra.mxu0 0.0
        %1649 = vmatprep.subr.mxu0 0.0
        %1650 = vmatpush1.msra.mxu0 0.0
        %1651 = vmatprep.subr.mxu0 0.0
        %1652 = vmatpush1.msra.mxu0 0.0
        %1653 = vmatprep.subr.mxu0 0.0
        %1654 = vmatpush1.msra.mxu0 0.0
        %1655 = vmatprep.subr.mxu0 0.0
        %1656 = vmatpush1.msra.mxu0 0.0
        %1657 = vmatprep.subr.mxu0 0.0
        %1658 = vmatpush1.msra.mxu0 0.0
        %1659 = vmatprep.subr.mxu0 0.0
        %1660 = vmatpush1.msra.mxu0 0.0
        %1661 = vmatprep.subr.mxu0 0.0
        %1662 = vmatpush1.msra.mxu0 0.0
        %1663 = vmatprep.subr.mxu0 0.0
        %1664 = vmatpush1.msra.mxu0 0.0
        %1665 = vmatprep.subr.mxu0 0.0
        %1666 = vmatpush1.msra.mxu0 0.0
        %1667 = vmatprep.subr.mxu0 0.0
        %1668 = vmatpush1.msra.mxu0 0.0
        %1669 = vmatprep.mubr.f32.mxu0 0.0
        %1670 = vmatmul.mubr.f32.gmra.mrb[0].mxu0 %v1600
        %v1671 = vpop.f32.mrb[0].mxu0
        %v1672 = vadd.f32 0.0, %v1671
        %v1673 = vpop.f32.mrb[0].mxu0
        %1674 = vmatprep.mubr.f32.mxu0 0.0
        %1675 = vmatmul.mubr.f32.gmra.mrb[0].mxu0 %v1603
        %v1676 = vpop.f32.mrb[0].mxu0
        %v1677 = vadd.f32 0.0, %v1676
        %v1678 = vpop.f32.mrb[0].mxu0
        %1679 = vdwg.mxu0
        %1680 = vrot.lane.b32.xlu0 %v503, 64
        %v1681 = vpop.permute.xlu0 %1680
        %1682 = vrot.lane.b32.xlu0 %v504, 64
        %v1683 = vpop.permute.xlu0 %1682
        %v1687 = vsel %vm1242, %v1409, 0
        %v1690 = vsel %vm1242, %v1410, 0
        %1692 = vmatprep.subr.mxu0 0.0
        %1693 = vmatpush1.msra.mxu0 %v1681
        %1694 = vmatprep.subr.mxu0 0.0
        %1695 = vmatpush1.msra.mxu0 %v1683
        %1696 = vmatprep.subr.mxu0 0.0
        %1697 = vmatpush1.msra.mxu0 0.0
        %1698 = vmatprep.subr.mxu0 0.0
        %1699 = vmatpush1.msra.mxu0 0.0
        %1700 = vmatprep.subr.mxu0 0.0
        %1701 = vmatpush1.msra.mxu0 0.0
        %1702 = vmatprep.subr.mxu0 0.0
        %1703 = vmatpush1.msra.mxu0 0.0
        %1704 = vmatprep.subr.mxu0 0.0
        %1705 = vmatpush1.msra.mxu0 0.0
        %1706 = vmatprep.subr.mxu0 0.0
        %1707 = vmatpush1.msra.mxu0 0.0
        %1708 = vmatprep.subr.mxu0 0.0
        %1709 = vmatpush1.msra.mxu0 0.0
        %1710 = vmatprep.subr.mxu0 0.0
        %1711 = vmatpush1.msra.mxu0 0.0
        %1712 = vmatprep.subr.mxu0 0.0
        %1713 = vmatpush1.msra.mxu0 0.0
        %1714 = vmatprep.subr.mxu0 0.0
        %1715 = vmatpush1.msra.mxu0 0.0
        %1716 = vmatprep.subr.mxu0 0.0
        %1717 = vmatpush1.msra.mxu0 0.0
        %1718 = vmatprep.subr.mxu0 0.0
        %1719 = vmatpush1.msra.mxu0 0.0
        %1720 = vmatprep.subr.mxu0 0.0
        %1721 = vmatpush1.msra.mxu0 0.0
        %1722 = vmatprep.subr.mxu0 0.0
        %1723 = vmatpush1.msra.mxu0 0.0
        %1724 = vmatprep.subr.mxu0 0.0
        %1725 = vmatpush1.msra.mxu0 0.0
        %1726 = vmatprep.subr.mxu0 0.0
        %1727 = vmatpush1.msra.mxu0 0.0
        %1728 = vmatprep.subr.mxu0 0.0
        %1729 = vmatpush1.msra.mxu0 0.0
        %1730 = vmatprep.subr.mxu0 0.0
        %1731 = vmatpush1.msra.mxu0 0.0
        %1732 = vmatprep.subr.mxu0 0.0
        %1733 = vmatpush1.msra.mxu0 0.0
        %1734 = vmatprep.subr.mxu0 0.0
        %1735 = vmatpush1.msra.mxu0 0.0
        %1736 = vmatprep.subr.mxu0 0.0
        %1737 = vmatpush1.msra.mxu0 0.0
        %1738 = vmatprep.subr.mxu0 0.0
        %1739 = vmatpush1.msra.mxu0 0.0
        %1740 = vmatprep.subr.mxu0 0.0
        %1741 = vmatpush1.msra.mxu0 0.0
        %1742 = vmatprep.subr.mxu0 0.0
        %1743 = vmatpush1.msra.mxu0 0.0
        %1744 = vmatprep.subr.mxu0 0.0
        %1745 = vmatpush1.msra.mxu0 0.0
        %1746 = vmatprep.subr.mxu0 0.0
        %1747 = vmatpush1.msra.mxu0 0.0
        %1748 = vmatprep.subr.mxu0 0.0
        %1749 = vmatpush1.msra.mxu0 0.0
        %1750 = vmatprep.subr.mxu0 0.0
        %1751 = vmatpush1.msra.mxu0 0.0
        %1752 = vmatprep.subr.mxu0 0.0
        %1753 = vmatpush1.msra.mxu0 0.0
        %1754 = vmatprep.subr.mxu0 0.0
        %1755 = vmatpush1.msra.mxu0 0.0
        %1756 = vmatprep.mubr.f32.mxu0 0.0
        %1757 = vmatmul.mubr.f32.gmra.mrb[0].mxu0 %v1687
        %v1758 = vpop.f32.mrb[0].mxu0
        %v1759 = vadd.f32 0.0, %v1758
        %v1760 = vpop.f32.mrb[0].mxu0
        %1761 = vmatprep.mubr.f32.mxu0 0.0
        %1762 = vmatmul.mubr.f32.gmra.mrb[0].mxu0 %v1690
        %v1763 = vpop.f32.mrb[0].mxu0
        %v1764 = vadd.f32 0.0, %v1763
        %v1765 = vpop.f32.mrb[0].mxu0
        %1766 = vdwg.mxu0
        %1767 = vrot.lane.b32.xlu0 %v505, 64
        %v1768 = vpop.permute.xlu0 %1767
        %1769 = vrot.lane.b32.xlu0 %v506, 64
        %v1770 = vpop.permute.xlu0 %1769
        %v1774 = vsel %vm1242, %v1411, 0
        %v1777 = vsel %vm1242, %v1412, 0
        %1779 = vmatprep.subr.mxu0 0.0
        %1780 = vmatpush1.msra.mxu0 %v1768
        %1781 = vmatprep.subr.mxu0 0.0
        %1782 = vmatpush1.msra.mxu0 %v1770
        %1783 = vmatprep.subr.mxu0 0.0
        %1784 = vmatpush1.msra.mxu0 0.0
        %1785 = vmatprep.subr.mxu0 0.0
        %1786 = vmatpush1.msra.mxu0 0.0
        %1787 = vmatprep.subr.mxu0 0.0
        %1788 = vmatpush1.msra.mxu0 0.0
        %1789 = vmatprep.subr.mxu0 0.0
        %1790 = vmatpush1.msra.mxu0 0.0
        %1791 = vmatprep.subr.mxu0 0.0
        %1792 = vmatpush1.msra.mxu0 0.0
        %1793 = vmatprep.subr.mxu0 0.0
        %1794 = vmatpush1.msra.mxu0 0.0
        %1795 = vmatprep.subr.mxu0 0.0
        %1796 = vmatpush1.msra.mxu0 0.0
        %1797 = vmatprep.subr.mxu0 0.0
        %1798 = vmatpush1.msra.mxu0 0.0
        %1799 = vmatprep.subr.mxu0 0.0
        %1800 = vmatpush1.msra.mxu0 0.0
        %1801 = vmatprep.subr.mxu0 0.0
        %1802 = vmatpush1.msra.mxu0 0.0
        %1803 = vmatprep.subr.mxu0 0.0
        %1804 = vmatpush1.msra.mxu0 0.0
        %1805 = vmatprep.subr.mxu0 0.0
        %1806 = vmatpush1.msra.mxu0 0.0
        %1807 = vmatprep.subr.mxu0 0.0
        %1808 = vmatpush1.msra.mxu0 0.0
        %1809 = vmatprep.subr.mxu0 0.0
        %1810 = vmatpush1.msra.mxu0 0.0
        %1811 = vmatprep.subr.mxu0 0.0
        %1812 = vmatpush1.msra.mxu0 0.0
        %1813 = vmatprep.subr.mxu0 0.0
        %1814 = vmatpush1.msra.mxu0 0.0
        %1815 = vmatprep.subr.mxu0 0.0
        %1816 = vmatpush1.msra.mxu0 0.0
        %1817 = vmatprep.subr.mxu0 0.0
        %1818 = vmatpush1.msra.mxu0 0.0
        %1819 = vmatprep.subr.mxu0 0.0
        %1820 = vmatpush1.msra.mxu0 0.0
        %1821 = vmatprep.subr.mxu0 0.0
        %1822 = vmatpush1.msra.mxu0 0.0
        %1823 = vmatprep.subr.mxu0 0.0
        %1824 = vmatpush1.msra.mxu0 0.0
        %1825 = vmatprep.subr.mxu0 0.0
        %1826 = vmatpush1.msra.mxu0 0.0
        %1827 = vmatprep.subr.mxu0 0.0
        %1828 = vmatpush1.msra.mxu0 0.0
        %1829 = vmatprep.subr.mxu0 0.0
        %1830 = vmatpush1.msra.mxu0 0.0
        %1831 = vmatprep.subr.mxu0 0.0
        %1832 = vmatpush1.msra.mxu0 0.0
        %1833 = vmatprep.subr.mxu0 0.0
        %1834 = vmatpush1.msra.mxu0 0.0
        %1835 = vmatprep.subr.mxu0 0.0
        %1836 = vmatpush1.msra.mxu0 0.0
        %1837 = vmatprep.subr.mxu0 0.0
        %1838 = vmatpush1.msra.mxu0 0.0
        %1839 = vmatprep.subr.mxu0 0.0
        %1840 = vmatpush1.msra.mxu0 0.0
        %1841 = vmatprep.subr.mxu0 0.0
        %1842 = vmatpush1.msra.mxu0 0.0
        %1843 = vmatprep.mubr.f32.mxu0 0.0
        %1844 = vmatmul.mubr.f32.gmra.mrb[0].mxu0 %v1774
        %v1845 = vpop.f32.mrb[0].mxu0
        %v1846 = vadd.f32 0.0, %v1845
        %v1847 = vpop.f32.mrb[0].mxu0
        %1848 = vmatprep.mubr.f32.mxu0 0.0
        %1849 = vmatmul.mubr.f32.gmra.mrb[0].mxu0 %v1777
        %v1850 = vpop.f32.mrb[0].mxu0
        %v1851 = vadd.f32 0.0, %v1850
        %v1852 = vpop.f32.mrb[0].mxu0
        %1853 = vdwg.mxu0
        %1854 = vrot.lane.b32.xlu0 %v507, 64
        %v1855 = vpop.permute.xlu0 %1854
        %1856 = vrot.lane.b32.xlu0 %v508, 64
        %v1857 = vpop.permute.xlu0 %1856
        %v1861 = vsel %vm1242, %v1413, 0
        %v1864 = vsel %vm1242, %v1414, 0
        %1866 = vmatprep.subr.mxu0 0.0
        %1867 = vmatpush1.msra.mxu0 %v1855
        %1868 = vmatprep.subr.mxu0 0.0
        %1869 = vmatpush1.msra.mxu0 %v1857
        %1870 = vmatprep.subr.mxu0 0.0
        %1871 = vmatpush1.msra.mxu0 0.0
        %1872 = vmatprep.subr.mxu0 0.0
        %1873 = vmatpush1.msra.mxu0 0.0
        %1874 = vmatprep.subr.mxu0 0.0
        %1875 = vmatpush1.msra.mxu0 0.0
        %1876 = vmatprep.subr.mxu0 0.0
        %1877 = vmatpush1.msra.mxu0 0.0
        %1878 = vmatprep.subr.mxu0 0.0
        %1879 = vmatpush1.msra.mxu0 0.0
        %1880 = vmatprep.subr.mxu0 0.0
        %1881 = vmatpush1.msra.mxu0 0.0
        %1882 = vmatprep.subr.mxu0 0.0
        %1883 = vmatpush1.msra.mxu0 0.0
        %1884 = vmatprep.subr.mxu0 0.0
        %1885 = vmatpush1.msra.mxu0 0.0
        %1886 = vmatprep.subr.mxu0 0.0
        %1887 = vmatpush1.msra.mxu0 0.0
        %1888 = vmatprep.subr.mxu0 0.0
        %1889 = vmatpush1.msra.mxu0 0.0
        %1890 = vmatprep.subr.mxu0 0.0
        %1891 = vmatpush1.msra.mxu0 0.0
        %1892 = vmatprep.subr.mxu0 0.0
        %1893 = vmatpush1.msra.mxu0 0.0
        %1894 = vmatprep.subr.mxu0 0.0
        %1895 = vmatpush1.msra.mxu0 0.0
        %1896 = vmatprep.subr.mxu0 0.0
        %1897 = vmatpush1.msra.mxu0 0.0
        %1898 = vmatprep.subr.mxu0 0.0
        %1899 = vmatpush1.msra.mxu0 0.0
        %1900 = vmatprep.subr.mxu0 0.0
        %1901 = vmatpush1.msra.mxu0 0.0
        %1902 = vmatprep.subr.mxu0 0.0
        %1903 = vmatpush1.msra.mxu0 0.0
        %1904 = vmatprep.subr.mxu0 0.0
        %1905 = vmatpush1.msra.mxu0 0.0
        %1906 = vmatprep.subr.mxu0 0.0
        %1907 = vmatpush1.msra.mxu0 0.0
        %1908 = vmatprep.subr.mxu0 0.0
        %1909 = vmatpush1.msra.mxu0 0.0
        %1910 = vmatprep.subr.mxu0 0.0
        %1911 = vmatpush1.msra.mxu0 0.0
        %1912 = vmatprep.subr.mxu0 0.0
        %1913 = vmatpush1.msra.mxu0 0.0
        %1914 = vmatprep.subr.mxu0 0.0
        %1915 = vmatpush1.msra.mxu0 0.0
        %1916 = vmatprep.subr.mxu0 0.0
        %1917 = vmatpush1.msra.mxu0 0.0
        %1918 = vmatprep.subr.mxu0 0.0
        %1919 = vmatpush1.msra.mxu0 0.0
        %1920 = vmatprep.subr.mxu0 0.0
        %1921 = vmatpush1.msra.mxu0 0.0
        %1922 = vmatprep.subr.mxu0 0.0
        %1923 = vmatpush1.msra.mxu0 0.0
        %1924 = vmatprep.subr.mxu0 0.0
        %1925 = vmatpush1.msra.mxu0 0.0
        %1926 = vmatprep.subr.mxu0 0.0
        %1927 = vmatpush1.msra.mxu0 0.0
        %1928 = vmatprep.subr.mxu0 0.0
        %1929 = vmatpush1.msra.mxu0 0.0
        %1930 = vmatprep.mubr.f32.mxu0 0.0
        %1931 = vmatmul.mubr.f32.gmra.mrb[0].mxu0 %v1861
        %v1932 = vpop.f32.mrb[0].mxu0
        %v1933 = vadd.f32 0.0, %v1932
        %v1934 = vpop.f32.mrb[0].mxu0
        %1935 = vmatprep.mubr.f32.mxu0 0.0
        %1936 = vmatmul.mubr.f32.gmra.mrb[0].mxu0 %v1864
        %v1937 = vpop.f32.mrb[0].mxu0
        %v1938 = vadd.f32 0.0, %v1937
        %v1939 = vpop.f32.mrb[0].mxu0
        %1940 = vdwg.mxu0
        %1941 = vrot.lane.b32.xlu0 %v509, 64
        %v1942 = vpop.permute.xlu0 %1941
        %1943 = vrot.lane.b32.xlu0 %v510, 64
        %v1944 = vpop.permute.xlu0 %1943
        %v1948 = vsel %vm1242, %v1415, 0
        %v1951 = vsel %vm1242, %v1416, 0
        %1953 = vmatprep.subr.mxu0 0.0
        %1954 = vmatpush1.msra.mxu0 %v1942
        %1955 = vmatprep.subr.mxu0 0.0
        %1956 = vmatpush1.msra.mxu0 %v1944
        %1957 = vmatprep.subr.mxu0 0.0
        %1958 = vmatpush1.msra.mxu0 0.0
        %1959 = vmatprep.subr.mxu0 0.0
        %1960 = vmatpush1.msra.mxu0 0.0
        %1961 = vmatprep.subr.mxu0 0.0
        %1962 = vmatpush1.msra.mxu0 0.0
        %1963 = vmatprep.subr.mxu0 0.0
        %1964 = vmatpush1.msra.mxu0 0.0
        %1965 = vmatprep.subr.mxu0 0.0
        %1966 = vmatpush1.msra.mxu0 0.0
        %1967 = vmatprep.subr.mxu0 0.0
        %1968 = vmatpush1.msra.mxu0 0.0
        %1969 = vmatprep.subr.mxu0 0.0
        %1970 = vmatpush1.msra.mxu0 0.0
        %1971 = vmatprep.subr.mxu0 0.0
        %1972 = vmatpush1.msra.mxu0 0.0
        %1973 = vmatprep.subr.mxu0 0.0
        %1974 = vmatpush1.msra.mxu0 0.0
        %1975 = vmatprep.subr.mxu0 0.0
        %1976 = vmatpush1.msra.mxu0 0.0
        %1977 = vmatprep.subr.mxu0 0.0
        %1978 = vmatpush1.msra.mxu0 0.0
        %1979 = vmatprep.subr.mxu0 0.0
        %1980 = vmatpush1.msra.mxu0 0.0
        %1981 = vmatprep.subr.mxu0 0.0
        %1982 = vmatpush1.msra.mxu0 0.0
        %1983 = vmatprep.subr.mxu0 0.0
        %1984 = vmatpush1.msra.mxu0 0.0
        %1985 = vmatprep.subr.mxu0 0.0
        %1986 = vmatpush1.msra.mxu0 0.0
        %1987 = vmatprep.subr.mxu0 0.0
        %1988 = vmatpush1.msra.mxu0 0.0
        %1989 = vmatprep.subr.mxu0 0.0
        %1990 = vmatpush1.msra.mxu0 0.0
        %1991 = vmatprep.subr.mxu0 0.0
        %1992 = vmatpush1.msra.mxu0 0.0
        %1993 = vmatprep.subr.mxu0 0.0
        %1994 = vmatpush1.msra.mxu0 0.0
        %1995 = vmatprep.subr.mxu0 0.0
        %1996 = vmatpush1.msra.mxu0 0.0
        %1997 = vmatprep.subr.mxu0 0.0
        %1998 = vmatpush1.msra.mxu0 0.0
        %1999 = vmatprep.subr.mxu0 0.0
        %2000 = vmatpush1.msra.mxu0 0.0
        %2001 = vmatprep.subr.mxu0 0.0
        %2002 = vmatpush1.msra.mxu0 0.0
        %2003 = vmatprep.subr.mxu0 0.0
        %2004 = vmatpush1.msra.mxu0 0.0
        %2005 = vmatprep.subr.mxu0 0.0
        %2006 = vmatpush1.msra.mxu0 0.0
        %2007 = vmatprep.subr.mxu0 0.0
        %2008 = vmatpush1.msra.mxu0 0.0
        %2009 = vmatprep.subr.mxu0 0.0
        %2010 = vmatpush1.msra.mxu0 0.0
        %2011 = vmatprep.subr.mxu0 0.0
        %2012 = vmatpush1.msra.mxu0 0.0
        %2013 = vmatprep.subr.mxu0 0.0
        %2014 = vmatpush1.msra.mxu0 0.0
        %2015 = vmatprep.subr.mxu0 0.0
        %2016 = vmatpush1.msra.mxu0 0.0
        %2017 = vmatprep.mubr.f32.mxu0 0.0
        %2018 = vmatmul.mubr.f32.gmra.mrb[0].mxu0 %v1948
        %v2019 = vpop.f32.mrb[0].mxu0
        %v2020 = vadd.f32 0.0, %v2019
        %v2021 = vpop.f32.mrb[0].mxu0
        %2022 = vmatprep.mubr.f32.mxu0 0.0
        %2023 = vmatmul.mubr.f32.gmra.mrb[0].mxu0 %v1951
        %v2024 = vpop.f32.mrb[0].mxu0
        %v2025 = vadd.f32 0.0, %v2024
        %v2026 = vpop.f32.mrb[0].mxu0
        %2027 = vdwg.mxu0
        %2028 = vrot.lane.b32.xlu0 %v511, 64
        %v2029 = vpop.permute.xlu0 %2028
        %2030 = vrot.lane.b32.xlu0 %v512, 64
        %v2031 = vpop.permute.xlu0 %2030
        %v2035 = vsel %vm1242, %v1417, 0
        %v2038 = vsel %vm1242, %v1418, 0
        %2040 = vmatprep.subr.mxu0 0.0
        %2041 = vmatpush1.msra.mxu0 %v2029
        %2042 = vmatprep.subr.mxu0 0.0
        %2043 = vmatpush1.msra.mxu0 %v2031
        %2044 = vmatprep.subr.mxu0 0.0
        %2045 = vmatpush1.msra.mxu0 0.0
        %2046 = vmatprep.subr.mxu0 0.0
        %2047 = vmatpush1.msra.mxu0 0.0
        %2048 = vmatprep.subr.mxu0 0.0
        %2049 = vmatpush1.msra.mxu0 0.0
        %2050 = vmatprep.subr.mxu0 0.0
        %2051 = vmatpush1.msra.mxu0 0.0
        %2052 = vmatprep.subr.mxu0 0.0
        %2053 = vmatpush1.msra.mxu0 0.0
        %2054 = vmatprep.subr.mxu0 0.0
        %2055 = vmatpush1.msra.mxu0 0.0
        %2056 = vmatprep.subr.mxu0 0.0
        %2057 = vmatpush1.msra.mxu0 0.0
        %2058 = vmatprep.subr.mxu0 0.0
        %2059 = vmatpush1.msra.mxu0 0.0
        %2060 = vmatprep.subr.mxu0 0.0
        %2061 = vmatpush1.msra.mxu0 0.0
        %2062 = vmatprep.subr.mxu0 0.0
        %2063 = vmatpush1.msra.mxu0 0.0
        %2064 = vmatprep.subr.mxu0 0.0
        %2065 = vmatpush1.msra.mxu0 0.0
        %2066 = vmatprep.subr.mxu0 0.0
        %2067 = vmatpush1.msra.mxu0 0.0
        %2068 = vmatprep.subr.mxu0 0.0
        %2069 = vmatpush1.msra.mxu0 0.0
        %2070 = vmatprep.subr.mxu0 0.0
        %2071 = vmatpush1.msra.mxu0 0.0
        %2072 = vmatprep.subr.mxu0 0.0
        %2073 = vmatpush1.msra.mxu0 0.0
        %2074 = vmatprep.subr.mxu0 0.0
        %2075 = vmatpush1.msra.mxu0 0.0
        %2076 = vmatprep.subr.mxu0 0.0
        %2077 = vmatpush1.msra.mxu0 0.0
        %2078 = vmatprep.subr.mxu0 0.0
        %2079 = vmatpush1.msra.mxu0 0.0
        %2080 = vmatprep.subr.mxu0 0.0
        %2081 = vmatpush1.msra.mxu0 0.0
        %2082 = vmatprep.subr.mxu0 0.0
        %2083 = vmatpush1.msra.mxu0 0.0
        %2084 = vmatprep.subr.mxu0 0.0
        %2085 = vmatpush1.msra.mxu0 0.0
        %2086 = vmatprep.subr.mxu0 0.0
        %2087 = vmatpush1.msra.mxu0 0.0
        %2088 = vmatprep.subr.mxu0 0.0
        %2089 = vmatpush1.msra.mxu0 0.0
        %2090 = vmatprep.subr.mxu0 0.0
        %2091 = vmatpush1.msra.mxu0 0.0
        %2092 = vmatprep.subr.mxu0 0.0
        %2093 = vmatpush1.msra.mxu0 0.0
        %2094 = vmatprep.subr.mxu0 0.0
        %2095 = vmatpush1.msra.mxu0 0.0
        %2096 = vmatprep.subr.mxu0 0.0
        %2097 = vmatpush1.msra.mxu0 0.0
        %2098 = vmatprep.subr.mxu0 0.0
        %2099 = vmatpush1.msra.mxu0 0.0
        %2100 = vmatprep.subr.mxu0 0.0
        %2101 = vmatpush1.msra.mxu0 0.0
        %2102 = vmatprep.subr.mxu0 0.0
        %2103 = vmatpush1.msra.mxu0 0.0
        %2104 = vmatprep.mubr.f32.mxu0 0.0
        %2105 = vmatmul.mubr.f32.gmra.mrb[0].mxu0 %v2035
        %v2106 = vpop.f32.mrb[0].mxu0
        %v2107 = vadd.f32 0.0, %v2106
        %v2108 = vpop.f32.mrb[0].mxu0
        %2109 = vmatprep.mubr.f32.mxu0 0.0
        %2110 = vmatmul.mubr.f32.gmra.mrb[0].mxu0 %v2038
        %v2111 = vpop.f32.mrb[0].mxu0
        %v2112 = vadd.f32 0.0, %v2111
        %v2113 = vpop.f32.mrb[0].mxu0
        %2114 = vdwg.mxu0
        %2115 = vst.msk [vmem:[#allocation3] sm:$0xff] %vm519, %v1498
        %2116 = vst.msk [vmem:[#allocation3 + $0x8] sm:$0xff] %vm519, %v1503
        %2117 = vst.msk [vmem:[#allocation3 + $0x10] sm:$0xff] %vm519, %v1585
        %2118 = vst.msk [vmem:[#allocation3 + $0x18] sm:$0xff] %vm519, %v1590
        %2119 = vst.msk [vmem:[#allocation3 + $0x20] sm:$0xff] %vm519, %v1672
        %2120 = vst.msk [vmem:[#allocation3 + $0x28] sm:$0xff] %vm519, %v1677
        %2121 = vst.msk [vmem:[#allocation3 + $0x30] sm:$0xff] %vm519, %v1759
        %2122 = vst.msk [vmem:[#allocation3 + $0x38] sm:$0xff] %vm519, %v1764
        %2123 = vst.msk [vmem:[#allocation3 + $0x40] sm:$0xff] %vm519, %v1846
        %2124 = vst.msk [vmem:[#allocation3 + $0x48] sm:$0xff] %vm519, %v1851
        %2125 = vst.msk [vmem:[#allocation3 + $0x50] sm:$0xff] %vm519, %v1933
        %2126 = vst.msk [vmem:[#allocation3 + $0x58] sm:$0xff] %vm519, %v1938
        %2127 = vst.msk [vmem:[#allocation3 + $0x60] sm:$0xff] %vm519, %v2020
        %2128 = vst.msk [vmem:[#allocation3 + $0x68] sm:$0xff] %vm519, %v2025
        %2129 = vst.msk [vmem:[#allocation3 + $0x70] sm:$0xff] %vm519, %v2107
        %2130 = vst.msk [vmem:[#allocation3 + $0x78] sm:$0xff] %vm519, %v2112
        %v2131 = vld [vmem:[#allocation2] sm:$0xff]
        %v2132 = vld [vmem:[#allocation2 + $0x8] sm:$0xff]
        %v2133 = vld [vmem:[#allocation2 + $0x10] sm:$0xff]
        %v2134 = vld [vmem:[#allocation2 + $0x18] sm:$0xff]
        %v2135 = vld [vmem:[#allocation2 + $0x20] sm:$0xff]
        %v2136 = vld [vmem:[#allocation2 + $0x28] sm:$0xff]
        %v2137 = vld [vmem:[#allocation2 + $0x30] sm:$0xff]
        %v2138 = vld [vmem:[#allocation2 + $0x38] sm:$0xff]
        %v2139 = vld [vmem:[#allocation2 + $0x40] sm:$0xff]
        %v2140 = vld [vmem:[#allocation2 + $0x48] sm:$0xff]
        %v2141 = vld [vmem:[#allocation2 + $0x50] sm:$0xff]
        %v2142 = vld [vmem:[#allocation2 + $0x58] sm:$0xff]
        %v2143 = vld [vmem:[#allocation2 + $0x60] sm:$0xff]
        %v2144 = vld [vmem:[#allocation2 + $0x68] sm:$0xff]
        %v2145 = vld [vmem:[#allocation2 + $0x70] sm:$0xff]
        %v2146 = vld [vmem:[#allocation2 + $0x78] sm:$0xff]
        %2149 = vrot.lane.b32.xlu0 %v2131, 120
        %v2150 = vpop.permute.xlu0 %2149
        %2151 = vrot.lane.b32.xlu0 %v2132, 120
        %v2152 = vpop.permute.xlu0 %2151
        %2153 = vrot.lane.b32.xlu0 %v2131, 88
        %v2154 = vpop.permute.xlu0 %2153
        %2155 = vrot.lane.b32.xlu0 %v2132, 88
        %v2156 = vpop.permute.xlu0 %2155
        %v2157 = vsel %vm519, %v2150, 0
        %v2159 = vsel %vm519, %v2152, 0
        %v2161 = vsel %vm519, %v2154, 0
        %v2163 = vsel %vm519, %v2156, 0
        %2165 = vmatprep.subr.mxu0 0.0
        %2166 = vmatpush1.xpose.msra.mxu0 %v2161
        %2167 = vmatprep.subr.mxu0 0.0
        %2168 = vmatpush1.xpose.msra.mxu0 %v2163
        %2169 = vmatprep.subr.mxu0 0.0
        %2170 = vmatpush1.xpose.msra.mxu0 0.0
        %2171 = vmatprep.subr.mxu0 0.0
        %2172 = vmatpush1.xpose.msra.mxu0 0.0
        %2173 = vmatprep.subr.mxu0 0.0
        %2174 = vmatpush1.xpose.msra.mxu0 0.0
        %2175 = vmatprep.subr.mxu0 0.0
        %2176 = vmatpush1.xpose.msra.mxu0 0.0
        %2177 = vmatprep.subr.mxu0 0.0
        %2178 = vmatpush1.xpose.msra.mxu0 0.0
        %2179 = vmatprep.subr.mxu0 0.0
        %2180 = vmatpush1.xpose.msra.mxu0 0.0
        %2181 = vmatprep.subr.mxu0 0.0
        %2182 = vmatpush1.xpose.msra.mxu0 0.0
        %2183 = vmatprep.subr.mxu0 0.0
        %2184 = vmatpush1.xpose.msra.mxu0 0.0
        %2185 = vmatprep.subr.mxu0 0.0
        %2186 = vmatpush1.xpose.msra.mxu0 0.0
        %2187 = vmatprep.subr.mxu0 0.0
        %2188 = vmatpush1.xpose.msra.mxu0 0.0
        %2189 = vmatprep.subr.mxu0 0.0
        %2190 = vmatpush1.xpose.msra.mxu0 0.0
        %2191 = vmatprep.subr.mxu0 0.0
        %2192 = vmatpush1.xpose.msra.mxu0 0.0
        %2193 = vmatprep.subr.mxu0 0.0
        %2194 = vmatpush1.xpose.msra.mxu0 0.0
        %2195 = vmatprep.subr.mxu0 0.0
        %2196 = vmatpush1.xpose.msra.mxu0 0.0
        %2197 = vmatprep.subr.mxu0 0.0
        %2198 = vmatpush1.xpose.msra.mxu0 0.0
        %2199 = vmatprep.subr.mxu0 0.0
        %2200 = vmatpush1.xpose.msra.mxu0 0.0
        %2201 = vmatprep.subr.mxu0 0.0
        %2202 = vmatpush1.xpose.msra.mxu0 0.0
        %2203 = vmatprep.subr.mxu0 0.0
        %2204 = vmatpush1.xpose.msra.mxu0 0.0
        %2205 = vmatprep.subr.mxu0 0.0
        %2206 = vmatpush1.xpose.msra.mxu0 0.0
        %2207 = vmatprep.subr.mxu0 0.0
        %2208 = vmatpush1.xpose.msra.mxu0 0.0
        %2209 = vmatprep.subr.mxu0 0.0
        %2210 = vmatpush1.xpose.msra.mxu0 0.0
        %2211 = vmatprep.subr.mxu0 0.0
        %2212 = vmatpush1.xpose.msra.mxu0 0.0
        %2213 = vmatprep.subr.mxu0 0.0
        %2214 = vmatpush1.xpose.msra.mxu0 0.0
        %2215 = vmatprep.subr.mxu0 0.0
        %2216 = vmatpush1.xpose.msra.mxu0 0.0
        %2217 = vmatprep.subr.mxu0 0.0
        %2218 = vmatpush1.xpose.msra.mxu0 0.0
        %2219 = vmatprep.subr.mxu0 0.0
        %2220 = vmatpush1.xpose.msra.mxu0 0.0
        %2221 = vmatprep.subr.mxu0 0.0
        %2222 = vmatpush1.xpose.msra.mxu0 0.0
        %2223 = vmatprep.subr.mxu0 0.0
        %2224 = vmatpush1.xpose.msra.mxu0 0.0
        %2225 = vmatprep.subr.mxu0 0.0
        %2226 = vmatpush1.xpose.msra.mxu0 0.0
        %2227 = vmatprep.subr.mxu0 0.0
        %2228 = vmatpush1.xpose.msra.mxu0 0.0
        %2229 = vmatprep.mubr.f32.mxu0 0.0
        %2230 = vmatmul.mubr.f32.gmra.mrb[0].mxu0 %v2157
        %v2231 = vpop.f32.mrb[0].mxu0
        %v2232 = vadd.f32 0.0, %v2231
        %v2233 = vpop.f32.mrb[0].mxu0
        %2234 = vmatprep.mubr.f32.mxu0 0.0
        %2235 = vmatmul.mubr.f32.gmra.mrb[0].mxu0 %v2159
        %v2236 = vpop.f32.mrb[0].mxu0
        %v2237 = vadd.f32 0.0, %v2236
        %v2238 = vpop.f32.mrb[0].mxu0
        %2239 = vdwg.mxu0
        %2242 = vrot.lane.b32.xlu0 %v2133, 120
        %v2243 = vpop.permute.xlu0 %2242
        %2244 = vrot.lane.b32.xlu0 %v2134, 120
        %v2245 = vpop.permute.xlu0 %2244
        %2246 = vrot.lane.b32.xlu0 %v2133, 88
        %v2247 = vpop.permute.xlu0 %2246
        %2248 = vrot.lane.b32.xlu0 %v2134, 88
        %v2249 = vpop.permute.xlu0 %2248
        %v2250 = vsel %vm519, %v2243, 0
        %v2252 = vsel %vm519, %v2245, 0
        %v2254 = vsel %vm519, %v2247, 0
        %v2256 = vsel %vm519, %v2249, 0
        %2258 = vmatprep.subr.mxu0 0.0
        %2259 = vmatpush1.xpose.msra.mxu0 %v2254
        %2260 = vmatprep.subr.mxu0 0.0
        %2261 = vmatpush1.xpose.msra.mxu0 %v2256
        %2262 = vmatprep.subr.mxu0 0.0
        %2263 = vmatpush1.xpose.msra.mxu0 0.0
        %2264 = vmatprep.subr.mxu0 0.0
        %2265 = vmatpush1.xpose.msra.mxu0 0.0
        %2266 = vmatprep.subr.mxu0 0.0
        %2267 = vmatpush1.xpose.msra.mxu0 0.0
        %2268 = vmatprep.subr.mxu0 0.0
        %2269 = vmatpush1.xpose.msra.mxu0 0.0
        %2270 = vmatprep.subr.mxu0 0.0
        %2271 = vmatpush1.xpose.msra.mxu0 0.0
        %2272 = vmatprep.subr.mxu0 0.0
        %2273 = vmatpush1.xpose.msra.mxu0 0.0
        %2274 = vmatprep.subr.mxu0 0.0
        %2275 = vmatpush1.xpose.msra.mxu0 0.0
        %2276 = vmatprep.subr.mxu0 0.0
        %2277 = vmatpush1.xpose.msra.mxu0 0.0
        %2278 = vmatprep.subr.mxu0 0.0
        %2279 = vmatpush1.xpose.msra.mxu0 0.0
        %2280 = vmatprep.subr.mxu0 0.0
        %2281 = vmatpush1.xpose.msra.mxu0 0.0
        %2282 = vmatprep.subr.mxu0 0.0
        %2283 = vmatpush1.xpose.msra.mxu0 0.0
        %2284 = vmatprep.subr.mxu0 0.0
        %2285 = vmatpush1.xpose.msra.mxu0 0.0
        %2286 = vmatprep.subr.mxu0 0.0
        %2287 = vmatpush1.xpose.msra.mxu0 0.0
        %2288 = vmatprep.subr.mxu0 0.0
        %2289 = vmatpush1.xpose.msra.mxu0 0.0
        %2290 = vmatprep.subr.mxu0 0.0
        %2291 = vmatpush1.xpose.msra.mxu0 0.0
        %2292 = vmatprep.subr.mxu0 0.0
        %2293 = vmatpush1.xpose.msra.mxu0 0.0
        %2294 = vmatprep.subr.mxu0 0.0
        %2295 = vmatpush1.xpose.msra.mxu0 0.0
        %2296 = vmatprep.subr.mxu0 0.0
        %2297 = vmatpush1.xpose.msra.mxu0 0.0
        %2298 = vmatprep.subr.mxu0 0.0
        %2299 = vmatpush1.xpose.msra.mxu0 0.0
        %2300 = vmatprep.subr.mxu0 0.0
        %2301 = vmatpush1.xpose.msra.mxu0 0.0
        %2302 = vmatprep.subr.mxu0 0.0
        %2303 = vmatpush1.xpose.msra.mxu0 0.0
        %2304 = vmatprep.subr.mxu0 0.0
        %2305 = vmatpush1.xpose.msra.mxu0 0.0
        %2306 = vmatprep.subr.mxu0 0.0
        %2307 = vmatpush1.xpose.msra.mxu0 0.0
        %2308 = vmatprep.subr.mxu0 0.0
        %2309 = vmatpush1.xpose.msra.mxu0 0.0
        %2310 = vmatprep.subr.mxu0 0.0
        %2311 = vmatpush1.xpose.msra.mxu0 0.0
        %2312 = vmatprep.subr.mxu0 0.0
        %2313 = vmatpush1.xpose.msra.mxu0 0.0
        %2314 = vmatprep.subr.mxu0 0.0
        %2315 = vmatpush1.xpose.msra.mxu0 0.0
        %2316 = vmatprep.subr.mxu0 0.0
        %2317 = vmatpush1.xpose.msra.mxu0 0.0
        %2318 = vmatprep.subr.mxu0 0.0
        %2319 = vmatpush1.xpose.msra.mxu0 0.0
        %2320 = vmatprep.subr.mxu0 0.0
        %2321 = vmatpush1.xpose.msra.mxu0 0.0
        %2322 = vmatprep.mubr.f32.mxu0 0.0
        %2323 = vmatmul.mubr.f32.gmra.mrb[0].mxu0 %v2250
        %v2324 = vpop.f32.mrb[0].mxu0
        %v2325 = vadd.f32 0.0, %v2324
        %v2326 = vpop.f32.mrb[0].mxu0
        %2327 = vmatprep.mubr.f32.mxu0 0.0
        %2328 = vmatmul.mubr.f32.gmra.mrb[0].mxu0 %v2252
        %v2329 = vpop.f32.mrb[0].mxu0
        %v2330 = vadd.f32 0.0, %v2329
        %v2331 = vpop.f32.mrb[0].mxu0
        %2332 = vdwg.mxu0
        %2335 = vrot.lane.b32.xlu0 %v2135, 120
        %v2336 = vpop.permute.xlu0 %2335
        %2337 = vrot.lane.b32.xlu0 %v2136, 120
        %v2338 = vpop.permute.xlu0 %2337
        %2339 = vrot.lane.b32.xlu0 %v2135, 88
        %v2340 = vpop.permute.xlu0 %2339
        %2341 = vrot.lane.b32.xlu0 %v2136, 88
        %v2342 = vpop.permute.xlu0 %2341
        %v2343 = vsel %vm519, %v2336, 0
        %v2345 = vsel %vm519, %v2338, 0
        %v2347 = vsel %vm519, %v2340, 0
        %v2349 = vsel %vm519, %v2342, 0
        %2351 = vmatprep.subr.mxu0 0.0
        %2352 = vmatpush1.xpose.msra.mxu0 %v2347
        %2353 = vmatprep.subr.mxu0 0.0
        %2354 = vmatpush1.xpose.msra.mxu0 %v2349
        %2355 = vmatprep.subr.mxu0 0.0
        %2356 = vmatpush1.xpose.msra.mxu0 0.0
        %2357 = vmatprep.subr.mxu0 0.0
        %2358 = vmatpush1.xpose.msra.mxu0 0.0
        %2359 = vmatprep.subr.mxu0 0.0
        %2360 = vmatpush1.xpose.msra.mxu0 0.0
        %2361 = vmatprep.subr.mxu0 0.0
        %2362 = vmatpush1.xpose.msra.mxu0 0.0
        %2363 = vmatprep.subr.mxu0 0.0
        %2364 = vmatpush1.xpose.msra.mxu0 0.0
        %2365 = vmatprep.subr.mxu0 0.0
        %2366 = vmatpush1.xpose.msra.mxu0 0.0
        %2367 = vmatprep.subr.mxu0 0.0
        %2368 = vmatpush1.xpose.msra.mxu0 0.0
        %2369 = vmatprep.subr.mxu0 0.0
        %2370 = vmatpush1.xpose.msra.mxu0 0.0
        %2371 = vmatprep.subr.mxu0 0.0
        %2372 = vmatpush1.xpose.msra.mxu0 0.0
        %2373 = vmatprep.subr.mxu0 0.0
        %2374 = vmatpush1.xpose.msra.mxu0 0.0
        %2375 = vmatprep.subr.mxu0 0.0
        %2376 = vmatpush1.xpose.msra.mxu0 0.0
        %2377 = vmatprep.subr.mxu0 0.0
        %2378 = vmatpush1.xpose.msra.mxu0 0.0
        %2379 = vmatprep.subr.mxu0 0.0
        %2380 = vmatpush1.xpose.msra.mxu0 0.0
        %2381 = vmatprep.subr.mxu0 0.0
        %2382 = vmatpush1.xpose.msra.mxu0 0.0
        %2383 = vmatprep.subr.mxu0 0.0
        %2384 = vmatpush1.xpose.msra.mxu0 0.0
        %2385 = vmatprep.subr.mxu0 0.0
        %2386 = vmatpush1.xpose.msra.mxu0 0.0
        %2387 = vmatprep.subr.mxu0 0.0
        %2388 = vmatpush1.xpose.msra.mxu0 0.0
        %2389 = vmatprep.subr.mxu0 0.0
        %2390 = vmatpush1.xpose.msra.mxu0 0.0
        %2391 = vmatprep.subr.mxu0 0.0
        %2392 = vmatpush1.xpose.msra.mxu0 0.0
        %2393 = vmatprep.subr.mxu0 0.0
        %2394 = vmatpush1.xpose.msra.mxu0 0.0
        %2395 = vmatprep.subr.mxu0 0.0
        %2396 = vmatpush1.xpose.msra.mxu0 0.0
        %2397 = vmatprep.subr.mxu0 0.0
        %2398 = vmatpush1.xpose.msra.mxu0 0.0
        %2399 = vmatprep.subr.mxu0 0.0
        %2400 = vmatpush1.xpose.msra.mxu0 0.0
        %2401 = vmatprep.subr.mxu0 0.0
        %2402 = vmatpush1.xpose.msra.mxu0 0.0
        %2403 = vmatprep.subr.mxu0 0.0
        %2404 = vmatpush1.xpose.msra.mxu0 0.0
        %2405 = vmatprep.subr.mxu0 0.0
        %2406 = vmatpush1.xpose.msra.mxu0 0.0
        %2407 = vmatprep.subr.mxu0 0.0
        %2408 = vmatpush1.xpose.msra.mxu0 0.0
        %2409 = vmatprep.subr.mxu0 0.0
        %2410 = vmatpush1.xpose.msra.mxu0 0.0
        %2411 = vmatprep.subr.mxu0 0.0
        %2412 = vmatpush1.xpose.msra.mxu0 0.0
        %2413 = vmatprep.subr.mxu0 0.0
        %2414 = vmatpush1.xpose.msra.mxu0 0.0
        %2415 = vmatprep.mubr.f32.mxu0 0.0
        %2416 = vmatmul.mubr.f32.gmra.mrb[0].mxu0 %v2343
        %v2417 = vpop.f32.mrb[0].mxu0
        %v2418 = vadd.f32 0.0, %v2417
        %v2419 = vpop.f32.mrb[0].mxu0
        %2420 = vmatprep.mubr.f32.mxu0 0.0
        %2421 = vmatmul.mubr.f32.gmra.mrb[0].mxu0 %v2345
        %v2422 = vpop.f32.mrb[0].mxu0
        %v2423 = vadd.f32 0.0, %v2422
        %v2424 = vpop.f32.mrb[0].mxu0
        %2425 = vdwg.mxu0
        %2428 = vrot.lane.b32.xlu0 %v2137, 120
        %v2429 = vpop.permute.xlu0 %2428
        %2430 = vrot.lane.b32.xlu0 %v2138, 120
        %v2431 = vpop.permute.xlu0 %2430
        %2432 = vrot.lane.b32.xlu0 %v2137, 88
        %v2433 = vpop.permute.xlu0 %2432
        %2434 = vrot.lane.b32.xlu0 %v2138, 88
        %v2435 = vpop.permute.xlu0 %2434
        %v2436 = vsel %vm519, %v2429, 0
        %v2438 = vsel %vm519, %v2431, 0
        %v2440 = vsel %vm519, %v2433, 0
        %v2442 = vsel %vm519, %v2435, 0
        %2444 = vmatprep.subr.mxu0 0.0
        %2445 = vmatpush1.xpose.msra.mxu0 %v2440
        %2446 = vmatprep.subr.mxu0 0.0
        %2447 = vmatpush1.xpose.msra.mxu0 %v2442
        %2448 = vmatprep.subr.mxu0 0.0
        %2449 = vmatpush1.xpose.msra.mxu0 0.0
        %2450 = vmatprep.subr.mxu0 0.0
        %2451 = vmatpush1.xpose.msra.mxu0 0.0
        %2452 = vmatprep.subr.mxu0 0.0
        %2453 = vmatpush1.xpose.msra.mxu0 0.0
        %2454 = vmatprep.subr.mxu0 0.0
        %2455 = vmatpush1.xpose.msra.mxu0 0.0
        %2456 = vmatprep.subr.mxu0 0.0
        %2457 = vmatpush1.xpose.msra.mxu0 0.0
        %2458 = vmatprep.subr.mxu0 0.0
        %2459 = vmatpush1.xpose.msra.mxu0 0.0
        %2460 = vmatprep.subr.mxu0 0.0
        %2461 = vmatpush1.xpose.msra.mxu0 0.0
        %2462 = vmatprep.subr.mxu0 0.0
        %2463 = vmatpush1.xpose.msra.mxu0 0.0
        %2464 = vmatprep.subr.mxu0 0.0
        %2465 = vmatpush1.xpose.msra.mxu0 0.0
        %2466 = vmatprep.subr.mxu0 0.0
        %2467 = vmatpush1.xpose.msra.mxu0 0.0
        %2468 = vmatprep.subr.mxu0 0.0
        %2469 = vmatpush1.xpose.msra.mxu0 0.0
        %2470 = vmatprep.subr.mxu0 0.0
        %2471 = vmatpush1.xpose.msra.mxu0 0.0
        %2472 = vmatprep.subr.mxu0 0.0
        %2473 = vmatpush1.xpose.msra.mxu0 0.0
        %2474 = vmatprep.subr.mxu0 0.0
        %2475 = vmatpush1.xpose.msra.mxu0 0.0
        %2476 = vmatprep.subr.mxu0 0.0
        %2477 = vmatpush1.xpose.msra.mxu0 0.0
        %2478 = vmatprep.subr.mxu0 0.0
        %2479 = vmatpush1.xpose.msra.mxu0 0.0
        %2480 = vmatprep.subr.mxu0 0.0
        %2481 = vmatpush1.xpose.msra.mxu0 0.0
        %2482 = vmatprep.subr.mxu0 0.0
        %2483 = vmatpush1.xpose.msra.mxu0 0.0
        %2484 = vmatprep.subr.mxu0 0.0
        %2485 = vmatpush1.xpose.msra.mxu0 0.0
        %2486 = vmatprep.subr.mxu0 0.0
        %2487 = vmatpush1.xpose.msra.mxu0 0.0
        %2488 = vmatprep.subr.mxu0 0.0
        %2489 = vmatpush1.xpose.msra.mxu0 0.0
        %2490 = vmatprep.subr.mxu0 0.0
        %2491 = vmatpush1.xpose.msra.mxu0 0.0
        %2492 = vmatprep.subr.mxu0 0.0
        %2493 = vmatpush1.xpose.msra.mxu0 0.0
        %2494 = vmatprep.subr.mxu0 0.0
        %2495 = vmatpush1.xpose.msra.mxu0 0.0
        %2496 = vmatprep.subr.mxu0 0.0
        %2497 = vmatpush1.xpose.msra.mxu0 0.0
        %2498 = vmatprep.subr.mxu0 0.0
        %2499 = vmatpush1.xpose.msra.mxu0 0.0
        %2500 = vmatprep.subr.mxu0 0.0
        %2501 = vmatpush1.xpose.msra.mxu0 0.0
        %2502 = vmatprep.subr.mxu0 0.0
        %2503 = vmatpush1.xpose.msra.mxu0 0.0
        %2504 = vmatprep.subr.mxu0 0.0
        %2505 = vmatpush1.xpose.msra.mxu0 0.0
        %2506 = vmatprep.subr.mxu0 0.0
        %2507 = vmatpush1.xpose.msra.mxu0 0.0
        %2508 = vmatprep.mubr.f32.mxu0 0.0
        %2509 = vmatmul.mubr.f32.gmra.mrb[0].mxu0 %v2436
        %v2510 = vpop.f32.mrb[0].mxu0
        %v2511 = vadd.f32 0.0, %v2510
        %v2512 = vpop.f32.mrb[0].mxu0
        %2513 = vmatprep.mubr.f32.mxu0 0.0
        %2514 = vmatmul.mubr.f32.gmra.mrb[0].mxu0 %v2438
        %v2515 = vpop.f32.mrb[0].mxu0
        %v2516 = vadd.f32 0.0, %v2515
        %v2517 = vpop.f32.mrb[0].mxu0
        %2518 = vdwg.mxu0
        %2521 = vrot.lane.b32.xlu0 %v2139, 120
        %v2522 = vpop.permute.xlu0 %2521
        %2523 = vrot.lane.b32.xlu0 %v2140, 120
        %v2524 = vpop.permute.xlu0 %2523
        %2525 = vrot.lane.b32.xlu0 %v2139, 88
        %v2526 = vpop.permute.xlu0 %2525
        %2527 = vrot.lane.b32.xlu0 %v2140, 88
        %v2528 = vpop.permute.xlu0 %2527
        %v2529 = vsel %vm519, %v2522, 0
        %v2531 = vsel %vm519, %v2524, 0
        %v2533 = vsel %vm519, %v2526, 0
        %v2535 = vsel %vm519, %v2528, 0
        %2537 = vmatprep.subr.mxu0 0.0
        %2538 = vmatpush1.xpose.msra.mxu0 %v2533
        %2539 = vmatprep.subr.mxu0 0.0
        %2540 = vmatpush1.xpose.msra.mxu0 %v2535
        %2541 = vmatprep.subr.mxu0 0.0
        %2542 = vmatpush1.xpose.msra.mxu0 0.0
        %2543 = vmatprep.subr.mxu0 0.0
        %2544 = vmatpush1.xpose.msra.mxu0 0.0
        %2545 = vmatprep.subr.mxu0 0.0
        %2546 = vmatpush1.xpose.msra.mxu0 0.0
        %2547 = vmatprep.subr.mxu0 0.0
        %2548 = vmatpush1.xpose.msra.mxu0 0.0
        %2549 = vmatprep.subr.mxu0 0.0
        %2550 = vmatpush1.xpose.msra.mxu0 0.0
        %2551 = vmatprep.subr.mxu0 0.0
        %2552 = vmatpush1.xpose.msra.mxu0 0.0
        %2553 = vmatprep.subr.mxu0 0.0
        %2554 = vmatpush1.xpose.msra.mxu0 0.0
        %2555 = vmatprep.subr.mxu0 0.0
        %2556 = vmatpush1.xpose.msra.mxu0 0.0
        %2557 = vmatprep.subr.mxu0 0.0
        %2558 = vmatpush1.xpose.msra.mxu0 0.0
        %2559 = vmatprep.subr.mxu0 0.0
        %2560 = vmatpush1.xpose.msra.mxu0 0.0
        %2561 = vmatprep.subr.mxu0 0.0
        %2562 = vmatpush1.xpose.msra.mxu0 0.0
        %2563 = vmatprep.subr.mxu0 0.0
        %2564 = vmatpush1.xpose.msra.mxu0 0.0
        %2565 = vmatprep.subr.mxu0 0.0
        %2566 = vmatpush1.xpose.msra.mxu0 0.0
        %2567 = vmatprep.subr.mxu0 0.0
        %2568 = vmatpush1.xpose.msra.mxu0 0.0
        %2569 = vmatprep.subr.mxu0 0.0
        %2570 = vmatpush1.xpose.msra.mxu0 0.0
        %2571 = vmatprep.subr.mxu0 0.0
        %2572 = vmatpush1.xpose.msra.mxu0 0.0
        %2573 = vmatprep.subr.mxu0 0.0
        %2574 = vmatpush1.xpose.msra.mxu0 0.0
        %2575 = vmatprep.subr.mxu0 0.0
        %2576 = vmatpush1.xpose.msra.mxu0 0.0
        %2577 = vmatprep.subr.mxu0 0.0
        %2578 = vmatpush1.xpose.msra.mxu0 0.0
        %2579 = vmatprep.subr.mxu0 0.0
        %2580 = vmatpush1.xpose.msra.mxu0 0.0
        %2581 = vmatprep.subr.mxu0 0.0
        %2582 = vmatpush1.xpose.msra.mxu0 0.0
        %2583 = vmatprep.subr.mxu0 0.0
        %2584 = vmatpush1.xpose.msra.mxu0 0.0
        %2585 = vmatprep.subr.mxu0 0.0
        %2586 = vmatpush1.xpose.msra.mxu0 0.0
        %2587 = vmatprep.subr.mxu0 0.0
        %2588 = vmatpush1.xpose.msra.mxu0 0.0
        %2589 = vmatprep.subr.mxu0 0.0
        %2590 = vmatpush1.xpose.msra.mxu0 0.0
        %2591 = vmatprep.subr.mxu0 0.0
        %2592 = vmatpush1.xpose.msra.mxu0 0.0
        %2593 = vmatprep.subr.mxu0 0.0
        %2594 = vmatpush1.xpose.msra.mxu0 0.0
        %2595 = vmatprep.subr.mxu0 0.0
        %2596 = vmatpush1.xpose.msra.mxu0 0.0
        %2597 = vmatprep.subr.mxu0 0.0
        %2598 = vmatpush1.xpose.msra.mxu0 0.0
        %2599 = vmatprep.subr.mxu0 0.0
        %2600 = vmatpush1.xpose.msra.mxu0 0.0
        %2601 = vmatprep.mubr.f32.mxu0 0.0
        %2602 = vmatmul.mubr.f32.gmra.mrb[0].mxu0 %v2529
        %v2603 = vpop.f32.mrb[0].mxu0
        %v2604 = vadd.f32 0.0, %v2603
        %v2605 = vpop.f32.mrb[0].mxu0
        %2606 = vmatprep.mubr.f32.mxu0 0.0
        %2607 = vmatmul.mubr.f32.gmra.mrb[0].mxu0 %v2531
        %v2608 = vpop.f32.mrb[0].mxu0
        %v2609 = vadd.f32 0.0, %v2608
        %v2610 = vpop.f32.mrb[0].mxu0
        %2611 = vdwg.mxu0
        %2614 = vrot.lane.b32.xlu0 %v2141, 120
        %v2615 = vpop.permute.xlu0 %2614
        %2616 = vrot.lane.b32.xlu0 %v2142, 120
        %v2617 = vpop.permute.xlu0 %2616
        %2618 = vrot.lane.b32.xlu0 %v2141, 88
        %v2619 = vpop.permute.xlu0 %2618
        %2620 = vrot.lane.b32.xlu0 %v2142, 88
        %v2621 = vpop.permute.xlu0 %2620
        %v2622 = vsel %vm519, %v2615, 0
        %v2624 = vsel %vm519, %v2617, 0
        %v2626 = vsel %vm519, %v2619, 0
        %v2628 = vsel %vm519, %v2621, 0
        %2630 = vmatprep.subr.mxu0 0.0
        %2631 = vmatpush1.xpose.msra.mxu0 %v2626
        %2632 = vmatprep.subr.mxu0 0.0
        %2633 = vmatpush1.xpose.msra.mxu0 %v2628
        %2634 = vmatprep.subr.mxu0 0.0
        %2635 = vmatpush1.xpose.msra.mxu0 0.0
        %2636 = vmatprep.subr.mxu0 0.0
        %2637 = vmatpush1.xpose.msra.mxu0 0.0
        %2638 = vmatprep.subr.mxu0 0.0
        %2639 = vmatpush1.xpose.msra.mxu0 0.0
        %2640 = vmatprep.subr.mxu0 0.0
        %2641 = vmatpush1.xpose.msra.mxu0 0.0
        %2642 = vmatprep.subr.mxu0 0.0
        %2643 = vmatpush1.xpose.msra.mxu0 0.0
        %2644 = vmatprep.subr.mxu0 0.0
        %2645 = vmatpush1.xpose.msra.mxu0 0.0
        %2646 = vmatprep.subr.mxu0 0.0
        %2647 = vmatpush1.xpose.msra.mxu0 0.0
        %2648 = vmatprep.subr.mxu0 0.0
        %2649 = vmatpush1.xpose.msra.mxu0 0.0
        %2650 = vmatprep.subr.mxu0 0.0
        %2651 = vmatpush1.xpose.msra.mxu0 0.0
        %2652 = vmatprep.subr.mxu0 0.0
        %2653 = vmatpush1.xpose.msra.mxu0 0.0
        %2654 = vmatprep.subr.mxu0 0.0
        %2655 = vmatpush1.xpose.msra.mxu0 0.0
        %2656 = vmatprep.subr.mxu0 0.0
        %2657 = vmatpush1.xpose.msra.mxu0 0.0
        %2658 = vmatprep.subr.mxu0 0.0
        %2659 = vmatpush1.xpose.msra.mxu0 0.0
        %2660 = vmatprep.subr.mxu0 0.0
        %2661 = vmatpush1.xpose.msra.mxu0 0.0
        %2662 = vmatprep.subr.mxu0 0.0
        %2663 = vmatpush1.xpose.msra.mxu0 0.0
        %2664 = vmatprep.subr.mxu0 0.0
        %2665 = vmatpush1.xpose.msra.mxu0 0.0
        %2666 = vmatprep.subr.mxu0 0.0
        %2667 = vmatpush1.xpose.msra.mxu0 0.0
        %2668 = vmatprep.subr.mxu0 0.0
        %2669 = vmatpush1.xpose.msra.mxu0 0.0
        %2670 = vmatprep.subr.mxu0 0.0
        %2671 = vmatpush1.xpose.msra.mxu0 0.0
        %2672 = vmatprep.subr.mxu0 0.0
        %2673 = vmatpush1.xpose.msra.mxu0 0.0
        %2674 = vmatprep.subr.mxu0 0.0
        %2675 = vmatpush1.xpose.msra.mxu0 0.0
        %2676 = vmatprep.subr.mxu0 0.0
        %2677 = vmatpush1.xpose.msra.mxu0 0.0
        %2678 = vmatprep.subr.mxu0 0.0
        %2679 = vmatpush1.xpose.msra.mxu0 0.0
        %2680 = vmatprep.subr.mxu0 0.0
        %2681 = vmatpush1.xpose.msra.mxu0 0.0
        %2682 = vmatprep.subr.mxu0 0.0
        %2683 = vmatpush1.xpose.msra.mxu0 0.0
        %2684 = vmatprep.subr.mxu0 0.0
        %2685 = vmatpush1.xpose.msra.mxu0 0.0
        %2686 = vmatprep.subr.mxu0 0.0
        %2687 = vmatpush1.xpose.msra.mxu0 0.0
        %2688 = vmatprep.subr.mxu0 0.0
        %2689 = vmatpush1.xpose.msra.mxu0 0.0
        %2690 = vmatprep.subr.mxu0 0.0
        %2691 = vmatpush1.xpose.msra.mxu0 0.0
        %2692 = vmatprep.subr.mxu0 0.0
        %2693 = vmatpush1.xpose.msra.mxu0 0.0
        %2694 = vmatprep.mubr.f32.mxu0 0.0
        %2695 = vmatmul.mubr.f32.gmra.mrb[0].mxu0 %v2622
        %v2696 = vpop.f32.mrb[0].mxu0
        %v2697 = vadd.f32 0.0, %v2696
        %v2698 = vpop.f32.mrb[0].mxu0
        %2699 = vmatprep.mubr.f32.mxu0 0.0
        %2700 = vmatmul.mubr.f32.gmra.mrb[0].mxu0 %v2624
        %v2701 = vpop.f32.mrb[0].mxu0
        %v2702 = vadd.f32 0.0, %v2701
        %v2703 = vpop.f32.mrb[0].mxu0
        %2704 = vdwg.mxu0
        %2707 = vrot.lane.b32.xlu0 %v2143, 120
        %v2708 = vpop.permute.xlu0 %2707
        %2709 = vrot.lane.b32.xlu0 %v2144, 120
        %v2710 = vpop.permute.xlu0 %2709
        %2711 = vrot.lane.b32.xlu0 %v2143, 88
        %v2712 = vpop.permute.xlu0 %2711
        %2713 = vrot.lane.b32.xlu0 %v2144, 88
        %v2714 = vpop.permute.xlu0 %2713
        %v2715 = vsel %vm519, %v2708, 0
        %v2717 = vsel %vm519, %v2710, 0
        %v2719 = vsel %vm519, %v2712, 0
        %v2721 = vsel %vm519, %v2714, 0
        %2723 = vmatprep.subr.mxu0 0.0
        %2724 = vmatpush1.xpose.msra.mxu0 %v2719
        %2725 = vmatprep.subr.mxu0 0.0
        %2726 = vmatpush1.xpose.msra.mxu0 %v2721
        %2727 = vmatprep.subr.mxu0 0.0
        %2728 = vmatpush1.xpose.msra.mxu0 0.0
        %2729 = vmatprep.subr.mxu0 0.0
        %2730 = vmatpush1.xpose.msra.mxu0 0.0
        %2731 = vmatprep.subr.mxu0 0.0
        %2732 = vmatpush1.xpose.msra.mxu0 0.0
        %2733 = vmatprep.subr.mxu0 0.0
        %2734 = vmatpush1.xpose.msra.mxu0 0.0
        %2735 = vmatprep.subr.mxu0 0.0
        %2736 = vmatpush1.xpose.msra.mxu0 0.0
        %2737 = vmatprep.subr.mxu0 0.0
        %2738 = vmatpush1.xpose.msra.mxu0 0.0
        %2739 = vmatprep.subr.mxu0 0.0
        %2740 = vmatpush1.xpose.msra.mxu0 0.0
        %2741 = vmatprep.subr.mxu0 0.0
        %2742 = vmatpush1.xpose.msra.mxu0 0.0
        %2743 = vmatprep.subr.mxu0 0.0
        %2744 = vmatpush1.xpose.msra.mxu0 0.0
        %2745 = vmatprep.subr.mxu0 0.0
        %2746 = vmatpush1.xpose.msra.mxu0 0.0
        %2747 = vmatprep.subr.mxu0 0.0
        %2748 = vmatpush1.xpose.msra.mxu0 0.0
        %2749 = vmatprep.subr.mxu0 0.0
        %2750 = vmatpush1.xpose.msra.mxu0 0.0
        %2751 = vmatprep.subr.mxu0 0.0
        %2752 = vmatpush1.xpose.msra.mxu0 0.0
        %2753 = vmatprep.subr.mxu0 0.0
        %2754 = vmatpush1.xpose.msra.mxu0 0.0
        %2755 = vmatprep.subr.mxu0 0.0
        %2756 = vmatpush1.xpose.msra.mxu0 0.0
        %2757 = vmatprep.subr.mxu0 0.0
        %2758 = vmatpush1.xpose.msra.mxu0 0.0
        %2759 = vmatprep.subr.mxu0 0.0
        %2760 = vmatpush1.xpose.msra.mxu0 0.0
        %2761 = vmatprep.subr.mxu0 0.0
        %2762 = vmatpush1.xpose.msra.mxu0 0.0
        %2763 = vmatprep.subr.mxu0 0.0
        %2764 = vmatpush1.xpose.msra.mxu0 0.0
        %2765 = vmatprep.subr.mxu0 0.0
        %2766 = vmatpush1.xpose.msra.mxu0 0.0
        %2767 = vmatprep.subr.mxu0 0.0
        %2768 = vmatpush1.xpose.msra.mxu0 0.0
        %2769 = vmatprep.subr.mxu0 0.0
        %2770 = vmatpush1.xpose.msra.mxu0 0.0
        %2771 = vmatprep.subr.mxu0 0.0
        %2772 = vmatpush1.xpose.msra.mxu0 0.0
        %2773 = vmatprep.subr.mxu0 0.0
        %2774 = vmatpush1.xpose.msra.mxu0 0.0
        %2775 = vmatprep.subr.mxu0 0.0
        %2776 = vmatpush1.xpose.msra.mxu0 0.0
        %2777 = vmatprep.subr.mxu0 0.0
        %2778 = vmatpush1.xpose.msra.mxu0 0.0
        %2779 = vmatprep.subr.mxu0 0.0
        %2780 = vmatpush1.xpose.msra.mxu0 0.0
        %2781 = vmatprep.subr.mxu0 0.0
        %2782 = vmatpush1.xpose.msra.mxu0 0.0
        %2783 = vmatprep.subr.mxu0 0.0
        %2784 = vmatpush1.xpose.msra.mxu0 0.0
        %2785 = vmatprep.subr.mxu0 0.0
        %2786 = vmatpush1.xpose.msra.mxu0 0.0
        %2787 = vmatprep.mubr.f32.mxu0 0.0
        %2788 = vmatmul.mubr.f32.gmra.mrb[0].mxu0 %v2715
        %v2789 = vpop.f32.mrb[0].mxu0
        %v2790 = vadd.f32 0.0, %v2789
        %v2791 = vpop.f32.mrb[0].mxu0
        %2792 = vmatprep.mubr.f32.mxu0 0.0
        %2793 = vmatmul.mubr.f32.gmra.mrb[0].mxu0 %v2717
        %v2794 = vpop.f32.mrb[0].mxu0
        %v2795 = vadd.f32 0.0, %v2794
        %v2796 = vpop.f32.mrb[0].mxu0
        %2797 = vdwg.mxu0
        %2800 = vrot.lane.b32.xlu0 %v2145, 120
        %v2801 = vpop.permute.xlu0 %2800
        %2802 = vrot.lane.b32.xlu0 %v2146, 120
        %v2803 = vpop.permute.xlu0 %2802
        %2804 = vrot.lane.b32.xlu0 %v2145, 88
        %v2805 = vpop.permute.xlu0 %2804
        %2806 = vrot.lane.b32.xlu0 %v2146, 88
        %v2807 = vpop.permute.xlu0 %2806
        %v2808 = vsel %vm519, %v2801, 0
        %v2810 = vsel %vm519, %v2803, 0
        %v2812 = vsel %vm519, %v2805, 0
        %v2814 = vsel %vm519, %v2807, 0
        %2816 = vmatprep.subr.mxu0 0.0
        %2817 = vmatpush1.xpose.msra.mxu0 %v2812
        %2818 = vmatprep.subr.mxu0 0.0
        %2819 = vmatpush1.xpose.msra.mxu0 %v2814
        %2820 = vmatprep.subr.mxu0 0.0
        %2821 = vmatpush1.xpose.msra.mxu0 0.0
        %2822 = vmatprep.subr.mxu0 0.0
        %2823 = vmatpush1.xpose.msra.mxu0 0.0
        %2824 = vmatprep.subr.mxu0 0.0
        %2825 = vmatpush1.xpose.msra.mxu0 0.0
        %2826 = vmatprep.subr.mxu0 0.0
        %2827 = vmatpush1.xpose.msra.mxu0 0.0
        %2828 = vmatprep.subr.mxu0 0.0
        %2829 = vmatpush1.xpose.msra.mxu0 0.0
        %2830 = vmatprep.subr.mxu0 0.0
        %2831 = vmatpush1.xpose.msra.mxu0 0.0
        %2832 = vmatprep.subr.mxu0 0.0
        %2833 = vmatpush1.xpose.msra.mxu0 0.0
        %2834 = vmatprep.subr.mxu0 0.0
        %2835 = vmatpush1.xpose.msra.mxu0 0.0
        %2836 = vmatprep.subr.mxu0 0.0
        %2837 = vmatpush1.xpose.msra.mxu0 0.0
        %2838 = vmatprep.subr.mxu0 0.0
        %2839 = vmatpush1.xpose.msra.mxu0 0.0
        %2840 = vmatprep.subr.mxu0 0.0
        %2841 = vmatpush1.xpose.msra.mxu0 0.0
        %2842 = vmatprep.subr.mxu0 0.0
        %2843 = vmatpush1.xpose.msra.mxu0 0.0
        %2844 = vmatprep.subr.mxu0 0.0
        %2845 = vmatpush1.xpose.msra.mxu0 0.0
        %2846 = vmatprep.subr.mxu0 0.0
        %2847 = vmatpush1.xpose.msra.mxu0 0.0
        %2848 = vmatprep.subr.mxu0 0.0
        %2849 = vmatpush1.xpose.msra.mxu0 0.0
        %2850 = vmatprep.subr.mxu0 0.0
        %2851 = vmatpush1.xpose.msra.mxu0 0.0
        %2852 = vmatprep.subr.mxu0 0.0
        %2853 = vmatpush1.xpose.msra.mxu0 0.0
        %2854 = vmatprep.subr.mxu0 0.0
        %2855 = vmatpush1.xpose.msra.mxu0 0.0
        %2856 = vmatprep.subr.mxu0 0.0
        %2857 = vmatpush1.xpose.msra.mxu0 0.0
        %2858 = vmatprep.subr.mxu0 0.0
        %2859 = vmatpush1.xpose.msra.mxu0 0.0
        %2860 = vmatprep.subr.mxu0 0.0
        %2861 = vmatpush1.xpose.msra.mxu0 0.0
        %2862 = vmatprep.subr.mxu0 0.0
        %2863 = vmatpush1.xpose.msra.mxu0 0.0
        %2864 = vmatprep.subr.mxu0 0.0
        %2865 = vmatpush1.xpose.msra.mxu0 0.0
        %2866 = vmatprep.subr.mxu0 0.0
        %2867 = vmatpush1.xpose.msra.mxu0 0.0
        %2868 = vmatprep.subr.mxu0 0.0
        %2869 = vmatpush1.xpose.msra.mxu0 0.0
        %2870 = vmatprep.subr.mxu0 0.0
        %2871 = vmatpush1.xpose.msra.mxu0 0.0
        %2872 = vmatprep.subr.mxu0 0.0
        %2873 = vmatpush1.xpose.msra.mxu0 0.0
        %2874 = vmatprep.subr.mxu0 0.0
        %2875 = vmatpush1.xpose.msra.mxu0 0.0
        %2876 = vmatprep.subr.mxu0 0.0
        %2877 = vmatpush1.xpose.msra.mxu0 0.0
        %2878 = vmatprep.subr.mxu0 0.0
        %2879 = vmatpush1.xpose.msra.mxu0 0.0
        %2880 = vmatprep.mubr.f32.mxu0 0.0
        %2881 = vmatmul.mubr.f32.gmra.mrb[0].mxu0 %v2808
        %v2882 = vpop.f32.mrb[0].mxu0
        %v2883 = vadd.f32 0.0, %v2882
        %v2884 = vpop.f32.mrb[0].mxu0
        %2885 = vmatprep.mubr.f32.mxu0 0.0
        %2886 = vmatmul.mubr.f32.gmra.mrb[0].mxu0 %v2810
        %v2887 = vpop.f32.mrb[0].mxu0
        %v2888 = vadd.f32 0.0, %v2887
        %v2889 = vpop.f32.mrb[0].mxu0
        %2890 = vdwg.mxu0
        %v2891 = vmul.f32 %v2232, 0.35355338
        %v2892 = vmul.f32 %v2237, 0.35355338
        %v2893 = vmul.f32 %v2325, 0.35355338
        %v2894 = vmul.f32 %v2330, 0.35355338
        %v2895 = vmul.f32 %v2418, 0.35355338
        %v2896 = vmul.f32 %v2423, 0.35355338
        %v2897 = vmul.f32 %v2511, 0.35355338
        %v2898 = vmul.f32 %v2516, 0.35355338
        %v2899 = vmul.f32 %v2604, 0.35355338
        %v2900 = vmul.f32 %v2609, 0.35355338
        %v2901 = vmul.f32 %v2697, 0.35355338
        %v2902 = vmul.f32 %v2702, 0.35355338
        %v2903 = vmul.f32 %v2790, 0.35355338
        %v2904 = vmul.f32 %v2795, 0.35355338
        %v2905 = vmul.f32 %v2883, 0.35355338
        %v2906 = vmul.f32 %v2888, 0.35355338
        %v2907 = vsel %vm1242, %v2891, -inf
        %2908 = vmax.xlane.f32.xlu0 %v2907
        %v2909 = vpop.xlane.xlu0 %2908
        %v2910 = vsel %vm1242, %v2892, -inf
        %2911 = vmax.xlane.f32.xlu0 %v2910
        %v2912 = vpop.xlane.xlu0 %2911
        %v2913 = vsel %vm1242, %v2893, -inf
        %2914 = vmax.xlane.f32.xlu0 %v2913
        %v2915 = vpop.xlane.xlu0 %2914
        %v2916 = vsel %vm1242, %v2894, -inf
        %2917 = vmax.xlane.f32.xlu0 %v2916
        %v2918 = vpop.xlane.xlu0 %2917
        %v2919 = vsel %vm1242, %v2895, -inf
        %2920 = vmax.xlane.f32.xlu0 %v2919
        %v2921 = vpop.xlane.xlu0 %2920
        %v2922 = vsel %vm1242, %v2896, -inf
        %2923 = vmax.xlane.f32.xlu0 %v2922
        %v2924 = vpop.xlane.xlu0 %2923
        %v2925 = vsel %vm1242, %v2897, -inf
        %2926 = vmax.xlane.f32.xlu0 %v2925
        %v2927 = vpop.xlane.xlu0 %2926
        %v2928 = vsel %vm1242, %v2898, -inf
        %2929 = vmax.xlane.f32.xlu0 %v2928
        %v2930 = vpop.xlane.xlu0 %2929
        %v2931 = vsel %vm1242, %v2899, -inf
        %2932 = vmax.xlane.f32.xlu0 %v2931
        %v2933 = vpop.xlane.xlu0 %2932
        %v2934 = vsel %vm1242, %v2900, -inf
        %2935 = vmax.xlane.f32.xlu0 %v2934
        %v2936 = vpop.xlane.xlu0 %2935
        %v2937 = vsel %vm1242, %v2901, -inf
        %2938 = vmax.xlane.f32.xlu0 %v2937
        %v2939 = vpop.xlane.xlu0 %2938
        %v2940 = vsel %vm1242, %v2902, -inf
        %2941 = vmax.xlane.f32.xlu0 %v2940
        %v2942 = vpop.xlane.xlu0 %2941
        %v2943 = vsel %vm1242, %v2903, -inf
        %2944 = vmax.xlane.f32.xlu0 %v2943
        %v2945 = vpop.xlane.xlu0 %2944
        %v2946 = vsel %vm1242, %v2904, -inf
        %2947 = vmax.xlane.f32.xlu0 %v2946
        %v2948 = vpop.xlane.xlu0 %2947
        %v2949 = vsel %vm1242, %v2905, -inf
        %2950 = vmax.xlane.f32.xlu0 %v2949
        %v2951 = vpop.xlane.xlu0 %2950
        %v2952 = vsel %vm1242, %v2906, -inf
        %2953 = vmax.xlane.f32.xlu0 %v2952
        %v2954 = vpop.xlane.xlu0 %2953
        %v2955 = vsub.f32 %v2891, %v2909
        %v2956 = vsub.f32 %v2892, %v2912
        %v2957 = vsub.f32 %v2893, %v2915
        %v2958 = vsub.f32 %v2894, %v2918
        %v2959 = vsub.f32 %v2895, %v2921
        %v2960 = vsub.f32 %v2896, %v2924
        %v2961 = vsub.f32 %v2897, %v2927
        %v2962 = vsub.f32 %v2898, %v2930
        %v2963 = vsub.f32 %v2899, %v2933
        %v2964 = vsub.f32 %v2900, %v2936
        %v2965 = vsub.f32 %v2901, %v2939
        %v2966 = vsub.f32 %v2902, %v2942
        %v2967 = vsub.f32 %v2903, %v2945
        %v2968 = vsub.f32 %v2904, %v2948
        %v2969 = vsub.f32 %v2905, %v2951
        %v2970 = vsub.f32 %v2906, %v2954
        %v2971 = vmul.f32 %v2955, 1.442695
        %v2972 = vpow.pop %v2971
        %v2973 = vmul.f32 %v2956, 1.442695
        %v2974 = vpow.pop %v2973
        %v2975 = vmul.f32 %v2957, 1.442695
        %v2976 = vpow.pop %v2975
        %v2977 = vmul.f32 %v2958, 1.442695
        %v2978 = vpow.pop %v2977
        %v2979 = vmul.f32 %v2959, 1.442695
        %v2980 = vpow.pop %v2979
        %v2981 = vmul.f32 %v2960, 1.442695
        %v2982 = vpow.pop %v2981
        %v2983 = vmul.f32 %v2961, 1.442695
        %v2984 = vpow.pop %v2983
        %v2985 = vmul.f32 %v2962, 1.442695
        %v2986 = vpow.pop %v2985
        %v2987 = vmul.f32 %v2963, 1.442695
        %v2988 = vpow.pop %v2987
        %v2989 = vmul.f32 %v2964, 1.442695
        %v2990 = vpow.pop %v2989
        %v2991 = vmul.f32 %v2965, 1.442695
        %v2992 = vpow.pop %v2991
        %v2993 = vmul.f32 %v2966, 1.442695
        %v2994 = vpow.pop %v2993
        %v2995 = vmul.f32 %v2967, 1.442695
        %v2996 = vpow.pop %v2995
        %v2997 = vmul.f32 %v2968, 1.442695
        %v2998 = vpow.pop %v2997
        %v2999 = vmul.f32 %v2969, 1.442695
        %v3000 = vpow.pop %v2999
        %v3001 = vmul.f32 %v2970, 1.442695
        %v3002 = vpow.pop %v3001
        %v3003 = vsel %vm1242, %v2972, 0.0
        %3004 = vadd.xlane.f32.xlu0 %v3003
        %v3005 = vpop.xlane.xlu0 %3004
        %v3006 = vsel %vm1242, %v2974, 0.0
        %3007 = vadd.xlane.f32.xlu0 %v3006
        %v3008 = vpop.xlane.xlu0 %3007
        %v3009 = vsel %vm1242, %v2976, 0.0
        %3010 = vadd.xlane.f32.xlu0 %v3009
        %v3011 = vpop.xlane.xlu0 %3010
        %v3012 = vsel %vm1242, %v2978, 0.0
        %3013 = vadd.xlane.f32.xlu0 %v3012
        %v3014 = vpop.xlane.xlu0 %3013
        %v3015 = vsel %vm1242, %v2980, 0.0
        %3016 = vadd.xlane.f32.xlu0 %v3015
        %v3017 = vpop.xlane.xlu0 %3016
        %v3018 = vsel %vm1242, %v2982, 0.0
        %3019 = vadd.xlane.f32.xlu0 %v3018
        %v3020 = vpop.xlane.xlu0 %3019
        %v3021 = vsel %vm1242, %v2984, 0.0
        %3022 = vadd.xlane.f32.xlu0 %v3021
        %v3023 = vpop.xlane.xlu0 %3022
        %v3024 = vsel %vm1242, %v2986, 0.0
        %3025 = vadd.xlane.f32.xlu0 %v3024
        %v3026 = vpop.xlane.xlu0 %3025
        %v3027 = vsel %vm1242, %v2988, 0.0
        %3028 = vadd.xlane.f32.xlu0 %v3027
        %v3029 = vpop.xlane.xlu0 %3028
        %v3030 = vsel %vm1242, %v2990, 0.0
        %3031 = vadd.xlane.f32.xlu0 %v3030
        %v3032 = vpop.xlane.xlu0 %3031
        %v3033 = vsel %vm1242, %v2992, 0.0
        %3034 = vadd.xlane.f32.xlu0 %v3033
        %v3035 = vpop.xlane.xlu0 %3034
        %v3036 = vsel %vm1242, %v2994, 0.0
        %3037 = vadd.xlane.f32.xlu0 %v3036
        %v3038 = vpop.xlane.xlu0 %3037
        %v3039 = vsel %vm1242, %v2996, 0.0
        %3040 = vadd.xlane.f32.xlu0 %v3039
        %v3041 = vpop.xlane.xlu0 %3040
        %v3042 = vsel %vm1242, %v2998, 0.0
        %3043 = vadd.xlane.f32.xlu0 %v3042
        %v3044 = vpop.xlane.xlu0 %3043
        %v3045 = vsel %vm1242, %v3000, 0.0
        %3046 = vadd.xlane.f32.xlu0 %v3045
        %v3047 = vpop.xlane.xlu0 %3046
        %v3048 = vsel %vm1242, %v3002, 0.0
        %3049 = vadd.xlane.f32.xlu0 %v3048
        %v3050 = vpop.xlane.xlu0 %3049
        %v3051 = vrcp.pop %v3005
        %v3052 = vrcp.pop %v3008
        %v3053 = vrcp.pop %v3011
        %v3054 = vrcp.pop %v3014
        %v3055 = vrcp.pop %v3017
        %v3056 = vrcp.pop %v3020
        %v3057 = vrcp.pop %v3023
        %v3058 = vrcp.pop %v3026
        %v3059 = vrcp.pop %v3029
        %v3060 = vrcp.pop %v3032
        %v3061 = vrcp.pop %v3035
        %v3062 = vrcp.pop %v3038
        %v3063 = vrcp.pop %v3041
        %v3064 = vrcp.pop %v3044
        %v3065 = vrcp.pop %v3047
        %v3066 = vrcp.pop %v3050
        %v3067 = vmul.f32 %v2972, %v3051
        %v3068 = vmul.f32 %v2974, %v3052
        %v3069 = vmul.f32 %v2976, %v3053
        %v3070 = vmul.f32 %v2978, %v3054
        %v3071 = vmul.f32 %v2980, %v3055
        %v3072 = vmul.f32 %v2982, %v3056
        %v3073 = vmul.f32 %v2984, %v3057
        %v3074 = vmul.f32 %v2986, %v3058
        %v3075 = vmul.f32 %v2988, %v3059
        %v3076 = vmul.f32 %v2990, %v3060
        %v3077 = vmul.f32 %v2992, %v3061
        %v3078 = vmul.f32 %v2994, %v3062
        %v3079 = vmul.f32 %v2996, %v3063
        %v3080 = vmul.f32 %v2998, %v3064
        %v3081 = vmul.f32 %v3000, %v3065
        %v3082 = vmul.f32 %v3002, %v3066
        %3083 = vrot.lane.b32.xlu0 %v2131, 56
        %v3084 = vpop.permute.xlu0 %3083
        %3085 = vrot.lane.b32.xlu0 %v2132, 56
        %v3086 = vpop.permute.xlu0 %3085
        %v3090 = vsel %vm1242, %v3067, 0
        %v3093 = vsel %vm1242, %v3068, 0
        %3095 = vmatprep.subr.mxu0 0.0
        %3096 = vmatpush1.msra.mxu0 %v3084
        %3097 = vmatprep.subr.mxu0 0.0
        %3098 = vmatpush1.msra.mxu0 %v3086
        %3099 = vmatprep.subr.mxu0 0.0
        %3100 = vmatpush1.msra.mxu0 0.0
        %3101 = vmatprep.subr.mxu0 0.0
        %3102 = vmatpush1.msra.mxu0 0.0
        %3103 = vmatprep.subr.mxu0 0.0
        %3104 = vmatpush1.msra.mxu0 0.0
        %3105 = vmatprep.subr.mxu0 0.0
        %3106 = vmatpush1.msra.mxu0 0.0
        %3107 = vmatprep.subr.mxu0 0.0
        %3108 = vmatpush1.msra.mxu0 0.0
        %3109 = vmatprep.subr.mxu0 0.0
        %3110 = vmatpush1.msra.mxu0 0.0
        %3111 = vmatprep.subr.mxu0 0.0
        %3112 = vmatpush1.msra.mxu0 0.0
        %3113 = vmatprep.subr.mxu0 0.0
        %3114 = vmatpush1.msra.mxu0 0.0
        %3115 = vmatprep.subr.mxu0 0.0
        %3116 = vmatpush1.msra.mxu0 0.0
        %3117 = vmatprep.subr.mxu0 0.0
        %3118 = vmatpush1.msra.mxu0 0.0
        %3119 = vmatprep.subr.mxu0 0.0
        %3120 = vmatpush1.msra.mxu0 0.0
        %3121 = vmatprep.subr.mxu0 0.0
        %3122 = vmatpush1.msra.mxu0 0.0
        %3123 = vmatprep.subr.mxu0 0.0
        %3124 = vmatpush1.msra.mxu0 0.0
        %3125 = vmatprep.subr.mxu0 0.0
        %3126 = vmatpush1.msra.mxu0 0.0
        %3127 = vmatprep.subr.mxu0 0.0
        %3128 = vmatpush1.msra.mxu0 0.0
        %3129 = vmatprep.subr.mxu0 0.0
        %3130 = vmatpush1.msra.mxu0 0.0
        %3131 = vmatprep.subr.mxu0 0.0
        %3132 = vmatpush1.msra.mxu0 0.0
        %3133 = vmatprep.subr.mxu0 0.0
        %3134 = vmatpush1.msra.mxu0 0.0
        %3135 = vmatprep.subr.mxu0 0.0
        %3136 = vmatpush1.msra.mxu0 0.0
        %3137 = vmatprep.subr.mxu0 0.0
        %3138 = vmatpush1.msra.mxu0 0.0
        %3139 = vmatprep.subr.mxu0 0.0
        %3140 = vmatpush1.msra.mxu0 0.0
        %3141 = vmatprep.subr.mxu0 0.0
        %3142 = vmatpush1.msra.mxu0 0.0
        %3143 = vmatprep.subr.mxu0 0.0
        %3144 = vmatpush1.msra.mxu0 0.0
        %3145 = vmatprep.subr.mxu0 0.0
        %3146 = vmatpush1.msra.mxu0 0.0
        %3147 = vmatprep.subr.mxu0 0.0
        %3148 = vmatpush1.msra.mxu0 0.0
        %3149 = vmatprep.subr.mxu0 0.0
        %3150 = vmatpush1.msra.mxu0 0.0
        %3151 = vmatprep.subr.mxu0 0.0
        %3152 = vmatpush1.msra.mxu0 0.0
        %3153 = vmatprep.subr.mxu0 0.0
        %3154 = vmatpush1.msra.mxu0 0.0
        %3155 = vmatprep.subr.mxu0 0.0
        %3156 = vmatpush1.msra.mxu0 0.0
        %3157 = vmatprep.subr.mxu0 0.0
        %3158 = vmatpush1.msra.mxu0 0.0
        %3159 = vmatprep.mubr.f32.mxu0 0.0
        %3160 = vmatmul.mubr.f32.gmra.mrb[0].mxu0 %v3090
        %v3161 = vpop.f32.mrb[0].mxu0
        %v3162 = vadd.f32 0.0, %v3161
        %v3163 = vpop.f32.mrb[0].mxu0
        %3164 = vmatprep.mubr.f32.mxu0 0.0
        %3165 = vmatmul.mubr.f32.gmra.mrb[0].mxu0 %v3093
        %v3166 = vpop.f32.mrb[0].mxu0
        %v3167 = vadd.f32 0.0, %v3166
        %v3168 = vpop.f32.mrb[0].mxu0
        %3169 = vdwg.mxu0
        %3170 = vrot.lane.b32.xlu0 %v2133, 56
        %v3171 = vpop.permute.xlu0 %3170
        %3172 = vrot.lane.b32.xlu0 %v2134, 56
        %v3173 = vpop.permute.xlu0 %3172
        %v3177 = vsel %vm1242, %v3069, 0
        %v3180 = vsel %vm1242, %v3070, 0
        %3182 = vmatprep.subr.mxu0 0.0
        %3183 = vmatpush1.msra.mxu0 %v3171
        %3184 = vmatprep.subr.mxu0 0.0
        %3185 = vmatpush1.msra.mxu0 %v3173
        %3186 = vmatprep.subr.mxu0 0.0
        %3187 = vmatpush1.msra.mxu0 0.0
        %3188 = vmatprep.subr.mxu0 0.0
        %3189 = vmatpush1.msra.mxu0 0.0
        %3190 = vmatprep.subr.mxu0 0.0
        %3191 = vmatpush1.msra.mxu0 0.0
        %3192 = vmatprep.subr.mxu0 0.0
        %3193 = vmatpush1.msra.mxu0 0.0
        %3194 = vmatprep.subr.mxu0 0.0
        %3195 = vmatpush1.msra.mxu0 0.0
        %3196 = vmatprep.subr.mxu0 0.0
        %3197 = vmatpush1.msra.mxu0 0.0
        %3198 = vmatprep.subr.mxu0 0.0
        %3199 = vmatpush1.msra.mxu0 0.0
        %3200 = vmatprep.subr.mxu0 0.0
        %3201 = vmatpush1.msra.mxu0 0.0
        %3202 = vmatprep.subr.mxu0 0.0
        %3203 = vmatpush1.msra.mxu0 0.0
        %3204 = vmatprep.subr.mxu0 0.0
        %3205 = vmatpush1.msra.mxu0 0.0
        %3206 = vmatprep.subr.mxu0 0.0
        %3207 = vmatpush1.msra.mxu0 0.0
        %3208 = vmatprep.subr.mxu0 0.0
        %3209 = vmatpush1.msra.mxu0 0.0
        %3210 = vmatprep.subr.mxu0 0.0
        %3211 = vmatpush1.msra.mxu0 0.0
        %3212 = vmatprep.subr.mxu0 0.0
        %3213 = vmatpush1.msra.mxu0 0.0
        %3214 = vmatprep.subr.mxu0 0.0
        %3215 = vmatpush1.msra.mxu0 0.0
        %3216 = vmatprep.subr.mxu0 0.0
        %3217 = vmatpush1.msra.mxu0 0.0
        %3218 = vmatprep.subr.mxu0 0.0
        %3219 = vmatpush1.msra.mxu0 0.0
        %3220 = vmatprep.subr.mxu0 0.0
        %3221 = vmatpush1.msra.mxu0 0.0
        %3222 = vmatprep.subr.mxu0 0.0
        %3223 = vmatpush1.msra.mxu0 0.0
        %3224 = vmatprep.subr.mxu0 0.0
        %3225 = vmatpush1.msra.mxu0 0.0
        %3226 = vmatprep.subr.mxu0 0.0
        %3227 = vmatpush1.msra.mxu0 0.0
        %3228 = vmatprep.subr.mxu0 0.0
        %3229 = vmatpush1.msra.mxu0 0.0
        %3230 = vmatprep.subr.mxu0 0.0
        %3231 = vmatpush1.msra.mxu0 0.0
        %3232 = vmatprep.subr.mxu0 0.0
        %3233 = vmatpush1.msra.mxu0 0.0
        %3234 = vmatprep.subr.mxu0 0.0
        %3235 = vmatpush1.msra.mxu0 0.0
        %3236 = vmatprep.subr.mxu0 0.0
        %3237 = vmatpush1.msra.mxu0 0.0
        %3238 = vmatprep.subr.mxu0 0.0
        %3239 = vmatpush1.msra.mxu0 0.0
        %3240 = vmatprep.subr.mxu0 0.0
        %3241 = vmatpush1.msra.mxu0 0.0
        %3242 = vmatprep.subr.mxu0 0.0
        %3243 = vmatpush1.msra.mxu0 0.0
        %3244 = vmatprep.subr.mxu0 0.0
        %3245 = vmatpush1.msra.mxu0 0.0
        %3246 = vmatprep.mubr.f32.mxu0 0.0
        %3247 = vmatmul.mubr.f32.gmra.mrb[0].mxu0 %v3177
        %v3248 = vpop.f32.mrb[0].mxu0
        %v3249 = vadd.f32 0.0, %v3248
        %v3250 = vpop.f32.mrb[0].mxu0
        %3251 = vmatprep.mubr.f32.mxu0 0.0
        %3252 = vmatmul.mubr.f32.gmra.mrb[0].mxu0 %v3180
        %v3253 = vpop.f32.mrb[0].mxu0
        %v3254 = vadd.f32 0.0, %v3253
        %v3255 = vpop.f32.mrb[0].mxu0
        %3256 = vdwg.mxu0
        %3257 = vrot.lane.b32.xlu0 %v2135, 56
        %v3258 = vpop.permute.xlu0 %3257
        %3259 = vrot.lane.b32.xlu0 %v2136, 56
        %v3260 = vpop.permute.xlu0 %3259
        %v3264 = vsel %vm1242, %v3071, 0
        %v3267 = vsel %vm1242, %v3072, 0
        %3269 = vmatprep.subr.mxu0 0.0
        %3270 = vmatpush1.msra.mxu0 %v3258
        %3271 = vmatprep.subr.mxu0 0.0
        %3272 = vmatpush1.msra.mxu0 %v3260
        %3273 = vmatprep.subr.mxu0 0.0
        %3274 = vmatpush1.msra.mxu0 0.0
        %3275 = vmatprep.subr.mxu0 0.0
        %3276 = vmatpush1.msra.mxu0 0.0
        %3277 = vmatprep.subr.mxu0 0.0
        %3278 = vmatpush1.msra.mxu0 0.0
        %3279 = vmatprep.subr.mxu0 0.0
        %3280 = vmatpush1.msra.mxu0 0.0
        %3281 = vmatprep.subr.mxu0 0.0
        %3282 = vmatpush1.msra.mxu0 0.0
        %3283 = vmatprep.subr.mxu0 0.0
        %3284 = vmatpush1.msra.mxu0 0.0
        %3285 = vmatprep.subr.mxu0 0.0
        %3286 = vmatpush1.msra.mxu0 0.0
        %3287 = vmatprep.subr.mxu0 0.0
        %3288 = vmatpush1.msra.mxu0 0.0
        %3289 = vmatprep.subr.mxu0 0.0
        %3290 = vmatpush1.msra.mxu0 0.0
        %3291 = vmatprep.subr.mxu0 0.0
        %3292 = vmatpush1.msra.mxu0 0.0
        %3293 = vmatprep.subr.mxu0 0.0
        %3294 = vmatpush1.msra.mxu0 0.0
        %3295 = vmatprep.subr.mxu0 0.0
        %3296 = vmatpush1.msra.mxu0 0.0
        %3297 = vmatprep.subr.mxu0 0.0
        %3298 = vmatpush1.msra.mxu0 0.0
        %3299 = vmatprep.subr.mxu0 0.0
        %3300 = vmatpush1.msra.mxu0 0.0
        %3301 = vmatprep.subr.mxu0 0.0
        %3302 = vmatpush1.msra.mxu0 0.0
        %3303 = vmatprep.subr.mxu0 0.0
        %3304 = vmatpush1.msra.mxu0 0.0
        %3305 = vmatprep.subr.mxu0 0.0
        %3306 = vmatpush1.msra.mxu0 0.0
        %3307 = vmatprep.subr.mxu0 0.0
        %3308 = vmatpush1.msra.mxu0 0.0
        %3309 = vmatprep.subr.mxu0 0.0
        %3310 = vmatpush1.msra.mxu0 0.0
        %3311 = vmatprep.subr.mxu0 0.0
        %3312 = vmatpush1.msra.mxu0 0.0
        %3313 = vmatprep.subr.mxu0 0.0
        %3314 = vmatpush1.msra.mxu0 0.0
        %3315 = vmatprep.subr.mxu0 0.0
        %3316 = vmatpush1.msra.mxu0 0.0
        %3317 = vmatprep.subr.mxu0 0.0
        %3318 = vmatpush1.msra.mxu0 0.0
        %3319 = vmatprep.subr.mxu0 0.0
        %3320 = vmatpush1.msra.mxu0 0.0
        %3321 = vmatprep.subr.mxu0 0.0
        %3322 = vmatpush1.msra.mxu0 0.0
        %3323 = vmatprep.subr.mxu0 0.0
        %3324 = vmatpush1.msra.mxu0 0.0
        %3325 = vmatprep.subr.mxu0 0.0
        %3326 = vmatpush1.msra.mxu0 0.0
        %3327 = vmatprep.subr.mxu0 0.0
        %3328 = vmatpush1.msra.mxu0 0.0
        %3329 = vmatprep.subr.mxu0 0.0
        %3330 = vmatpush1.msra.mxu0 0.0
        %3331 = vmatprep.subr.mxu0 0.0
        %3332 = vmatpush1.msra.mxu0 0.0
        %3333 = vmatprep.mubr.f32.mxu0 0.0
        %3334 = vmatmul.mubr.f32.gmra.mrb[0].mxu0 %v3264
        %v3335 = vpop.f32.mrb[0].mxu0
        %v3336 = vadd.f32 0.0, %v3335
        %v3337 = vpop.f32.mrb[0].mxu0
        %3338 = vmatprep.mubr.f32.mxu0 0.0
        %3339 = vmatmul.mubr.f32.gmra.mrb[0].mxu0 %v3267
        %v3340 = vpop.f32.mrb[0].mxu0
        %v3341 = vadd.f32 0.0, %v3340
        %v3342 = vpop.f32.mrb[0].mxu0
        %3343 = vdwg.mxu0
        %3344 = vrot.lane.b32.xlu0 %v2137, 56
        %v3345 = vpop.permute.xlu0 %3344
        %3346 = vrot.lane.b32.xlu0 %v2138, 56
        %v3347 = vpop.permute.xlu0 %3346
        %v3351 = vsel %vm1242, %v3073, 0
        %v3354 = vsel %vm1242, %v3074, 0
        %3356 = vmatprep.subr.mxu0 0.0
        %3357 = vmatpush1.msra.mxu0 %v3345
        %3358 = vmatprep.subr.mxu0 0.0
        %3359 = vmatpush1.msra.mxu0 %v3347
        %3360 = vmatprep.subr.mxu0 0.0
        %3361 = vmatpush1.msra.mxu0 0.0
        %3362 = vmatprep.subr.mxu0 0.0
        %3363 = vmatpush1.msra.mxu0 0.0
        %3364 = vmatprep.subr.mxu0 0.0
        %3365 = vmatpush1.msra.mxu0 0.0
        %3366 = vmatprep.subr.mxu0 0.0
        %3367 = vmatpush1.msra.mxu0 0.0
        %3368 = vmatprep.subr.mxu0 0.0
        %3369 = vmatpush1.msra.mxu0 0.0
        %3370 = vmatprep.subr.mxu0 0.0
        %3371 = vmatpush1.msra.mxu0 0.0
        %3372 = vmatprep.subr.mxu0 0.0
        %3373 = vmatpush1.msra.mxu0 0.0
        %3374 = vmatprep.subr.mxu0 0.0
        %3375 = vmatpush1.msra.mxu0 0.0
        %3376 = vmatprep.subr.mxu0 0.0
        %3377 = vmatpush1.msra.mxu0 0.0
        %3378 = vmatprep.subr.mxu0 0.0
        %3379 = vmatpush1.msra.mxu0 0.0
        %3380 = vmatprep.subr.mxu0 0.0
        %3381 = vmatpush1.msra.mxu0 0.0
        %3382 = vmatprep.subr.mxu0 0.0
        %3383 = vmatpush1.msra.mxu0 0.0
        %3384 = vmatprep.subr.mxu0 0.0
        %3385 = vmatpush1.msra.mxu0 0.0
        %3386 = vmatprep.subr.mxu0 0.0
        %3387 = vmatpush1.msra.mxu0 0.0
        %3388 = vmatprep.subr.mxu0 0.0
        %3389 = vmatpush1.msra.mxu0 0.0
        %3390 = vmatprep.subr.mxu0 0.0
        %3391 = vmatpush1.msra.mxu0 0.0
        %3392 = vmatprep.subr.mxu0 0.0
        %3393 = vmatpush1.msra.mxu0 0.0
        %3394 = vmatprep.subr.mxu0 0.0
        %3395 = vmatpush1.msra.mxu0 0.0
        %3396 = vmatprep.subr.mxu0 0.0
        %3397 = vmatpush1.msra.mxu0 0.0
        %3398 = vmatprep.subr.mxu0 0.0
        %3399 = vmatpush1.msra.mxu0 0.0
        %3400 = vmatprep.subr.mxu0 0.0
        %3401 = vmatpush1.msra.mxu0 0.0
        %3402 = vmatprep.subr.mxu0 0.0
        %3403 = vmatpush1.msra.mxu0 0.0
        %3404 = vmatprep.subr.mxu0 0.0
        %3405 = vmatpush1.msra.mxu0 0.0
        %3406 = vmatprep.subr.mxu0 0.0
        %3407 = vmatpush1.msra.mxu0 0.0
        %3408 = vmatprep.subr.mxu0 0.0
        %3409 = vmatpush1.msra.mxu0 0.0
        %3410 = vmatprep.subr.mxu0 0.0
        %3411 = vmatpush1.msra.mxu0 0.0
        %3412 = vmatprep.subr.mxu0 0.0
        %3413 = vmatpush1.msra.mxu0 0.0
        %3414 = vmatprep.subr.mxu0 0.0
        %3415 = vmatpush1.msra.mxu0 0.0
        %3416 = vmatprep.subr.mxu0 0.0
        %3417 = vmatpush1.msra.mxu0 0.0
        %3418 = vmatprep.subr.mxu0 0.0
        %3419 = vmatpush1.msra.mxu0 0.0
        %3420 = vmatprep.mubr.f32.mxu0 0.0
        %3421 = vmatmul.mubr.f32.gmra.mrb[0].mxu0 %v3351
        %v3422 = vpop.f32.mrb[0].mxu0
        %v3423 = vadd.f32 0.0, %v3422
        %v3424 = vpop.f32.mrb[0].mxu0
        %3425 = vmatprep.mubr.f32.mxu0 0.0
        %3426 = vmatmul.mubr.f32.gmra.mrb[0].mxu0 %v3354
        %v3427 = vpop.f32.mrb[0].mxu0
        %v3428 = vadd.f32 0.0, %v3427
        %v3429 = vpop.f32.mrb[0].mxu0
        %3430 = vdwg.mxu0
        %3431 = vrot.lane.b32.xlu0 %v2139, 56
        %v3432 = vpop.permute.xlu0 %3431
        %3433 = vrot.lane.b32.xlu0 %v2140, 56
        %v3434 = vpop.permute.xlu0 %3433
        %v3438 = vsel %vm1242, %v3075, 0
        %v3441 = vsel %vm1242, %v3076, 0
        %3443 = vmatprep.subr.mxu0 0.0
        %3444 = vmatpush1.msra.mxu0 %v3432
        %3445 = vmatprep.subr.mxu0 0.0
        %3446 = vmatpush1.msra.mxu0 %v3434
        %3447 = vmatprep.subr.mxu0 0.0
        %3448 = vmatpush1.msra.mxu0 0.0
        %3449 = vmatprep.subr.mxu0 0.0
        %3450 = vmatpush1.msra.mxu0 0.0
        %3451 = vmatprep.subr.mxu0 0.0
        %3452 = vmatpush1.msra.mxu0 0.0
        %3453 = vmatprep.subr.mxu0 0.0
        %3454 = vmatpush1.msra.mxu0 0.0
        %3455 = vmatprep.subr.mxu0 0.0
        %3456 = vmatpush1.msra.mxu0 0.0
        %3457 = vmatprep.subr.mxu0 0.0
        %3458 = vmatpush1.msra.mxu0 0.0
        %3459 = vmatprep.subr.mxu0 0.0
        %3460 = vmatpush1.msra.mxu0 0.0
        %3461 = vmatprep.subr.mxu0 0.0
        %3462 = vmatpush1.msra.mxu0 0.0
        %3463 = vmatprep.subr.mxu0 0.0
        %3464 = vmatpush1.msra.mxu0 0.0
        %3465 = vmatprep.subr.mxu0 0.0
        %3466 = vmatpush1.msra.mxu0 0.0
        %3467 = vmatprep.subr.mxu0 0.0
        %3468 = vmatpush1.msra.mxu0 0.0
        %3469 = vmatprep.subr.mxu0 0.0
        %3470 = vmatpush1.msra.mxu0 0.0
        %3471 = vmatprep.subr.mxu0 0.0
        %3472 = vmatpush1.msra.mxu0 0.0
        %3473 = vmatprep.subr.mxu0 0.0
        %3474 = vmatpush1.msra.mxu0 0.0
        %3475 = vmatprep.subr.mxu0 0.0
        %3476 = vmatpush1.msra.mxu0 0.0
        %3477 = vmatprep.subr.mxu0 0.0
        %3478 = vmatpush1.msra.mxu0 0.0
        %3479 = vmatprep.subr.mxu0 0.0
        %3480 = vmatpush1.msra.mxu0 0.0
        %3481 = vmatprep.subr.mxu0 0.0
        %3482 = vmatpush1.msra.mxu0 0.0
        %3483 = vmatprep.subr.mxu0 0.0
        %3484 = vmatpush1.msra.mxu0 0.0
        %3485 = vmatprep.subr.mxu0 0.0
        %3486 = vmatpush1.msra.mxu0 0.0
        %3487 = vmatprep.subr.mxu0 0.0
        %3488 = vmatpush1.msra.mxu0 0.0
        %3489 = vmatprep.subr.mxu0 0.0
        %3490 = vmatpush1.msra.mxu0 0.0
        %3491 = vmatprep.subr.mxu0 0.0
        %3492 = vmatpush1.msra.mxu0 0.0
        %3493 = vmatprep.subr.mxu0 0.0
        %3494 = vmatpush1.msra.mxu0 0.0
        %3495 = vmatprep.subr.mxu0 0.0
        %3496 = vmatpush1.msra.mxu0 0.0
        %3497 = vmatprep.subr.mxu0 0.0
        %3498 = vmatpush1.msra.mxu0 0.0
        %3499 = vmatprep.subr.mxu0 0.0
        %3500 = vmatpush1.msra.mxu0 0.0
        %3501 = vmatprep.subr.mxu0 0.0
        %3502 = vmatpush1.msra.mxu0 0.0
        %3503 = vmatprep.subr.mxu0 0.0
        %3504 = vmatpush1.msra.mxu0 0.0
        %3505 = vmatprep.subr.mxu0 0.0
        %3506 = vmatpush1.msra.mxu0 0.0
        %3507 = vmatprep.mubr.f32.mxu0 0.0
        %3508 = vmatmul.mubr.f32.gmra.mrb[0].mxu0 %v3438
        %v3509 = vpop.f32.mrb[0].mxu0
        %v3510 = vadd.f32 0.0, %v3509
        %v3511 = vpop.f32.mrb[0].mxu0
        %3512 = vmatprep.mubr.f32.mxu0 0.0
        %3513 = vmatmul.mubr.f32.gmra.mrb[0].mxu0 %v3441
        %v3514 = vpop.f32.mrb[0].mxu0
        %v3515 = vadd.f32 0.0, %v3514
        %v3516 = vpop.f32.mrb[0].mxu0
        %3517 = vdwg.mxu0
        %3518 = vrot.lane.b32.xlu0 %v2141, 56
        %v3519 = vpop.permute.xlu0 %3518
        %3520 = vrot.lane.b32.xlu0 %v2142, 56
        %v3521 = vpop.permute.xlu0 %3520
        %v3525 = vsel %vm1242, %v3077, 0
        %v3528 = vsel %vm1242, %v3078, 0
        %3530 = vmatprep.subr.mxu0 0.0
        %3531 = vmatpush1.msra.mxu0 %v3519
        %3532 = vmatprep.subr.mxu0 0.0
        %3533 = vmatpush1.msra.mxu0 %v3521
        %3534 = vmatprep.subr.mxu0 0.0
        %3535 = vmatpush1.msra.mxu0 0.0
        %3536 = vmatprep.subr.mxu0 0.0
        %3537 = vmatpush1.msra.mxu0 0.0
        %3538 = vmatprep.subr.mxu0 0.0
        %3539 = vmatpush1.msra.mxu0 0.0
        %3540 = vmatprep.subr.mxu0 0.0
        %3541 = vmatpush1.msra.mxu0 0.0
        %3542 = vmatprep.subr.mxu0 0.0
        %3543 = vmatpush1.msra.mxu0 0.0
        %3544 = vmatprep.subr.mxu0 0.0
        %3545 = vmatpush1.msra.mxu0 0.0
        %3546 = vmatprep.subr.mxu0 0.0
        %3547 = vmatpush1.msra.mxu0 0.0
        %3548 = vmatprep.subr.mxu0 0.0
        %3549 = vmatpush1.msra.mxu0 0.0
        %3550 = vmatprep.subr.mxu0 0.0
        %3551 = vmatpush1.msra.mxu0 0.0
        %3552 = vmatprep.subr.mxu0 0.0
        %3553 = vmatpush1.msra.mxu0 0.0
        %3554 = vmatprep.subr.mxu0 0.0
        %3555 = vmatpush1.msra.mxu0 0.0
        %3556 = vmatprep.subr.mxu0 0.0
        %3557 = vmatpush1.msra.mxu0 0.0
        %3558 = vmatprep.subr.mxu0 0.0
        %3559 = vmatpush1.msra.mxu0 0.0
        %3560 = vmatprep.subr.mxu0 0.0
        %3561 = vmatpush1.msra.mxu0 0.0
        %3562 = vmatprep.subr.mxu0 0.0
        %3563 = vmatpush1.msra.mxu0 0.0
        %3564 = vmatprep.subr.mxu0 0.0
        %3565 = vmatpush1.msra.mxu0 0.0
        %3566 = vmatprep.subr.mxu0 0.0
        %3567 = vmatpush1.msra.mxu0 0.0
        %3568 = vmatprep.subr.mxu0 0.0
        %3569 = vmatpush1.msra.mxu0 0.0
        %3570 = vmatprep.subr.mxu0 0.0
        %3571 = vmatpush1.msra.mxu0 0.0
        %3572 = vmatprep.subr.mxu0 0.0
        %3573 = vmatpush1.msra.mxu0 0.0
        %3574 = vmatprep.subr.mxu0 0.0
        %3575 = vmatpush1.msra.mxu0 0.0
        %3576 = vmatprep.subr.mxu0 0.0
        %3577 = vmatpush1.msra.mxu0 0.0
        %3578 = vmatprep.subr.mxu0 0.0
        %3579 = vmatpush1.msra.mxu0 0.0
        %3580 = vmatprep.subr.mxu0 0.0
        %3581 = vmatpush1.msra.mxu0 0.0
        %3582 = vmatprep.subr.mxu0 0.0
        %3583 = vmatpush1.msra.mxu0 0.0
        %3584 = vmatprep.subr.mxu0 0.0
        %3585 = vmatpush1.msra.mxu0 0.0
        %3586 = vmatprep.subr.mxu0 0.0
        %3587 = vmatpush1.msra.mxu0 0.0
        %3588 = vmatprep.subr.mxu0 0.0
        %3589 = vmatpush1.msra.mxu0 0.0
        %3590 = vmatprep.subr.mxu0 0.0
        %3591 = vmatpush1.msra.mxu0 0.0
        %3592 = vmatprep.subr.mxu0 0.0
        %3593 = vmatpush1.msra.mxu0 0.0
        %3594 = vmatprep.mubr.f32.mxu0 0.0
        %3595 = vmatmul.mubr.f32.gmra.mrb[0].mxu0 %v3525
        %v3596 = vpop.f32.mrb[0].mxu0
        %v3597 = vadd.f32 0.0, %v3596
        %v3598 = vpop.f32.mrb[0].mxu0
        %3599 = vmatprep.mubr.f32.mxu0 0.0
        %3600 = vmatmul.mubr.f32.gmra.mrb[0].mxu0 %v3528
        %v3601 = vpop.f32.mrb[0].mxu0
        %v3602 = vadd.f32 0.0, %v3601
        %v3603 = vpop.f32.mrb[0].mxu0
        %3604 = vdwg.mxu0
        %3605 = vrot.lane.b32.xlu0 %v2143, 56
        %v3606 = vpop.permute.xlu0 %3605
        %3607 = vrot.lane.b32.xlu0 %v2144, 56
        %v3608 = vpop.permute.xlu0 %3607
        %v3612 = vsel %vm1242, %v3079, 0
        %v3615 = vsel %vm1242, %v3080, 0
        %3617 = vmatprep.subr.mxu0 0.0
        %3618 = vmatpush1.msra.mxu0 %v3606
        %3619 = vmatprep.subr.mxu0 0.0
        %3620 = vmatpush1.msra.mxu0 %v3608
        %3621 = vmatprep.subr.mxu0 0.0
        %3622 = vmatpush1.msra.mxu0 0.0
        %3623 = vmatprep.subr.mxu0 0.0
        %3624 = vmatpush1.msra.mxu0 0.0
        %3625 = vmatprep.subr.mxu0 0.0
        %3626 = vmatpush1.msra.mxu0 0.0
        %3627 = vmatprep.subr.mxu0 0.0
        %3628 = vmatpush1.msra.mxu0 0.0
        %3629 = vmatprep.subr.mxu0 0.0
        %3630 = vmatpush1.msra.mxu0 0.0
        %3631 = vmatprep.subr.mxu0 0.0
        %3632 = vmatpush1.msra.mxu0 0.0
        %3633 = vmatprep.subr.mxu0 0.0
        %3634 = vmatpush1.msra.mxu0 0.0
        %3635 = vmatprep.subr.mxu0 0.0
        %3636 = vmatpush1.msra.mxu0 0.0
        %3637 = vmatprep.subr.mxu0 0.0
        %3638 = vmatpush1.msra.mxu0 0.0
        %3639 = vmatprep.subr.mxu0 0.0
        %3640 = vmatpush1.msra.mxu0 0.0
        %3641 = vmatprep.subr.mxu0 0.0
        %3642 = vmatpush1.msra.mxu0 0.0
        %3643 = vmatprep.subr.mxu0 0.0
        %3644 = vmatpush1.msra.mxu0 0.0
        %3645 = vmatprep.subr.mxu0 0.0
        %3646 = vmatpush1.msra.mxu0 0.0
        %3647 = vmatprep.subr.mxu0 0.0
        %3648 = vmatpush1.msra.mxu0 0.0
        %3649 = vmatprep.subr.mxu0 0.0
        %3650 = vmatpush1.msra.mxu0 0.0
        %3651 = vmatprep.subr.mxu0 0.0
        %3652 = vmatpush1.msra.mxu0 0.0
        %3653 = vmatprep.subr.mxu0 0.0
        %3654 = vmatpush1.msra.mxu0 0.0
        %3655 = vmatprep.subr.mxu0 0.0
        %3656 = vmatpush1.msra.mxu0 0.0
        %3657 = vmatprep.subr.mxu0 0.0
        %3658 = vmatpush1.msra.mxu0 0.0
        %3659 = vmatprep.subr.mxu0 0.0
        %3660 = vmatpush1.msra.mxu0 0.0
        %3661 = vmatprep.subr.mxu0 0.0
        %3662 = vmatpush1.msra.mxu0 0.0
        %3663 = vmatprep.subr.mxu0 0.0
        %3664 = vmatpush1.msra.mxu0 0.0
        %3665 = vmatprep.subr.mxu0 0.0
        %3666 = vmatpush1.msra.mxu0 0.0
        %3667 = vmatprep.subr.mxu0 0.0
        %3668 = vmatpush1.msra.mxu0 0.0
        %3669 = vmatprep.subr.mxu0 0.0
        %3670 = vmatpush1.msra.mxu0 0.0
        %3671 = vmatprep.subr.mxu0 0.0
        %3672 = vmatpush1.msra.mxu0 0.0
        %3673 = vmatprep.subr.mxu0 0.0
        %3674 = vmatpush1.msra.mxu0 0.0
        %3675 = vmatprep.subr.mxu0 0.0
        %3676 = vmatpush1.msra.mxu0 0.0
        %3677 = vmatprep.subr.mxu0 0.0
        %3678 = vmatpush1.msra.mxu0 0.0
        %3679 = vmatprep.subr.mxu0 0.0
        %3680 = vmatpush1.msra.mxu0 0.0
        %3681 = vmatprep.mubr.f32.mxu0 0.0
        %3682 = vmatmul.mubr.f32.gmra.mrb[0].mxu0 %v3612
        %v3683 = vpop.f32.mrb[0].mxu0
        %v3684 = vadd.f32 0.0, %v3683
        %v3685 = vpop.f32.mrb[0].mxu0
        %3686 = vmatprep.mubr.f32.mxu0 0.0
        %3687 = vmatmul.mubr.f32.gmra.mrb[0].mxu0 %v3615
        %v3688 = vpop.f32.mrb[0].mxu0
        %v3689 = vadd.f32 0.0, %v3688
        %v3690 = vpop.f32.mrb[0].mxu0
        %3691 = vdwg.mxu0
        %3692 = vrot.lane.b32.xlu0 %v2145, 56
        %v3693 = vpop.permute.xlu0 %3692
        %3694 = vrot.lane.b32.xlu0 %v2146, 56
        %v3695 = vpop.permute.xlu0 %3694
        %v3699 = vsel %vm1242, %v3081, 0
        %v3702 = vsel %vm1242, %v3082, 0
        %3704 = vmatprep.subr.mxu0 0.0
        %3705 = vmatpush1.msra.mxu0 %v3693
        %3706 = vmatprep.subr.mxu0 0.0
        %3707 = vmatpush1.msra.mxu0 %v3695
        %3708 = vmatprep.subr.mxu0 0.0
        %3709 = vmatpush1.msra.mxu0 0.0
        %3710 = vmatprep.subr.mxu0 0.0
        %3711 = vmatpush1.msra.mxu0 0.0
        %3712 = vmatprep.subr.mxu0 0.0
        %3713 = vmatpush1.msra.mxu0 0.0
        %3714 = vmatprep.subr.mxu0 0.0
        %3715 = vmatpush1.msra.mxu0 0.0
        %3716 = vmatprep.subr.mxu0 0.0
        %3717 = vmatpush1.msra.mxu0 0.0
        %3718 = vmatprep.subr.mxu0 0.0
        %3719 = vmatpush1.msra.mxu0 0.0
        %3720 = vmatprep.subr.mxu0 0.0
        %3721 = vmatpush1.msra.mxu0 0.0
        %3722 = vmatprep.subr.mxu0 0.0
        %3723 = vmatpush1.msra.mxu0 0.0
        %3724 = vmatprep.subr.mxu0 0.0
        %3725 = vmatpush1.msra.mxu0 0.0
        %3726 = vmatprep.subr.mxu0 0.0
        %3727 = vmatpush1.msra.mxu0 0.0
        %3728 = vmatprep.subr.mxu0 0.0
        %3729 = vmatpush1.msra.mxu0 0.0
        %3730 = vmatprep.subr.mxu0 0.0
        %3731 = vmatpush1.msra.mxu0 0.0
        %3732 = vmatprep.subr.mxu0 0.0
        %3733 = vmatpush1.msra.mxu0 0.0
        %3734 = vmatprep.subr.mxu0 0.0
        %3735 = vmatpush1.msra.mxu0 0.0
        %3736 = vmatprep.subr.mxu0 0.0
        %3737 = vmatpush1.msra.mxu0 0.0
        %3738 = vmatprep.subr.mxu0 0.0
        %3739 = vmatpush1.msra.mxu0 0.0
        %3740 = vmatprep.subr.mxu0 0.0
        %3741 = vmatpush1.msra.mxu0 0.0
        %3742 = vmatprep.subr.mxu0 0.0
        %3743 = vmatpush1.msra.mxu0 0.0
        %3744 = vmatprep.subr.mxu0 0.0
        %3745 = vmatpush1.msra.mxu0 0.0
        %3746 = vmatprep.subr.mxu0 0.0
        %3747 = vmatpush1.msra.mxu0 0.0
        %3748 = vmatprep.subr.mxu0 0.0
        %3749 = vmatpush1.msra.mxu0 0.0
        %3750 = vmatprep.subr.mxu0 0.0
        %3751 = vmatpush1.msra.mxu0 0.0
        %3752 = vmatprep.subr.mxu0 0.0
        %3753 = vmatpush1.msra.mxu0 0.0
        %3754 = vmatprep.subr.mxu0 0.0
        %3755 = vmatpush1.msra.mxu0 0.0
        %3756 = vmatprep.subr.mxu0 0.0
        %3757 = vmatpush1.msra.mxu0 0.0
        %3758 = vmatprep.subr.mxu0 0.0
        %3759 = vmatpush1.msra.mxu0 0.0
        %3760 = vmatprep.subr.mxu0 0.0
        %3761 = vmatpush1.msra.mxu0 0.0
        %3762 = vmatprep.subr.mxu0 0.0
        %3763 = vmatpush1.msra.mxu0 0.0
        %3764 = vmatprep.subr.mxu0 0.0
        %3765 = vmatpush1.msra.mxu0 0.0
        %3766 = vmatprep.subr.mxu0 0.0
        %3767 = vmatpush1.msra.mxu0 0.0
        %3768 = vmatprep.mubr.f32.mxu0 0.0
        %3769 = vmatmul.mubr.f32.gmra.mrb[0].mxu0 %v3699
        %v3770 = vpop.f32.mrb[0].mxu0
        %v3771 = vadd.f32 0.0, %v3770
        %v3772 = vpop.f32.mrb[0].mxu0
        %3773 = vmatprep.mubr.f32.mxu0 0.0
        %3774 = vmatmul.mubr.f32.gmra.mrb[0].mxu0 %v3702
        %v3775 = vpop.f32.mrb[0].mxu0
        %v3776 = vadd.f32 0.0, %v3775
        %v3777 = vpop.f32.mrb[0].mxu0
        %3778 = vdwg.mxu0
        %3795 = vrot.lane.b32.xlu0 %v3162, 8
        %v3796 = vpop.permute.xlu0 %3795
        %3797 = vrot.lane.b32.xlu0 %v3167, 8
        %v3798 = vpop.permute.xlu0 %3797
        %3799 = vrot.lane.b32.xlu0 %v3249, 8
        %v3800 = vpop.permute.xlu0 %3799
        %3801 = vrot.lane.b32.xlu0 %v3254, 8
        %v3802 = vpop.permute.xlu0 %3801
        %3803 = vrot.lane.b32.xlu0 %v3336, 8
        %v3804 = vpop.permute.xlu0 %3803
        %3805 = vrot.lane.b32.xlu0 %v3341, 8
        %v3806 = vpop.permute.xlu0 %3805
        %3807 = vrot.lane.b32.xlu0 %v3423, 8
        %v3808 = vpop.permute.xlu0 %3807
        %3809 = vrot.lane.b32.xlu0 %v3428, 8
        %v3810 = vpop.permute.xlu0 %3809
        %3811 = vrot.lane.b32.xlu0 %v3510, 8
        %v3812 = vpop.permute.xlu0 %3811
        %3813 = vrot.lane.b32.xlu0 %v3515, 8
        %v3814 = vpop.permute.xlu0 %3813
        %3815 = vrot.lane.b32.xlu0 %v3597, 8
        %v3816 = vpop.permute.xlu0 %3815
        %3817 = vrot.lane.b32.xlu0 %v3602, 8
        %v3818 = vpop.permute.xlu0 %3817
        %3819 = vrot.lane.b32.xlu0 %v3684, 8
        %v3820 = vpop.permute.xlu0 %3819
        %3821 = vrot.lane.b32.xlu0 %v3689, 8
        %v3822 = vpop.permute.xlu0 %3821
        %3823 = vrot.lane.b32.xlu0 %v3771, 8
        %v3824 = vpop.permute.xlu0 %3823
        %3825 = vrot.lane.b32.xlu0 %v3776, 8
        %v3826 = vpop.permute.xlu0 %3825
        %vm3843 = vcmask 130112
        %3844 = vst.msk [vmem:[#allocation3] sm:$0xff] %vm3843, %v3796
        %3845 = vst.msk [vmem:[#allocation3 + $0x8] sm:$0xff] %vm3843, %v3798
        %3846 = vst.msk [vmem:[#allocation3 + $0x10] sm:$0xff] %vm3843, %v3800
        %3847 = vst.msk [vmem:[#allocation3 + $0x18] sm:$0xff] %vm3843, %v3802
        %3848 = vst.msk [vmem:[#allocation3 + $0x20] sm:$0xff] %vm3843, %v3804
        %3849 = vst.msk [vmem:[#allocation3 + $0x28] sm:$0xff] %vm3843, %v3806
        %3850 = vst.msk [vmem:[#allocation3 + $0x30] sm:$0xff] %vm3843, %v3808
        %3851 = vst.msk [vmem:[#allocation3 + $0x38] sm:$0xff] %vm3843, %v3810
        %3852 = vst.msk [vmem:[#allocation3 + $0x40] sm:$0xff] %vm3843, %v3812
        %3853 = vst.msk [vmem:[#allocation3 + $0x48] sm:$0xff] %vm3843, %v3814
        %3854 = vst.msk [vmem:[#allocation3 + $0x50] sm:$0xff] %vm3843, %v3816
        %3855 = vst.msk [vmem:[#allocation3 + $0x58] sm:$0xff] %vm3843, %v3818
        %3856 = vst.msk [vmem:[#allocation3 + $0x60] sm:$0xff] %vm3843, %v3820
        %3857 = vst.msk [vmem:[#allocation3 + $0x68] sm:$0xff] %vm3843, %v3822
        %3858 = vst.msk [vmem:[#allocation3 + $0x70] sm:$0xff] %vm3843, %v3824
        %3859 = vst.msk [vmem:[#allocation3 + $0x78] sm:$0xff] %vm3843, %v3826
        %v3860 = vld [vmem:[#allocation2] sm:$0xff]
        %v3861 = vld [vmem:[#allocation2 + $0x8] sm:$0xff]
        %v3862 = vld [vmem:[#allocation2 + $0x10] sm:$0xff]
        %v3863 = vld [vmem:[#allocation2 + $0x18] sm:$0xff]
        %v3864 = vld [vmem:[#allocation2 + $0x20] sm:$0xff]
        %v3865 = vld [vmem:[#allocation2 + $0x28] sm:$0xff]
        %v3866 = vld [vmem:[#allocation2 + $0x30] sm:$0xff]
        %v3867 = vld [vmem:[#allocation2 + $0x38] sm:$0xff]
        %v3868 = vld [vmem:[#allocation2 + $0x40] sm:$0xff]
        %v3869 = vld [vmem:[#allocation2 + $0x48] sm:$0xff]
        %v3870 = vld [vmem:[#allocation2 + $0x50] sm:$0xff]
        %v3871 = vld [vmem:[#allocation2 + $0x58] sm:$0xff]
        %v3872 = vld [vmem:[#allocation2 + $0x60] sm:$0xff]
        %v3873 = vld [vmem:[#allocation2 + $0x68] sm:$0xff]
        %v3874 = vld [vmem:[#allocation2 + $0x70] sm:$0xff]
        %v3875 = vld [vmem:[#allocation2 + $0x78] sm:$0xff]
        %3878 = vrot.lane.b32.xlu0 %v3860, 112
        %v3879 = vpop.permute.xlu0 %3878
        %3880 = vrot.lane.b32.xlu0 %v3861, 112
        %v3881 = vpop.permute.xlu0 %3880
        %3882 = vrot.lane.b32.xlu0 %v3860, 80
        %v3883 = vpop.permute.xlu0 %3882
        %3884 = vrot.lane.b32.xlu0 %v3861, 80
        %v3885 = vpop.permute.xlu0 %3884
        %v3886 = vsel %vm519, %v3879, 0
        %v3888 = vsel %vm519, %v3881, 0
        %v3890 = vsel %vm519, %v3883, 0
        %v3892 = vsel %vm519, %v3885, 0
        %3894 = vmatprep.subr.mxu0 0.0
        %3895 = vmatpush1.xpose.msra.mxu0 %v3890
        %3896 = vmatprep.subr.mxu0 0.0
        %3897 = vmatpush1.xpose.msra.mxu0 %v3892
        %3898 = vmatprep.subr.mxu0 0.0
        %3899 = vmatpush1.xpose.msra.mxu0 0.0
        %3900 = vmatprep.subr.mxu0 0.0
        %3901 = vmatpush1.xpose.msra.mxu0 0.0
        %3902 = vmatprep.subr.mxu0 0.0
        %3903 = vmatpush1.xpose.msra.mxu0 0.0
        %3904 = vmatprep.subr.mxu0 0.0
        %3905 = vmatpush1.xpose.msra.mxu0 0.0
        %3906 = vmatprep.subr.mxu0 0.0
        %3907 = vmatpush1.xpose.msra.mxu0 0.0
        %3908 = vmatprep.subr.mxu0 0.0
        %3909 = vmatpush1.xpose.msra.mxu0 0.0
        %3910 = vmatprep.subr.mxu0 0.0
        %3911 = vmatpush1.xpose.msra.mxu0 0.0
        %3912 = vmatprep.subr.mxu0 0.0
        %3913 = vmatpush1.xpose.msra.mxu0 0.0
        %3914 = vmatprep.subr.mxu0 0.0
        %3915 = vmatpush1.xpose.msra.mxu0 0.0
        %3916 = vmatprep.subr.mxu0 0.0
        %3917 = vmatpush1.xpose.msra.mxu0 0.0
        %3918 = vmatprep.subr.mxu0 0.0
        %3919 = vmatpush1.xpose.msra.mxu0 0.0
        %3920 = vmatprep.subr.mxu0 0.0
        %3921 = vmatpush1.xpose.msra.mxu0 0.0
        %3922 = vmatprep.subr.mxu0 0.0
        %3923 = vmatpush1.xpose.msra.mxu0 0.0
        %3924 = vmatprep.subr.mxu0 0.0
        %3925 = vmatpush1.xpose.msra.mxu0 0.0
        %3926 = vmatprep.subr.mxu0 0.0
        %3927 = vmatpush1.xpose.msra.mxu0 0.0
        %3928 = vmatprep.subr.mxu0 0.0
        %3929 = vmatpush1.xpose.msra.mxu0 0.0
        %3930 = vmatprep.subr.mxu0 0.0
        %3931 = vmatpush1.xpose.msra.mxu0 0.0
        %3932 = vmatprep.subr.mxu0 0.0
        %3933 = vmatpush1.xpose.msra.mxu0 0.0
        %3934 = vmatprep.subr.mxu0 0.0
        %3935 = vmatpush1.xpose.msra.mxu0 0.0
        %3936 = vmatprep.subr.mxu0 0.0
        %3937 = vmatpush1.xpose.msra.mxu0 0.0
        %3938 = vmatprep.subr.mxu0 0.0
        %3939 = vmatpush1.xpose.msra.mxu0 0.0
        %3940 = vmatprep.subr.mxu0 0.0
        %3941 = vmatpush1.xpose.msra.mxu0 0.0
        %3942 = vmatprep.subr.mxu0 0.0
        %3943 = vmatpush1.xpose.msra.mxu0 0.0
        %3944 = vmatprep.subr.mxu0 0.0
        %3945 = vmatpush1.xpose.msra.mxu0 0.0
        %3946 = vmatprep.subr.mxu0 0.0
        %3947 = vmatpush1.xpose.msra.mxu0 0.0
        %3948 = vmatprep.subr.mxu0 0.0
        %3949 = vmatpush1.xpose.msra.mxu0 0.0
        %3950 = vmatprep.subr.mxu0 0.0
        %3951 = vmatpush1.xpose.msra.mxu0 0.0
        %3952 = vmatprep.subr.mxu0 0.0
        %3953 = vmatpush1.xpose.msra.mxu0 0.0
        %3954 = vmatprep.subr.mxu0 0.0
        %3955 = vmatpush1.xpose.msra.mxu0 0.0
        %3956 = vmatprep.subr.mxu0 0.0
        %3957 = vmatpush1.xpose.msra.mxu0 0.0
        %3958 = vmatprep.mubr.f32.mxu0 0.0
        %3959 = vmatmul.mubr.f32.gmra.mrb[0].mxu0 %v3886
        %v3960 = vpop.f32.mrb[0].mxu0
        %v3961 = vadd.f32 0.0, %v3960
        %v3962 = vpop.f32.mrb[0].mxu0
        %3963 = vmatprep.mubr.f32.mxu0 0.0
        %3964 = vmatmul.mubr.f32.gmra.mrb[0].mxu0 %v3888
        %v3965 = vpop.f32.mrb[0].mxu0
        %v3966 = vadd.f32 0.0, %v3965
        %v3967 = vpop.f32.mrb[0].mxu0
        %3968 = vdwg.mxu0
        %3971 = vrot.lane.b32.xlu0 %v3862, 112
        %v3972 = vpop.permute.xlu0 %3971
        %3973 = vrot.lane.b32.xlu0 %v3863, 112
        %v3974 = vpop.permute.xlu0 %3973
        %3975 = vrot.lane.b32.xlu0 %v3862, 80
        %v3976 = vpop.permute.xlu0 %3975
        %3977 = vrot.lane.b32.xlu0 %v3863, 80
        %v3978 = vpop.permute.xlu0 %3977
        %v3979 = vsel %vm519, %v3972, 0
        %v3981 = vsel %vm519, %v3974, 0
        %v3983 = vsel %vm519, %v3976, 0
        %v3985 = vsel %vm519, %v3978, 0
        %3987 = vmatprep.subr.mxu0 0.0
        %3988 = vmatpush1.xpose.msra.mxu0 %v3983
        %3989 = vmatprep.subr.mxu0 0.0
        %3990 = vmatpush1.xpose.msra.mxu0 %v3985
        %3991 = vmatprep.subr.mxu0 0.0
        %3992 = vmatpush1.xpose.msra.mxu0 0.0
        %3993 = vmatprep.subr.mxu0 0.0
        %3994 = vmatpush1.xpose.msra.mxu0 0.0
        %3995 = vmatprep.subr.mxu0 0.0
        %3996 = vmatpush1.xpose.msra.mxu0 0.0
        %3997 = vmatprep.subr.mxu0 0.0
        %3998 = vmatpush1.xpose.msra.mxu0 0.0
        %3999 = vmatprep.subr.mxu0 0.0
        %4000 = vmatpush1.xpose.msra.mxu0 0.0
        %4001 = vmatprep.subr.mxu0 0.0
        %4002 = vmatpush1.xpose.msra.mxu0 0.0
        %4003 = vmatprep.subr.mxu0 0.0
        %4004 = vmatpush1.xpose.msra.mxu0 0.0
        %4005 = vmatprep.subr.mxu0 0.0
        %4006 = vmatpush1.xpose.msra.mxu0 0.0
        %4007 = vmatprep.subr.mxu0 0.0
        %4008 = vmatpush1.xpose.msra.mxu0 0.0
        %4009 = vmatprep.subr.mxu0 0.0
        %4010 = vmatpush1.xpose.msra.mxu0 0.0
        %4011 = vmatprep.subr.mxu0 0.0
        %4012 = vmatpush1.xpose.msra.mxu0 0.0
        %4013 = vmatprep.subr.mxu0 0.0
        %4014 = vmatpush1.xpose.msra.mxu0 0.0
        %4015 = vmatprep.subr.mxu0 0.0
        %4016 = vmatpush1.xpose.msra.mxu0 0.0
        %4017 = vmatprep.subr.mxu0 0.0
        %4018 = vmatpush1.xpose.msra.mxu0 0.0
        %4019 = vmatprep.subr.mxu0 0.0
        %4020 = vmatpush1.xpose.msra.mxu0 0.0
        %4021 = vmatprep.subr.mxu0 0.0
        %4022 = vmatpush1.xpose.msra.mxu0 0.0
        %4023 = vmatprep.subr.mxu0 0.0
        %4024 = vmatpush1.xpose.msra.mxu0 0.0
        %4025 = vmatprep.subr.mxu0 0.0
        %4026 = vmatpush1.xpose.msra.mxu0 0.0
        %4027 = vmatprep.subr.mxu0 0.0
        %4028 = vmatpush1.xpose.msra.mxu0 0.0
        %4029 = vmatprep.subr.mxu0 0.0
        %4030 = vmatpush1.xpose.msra.mxu0 0.0
        %4031 = vmatprep.subr.mxu0 0.0
        %4032 = vmatpush1.xpose.msra.mxu0 0.0
        %4033 = vmatprep.subr.mxu0 0.0
        %4034 = vmatpush1.xpose.msra.mxu0 0.0
        %4035 = vmatprep.subr.mxu0 0.0
        %4036 = vmatpush1.xpose.msra.mxu0 0.0
        %4037 = vmatprep.subr.mxu0 0.0
        %4038 = vmatpush1.xpose.msra.mxu0 0.0
        %4039 = vmatprep.subr.mxu0 0.0
        %4040 = vmatpush1.xpose.msra.mxu0 0.0
        %4041 = vmatprep.subr.mxu0 0.0
        %4042 = vmatpush1.xpose.msra.mxu0 0.0
        %4043 = vmatprep.subr.mxu0 0.0
        %4044 = vmatpush1.xpose.msra.mxu0 0.0
        %4045 = vmatprep.subr.mxu0 0.0
        %4046 = vmatpush1.xpose.msra.mxu0 0.0
        %4047 = vmatprep.subr.mxu0 0.0
        %4048 = vmatpush1.xpose.msra.mxu0 0.0
        %4049 = vmatprep.subr.mxu0 0.0
        %4050 = vmatpush1.xpose.msra.mxu0 0.0
        %4051 = vmatprep.mubr.f32.mxu0 0.0
        %4052 = vmatmul.mubr.f32.gmra.mrb[0].mxu0 %v3979
        %v4053 = vpop.f32.mrb[0].mxu0
        %v4054 = vadd.f32 0.0, %v4053
        %v4055 = vpop.f32.mrb[0].mxu0
        %4056 = vmatprep.mubr.f32.mxu0 0.0
        %4057 = vmatmul.mubr.f32.gmra.mrb[0].mxu0 %v3981
        %v4058 = vpop.f32.mrb[0].mxu0
        %v4059 = vadd.f32 0.0, %v4058
        %v4060 = vpop.f32.mrb[0].mxu0
        %4061 = vdwg.mxu0
        %4064 = vrot.lane.b32.xlu0 %v3864, 112
        %v4065 = vpop.permute.xlu0 %4064
        %4066 = vrot.lane.b32.xlu0 %v3865, 112
        %v4067 = vpop.permute.xlu0 %4066
        %4068 = vrot.lane.b32.xlu0 %v3864, 80
        %v4069 = vpop.permute.xlu0 %4068
        %4070 = vrot.lane.b32.xlu0 %v3865, 80
        %v4071 = vpop.permute.xlu0 %4070
        %v4072 = vsel %vm519, %v4065, 0
        %v4074 = vsel %vm519, %v4067, 0
        %v4076 = vsel %vm519, %v4069, 0
        %v4078 = vsel %vm519, %v4071, 0
        %4080 = vmatprep.subr.mxu0 0.0
        %4081 = vmatpush1.xpose.msra.mxu0 %v4076
        %4082 = vmatprep.subr.mxu0 0.0
        %4083 = vmatpush1.xpose.msra.mxu0 %v4078
        %4084 = vmatprep.subr.mxu0 0.0
        %4085 = vmatpush1.xpose.msra.mxu0 0.0
        %4086 = vmatprep.subr.mxu0 0.0
        %4087 = vmatpush1.xpose.msra.mxu0 0.0
        %4088 = vmatprep.subr.mxu0 0.0
        %4089 = vmatpush1.xpose.msra.mxu0 0.0
        %4090 = vmatprep.subr.mxu0 0.0
        %4091 = vmatpush1.xpose.msra.mxu0 0.0
        %4092 = vmatprep.subr.mxu0 0.0
        %4093 = vmatpush1.xpose.msra.mxu0 0.0
        %4094 = vmatprep.subr.mxu0 0.0
        %4095 = vmatpush1.xpose.msra.mxu0 0.0
        %4096 = vmatprep.subr.mxu0 0.0
        %4097 = vmatpush1.xpose.msra.mxu0 0.0
        %4098 = vmatprep.subr.mxu0 0.0
        %4099 = vmatpush1.xpose.msra.mxu0 0.0
        %4100 = vmatprep.subr.mxu0 0.0
        %4101 = vmatpush1.xpose.msra.mxu0 0.0
        %4102 = vmatprep.subr.mxu0 0.0
        %4103 = vmatpush1.xpose.msra.mxu0 0.0
        %4104 = vmatprep.subr.mxu0 0.0
        %4105 = vmatpush1.xpose.msra.mxu0 0.0
        %4106 = vmatprep.subr.mxu0 0.0
        %4107 = vmatpush1.xpose.msra.mxu0 0.0
        %4108 = vmatprep.subr.mxu0 0.0
        %4109 = vmatpush1.xpose.msra.mxu0 0.0
        %4110 = vmatprep.subr.mxu0 0.0
        %4111 = vmatpush1.xpose.msra.mxu0 0.0
        %4112 = vmatprep.subr.mxu0 0.0
        %4113 = vmatpush1.xpose.msra.mxu0 0.0
        %4114 = vmatprep.subr.mxu0 0.0
        %4115 = vmatpush1.xpose.msra.mxu0 0.0
        %4116 = vmatprep.subr.mxu0 0.0
        %4117 = vmatpush1.xpose.msra.mxu0 0.0
        %4118 = vmatprep.subr.mxu0 0.0
        %4119 = vmatpush1.xpose.msra.mxu0 0.0
        %4120 = vmatprep.subr.mxu0 0.0
        %4121 = vmatpush1.xpose.msra.mxu0 0.0
        %4122 = vmatprep.subr.mxu0 0.0
        %4123 = vmatpush1.xpose.msra.mxu0 0.0
        %4124 = vmatprep.subr.mxu0 0.0
        %4125 = vmatpush1.xpose.msra.mxu0 0.0
        %4126 = vmatprep.subr.mxu0 0.0
        %4127 = vmatpush1.xpose.msra.mxu0 0.0
        %4128 = vmatprep.subr.mxu0 0.0
        %4129 = vmatpush1.xpose.msra.mxu0 0.0
        %4130 = vmatprep.subr.mxu0 0.0
        %4131 = vmatpush1.xpose.msra.mxu0 0.0
        %4132 = vmatprep.subr.mxu0 0.0
        %4133 = vmatpush1.xpose.msra.mxu0 0.0
        %4134 = vmatprep.subr.mxu0 0.0
        %4135 = vmatpush1.xpose.msra.mxu0 0.0
        %4136 = vmatprep.subr.mxu0 0.0
        %4137 = vmatpush1.xpose.msra.mxu0 0.0
        %4138 = vmatprep.subr.mxu0 0.0
        %4139 = vmatpush1.xpose.msra.mxu0 0.0
        %4140 = vmatprep.subr.mxu0 0.0
        %4141 = vmatpush1.xpose.msra.mxu0 0.0
        %4142 = vmatprep.subr.mxu0 0.0
        %4143 = vmatpush1.xpose.msra.mxu0 0.0
        %4144 = vmatprep.mubr.f32.mxu0 0.0
        %4145 = vmatmul.mubr.f32.gmra.mrb[0].mxu0 %v4072
        %v4146 = vpop.f32.mrb[0].mxu0
        %v4147 = vadd.f32 0.0, %v4146
        %v4148 = vpop.f32.mrb[0].mxu0
        %4149 = vmatprep.mubr.f32.mxu0 0.0
        %4150 = vmatmul.mubr.f32.gmra.mrb[0].mxu0 %v4074
        %v4151 = vpop.f32.mrb[0].mxu0
        %v4152 = vadd.f32 0.0, %v4151
        %v4153 = vpop.f32.mrb[0].mxu0
        %4154 = vdwg.mxu0
        %4157 = vrot.lane.b32.xlu0 %v3866, 112
        %v4158 = vpop.permute.xlu0 %4157
        %4159 = vrot.lane.b32.xlu0 %v3867, 112
        %v4160 = vpop.permute.xlu0 %4159
        %4161 = vrot.lane.b32.xlu0 %v3866, 80
        %v4162 = vpop.permute.xlu0 %4161
        %4163 = vrot.lane.b32.xlu0 %v3867, 80
        %v4164 = vpop.permute.xlu0 %4163
        %v4165 = vsel %vm519, %v4158, 0
        %v4167 = vsel %vm519, %v4160, 0
        %v4169 = vsel %vm519, %v4162, 0
        %v4171 = vsel %vm519, %v4164, 0
        %4173 = vmatprep.subr.mxu0 0.0
        %4174 = vmatpush1.xpose.msra.mxu0 %v4169
        %4175 = vmatprep.subr.mxu0 0.0
        %4176 = vmatpush1.xpose.msra.mxu0 %v4171
        %4177 = vmatprep.subr.mxu0 0.0
        %4178 = vmatpush1.xpose.msra.mxu0 0.0
        %4179 = vmatprep.subr.mxu0 0.0
        %4180 = vmatpush1.xpose.msra.mxu0 0.0
        %4181 = vmatprep.subr.mxu0 0.0
        %4182 = vmatpush1.xpose.msra.mxu0 0.0
        %4183 = vmatprep.subr.mxu0 0.0
        %4184 = vmatpush1.xpose.msra.mxu0 0.0
        %4185 = vmatprep.subr.mxu0 0.0
        %4186 = vmatpush1.xpose.msra.mxu0 0.0
        %4187 = vmatprep.subr.mxu0 0.0
        %4188 = vmatpush1.xpose.msra.mxu0 0.0
        %4189 = vmatprep.subr.mxu0 0.0
        %4190 = vmatpush1.xpose.msra.mxu0 0.0
        %4191 = vmatprep.subr.mxu0 0.0
        %4192 = vmatpush1.xpose.msra.mxu0 0.0
        %4193 = vmatprep.subr.mxu0 0.0
        %4194 = vmatpush1.xpose.msra.mxu0 0.0
        %4195 = vmatprep.subr.mxu0 0.0
        %4196 = vmatpush1.xpose.msra.mxu0 0.0
        %4197 = vmatprep.subr.mxu0 0.0
        %4198 = vmatpush1.xpose.msra.mxu0 0.0
        %4199 = vmatprep.subr.mxu0 0.0
        %4200 = vmatpush1.xpose.msra.mxu0 0.0
        %4201 = vmatprep.subr.mxu0 0.0
        %4202 = vmatpush1.xpose.msra.mxu0 0.0
        %4203 = vmatprep.subr.mxu0 0.0
        %4204 = vmatpush1.xpose.msra.mxu0 0.0
        %4205 = vmatprep.subr.mxu0 0.0
        %4206 = vmatpush1.xpose.msra.mxu0 0.0
        %4207 = vmatprep.subr.mxu0 0.0
        %4208 = vmatpush1.xpose.msra.mxu0 0.0
        %4209 = vmatprep.subr.mxu0 0.0
        %4210 = vmatpush1.xpose.msra.mxu0 0.0
        %4211 = vmatprep.subr.mxu0 0.0
        %4212 = vmatpush1.xpose.msra.mxu0 0.0
        %4213 = vmatprep.subr.mxu0 0.0
        %4214 = vmatpush1.xpose.msra.mxu0 0.0
        %4215 = vmatprep.subr.mxu0 0.0
        %4216 = vmatpush1.xpose.msra.mxu0 0.0
        %4217 = vmatprep.subr.mxu0 0.0
        %4218 = vmatpush1.xpose.msra.mxu0 0.0
        %4219 = vmatprep.subr.mxu0 0.0
        %4220 = vmatpush1.xpose.msra.mxu0 0.0
        %4221 = vmatprep.subr.mxu0 0.0
        %4222 = vmatpush1.xpose.msra.mxu0 0.0
        %4223 = vmatprep.subr.mxu0 0.0
        %4224 = vmatpush1.xpose.msra.mxu0 0.0
        %4225 = vmatprep.subr.mxu0 0.0
        %4226 = vmatpush1.xpose.msra.mxu0 0.0
        %4227 = vmatprep.subr.mxu0 0.0
        %4228 = vmatpush1.xpose.msra.mxu0 0.0
        %4229 = vmatprep.subr.mxu0 0.0
        %4230 = vmatpush1.xpose.msra.mxu0 0.0
        %4231 = vmatprep.subr.mxu0 0.0
        %4232 = vmatpush1.xpose.msra.mxu0 0.0
        %4233 = vmatprep.subr.mxu0 0.0
        %4234 = vmatpush1.xpose.msra.mxu0 0.0
        %4235 = vmatprep.subr.mxu0 0.0
        %4236 = vmatpush1.xpose.msra.mxu0 0.0
        %4237 = vmatprep.mubr.f32.mxu0 0.0
        %4238 = vmatmul.mubr.f32.gmra.mrb[0].mxu0 %v4165
        %v4239 = vpop.f32.mrb[0].mxu0
        %v4240 = vadd.f32 0.0, %v4239
        %v4241 = vpop.f32.mrb[0].mxu0
        %4242 = vmatprep.mubr.f32.mxu0 0.0
        %4243 = vmatmul.mubr.f32.gmra.mrb[0].mxu0 %v4167
        %v4244 = vpop.f32.mrb[0].mxu0
        %v4245 = vadd.f32 0.0, %v4244
        %v4246 = vpop.f32.mrb[0].mxu0
        %4247 = vdwg.mxu0
        %4250 = vrot.lane.b32.xlu0 %v3868, 112
        %v4251 = vpop.permute.xlu0 %4250
        %4252 = vrot.lane.b32.xlu0 %v3869, 112
        %v4253 = vpop.permute.xlu0 %4252
        %4254 = vrot.lane.b32.xlu0 %v3868, 80
        %v4255 = vpop.permute.xlu0 %4254
        %4256 = vrot.lane.b32.xlu0 %v3869, 80
        %v4257 = vpop.permute.xlu0 %4256
        %v4258 = vsel %vm519, %v4251, 0
        %v4260 = vsel %vm519, %v4253, 0
        %v4262 = vsel %vm519, %v4255, 0
        %v4264 = vsel %vm519, %v4257, 0
        %4266 = vmatprep.subr.mxu0 0.0
        %4267 = vmatpush1.xpose.msra.mxu0 %v4262
        %4268 = vmatprep.subr.mxu0 0.0
        %4269 = vmatpush1.xpose.msra.mxu0 %v4264
        %4270 = vmatprep.subr.mxu0 0.0
        %4271 = vmatpush1.xpose.msra.mxu0 0.0
        %4272 = vmatprep.subr.mxu0 0.0
        %4273 = vmatpush1.xpose.msra.mxu0 0.0
        %4274 = vmatprep.subr.mxu0 0.0
        %4275 = vmatpush1.xpose.msra.mxu0 0.0
        %4276 = vmatprep.subr.mxu0 0.0
        %4277 = vmatpush1.xpose.msra.mxu0 0.0
        %4278 = vmatprep.subr.mxu0 0.0
        %4279 = vmatpush1.xpose.msra.mxu0 0.0
        %4280 = vmatprep.subr.mxu0 0.0
        %4281 = vmatpush1.xpose.msra.mxu0 0.0
        %4282 = vmatprep.subr.mxu0 0.0
        %4283 = vmatpush1.xpose.msra.mxu0 0.0
        %4284 = vmatprep.subr.mxu0 0.0
        %4285 = vmatpush1.xpose.msra.mxu0 0.0
        %4286 = vmatprep.subr.mxu0 0.0
        %4287 = vmatpush1.xpose.msra.mxu0 0.0
        %4288 = vmatprep.subr.mxu0 0.0
        %4289 = vmatpush1.xpose.msra.mxu0 0.0
        %4290 = vmatprep.subr.mxu0 0.0
        %4291 = vmatpush1.xpose.msra.mxu0 0.0
        %4292 = vmatprep.subr.mxu0 0.0
        %4293 = vmatpush1.xpose.msra.mxu0 0.0
        %4294 = vmatprep.subr.mxu0 0.0
        %4295 = vmatpush1.xpose.msra.mxu0 0.0
        %4296 = vmatprep.subr.mxu0 0.0
        %4297 = vmatpush1.xpose.msra.mxu0 0.0
        %4298 = vmatprep.subr.mxu0 0.0
        %4299 = vmatpush1.xpose.msra.mxu0 0.0
        %4300 = vmatprep.subr.mxu0 0.0
        %4301 = vmatpush1.xpose.msra.mxu0 0.0
        %4302 = vmatprep.subr.mxu0 0.0
        %4303 = vmatpush1.xpose.msra.mxu0 0.0
        %4304 = vmatprep.subr.mxu0 0.0
        %4305 = vmatpush1.xpose.msra.mxu0 0.0
        %4306 = vmatprep.subr.mxu0 0.0
        %4307 = vmatpush1.xpose.msra.mxu0 0.0
        %4308 = vmatprep.subr.mxu0 0.0
        %4309 = vmatpush1.xpose.msra.mxu0 0.0
        %4310 = vmatprep.subr.mxu0 0.0
        %4311 = vmatpush1.xpose.msra.mxu0 0.0
        %4312 = vmatprep.subr.mxu0 0.0
        %4313 = vmatpush1.xpose.msra.mxu0 0.0
        %4314 = vmatprep.subr.mxu0 0.0
        %4315 = vmatpush1.xpose.msra.mxu0 0.0
        %4316 = vmatprep.subr.mxu0 0.0
        %4317 = vmatpush1.xpose.msra.mxu0 0.0
        %4318 = vmatprep.subr.mxu0 0.0
        %4319 = vmatpush1.xpose.msra.mxu0 0.0
        %4320 = vmatprep.subr.mxu0 0.0
        %4321 = vmatpush1.xpose.msra.mxu0 0.0
        %4322 = vmatprep.subr.mxu0 0.0
        %4323 = vmatpush1.xpose.msra.mxu0 0.0
        %4324 = vmatprep.subr.mxu0 0.0
        %4325 = vmatpush1.xpose.msra.mxu0 0.0
        %4326 = vmatprep.subr.mxu0 0.0
        %4327 = vmatpush1.xpose.msra.mxu0 0.0
        %4328 = vmatprep.subr.mxu0 0.0
        %4329 = vmatpush1.xpose.msra.mxu0 0.0
        %4330 = vmatprep.mubr.f32.mxu0 0.0
        %4331 = vmatmul.mubr.f32.gmra.mrb[0].mxu0 %v4258
        %v4332 = vpop.f32.mrb[0].mxu0
        %v4333 = vadd.f32 0.0, %v4332
        %v4334 = vpop.f32.mrb[0].mxu0
        %4335 = vmatprep.mubr.f32.mxu0 0.0
        %4336 = vmatmul.mubr.f32.gmra.mrb[0].mxu0 %v4260
        %v4337 = vpop.f32.mrb[0].mxu0
        %v4338 = vadd.f32 0.0, %v4337
        %v4339 = vpop.f32.mrb[0].mxu0
        %4340 = vdwg.mxu0
        %4343 = vrot.lane.b32.xlu0 %v3870, 112
        %v4344 = vpop.permute.xlu0 %4343
        %4345 = vrot.lane.b32.xlu0 %v3871, 112
        %v4346 = vpop.permute.xlu0 %4345
        %4347 = vrot.lane.b32.xlu0 %v3870, 80
        %v4348 = vpop.permute.xlu0 %4347
        %4349 = vrot.lane.b32.xlu0 %v3871, 80
        %v4350 = vpop.permute.xlu0 %4349
        %v4351 = vsel %vm519, %v4344, 0
        %v4353 = vsel %vm519, %v4346, 0
        %v4355 = vsel %vm519, %v4348, 0
        %v4357 = vsel %vm519, %v4350, 0
        %4359 = vmatprep.subr.mxu0 0.0
        %4360 = vmatpush1.xpose.msra.mxu0 %v4355
        %4361 = vmatprep.subr.mxu0 0.0
        %4362 = vmatpush1.xpose.msra.mxu0 %v4357
        %4363 = vmatprep.subr.mxu0 0.0
        %4364 = vmatpush1.xpose.msra.mxu0 0.0
        %4365 = vmatprep.subr.mxu0 0.0
        %4366 = vmatpush1.xpose.msra.mxu0 0.0
        %4367 = vmatprep.subr.mxu0 0.0
        %4368 = vmatpush1.xpose.msra.mxu0 0.0
        %4369 = vmatprep.subr.mxu0 0.0
        %4370 = vmatpush1.xpose.msra.mxu0 0.0
        %4371 = vmatprep.subr.mxu0 0.0
        %4372 = vmatpush1.xpose.msra.mxu0 0.0
        %4373 = vmatprep.subr.mxu0 0.0
        %4374 = vmatpush1.xpose.msra.mxu0 0.0
        %4375 = vmatprep.subr.mxu0 0.0
        %4376 = vmatpush1.xpose.msra.mxu0 0.0
        %4377 = vmatprep.subr.mxu0 0.0
        %4378 = vmatpush1.xpose.msra.mxu0 0.0
        %4379 = vmatprep.subr.mxu0 0.0
        %4380 = vmatpush1.xpose.msra.mxu0 0.0
        %4381 = vmatprep.subr.mxu0 0.0
        %4382 = vmatpush1.xpose.msra.mxu0 0.0
        %4383 = vmatprep.subr.mxu0 0.0
        %4384 = vmatpush1.xpose.msra.mxu0 0.0
        %4385 = vmatprep.subr.mxu0 0.0
        %4386 = vmatpush1.xpose.msra.mxu0 0.0
        %4387 = vmatprep.subr.mxu0 0.0
        %4388 = vmatpush1.xpose.msra.mxu0 0.0
        %4389 = vmatprep.subr.mxu0 0.0
        %4390 = vmatpush1.xpose.msra.mxu0 0.0
        %4391 = vmatprep.subr.mxu0 0.0
        %4392 = vmatpush1.xpose.msra.mxu0 0.0
        %4393 = vmatprep.subr.mxu0 0.0
        %4394 = vmatpush1.xpose.msra.mxu0 0.0
        %4395 = vmatprep.subr.mxu0 0.0
        %4396 = vmatpush1.xpose.msra.mxu0 0.0
        %4397 = vmatprep.subr.mxu0 0.0
        %4398 = vmatpush1.xpose.msra.mxu0 0.0
        %4399 = vmatprep.subr.mxu0 0.0
        %4400 = vmatpush1.xpose.msra.mxu0 0.0
        %4401 = vmatprep.subr.mxu0 0.0
        %4402 = vmatpush1.xpose.msra.mxu0 0.0
        %4403 = vmatprep.subr.mxu0 0.0
        %4404 = vmatpush1.xpose.msra.mxu0 0.0
        %4405 = vmatprep.subr.mxu0 0.0
        %4406 = vmatpush1.xpose.msra.mxu0 0.0
        %4407 = vmatprep.subr.mxu0 0.0
        %4408 = vmatpush1.xpose.msra.mxu0 0.0
        %4409 = vmatprep.subr.mxu0 0.0
        %4410 = vmatpush1.xpose.msra.mxu0 0.0
        %4411 = vmatprep.subr.mxu0 0.0
        %4412 = vmatpush1.xpose.msra.mxu0 0.0
        %4413 = vmatprep.subr.mxu0 0.0
        %4414 = vmatpush1.xpose.msra.mxu0 0.0
        %4415 = vmatprep.subr.mxu0 0.0
        %4416 = vmatpush1.xpose.msra.mxu0 0.0
        %4417 = vmatprep.subr.mxu0 0.0
        %4418 = vmatpush1.xpose.msra.mxu0 0.0
        %4419 = vmatprep.subr.mxu0 0.0
        %4420 = vmatpush1.xpose.msra.mxu0 0.0
        %4421 = vmatprep.subr.mxu0 0.0
        %4422 = vmatpush1.xpose.msra.mxu0 0.0
        %4423 = vmatprep.mubr.f32.mxu0 0.0
        %4424 = vmatmul.mubr.f32.gmra.mrb[0].mxu0 %v4351
        %v4425 = vpop.f32.mrb[0].mxu0
        %v4426 = vadd.f32 0.0, %v4425
        %v4427 = vpop.f32.mrb[0].mxu0
        %4428 = vmatprep.mubr.f32.mxu0 0.0
        %4429 = vmatmul.mubr.f32.gmra.mrb[0].mxu0 %v4353
        %v4430 = vpop.f32.mrb[0].mxu0
        %v4431 = vadd.f32 0.0, %v4430
        %v4432 = vpop.f32.mrb[0].mxu0
        %4433 = vdwg.mxu0
        %4436 = vrot.lane.b32.xlu0 %v3872, 112
        %v4437 = vpop.permute.xlu0 %4436
        %4438 = vrot.lane.b32.xlu0 %v3873, 112
        %v4439 = vpop.permute.xlu0 %4438
        %4440 = vrot.lane.b32.xlu0 %v3872, 80
        %v4441 = vpop.permute.xlu0 %4440
        %4442 = vrot.lane.b32.xlu0 %v3873, 80
        %v4443 = vpop.permute.xlu0 %4442
        %v4444 = vsel %vm519, %v4437, 0
        %v4446 = vsel %vm519, %v4439, 0
        %v4448 = vsel %vm519, %v4441, 0
        %v4450 = vsel %vm519, %v4443, 0
        %4452 = vmatprep.subr.mxu0 0.0
        %4453 = vmatpush1.xpose.msra.mxu0 %v4448
        %4454 = vmatprep.subr.mxu0 0.0
        %4455 = vmatpush1.xpose.msra.mxu0 %v4450
        %4456 = vmatprep.subr.mxu0 0.0
        %4457 = vmatpush1.xpose.msra.mxu0 0.0
        %4458 = vmatprep.subr.mxu0 0.0
        %4459 = vmatpush1.xpose.msra.mxu0 0.0
        %4460 = vmatprep.subr.mxu0 0.0
        %4461 = vmatpush1.xpose.msra.mxu0 0.0
        %4462 = vmatprep.subr.mxu0 0.0
        %4463 = vmatpush1.xpose.msra.mxu0 0.0
        %4464 = vmatprep.subr.mxu0 0.0
        %4465 = vmatpush1.xpose.msra.mxu0 0.0
        %4466 = vmatprep.subr.mxu0 0.0
        %4467 = vmatpush1.xpose.msra.mxu0 0.0
        %4468 = vmatprep.subr.mxu0 0.0
        %4469 = vmatpush1.xpose.msra.mxu0 0.0
        %4470 = vmatprep.subr.mxu0 0.0
        %4471 = vmatpush1.xpose.msra.mxu0 0.0
        %4472 = vmatprep.subr.mxu0 0.0
        %4473 = vmatpush1.xpose.msra.mxu0 0.0
        %4474 = vmatprep.subr.mxu0 0.0
        %4475 = vmatpush1.xpose.msra.mxu0 0.0
        %4476 = vmatprep.subr.mxu0 0.0
        %4477 = vmatpush1.xpose.msra.mxu0 0.0
        %4478 = vmatprep.subr.mxu0 0.0
        %4479 = vmatpush1.xpose.msra.mxu0 0.0
        %4480 = vmatprep.subr.mxu0 0.0
        %4481 = vmatpush1.xpose.msra.mxu0 0.0
        %4482 = vmatprep.subr.mxu0 0.0
        %4483 = vmatpush1.xpose.msra.mxu0 0.0
        %4484 = vmatprep.subr.mxu0 0.0
        %4485 = vmatpush1.xpose.msra.mxu0 0.0
        %4486 = vmatprep.subr.mxu0 0.0
        %4487 = vmatpush1.xpose.msra.mxu0 0.0
        %4488 = vmatprep.subr.mxu0 0.0
        %4489 = vmatpush1.xpose.msra.mxu0 0.0
        %4490 = vmatprep.subr.mxu0 0.0
        %4491 = vmatpush1.xpose.msra.mxu0 0.0
        %4492 = vmatprep.subr.mxu0 0.0
        %4493 = vmatpush1.xpose.msra.mxu0 0.0
        %4494 = vmatprep.subr.mxu0 0.0
        %4495 = vmatpush1.xpose.msra.mxu0 0.0
        %4496 = vmatprep.subr.mxu0 0.0
        %4497 = vmatpush1.xpose.msra.mxu0 0.0
        %4498 = vmatprep.subr.mxu0 0.0
        %4499 = vmatpush1.xpose.msra.mxu0 0.0
        %4500 = vmatprep.subr.mxu0 0.0
        %4501 = vmatpush1.xpose.msra.mxu0 0.0
        %4502 = vmatprep.subr.mxu0 0.0
        %4503 = vmatpush1.xpose.msra.mxu0 0.0
        %4504 = vmatprep.subr.mxu0 0.0
        %4505 = vmatpush1.xpose.msra.mxu0 0.0
        %4506 = vmatprep.subr.mxu0 0.0
        %4507 = vmatpush1.xpose.msra.mxu0 0.0
        %4508 = vmatprep.subr.mxu0 0.0
        %4509 = vmatpush1.xpose.msra.mxu0 0.0
        %4510 = vmatprep.subr.mxu0 0.0
        %4511 = vmatpush1.xpose.msra.mxu0 0.0
        %4512 = vmatprep.subr.mxu0 0.0
        %4513 = vmatpush1.xpose.msra.mxu0 0.0
        %4514 = vmatprep.subr.mxu0 0.0
        %4515 = vmatpush1.xpose.msra.mxu0 0.0
        %4516 = vmatprep.mubr.f32.mxu0 0.0
        %4517 = vmatmul.mubr.f32.gmra.mrb[0].mxu0 %v4444
        %v4518 = vpop.f32.mrb[0].mxu0
        %v4519 = vadd.f32 0.0, %v4518
        %v4520 = vpop.f32.mrb[0].mxu0
        %4521 = vmatprep.mubr.f32.mxu0 0.0
        %4522 = vmatmul.mubr.f32.gmra.mrb[0].mxu0 %v4446
        %v4523 = vpop.f32.mrb[0].mxu0
        %v4524 = vadd.f32 0.0, %v4523
        %v4525 = vpop.f32.mrb[0].mxu0
        %4526 = vdwg.mxu0
        %4529 = vrot.lane.b32.xlu0 %v3874, 112
        %v4530 = vpop.permute.xlu0 %4529
        %4531 = vrot.lane.b32.xlu0 %v3875, 112
        %v4532 = vpop.permute.xlu0 %4531
        %4533 = vrot.lane.b32.xlu0 %v3874, 80
        %v4534 = vpop.permute.xlu0 %4533
        %4535 = vrot.lane.b32.xlu0 %v3875, 80
        %v4536 = vpop.permute.xlu0 %4535
        %v4537 = vsel %vm519, %v4530, 0
        %v4539 = vsel %vm519, %v4532, 0
        %v4541 = vsel %vm519, %v4534, 0
        %v4543 = vsel %vm519, %v4536, 0
        %4545 = vmatprep.subr.mxu0 0.0
        %4546 = vmatpush1.xpose.msra.mxu0 %v4541
        %4547 = vmatprep.subr.mxu0 0.0
        %4548 = vmatpush1.xpose.msra.mxu0 %v4543
        %4549 = vmatprep.subr.mxu0 0.0
        %4550 = vmatpush1.xpose.msra.mxu0 0.0
        %4551 = vmatprep.subr.mxu0 0.0
        %4552 = vmatpush1.xpose.msra.mxu0 0.0
        %4553 = vmatprep.subr.mxu0 0.0
        %4554 = vmatpush1.xpose.msra.mxu0 0.0
        %4555 = vmatprep.subr.mxu0 0.0
        %4556 = vmatpush1.xpose.msra.mxu0 0.0
        %4557 = vmatprep.subr.mxu0 0.0
        %4558 = vmatpush1.xpose.msra.mxu0 0.0
        %4559 = vmatprep.subr.mxu0 0.0
        %4560 = vmatpush1.xpose.msra.mxu0 0.0
        %4561 = vmatprep.subr.mxu0 0.0
        %4562 = vmatpush1.xpose.msra.mxu0 0.0
        %4563 = vmatprep.subr.mxu0 0.0
        %4564 = vmatpush1.xpose.msra.mxu0 0.0
        %4565 = vmatprep.subr.mxu0 0.0
        %4566 = vmatpush1.xpose.msra.mxu0 0.0
        %4567 = vmatprep.subr.mxu0 0.0
        %4568 = vmatpush1.xpose.msra.mxu0 0.0
        %4569 = vmatprep.subr.mxu0 0.0
        %4570 = vmatpush1.xpose.msra.mxu0 0.0
        %4571 = vmatprep.subr.mxu0 0.0
        %4572 = vmatpush1.xpose.msra.mxu0 0.0
        %4573 = vmatprep.subr.mxu0 0.0
        %4574 = vmatpush1.xpose.msra.mxu0 0.0
        %4575 = vmatprep.subr.mxu0 0.0
        %4576 = vmatpush1.xpose.msra.mxu0 0.0
        %4577 = vmatprep.subr.mxu0 0.0
        %4578 = vmatpush1.xpose.msra.mxu0 0.0
        %4579 = vmatprep.subr.mxu0 0.0
        %4580 = vmatpush1.xpose.msra.mxu0 0.0
        %4581 = vmatprep.subr.mxu0 0.0
        %4582 = vmatpush1.xpose.msra.mxu0 0.0
        %4583 = vmatprep.subr.mxu0 0.0
        %4584 = vmatpush1.xpose.msra.mxu0 0.0
        %4585 = vmatprep.subr.mxu0 0.0
        %4586 = vmatpush1.xpose.msra.mxu0 0.0
        %4587 = vmatprep.subr.mxu0 0.0
        %4588 = vmatpush1.xpose.msra.mxu0 0.0
        %4589 = vmatprep.subr.mxu0 0.0
        %4590 = vmatpush1.xpose.msra.mxu0 0.0
        %4591 = vmatprep.subr.mxu0 0.0
        %4592 = vmatpush1.xpose.msra.mxu0 0.0
        %4593 = vmatprep.subr.mxu0 0.0
        %4594 = vmatpush1.xpose.msra.mxu0 0.0
        %4595 = vmatprep.subr.mxu0 0.0
        %4596 = vmatpush1.xpose.msra.mxu0 0.0
        %4597 = vmatprep.subr.mxu0 0.0
        %4598 = vmatpush1.xpose.msra.mxu0 0.0
        %4599 = vmatprep.subr.mxu0 0.0
        %4600 = vmatpush1.xpose.msra.mxu0 0.0
        %4601 = vmatprep.subr.mxu0 0.0
        %4602 = vmatpush1.xpose.msra.mxu0 0.0
        %4603 = vmatprep.subr.mxu0 0.0
        %4604 = vmatpush1.xpose.msra.mxu0 0.0
        %4605 = vmatprep.subr.mxu0 0.0
        %4606 = vmatpush1.xpose.msra.mxu0 0.0
        %4607 = vmatprep.subr.mxu0 0.0
        %4608 = vmatpush1.xpose.msra.mxu0 0.0
        %4609 = vmatprep.mubr.f32.mxu0 0.0
        %4610 = vmatmul.mubr.f32.gmra.mrb[0].mxu0 %v4537
        %v4611 = vpop.f32.mrb[0].mxu0
        %v4612 = vadd.f32 0.0, %v4611
        %v4613 = vpop.f32.mrb[0].mxu0
        %4614 = vmatprep.mubr.f32.mxu0 0.0
        %4615 = vmatmul.mubr.f32.gmra.mrb[0].mxu0 %v4539
        %v4616 = vpop.f32.mrb[0].mxu0
        %v4617 = vadd.f32 0.0, %v4616
        %v4618 = vpop.f32.mrb[0].mxu0
        %4619 = vdwg.mxu0
        %v4620 = vmul.f32 %v3961, 0.35355338
        %v4621 = vmul.f32 %v3966, 0.35355338
        %v4622 = vmul.f32 %v4054, 0.35355338
        %v4623 = vmul.f32 %v4059, 0.35355338
        %v4624 = vmul.f32 %v4147, 0.35355338
        %v4625 = vmul.f32 %v4152, 0.35355338
        %v4626 = vmul.f32 %v4240, 0.35355338
        %v4627 = vmul.f32 %v4245, 0.35355338
        %v4628 = vmul.f32 %v4333, 0.35355338
        %v4629 = vmul.f32 %v4338, 0.35355338
        %v4630 = vmul.f32 %v4426, 0.35355338
        %v4631 = vmul.f32 %v4431, 0.35355338
        %v4632 = vmul.f32 %v4519, 0.35355338
        %v4633 = vmul.f32 %v4524, 0.35355338
        %v4634 = vmul.f32 %v4612, 0.35355338
        %v4635 = vmul.f32 %v4617, 0.35355338
        %v4636 = vsel %vm1242, %v4620, -inf
        %4637 = vmax.xlane.f32.xlu0 %v4636
        %v4638 = vpop.xlane.xlu0 %4637
        %v4639 = vsel %vm1242, %v4621, -inf
        %4640 = vmax.xlane.f32.xlu0 %v4639
        %v4641 = vpop.xlane.xlu0 %4640
        %v4642 = vsel %vm1242, %v4622, -inf
        %4643 = vmax.xlane.f32.xlu0 %v4642
        %v4644 = vpop.xlane.xlu0 %4643
        %v4645 = vsel %vm1242, %v4623, -inf
        %4646 = vmax.xlane.f32.xlu0 %v4645
        %v4647 = vpop.xlane.xlu0 %4646
        %v4648 = vsel %vm1242, %v4624, -inf
        %4649 = vmax.xlane.f32.xlu0 %v4648
        %v4650 = vpop.xlane.xlu0 %4649
        %v4651 = vsel %vm1242, %v4625, -inf
        %4652 = vmax.xlane.f32.xlu0 %v4651
        %v4653 = vpop.xlane.xlu0 %4652
        %v4654 = vsel %vm1242, %v4626, -inf
        %4655 = vmax.xlane.f32.xlu0 %v4654
        %v4656 = vpop.xlane.xlu0 %4655
        %v4657 = vsel %vm1242, %v4627, -inf
        %4658 = vmax.xlane.f32.xlu0 %v4657
        %v4659 = vpop.xlane.xlu0 %4658
        %v4660 = vsel %vm1242, %v4628, -inf
        %4661 = vmax.xlane.f32.xlu0 %v4660
        %v4662 = vpop.xlane.xlu0 %4661
        %v4663 = vsel %vm1242, %v4629, -inf
        %4664 = vmax.xlane.f32.xlu0 %v4663
        %v4665 = vpop.xlane.xlu0 %4664
        %v4666 = vsel %vm1242, %v4630, -inf
        %4667 = vmax.xlane.f32.xlu0 %v4666
        %v4668 = vpop.xlane.xlu0 %4667
        %v4669 = vsel %vm1242, %v4631, -inf
        %4670 = vmax.xlane.f32.xlu0 %v4669
        %v4671 = vpop.xlane.xlu0 %4670
        %v4672 = vsel %vm1242, %v4632, -inf
        %4673 = vmax.xlane.f32.xlu0 %v4672
        %v4674 = vpop.xlane.xlu0 %4673
        %v4675 = vsel %vm1242, %v4633, -inf
        %4676 = vmax.xlane.f32.xlu0 %v4675
        %v4677 = vpop.xlane.xlu0 %4676
        %v4678 = vsel %vm1242, %v4634, -inf
        %4679 = vmax.xlane.f32.xlu0 %v4678
        %v4680 = vpop.xlane.xlu0 %4679
        %v4681 = vsel %vm1242, %v4635, -inf
        %4682 = vmax.xlane.f32.xlu0 %v4681
        %v4683 = vpop.xlane.xlu0 %4682
        %v4684 = vsub.f32 %v4620, %v4638
        %v4685 = vsub.f32 %v4621, %v4641
        %v4686 = vsub.f32 %v4622, %v4644
        %v4687 = vsub.f32 %v4623, %v4647
        %v4688 = vsub.f32 %v4624, %v4650
        %v4689 = vsub.f32 %v4625, %v4653
        %v4690 = vsub.f32 %v4626, %v4656
        %v4691 = vsub.f32 %v4627, %v4659
        %v4692 = vsub.f32 %v4628, %v4662
        %v4693 = vsub.f32 %v4629, %v4665
        %v4694 = vsub.f32 %v4630, %v4668
        %v4695 = vsub.f32 %v4631, %v4671
        %v4696 = vsub.f32 %v4632, %v4674
        %v4697 = vsub.f32 %v4633, %v4677
        %v4698 = vsub.f32 %v4634, %v4680
        %v4699 = vsub.f32 %v4635, %v4683
        %v4700 = vmul.f32 %v4684, 1.442695
        %v4701 = vpow.pop %v4700
        %v4702 = vmul.f32 %v4685, 1.442695
        %v4703 = vpow.pop %v4702
        %v4704 = vmul.f32 %v4686, 1.442695
        %v4705 = vpow.pop %v4704
        %v4706 = vmul.f32 %v4687, 1.442695
        %v4707 = vpow.pop %v4706
        %v4708 = vmul.f32 %v4688, 1.442695
        %v4709 = vpow.pop %v4708
        %v4710 = vmul.f32 %v4689, 1.442695
        %v4711 = vpow.pop %v4710
        %v4712 = vmul.f32 %v4690, 1.442695
        %v4713 = vpow.pop %v4712
        %v4714 = vmul.f32 %v4691, 1.442695
        %v4715 = vpow.pop %v4714
        %v4716 = vmul.f32 %v4692, 1.442695
        %v4717 = vpow.pop %v4716
        %v4718 = vmul.f32 %v4693, 1.442695
        %v4719 = vpow.pop %v4718
        %v4720 = vmul.f32 %v4694, 1.442695
        %v4721 = vpow.pop %v4720
        %v4722 = vmul.f32 %v4695, 1.442695
        %v4723 = vpow.pop %v4722
        %v4724 = vmul.f32 %v4696, 1.442695
        %v4725 = vpow.pop %v4724
        %v4726 = vmul.f32 %v4697, 1.442695
        %v4727 = vpow.pop %v4726
        %v4728 = vmul.f32 %v4698, 1.442695
        %v4729 = vpow.pop %v4728
        %v4730 = vmul.f32 %v4699, 1.442695
        %v4731 = vpow.pop %v4730
        %v4732 = vsel %vm1242, %v4701, 0.0
        %4733 = vadd.xlane.f32.xlu0 %v4732
        %v4734 = vpop.xlane.xlu0 %4733
        %v4735 = vsel %vm1242, %v4703, 0.0
        %4736 = vadd.xlane.f32.xlu0 %v4735
        %v4737 = vpop.xlane.xlu0 %4736
        %v4738 = vsel %vm1242, %v4705, 0.0
        %4739 = vadd.xlane.f32.xlu0 %v4738
        %v4740 = vpop.xlane.xlu0 %4739
        %v4741 = vsel %vm1242, %v4707, 0.0
        %4742 = vadd.xlane.f32.xlu0 %v4741
        %v4743 = vpop.xlane.xlu0 %4742
        %v4744 = vsel %vm1242, %v4709, 0.0
        %4745 = vadd.xlane.f32.xlu0 %v4744
        %v4746 = vpop.xlane.xlu0 %4745
        %v4747 = vsel %vm1242, %v4711, 0.0
        %4748 = vadd.xlane.f32.xlu0 %v4747
        %v4749 = vpop.xlane.xlu0 %4748
        %v4750 = vsel %vm1242, %v4713, 0.0
        %4751 = vadd.xlane.f32.xlu0 %v4750
        %v4752 = vpop.xlane.xlu0 %4751
        %v4753 = vsel %vm1242, %v4715, 0.0
        %4754 = vadd.xlane.f32.xlu0 %v4753
        %v4755 = vpop.xlane.xlu0 %4754
        %v4756 = vsel %vm1242, %v4717, 0.0
        %4757 = vadd.xlane.f32.xlu0 %v4756
        %v4758 = vpop.xlane.xlu0 %4757
        %v4759 = vsel %vm1242, %v4719, 0.0
        %4760 = vadd.xlane.f32.xlu0 %v4759
        %v4761 = vpop.xlane.xlu0 %4760
        %v4762 = vsel %vm1242, %v4721, 0.0
        %4763 = vadd.xlane.f32.xlu0 %v4762
        %v4764 = vpop.xlane.xlu0 %4763
        %v4765 = vsel %vm1242, %v4723, 0.0
        %4766 = vadd.xlane.f32.xlu0 %v4765
        %v4767 = vpop.xlane.xlu0 %4766
        %v4768 = vsel %vm1242, %v4725, 0.0
        %4769 = vadd.xlane.f32.xlu0 %v4768
        %v4770 = vpop.xlane.xlu0 %4769
        %v4771 = vsel %vm1242, %v4727, 0.0
        %4772 = vadd.xlane.f32.xlu0 %v4771
        %v4773 = vpop.xlane.xlu0 %4772
        %v4774 = vsel %vm1242, %v4729, 0.0
        %4775 = vadd.xlane.f32.xlu0 %v4774
        %v4776 = vpop.xlane.xlu0 %4775
        %v4777 = vsel %vm1242, %v4731, 0.0
        %4778 = vadd.xlane.f32.xlu0 %v4777
        %v4779 = vpop.xlane.xlu0 %4778
        %v4780 = vrcp.pop %v4734
        %v4781 = vrcp.pop %v4737
        %v4782 = vrcp.pop %v4740
        %v4783 = vrcp.pop %v4743
        %v4784 = vrcp.pop %v4746
        %v4785 = vrcp.pop %v4749
        %v4786 = vrcp.pop %v4752
        %v4787 = vrcp.pop %v4755
        %v4788 = vrcp.pop %v4758
        %v4789 = vrcp.pop %v4761
        %v4790 = vrcp.pop %v4764
        %v4791 = vrcp.pop %v4767
        %v4792 = vrcp.pop %v4770
        %v4793 = vrcp.pop %v4773
        %v4794 = vrcp.pop %v4776
        %v4795 = vrcp.pop %v4779
        %v4796 = vmul.f32 %v4701, %v4780
        %v4797 = vmul.f32 %v4703, %v4781
        %v4798 = vmul.f32 %v4705, %v4782
        %v4799 = vmul.f32 %v4707, %v4783
        %v4800 = vmul.f32 %v4709, %v4784
        %v4801 = vmul.f32 %v4711, %v4785
        %v4802 = vmul.f32 %v4713, %v4786
        %v4803 = vmul.f32 %v4715, %v4787
        %v4804 = vmul.f32 %v4717, %v4788
        %v4805 = vmul.f32 %v4719, %v4789
        %v4806 = vmul.f32 %v4721, %v4790
        %v4807 = vmul.f32 %v4723, %v4791
        %v4808 = vmul.f32 %v4725, %v4792
        %v4809 = vmul.f32 %v4727, %v4793
        %v4810 = vmul.f32 %v4729, %v4794
        %v4811 = vmul.f32 %v4731, %v4795
        %4812 = vrot.lane.b32.xlu0 %v3860, 48
        %v4813 = vpop.permute.xlu0 %4812
        %4814 = vrot.lane.b32.xlu0 %v3861, 48
        %v4815 = vpop.permute.xlu0 %4814
        %v4819 = vsel %vm1242, %v4796, 0
        %v4822 = vsel %vm1242, %v4797, 0
        %4824 = vmatprep.subr.mxu0 0.0
        %4825 = vmatpush1.msra.mxu0 %v4813
        %4826 = vmatprep.subr.mxu0 0.0
        %4827 = vmatpush1.msra.mxu0 %v4815
        %4828 = vmatprep.subr.mxu0 0.0
        %4829 = vmatpush1.msra.mxu0 0.0
        %4830 = vmatprep.subr.mxu0 0.0
        %4831 = vmatpush1.msra.mxu0 0.0
        %4832 = vmatprep.subr.mxu0 0.0
        %4833 = vmatpush1.msra.mxu0 0.0
        %4834 = vmatprep.subr.mxu0 0.0
        %4835 = vmatpush1.msra.mxu0 0.0
        %4836 = vmatprep.subr.mxu0 0.0
        %4837 = vmatpush1.msra.mxu0 0.0
        %4838 = vmatprep.subr.mxu0 0.0
        %4839 = vmatpush1.msra.mxu0 0.0
        %4840 = vmatprep.subr.mxu0 0.0
        %4841 = vmatpush1.msra.mxu0 0.0
        %4842 = vmatprep.subr.mxu0 0.0
        %4843 = vmatpush1.msra.mxu0 0.0
        %4844 = vmatprep.subr.mxu0 0.0
        %4845 = vmatpush1.msra.mxu0 0.0
        %4846 = vmatprep.subr.mxu0 0.0
        %4847 = vmatpush1.msra.mxu0 0.0
        %4848 = vmatprep.subr.mxu0 0.0
        %4849 = vmatpush1.msra.mxu0 0.0
        %4850 = vmatprep.subr.mxu0 0.0
        %4851 = vmatpush1.msra.mxu0 0.0
        %4852 = vmatprep.subr.mxu0 0.0
        %4853 = vmatpush1.msra.mxu0 0.0
        %4854 = vmatprep.subr.mxu0 0.0
        %4855 = vmatpush1.msra.mxu0 0.0
        %4856 = vmatprep.subr.mxu0 0.0
        %4857 = vmatpush1.msra.mxu0 0.0
        %4858 = vmatprep.subr.mxu0 0.0
        %4859 = vmatpush1.msra.mxu0 0.0
        %4860 = vmatprep.subr.mxu0 0.0
        %4861 = vmatpush1.msra.mxu0 0.0
        %4862 = vmatprep.subr.mxu0 0.0
        %4863 = vmatpush1.msra.mxu0 0.0
        %4864 = vmatprep.subr.mxu0 0.0
        %4865 = vmatpush1.msra.mxu0 0.0
        %4866 = vmatprep.subr.mxu0 0.0
        %4867 = vmatpush1.msra.mxu0 0.0
        %4868 = vmatprep.subr.mxu0 0.0
        %4869 = vmatpush1.msra.mxu0 0.0
        %4870 = vmatprep.subr.mxu0 0.0
        %4871 = vmatpush1.msra.mxu0 0.0
        %4872 = vmatprep.subr.mxu0 0.0
        %4873 = vmatpush1.msra.mxu0 0.0
        %4874 = vmatprep.subr.mxu0 0.0
        %4875 = vmatpush1.msra.mxu0 0.0
        %4876 = vmatprep.subr.mxu0 0.0
        %4877 = vmatpush1.msra.mxu0 0.0
        %4878 = vmatprep.subr.mxu0 0.0
        %4879 = vmatpush1.msra.mxu0 0.0
        %4880 = vmatprep.subr.mxu0 0.0
        %4881 = vmatpush1.msra.mxu0 0.0
        %4882 = vmatprep.subr.mxu0 0.0
        %4883 = vmatpush1.msra.mxu0 0.0
        %4884 = vmatprep.subr.mxu0 0.0
        %4885 = vmatpush1.msra.mxu0 0.0
        %4886 = vmatprep.subr.mxu0 0.0
        %4887 = vmatpush1.msra.mxu0 0.0
        %4888 = vmatprep.mubr.f32.mxu0 0.0
        %4889 = vmatmul.mubr.f32.gmra.mrb[0].mxu0 %v4819
        %v4890 = vpop.f32.mrb[0].mxu0
        %v4891 = vadd.f32 0.0, %v4890
        %v4892 = vpop.f32.mrb[0].mxu0
        %4893 = vmatprep.mubr.f32.mxu0 0.0
        %4894 = vmatmul.mubr.f32.gmra.mrb[0].mxu0 %v4822
        %v4895 = vpop.f32.mrb[0].mxu0
        %v4896 = vadd.f32 0.0, %v4895
        %v4897 = vpop.f32.mrb[0].mxu0
        %4898 = vdwg.mxu0
        %4899 = vrot.lane.b32.xlu0 %v3862, 48
        %v4900 = vpop.permute.xlu0 %4899
        %4901 = vrot.lane.b32.xlu0 %v3863, 48
        %v4902 = vpop.permute.xlu0 %4901
        %v4906 = vsel %vm1242, %v4798, 0
        %v4909 = vsel %vm1242, %v4799, 0
        %4911 = vmatprep.subr.mxu0 0.0
        %4912 = vmatpush1.msra.mxu0 %v4900
        %4913 = vmatprep.subr.mxu0 0.0
        %4914 = vmatpush1.msra.mxu0 %v4902
        %4915 = vmatprep.subr.mxu0 0.0
        %4916 = vmatpush1.msra.mxu0 0.0
        %4917 = vmatprep.subr.mxu0 0.0
        %4918 = vmatpush1.msra.mxu0 0.0
        %4919 = vmatprep.subr.mxu0 0.0
        %4920 = vmatpush1.msra.mxu0 0.0
        %4921 = vmatprep.subr.mxu0 0.0
        %4922 = vmatpush1.msra.mxu0 0.0
        %4923 = vmatprep.subr.mxu0 0.0
        %4924 = vmatpush1.msra.mxu0 0.0
        %4925 = vmatprep.subr.mxu0 0.0
        %4926 = vmatpush1.msra.mxu0 0.0
        %4927 = vmatprep.subr.mxu0 0.0
        %4928 = vmatpush1.msra.mxu0 0.0
        %4929 = vmatprep.subr.mxu0 0.0
        %4930 = vmatpush1.msra.mxu0 0.0
        %4931 = vmatprep.subr.mxu0 0.0
        %4932 = vmatpush1.msra.mxu0 0.0
        %4933 = vmatprep.subr.mxu0 0.0
        %4934 = vmatpush1.msra.mxu0 0.0
        %4935 = vmatprep.subr.mxu0 0.0
        %4936 = vmatpush1.msra.mxu0 0.0
        %4937 = vmatprep.subr.mxu0 0.0
        %4938 = vmatpush1.msra.mxu0 0.0
        %4939 = vmatprep.subr.mxu0 0.0
        %4940 = vmatpush1.msra.mxu0 0.0
        %4941 = vmatprep.subr.mxu0 0.0
        %4942 = vmatpush1.msra.mxu0 0.0
        %4943 = vmatprep.subr.mxu0 0.0
        %4944 = vmatpush1.msra.mxu0 0.0
        %4945 = vmatprep.subr.mxu0 0.0
        %4946 = vmatpush1.msra.mxu0 0.0
        %4947 = vmatprep.subr.mxu0 0.0
        %4948 = vmatpush1.msra.mxu0 0.0
        %4949 = vmatprep.subr.mxu0 0.0
        %4950 = vmatpush1.msra.mxu0 0.0
        %4951 = vmatprep.subr.mxu0 0.0
        %4952 = vmatpush1.msra.mxu0 0.0
        %4953 = vmatprep.subr.mxu0 0.0
        %4954 = vmatpush1.msra.mxu0 0.0
        %4955 = vmatprep.subr.mxu0 0.0
        %4956 = vmatpush1.msra.mxu0 0.0
        %4957 = vmatprep.subr.mxu0 0.0
        %4958 = vmatpush1.msra.mxu0 0.0
        %4959 = vmatprep.subr.mxu0 0.0
        %4960 = vmatpush1.msra.mxu0 0.0
        %4961 = vmatprep.subr.mxu0 0.0
        %4962 = vmatpush1.msra.mxu0 0.0
        %4963 = vmatprep.subr.mxu0 0.0
        %4964 = vmatpush1.msra.mxu0 0.0
        %4965 = vmatprep.subr.mxu0 0.0
        %4966 = vmatpush1.msra.mxu0 0.0
        %4967 = vmatprep.subr.mxu0 0.0
        %4968 = vmatpush1.msra.mxu0 0.0
        %4969 = vmatprep.subr.mxu0 0.0
        %4970 = vmatpush1.msra.mxu0 0.0
        %4971 = vmatprep.subr.mxu0 0.0
        %4972 = vmatpush1.msra.mxu0 0.0
        %4973 = vmatprep.subr.mxu0 0.0
        %4974 = vmatpush1.msra.mxu0 0.0
        %4975 = vmatprep.mubr.f32.mxu0 0.0
        %4976 = vmatmul.mubr.f32.gmra.mrb[0].mxu0 %v4906
        %v4977 = vpop.f32.mrb[0].mxu0
        %v4978 = vadd.f32 0.0, %v4977
        %v4979 = vpop.f32.mrb[0].mxu0
        %4980 = vmatprep.mubr.f32.mxu0 0.0
        %4981 = vmatmul.mubr.f32.gmra.mrb[0].mxu0 %v4909
        %v4982 = vpop.f32.mrb[0].mxu0
        %v4983 = vadd.f32 0.0, %v4982
        %v4984 = vpop.f32.mrb[0].mxu0
        %4985 = vdwg.mxu0
        %4986 = vrot.lane.b32.xlu0 %v3864, 48
        %v4987 = vpop.permute.xlu0 %4986
        %4988 = vrot.lane.b32.xlu0 %v3865, 48
        %v4989 = vpop.permute.xlu0 %4988
        %v4993 = vsel %vm1242, %v4800, 0
        %v4996 = vsel %vm1242, %v4801, 0
        %4998 = vmatprep.subr.mxu0 0.0
        %4999 = vmatpush1.msra.mxu0 %v4987
        %5000 = vmatprep.subr.mxu0 0.0
        %5001 = vmatpush1.msra.mxu0 %v4989
        %5002 = vmatprep.subr.mxu0 0.0
        %5003 = vmatpush1.msra.mxu0 0.0
        %5004 = vmatprep.subr.mxu0 0.0
        %5005 = vmatpush1.msra.mxu0 0.0
        %5006 = vmatprep.subr.mxu0 0.0
        %5007 = vmatpush1.msra.mxu0 0.0
        %5008 = vmatprep.subr.mxu0 0.0
        %5009 = vmatpush1.msra.mxu0 0.0
        %5010 = vmatprep.subr.mxu0 0.0
        %5011 = vmatpush1.msra.mxu0 0.0
        %5012 = vmatprep.subr.mxu0 0.0
        %5013 = vmatpush1.msra.mxu0 0.0
        %5014 = vmatprep.subr.mxu0 0.0
        %5015 = vmatpush1.msra.mxu0 0.0
        %5016 = vmatprep.subr.mxu0 0.0
        %5017 = vmatpush1.msra.mxu0 0.0
        %5018 = vmatprep.subr.mxu0 0.0
        %5019 = vmatpush1.msra.mxu0 0.0
        %5020 = vmatprep.subr.mxu0 0.0
        %5021 = vmatpush1.msra.mxu0 0.0
        %5022 = vmatprep.subr.mxu0 0.0
        %5023 = vmatpush1.msra.mxu0 0.0
        %5024 = vmatprep.subr.mxu0 0.0
        %5025 = vmatpush1.msra.mxu0 0.0
        %5026 = vmatprep.subr.mxu0 0.0
        %5027 = vmatpush1.msra.mxu0 0.0
        %5028 = vmatprep.subr.mxu0 0.0
        %5029 = vmatpush1.msra.mxu0 0.0
        %5030 = vmatprep.subr.mxu0 0.0
        %5031 = vmatpush1.msra.mxu0 0.0
        %5032 = vmatprep.subr.mxu0 0.0
        %5033 = vmatpush1.msra.mxu0 0.0
        %5034 = vmatprep.subr.mxu0 0.0
        %5035 = vmatpush1.msra.mxu0 0.0
        %5036 = vmatprep.subr.mxu0 0.0
        %5037 = vmatpush1.msra.mxu0 0.0
        %5038 = vmatprep.subr.mxu0 0.0
        %5039 = vmatpush1.msra.mxu0 0.0
        %5040 = vmatprep.subr.mxu0 0.0
        %5041 = vmatpush1.msra.mxu0 0.0
        %5042 = vmatprep.subr.mxu0 0.0
        %5043 = vmatpush1.msra.mxu0 0.0
        %5044 = vmatprep.subr.mxu0 0.0
        %5045 = vmatpush1.msra.mxu0 0.0
        %5046 = vmatprep.subr.mxu0 0.0
        %5047 = vmatpush1.msra.mxu0 0.0
        %5048 = vmatprep.subr.mxu0 0.0
        %5049 = vmatpush1.msra.mxu0 0.0
        %5050 = vmatprep.subr.mxu0 0.0
        %5051 = vmatpush1.msra.mxu0 0.0
        %5052 = vmatprep.subr.mxu0 0.0
        %5053 = vmatpush1.msra.mxu0 0.0
        %5054 = vmatprep.subr.mxu0 0.0
        %5055 = vmatpush1.msra.mxu0 0.0
        %5056 = vmatprep.subr.mxu0 0.0
        %5057 = vmatpush1.msra.mxu0 0.0
        %5058 = vmatprep.subr.mxu0 0.0
        %5059 = vmatpush1.msra.mxu0 0.0
        %5060 = vmatprep.subr.mxu0 0.0
        %5061 = vmatpush1.msra.mxu0 0.0
        %5062 = vmatprep.mubr.f32.mxu0 0.0
        %5063 = vmatmul.mubr.f32.gmra.mrb[0].mxu0 %v4993
        %v5064 = vpop.f32.mrb[0].mxu0
        %v5065 = vadd.f32 0.0, %v5064
        %v5066 = vpop.f32.mrb[0].mxu0
        %5067 = vmatprep.mubr.f32.mxu0 0.0
        %5068 = vmatmul.mubr.f32.gmra.mrb[0].mxu0 %v4996
        %v5069 = vpop.f32.mrb[0].mxu0
        %v5070 = vadd.f32 0.0, %v5069
        %v5071 = vpop.f32.mrb[0].mxu0
        %5072 = vdwg.mxu0
        %5073 = vrot.lane.b32.xlu0 %v3866, 48
        %v5074 = vpop.permute.xlu0 %5073
        %5075 = vrot.lane.b32.xlu0 %v3867, 48
        %v5076 = vpop.permute.xlu0 %5075
        %v5080 = vsel %vm1242, %v4802, 0
        %v5083 = vsel %vm1242, %v4803, 0
        %5085 = vmatprep.subr.mxu0 0.0
        %5086 = vmatpush1.msra.mxu0 %v5074
        %5087 = vmatprep.subr.mxu0 0.0
        %5088 = vmatpush1.msra.mxu0 %v5076
        %5089 = vmatprep.subr.mxu0 0.0
        %5090 = vmatpush1.msra.mxu0 0.0
        %5091 = vmatprep.subr.mxu0 0.0
        %5092 = vmatpush1.msra.mxu0 0.0
        %5093 = vmatprep.subr.mxu0 0.0
        %5094 = vmatpush1.msra.mxu0 0.0
        %5095 = vmatprep.subr.mxu0 0.0
        %5096 = vmatpush1.msra.mxu0 0.0
        %5097 = vmatprep.subr.mxu0 0.0
        %5098 = vmatpush1.msra.mxu0 0.0
        %5099 = vmatprep.subr.mxu0 0.0
        %5100 = vmatpush1.msra.mxu0 0.0
        %5101 = vmatprep.subr.mxu0 0.0
        %5102 = vmatpush1.msra.mxu0 0.0
        %5103 = vmatprep.subr.mxu0 0.0
        %5104 = vmatpush1.msra.mxu0 0.0
        %5105 = vmatprep.subr.mxu0 0.0
        %5106 = vmatpush1.msra.mxu0 0.0
        %5107 = vmatprep.subr.mxu0 0.0
        %5108 = vmatpush1.msra.mxu0 0.0
        %5109 = vmatprep.subr.mxu0 0.0
        %5110 = vmatpush1.msra.mxu0 0.0
        %5111 = vmatprep.subr.mxu0 0.0
        %5112 = vmatpush1.msra.mxu0 0.0
        %5113 = vmatprep.subr.mxu0 0.0
        %5114 = vmatpush1.msra.mxu0 0.0
        %5115 = vmatprep.subr.mxu0 0.0
        %5116 = vmatpush1.msra.mxu0 0.0
        %5117 = vmatprep.subr.mxu0 0.0
        %5118 = vmatpush1.msra.mxu0 0.0
        %5119 = vmatprep.subr.mxu0 0.0
        %5120 = vmatpush1.msra.mxu0 0.0
        %5121 = vmatprep.subr.mxu0 0.0
        %5122 = vmatpush1.msra.mxu0 0.0
        %5123 = vmatprep.subr.mxu0 0.0
        %5124 = vmatpush1.msra.mxu0 0.0
        %5125 = vmatprep.subr.mxu0 0.0
        %5126 = vmatpush1.msra.mxu0 0.0
        %5127 = vmatprep.subr.mxu0 0.0
        %5128 = vmatpush1.msra.mxu0 0.0
        %5129 = vmatprep.subr.mxu0 0.0
        %5130 = vmatpush1.msra.mxu0 0.0
        %5131 = vmatprep.subr.mxu0 0.0
        %5132 = vmatpush1.msra.mxu0 0.0
        %5133 = vmatprep.subr.mxu0 0.0
        %5134 = vmatpush1.msra.mxu0 0.0
        %5135 = vmatprep.subr.mxu0 0.0
        %5136 = vmatpush1.msra.mxu0 0.0
        %5137 = vmatprep.subr.mxu0 0.0
        %5138 = vmatpush1.msra.mxu0 0.0
        %5139 = vmatprep.subr.mxu0 0.0
        %5140 = vmatpush1.msra.mxu0 0.0
        %5141 = vmatprep.subr.mxu0 0.0
        %5142 = vmatpush1.msra.mxu0 0.0
        %5143 = vmatprep.subr.mxu0 0.0
        %5144 = vmatpush1.msra.mxu0 0.0
        %5145 = vmatprep.subr.mxu0 0.0
        %5146 = vmatpush1.msra.mxu0 0.0
        %5147 = vmatprep.subr.mxu0 0.0
        %5148 = vmatpush1.msra.mxu0 0.0
        %5149 = vmatprep.mubr.f32.mxu0 0.0
        %5150 = vmatmul.mubr.f32.gmra.mrb[0].mxu0 %v5080
        %v5151 = vpop.f32.mrb[0].mxu0
        %v5152 = vadd.f32 0.0, %v5151
        %v5153 = vpop.f32.mrb[0].mxu0
        %5154 = vmatprep.mubr.f32.mxu0 0.0
        %5155 = vmatmul.mubr.f32.gmra.mrb[0].mxu0 %v5083
        %v5156 = vpop.f32.mrb[0].mxu0
        %v5157 = vadd.f32 0.0, %v5156
        %v5158 = vpop.f32.mrb[0].mxu0
        %5159 = vdwg.mxu0
        %5160 = vrot.lane.b32.xlu0 %v3868, 48
        %v5161 = vpop.permute.xlu0 %5160
        %5162 = vrot.lane.b32.xlu0 %v3869, 48
        %v5163 = vpop.permute.xlu0 %5162
        %v5167 = vsel %vm1242, %v4804, 0
        %v5170 = vsel %vm1242, %v4805, 0
        %5172 = vmatprep.subr.mxu0 0.0
        %5173 = vmatpush1.msra.mxu0 %v5161
        %5174 = vmatprep.subr.mxu0 0.0
        %5175 = vmatpush1.msra.mxu0 %v5163
        %5176 = vmatprep.subr.mxu0 0.0
        %5177 = vmatpush1.msra.mxu0 0.0
        %5178 = vmatprep.subr.mxu0 0.0
        %5179 = vmatpush1.msra.mxu0 0.0
        %5180 = vmatprep.subr.mxu0 0.0
        %5181 = vmatpush1.msra.mxu0 0.0
        %5182 = vmatprep.subr.mxu0 0.0
        %5183 = vmatpush1.msra.mxu0 0.0
        %5184 = vmatprep.subr.mxu0 0.0
        %5185 = vmatpush1.msra.mxu0 0.0
        %5186 = vmatprep.subr.mxu0 0.0
        %5187 = vmatpush1.msra.mxu0 0.0
        %5188 = vmatprep.subr.mxu0 0.0
        %5189 = vmatpush1.msra.mxu0 0.0
        %5190 = vmatprep.subr.mxu0 0.0
        %5191 = vmatpush1.msra.mxu0 0.0
        %5192 = vmatprep.subr.mxu0 0.0
        %5193 = vmatpush1.msra.mxu0 0.0
        %5194 = vmatprep.subr.mxu0 0.0
        %5195 = vmatpush1.msra.mxu0 0.0
        %5196 = vmatprep.subr.mxu0 0.0
        %5197 = vmatpush1.msra.mxu0 0.0
        %5198 = vmatprep.subr.mxu0 0.0
        %5199 = vmatpush1.msra.mxu0 0.0
        %5200 = vmatprep.subr.mxu0 0.0
        %5201 = vmatpush1.msra.mxu0 0.0
        %5202 = vmatprep.subr.mxu0 0.0
        %5203 = vmatpush1.msra.mxu0 0.0
        %5204 = vmatprep.subr.mxu0 0.0
        %5205 = vmatpush1.msra.mxu0 0.0
        %5206 = vmatprep.subr.mxu0 0.0
        %5207 = vmatpush1.msra.mxu0 0.0
        %5208 = vmatprep.subr.mxu0 0.0
        %5209 = vmatpush1.msra.mxu0 0.0
        %5210 = vmatprep.subr.mxu0 0.0
        %5211 = vmatpush1.msra.mxu0 0.0
        %5212 = vmatprep.subr.mxu0 0.0
        %5213 = vmatpush1.msra.mxu0 0.0
        %5214 = vmatprep.subr.mxu0 0.0
        %5215 = vmatpush1.msra.mxu0 0.0
        %5216 = vmatprep.subr.mxu0 0.0
        %5217 = vmatpush1.msra.mxu0 0.0
        %5218 = vmatprep.subr.mxu0 0.0
        %5219 = vmatpush1.msra.mxu0 0.0
        %5220 = vmatprep.subr.mxu0 0.0
        %5221 = vmatpush1.msra.mxu0 0.0
        %5222 = vmatprep.subr.mxu0 0.0
        %5223 = vmatpush1.msra.mxu0 0.0
        %5224 = vmatprep.subr.mxu0 0.0
        %5225 = vmatpush1.msra.mxu0 0.0
        %5226 = vmatprep.subr.mxu0 0.0
        %5227 = vmatpush1.msra.mxu0 0.0
        %5228 = vmatprep.subr.mxu0 0.0
        %5229 = vmatpush1.msra.mxu0 0.0
        %5230 = vmatprep.subr.mxu0 0.0
        %5231 = vmatpush1.msra.mxu0 0.0
        %5232 = vmatprep.subr.mxu0 0.0
        %5233 = vmatpush1.msra.mxu0 0.0
        %5234 = vmatprep.subr.mxu0 0.0
        %5235 = vmatpush1.msra.mxu0 0.0
        %5236 = vmatprep.mubr.f32.mxu0 0.0
        %5237 = vmatmul.mubr.f32.gmra.mrb[0].mxu0 %v5167
        %v5238 = vpop.f32.mrb[0].mxu0
        %v5239 = vadd.f32 0.0, %v5238
        %v5240 = vpop.f32.mrb[0].mxu0
        %5241 = vmatprep.mubr.f32.mxu0 0.0
        %5242 = vmatmul.mubr.f32.gmra.mrb[0].mxu0 %v5170
        %v5243 = vpop.f32.mrb[0].mxu0
        %v5244 = vadd.f32 0.0, %v5243
        %v5245 = vpop.f32.mrb[0].mxu0
        %5246 = vdwg.mxu0
        %5247 = vrot.lane.b32.xlu0 %v3870, 48
        %v5248 = vpop.permute.xlu0 %5247
        %5249 = vrot.lane.b32.xlu0 %v3871, 48
        %v5250 = vpop.permute.xlu0 %5249
        %v5254 = vsel %vm1242, %v4806, 0
        %v5257 = vsel %vm1242, %v4807, 0
        %5259 = vmatprep.subr.mxu0 0.0
        %5260 = vmatpush1.msra.mxu0 %v5248
        %5261 = vmatprep.subr.mxu0 0.0
        %5262 = vmatpush1.msra.mxu0 %v5250
        %5263 = vmatprep.subr.mxu0 0.0
        %5264 = vmatpush1.msra.mxu0 0.0
        %5265 = vmatprep.subr.mxu0 0.0
        %5266 = vmatpush1.msra.mxu0 0.0
        %5267 = vmatprep.subr.mxu0 0.0
        %5268 = vmatpush1.msra.mxu0 0.0
        %5269 = vmatprep.subr.mxu0 0.0
        %5270 = vmatpush1.msra.mxu0 0.0
        %5271 = vmatprep.subr.mxu0 0.0
        %5272 = vmatpush1.msra.mxu0 0.0
        %5273 = vmatprep.subr.mxu0 0.0
        %5274 = vmatpush1.msra.mxu0 0.0
        %5275 = vmatprep.subr.mxu0 0.0
        %5276 = vmatpush1.msra.mxu0 0.0
        %5277 = vmatprep.subr.mxu0 0.0
        %5278 = vmatpush1.msra.mxu0 0.0
        %5279 = vmatprep.subr.mxu0 0.0
        %5280 = vmatpush1.msra.mxu0 0.0
        %5281 = vmatprep.subr.mxu0 0.0
        %5282 = vmatpush1.msra.mxu0 0.0
        %5283 = vmatprep.subr.mxu0 0.0
        %5284 = vmatpush1.msra.mxu0 0.0
        %5285 = vmatprep.subr.mxu0 0.0
        %5286 = vmatpush1.msra.mxu0 0.0
        %5287 = vmatprep.subr.mxu0 0.0
        %5288 = vmatpush1.msra.mxu0 0.0
        %5289 = vmatprep.subr.mxu0 0.0
        %5290 = vmatpush1.msra.mxu0 0.0
        %5291 = vmatprep.subr.mxu0 0.0
        %5292 = vmatpush1.msra.mxu0 0.0
        %5293 = vmatprep.subr.mxu0 0.0
        %5294 = vmatpush1.msra.mxu0 0.0
        %5295 = vmatprep.subr.mxu0 0.0
        %5296 = vmatpush1.msra.mxu0 0.0
        %5297 = vmatprep.subr.mxu0 0.0
        %5298 = vmatpush1.msra.mxu0 0.0
        %5299 = vmatprep.subr.mxu0 0.0
        %5300 = vmatpush1.msra.mxu0 0.0
        %5301 = vmatprep.subr.mxu0 0.0
        %5302 = vmatpush1.msra.mxu0 0.0
        %5303 = vmatprep.subr.mxu0 0.0
        %5304 = vmatpush1.msra.mxu0 0.0
        %5305 = vmatprep.subr.mxu0 0.0
        %5306 = vmatpush1.msra.mxu0 0.0
        %5307 = vmatprep.subr.mxu0 0.0
        %5308 = vmatpush1.msra.mxu0 0.0
        %5309 = vmatprep.subr.mxu0 0.0
        %5310 = vmatpush1.msra.mxu0 0.0
        %5311 = vmatprep.subr.mxu0 0.0
        %5312 = vmatpush1.msra.mxu0 0.0
        %5313 = vmatprep.subr.mxu0 0.0
        %5314 = vmatpush1.msra.mxu0 0.0
        %5315 = vmatprep.subr.mxu0 0.0
        %5316 = vmatpush1.msra.mxu0 0.0
        %5317 = vmatprep.subr.mxu0 0.0
        %5318 = vmatpush1.msra.mxu0 0.0
        %5319 = vmatprep.subr.mxu0 0.0
        %5320 = vmatpush1.msra.mxu0 0.0
        %5321 = vmatprep.subr.mxu0 0.0
        %5322 = vmatpush1.msra.mxu0 0.0
        %5323 = vmatprep.mubr.f32.mxu0 0.0
        %5324 = vmatmul.mubr.f32.gmra.mrb[0].mxu0 %v5254
        %v5325 = vpop.f32.mrb[0].mxu0
        %v5326 = vadd.f32 0.0, %v5325
        %v5327 = vpop.f32.mrb[0].mxu0
        %5328 = vmatprep.mubr.f32.mxu0 0.0
        %5329 = vmatmul.mubr.f32.gmra.mrb[0].mxu0 %v5257
        %v5330 = vpop.f32.mrb[0].mxu0
        %v5331 = vadd.f32 0.0, %v5330
        %v5332 = vpop.f32.mrb[0].mxu0
        %5333 = vdwg.mxu0
        %5334 = vrot.lane.b32.xlu0 %v3872, 48
        %v5335 = vpop.permute.xlu0 %5334
        %5336 = vrot.lane.b32.xlu0 %v3873, 48
        %v5337 = vpop.permute.xlu0 %5336
        %v5341 = vsel %vm1242, %v4808, 0
        %v5344 = vsel %vm1242, %v4809, 0
        %5346 = vmatprep.subr.mxu0 0.0
        %5347 = vmatpush1.msra.mxu0 %v5335
        %5348 = vmatprep.subr.mxu0 0.0
        %5349 = vmatpush1.msra.mxu0 %v5337
        %5350 = vmatprep.subr.mxu0 0.0
        %5351 = vmatpush1.msra.mxu0 0.0
        %5352 = vmatprep.subr.mxu0 0.0
        %5353 = vmatpush1.msra.mxu0 0.0
        %5354 = vmatprep.subr.mxu0 0.0
        %5355 = vmatpush1.msra.mxu0 0.0
        %5356 = vmatprep.subr.mxu0 0.0
        %5357 = vmatpush1.msra.mxu0 0.0
        %5358 = vmatprep.subr.mxu0 0.0
        %5359 = vmatpush1.msra.mxu0 0.0
        %5360 = vmatprep.subr.mxu0 0.0
        %5361 = vmatpush1.msra.mxu0 0.0
        %5362 = vmatprep.subr.mxu0 0.0
        %5363 = vmatpush1.msra.mxu0 0.0
        %5364 = vmatprep.subr.mxu0 0.0
        %5365 = vmatpush1.msra.mxu0 0.0
        %5366 = vmatprep.subr.mxu0 0.0
        %5367 = vmatpush1.msra.mxu0 0.0
        %5368 = vmatprep.subr.mxu0 0.0
        %5369 = vmatpush1.msra.mxu0 0.0
        %5370 = vmatprep.subr.mxu0 0.0
        %5371 = vmatpush1.msra.mxu0 0.0
        %5372 = vmatprep.subr.mxu0 0.0
        %5373 = vmatpush1.msra.mxu0 0.0
        %5374 = vmatprep.subr.mxu0 0.0
        %5375 = vmatpush1.msra.mxu0 0.0
        %5376 = vmatprep.subr.mxu0 0.0
        %5377 = vmatpush1.msra.mxu0 0.0
        %5378 = vmatprep.subr.mxu0 0.0
        %5379 = vmatpush1.msra.mxu0 0.0
        %5380 = vmatprep.subr.mxu0 0.0
        %5381 = vmatpush1.msra.mxu0 0.0
        %5382 = vmatprep.subr.mxu0 0.0
        %5383 = vmatpush1.msra.mxu0 0.0
        %5384 = vmatprep.subr.mxu0 0.0
        %5385 = vmatpush1.msra.mxu0 0.0
        %5386 = vmatprep.subr.mxu0 0.0
        %5387 = vmatpush1.msra.mxu0 0.0
        %5388 = vmatprep.subr.mxu0 0.0
        %5389 = vmatpush1.msra.mxu0 0.0
        %5390 = vmatprep.subr.mxu0 0.0
        %5391 = vmatpush1.msra.mxu0 0.0
        %5392 = vmatprep.subr.mxu0 0.0
        %5393 = vmatpush1.msra.mxu0 0.0
        %5394 = vmatprep.subr.mxu0 0.0
        %5395 = vmatpush1.msra.mxu0 0.0
        %5396 = vmatprep.subr.mxu0 0.0
        %5397 = vmatpush1.msra.mxu0 0.0
        %5398 = vmatprep.subr.mxu0 0.0
        %5399 = vmatpush1.msra.mxu0 0.0
        %5400 = vmatprep.subr.mxu0 0.0
        %5401 = vmatpush1.msra.mxu0 0.0
        %5402 = vmatprep.subr.mxu0 0.0
        %5403 = vmatpush1.msra.mxu0 0.0
        %5404 = vmatprep.subr.mxu0 0.0
        %5405 = vmatpush1.msra.mxu0 0.0
        %5406 = vmatprep.subr.mxu0 0.0
        %5407 = vmatpush1.msra.mxu0 0.0
        %5408 = vmatprep.subr.mxu0 0.0
        %5409 = vmatpush1.msra.mxu0 0.0
        %5410 = vmatprep.mubr.f32.mxu0 0.0
        %5411 = vmatmul.mubr.f32.gmra.mrb[0].mxu0 %v5341
        %v5412 = vpop.f32.mrb[0].mxu0
        %v5413 = vadd.f32 0.0, %v5412
        %v5414 = vpop.f32.mrb[0].mxu0
        %5415 = vmatprep.mubr.f32.mxu0 0.0
        %5416 = vmatmul.mubr.f32.gmra.mrb[0].mxu0 %v5344
        %v5417 = vpop.f32.mrb[0].mxu0
        %v5418 = vadd.f32 0.0, %v5417
        %v5419 = vpop.f32.mrb[0].mxu0
        %5420 = vdwg.mxu0
        %5421 = vrot.lane.b32.xlu0 %v3874, 48
        %v5422 = vpop.permute.xlu0 %5421
        %5423 = vrot.lane.b32.xlu0 %v3875, 48
        %v5424 = vpop.permute.xlu0 %5423
        %v5428 = vsel %vm1242, %v4810, 0
        %v5431 = vsel %vm1242, %v4811, 0
        %5433 = vmatprep.subr.mxu0 0.0
        %5434 = vmatpush1.msra.mxu0 %v5422
        %5435 = vmatprep.subr.mxu0 0.0
        %5436 = vmatpush1.msra.mxu0 %v5424
        %5437 = vmatprep.subr.mxu0 0.0
        %5438 = vmatpush1.msra.mxu0 0.0
        %5439 = vmatprep.subr.mxu0 0.0
        %5440 = vmatpush1.msra.mxu0 0.0
        %5441 = vmatprep.subr.mxu0 0.0
        %5442 = vmatpush1.msra.mxu0 0.0
        %5443 = vmatprep.subr.mxu0 0.0
        %5444 = vmatpush1.msra.mxu0 0.0
        %5445 = vmatprep.subr.mxu0 0.0
        %5446 = vmatpush1.msra.mxu0 0.0
        %5447 = vmatprep.subr.mxu0 0.0
        %5448 = vmatpush1.msra.mxu0 0.0
        %5449 = vmatprep.subr.mxu0 0.0
        %5450 = vmatpush1.msra.mxu0 0.0
        %5451 = vmatprep.subr.mxu0 0.0
        %5452 = vmatpush1.msra.mxu0 0.0
        %5453 = vmatprep.subr.mxu0 0.0
        %5454 = vmatpush1.msra.mxu0 0.0
        %5455 = vmatprep.subr.mxu0 0.0
        %5456 = vmatpush1.msra.mxu0 0.0
        %5457 = vmatprep.subr.mxu0 0.0
        %5458 = vmatpush1.msra.mxu0 0.0
        %5459 = vmatprep.subr.mxu0 0.0
        %5460 = vmatpush1.msra.mxu0 0.0
        %5461 = vmatprep.subr.mxu0 0.0
        %5462 = vmatpush1.msra.mxu0 0.0
        %5463 = vmatprep.subr.mxu0 0.0
        %5464 = vmatpush1.msra.mxu0 0.0
        %5465 = vmatprep.subr.mxu0 0.0
        %5466 = vmatpush1.msra.mxu0 0.0
        %5467 = vmatprep.subr.mxu0 0.0
        %5468 = vmatpush1.msra.mxu0 0.0
        %5469 = vmatprep.subr.mxu0 0.0
        %5470 = vmatpush1.msra.mxu0 0.0
        %5471 = vmatprep.subr.mxu0 0.0
        %5472 = vmatpush1.msra.mxu0 0.0
        %5473 = vmatprep.subr.mxu0 0.0
        %5474 = vmatpush1.msra.mxu0 0.0
        %5475 = vmatprep.subr.mxu0 0.0
        %5476 = vmatpush1.msra.mxu0 0.0
        %5477 = vmatprep.subr.mxu0 0.0
        %5478 = vmatpush1.msra.mxu0 0.0
        %5479 = vmatprep.subr.mxu0 0.0
        %5480 = vmatpush1.msra.mxu0 0.0
        %5481 = vmatprep.subr.mxu0 0.0
        %5482 = vmatpush1.msra.mxu0 0.0
        %5483 = vmatprep.subr.mxu0 0.0
        %5484 = vmatpush1.msra.mxu0 0.0
        %5485 = vmatprep.subr.mxu0 0.0
        %5486 = vmatpush1.msra.mxu0 0.0
        %5487 = vmatprep.subr.mxu0 0.0
        %5488 = vmatpush1.msra.mxu0 0.0
        %5489 = vmatprep.subr.mxu0 0.0
        %5490 = vmatpush1.msra.mxu0 0.0
        %5491 = vmatprep.subr.mxu0 0.0
        %5492 = vmatpush1.msra.mxu0 0.0
        %5493 = vmatprep.subr.mxu0 0.0
        %5494 = vmatpush1.msra.mxu0 0.0
        %5495 = vmatprep.subr.mxu0 0.0
        %5496 = vmatpush1.msra.mxu0 0.0
        %5497 = vmatprep.mubr.f32.mxu0 0.0
        %5498 = vmatmul.mubr.f32.gmra.mrb[0].mxu0 %v5428
        %v5499 = vpop.f32.mrb[0].mxu0
        %v5500 = vadd.f32 0.0, %v5499
        %v5501 = vpop.f32.mrb[0].mxu0
        %5502 = vmatprep.mubr.f32.mxu0 0.0
        %5503 = vmatmul.mubr.f32.gmra.mrb[0].mxu0 %v5431
        %v5504 = vpop.f32.mrb[0].mxu0
        %v5505 = vadd.f32 0.0, %v5504
        %v5506 = vpop.f32.mrb[0].mxu0
        %5507 = vdwg.mxu0
        %5524 = vrot.lane.b32.xlu0 %v4891, 16
        %v5525 = vpop.permute.xlu0 %5524
        %5526 = vrot.lane.b32.xlu0 %v4896, 16
        %v5527 = vpop.permute.xlu0 %5526
        %5528 = vrot.lane.b32.xlu0 %v4978, 16
        %v5529 = vpop.permute.xlu0 %5528
        %5530 = vrot.lane.b32.xlu0 %v4983, 16
        %v5531 = vpop.permute.xlu0 %5530
        %5532 = vrot.lane.b32.xlu0 %v5065, 16
        %v5533 = vpop.permute.xlu0 %5532
        %5534 = vrot.lane.b32.xlu0 %v5070, 16
        %v5535 = vpop.permute.xlu0 %5534
        %5536 = vrot.lane.b32.xlu0 %v5152, 16
        %v5537 = vpop.permute.xlu0 %5536
        %5538 = vrot.lane.b32.xlu0 %v5157, 16
        %v5539 = vpop.permute.xlu0 %5538
        %5540 = vrot.lane.b32.xlu0 %v5239, 16
        %v5541 = vpop.permute.xlu0 %5540
        %5542 = vrot.lane.b32.xlu0 %v5244, 16
        %v5543 = vpop.permute.xlu0 %5542
        %5544 = vrot.lane.b32.xlu0 %v5326, 16
        %v5545 = vpop.permute.xlu0 %5544
        %5546 = vrot.lane.b32.xlu0 %v5331, 16
        %v5547 = vpop.permute.xlu0 %5546
        %5548 = vrot.lane.b32.xlu0 %v5413, 16
        %v5549 = vpop.permute.xlu0 %5548
        %5550 = vrot.lane.b32.xlu0 %v5418, 16
        %v5551 = vpop.permute.xlu0 %5550
        %5552 = vrot.lane.b32.xlu0 %v5500, 16
        %v5553 = vpop.permute.xlu0 %5552
        %5554 = vrot.lane.b32.xlu0 %v5505, 16
        %v5555 = vpop.permute.xlu0 %5554
        %vm5572 = vcmask 195712
        %5573 = vst.msk [vmem:[#allocation3] sm:$0xff] %vm5572, %v5525
        %5574 = vst.msk [vmem:[#allocation3 + $0x8] sm:$0xff] %vm5572, %v5527
        %5575 = vst.msk [vmem:[#allocation3 + $0x10] sm:$0xff] %vm5572, %v5529
        %5576 = vst.msk [vmem:[#allocation3 + $0x18] sm:$0xff] %vm5572, %v5531
        %5577 = vst.msk [vmem:[#allocation3 + $0x20] sm:$0xff] %vm5572, %v5533
        %5578 = vst.msk [vmem:[#allocation3 + $0x28] sm:$0xff] %vm5572, %v5535
        %5579 = vst.msk [vmem:[#allocation3 + $0x30] sm:$0xff] %vm5572, %v5537
        %5580 = vst.msk [vmem:[#allocation3 + $0x38] sm:$0xff] %vm5572, %v5539
        %5581 = vst.msk [vmem:[#allocation3 + $0x40] sm:$0xff] %vm5572, %v5541
        %5582 = vst.msk [vmem:[#allocation3 + $0x48] sm:$0xff] %vm5572, %v5543
        %5583 = vst.msk [vmem:[#allocation3 + $0x50] sm:$0xff] %vm5572, %v5545
        %5584 = vst.msk [vmem:[#allocation3 + $0x58] sm:$0xff] %vm5572, %v5547
        %5585 = vst.msk [vmem:[#allocation3 + $0x60] sm:$0xff] %vm5572, %v5549
        %5586 = vst.msk [vmem:[#allocation3 + $0x68] sm:$0xff] %vm5572, %v5551
        %5587 = vst.msk [vmem:[#allocation3 + $0x70] sm:$0xff] %vm5572, %v5553
        %5588 = vst.msk [vmem:[#allocation3 + $0x78] sm:$0xff] %vm5572, %v5555
        %v5589 = vld [vmem:[#allocation2] sm:$0xff]
        %v5590 = vld [vmem:[#allocation2 + $0x8] sm:$0xff]
        %v5591 = vld [vmem:[#allocation2 + $0x10] sm:$0xff]
        %v5592 = vld [vmem:[#allocation2 + $0x18] sm:$0xff]
        %v5593 = vld [vmem:[#allocation2 + $0x20] sm:$0xff]
        %v5594 = vld [vmem:[#allocation2 + $0x28] sm:$0xff]
        %v5595 = vld [vmem:[#allocation2 + $0x30] sm:$0xff]
        %v5596 = vld [vmem:[#allocation2 + $0x38] sm:$0xff]
        %v5597 = vld [vmem:[#allocation2 + $0x40] sm:$0xff]
        %v5598 = vld [vmem:[#allocation2 + $0x48] sm:$0xff]
        %v5599 = vld [vmem:[#allocation2 + $0x50] sm:$0xff]
        %v5600 = vld [vmem:[#allocation2 + $0x58] sm:$0xff]
        %v5601 = vld [vmem:[#allocation2 + $0x60] sm:$0xff]
        %v5602 = vld [vmem:[#allocation2 + $0x68] sm:$0xff]
        %v5603 = vld [vmem:[#allocation2 + $0x70] sm:$0xff]
        %v5604 = vld [vmem:[#allocation2 + $0x78] sm:$0xff]
        %5607 = vrot.lane.b32.xlu0 %v5589, 104
        %v5608 = vpop.permute.xlu0 %5607
        %5609 = vrot.lane.b32.xlu0 %v5590, 104
        %v5610 = vpop.permute.xlu0 %5609
        %5611 = vrot.lane.b32.xlu0 %v5589, 72
        %v5612 = vpop.permute.xlu0 %5611
        %5613 = vrot.lane.b32.xlu0 %v5590, 72
        %v5614 = vpop.permute.xlu0 %5613
        %v5615 = vsel %vm519, %v5608, 0
        %v5617 = vsel %vm519, %v5610, 0
        %v5619 = vsel %vm519, %v5612, 0
        %v5621 = vsel %vm519, %v5614, 0
        %5623 = vmatprep.subr.mxu0 0.0
        %5624 = vmatpush1.xpose.msra.mxu0 %v5619
        %5625 = vmatprep.subr.mxu0 0.0
        %5626 = vmatpush1.xpose.msra.mxu0 %v5621
        %5627 = vmatprep.subr.mxu0 0.0
        %5628 = vmatpush1.xpose.msra.mxu0 0.0
        %5629 = vmatprep.subr.mxu0 0.0
        %5630 = vmatpush1.xpose.msra.mxu0 0.0
        %5631 = vmatprep.subr.mxu0 0.0
        %5632 = vmatpush1.xpose.msra.mxu0 0.0
        %5633 = vmatprep.subr.mxu0 0.0
        %5634 = vmatpush1.xpose.msra.mxu0 0.0
        %5635 = vmatprep.subr.mxu0 0.0
        %5636 = vmatpush1.xpose.msra.mxu0 0.0
        %5637 = vmatprep.subr.mxu0 0.0
        %5638 = vmatpush1.xpose.msra.mxu0 0.0
        %5639 = vmatprep.subr.mxu0 0.0
        %5640 = vmatpush1.xpose.msra.mxu0 0.0
        %5641 = vmatprep.subr.mxu0 0.0
        %5642 = vmatpush1.xpose.msra.mxu0 0.0
        %5643 = vmatprep.subr.mxu0 0.0
        %5644 = vmatpush1.xpose.msra.mxu0 0.0
        %5645 = vmatprep.subr.mxu0 0.0
        %5646 = vmatpush1.xpose.msra.mxu0 0.0
        %5647 = vmatprep.subr.mxu0 0.0
        %5648 = vmatpush1.xpose.msra.mxu0 0.0
        %5649 = vmatprep.subr.mxu0 0.0
        %5650 = vmatpush1.xpose.msra.mxu0 0.0
        %5651 = vmatprep.subr.mxu0 0.0
        %5652 = vmatpush1.xpose.msra.mxu0 0.0
        %5653 = vmatprep.subr.mxu0 0.0
        %5654 = vmatpush1.xpose.msra.mxu0 0.0
        %5655 = vmatprep.subr.mxu0 0.0
        %5656 = vmatpush1.xpose.msra.mxu0 0.0
        %5657 = vmatprep.subr.mxu0 0.0
        %5658 = vmatpush1.xpose.msra.mxu0 0.0
        %5659 = vmatprep.subr.mxu0 0.0
        %5660 = vmatpush1.xpose.msra.mxu0 0.0
        %5661 = vmatprep.subr.mxu0 0.0
        %5662 = vmatpush1.xpose.msra.mxu0 0.0
        %5663 = vmatprep.subr.mxu0 0.0
        %5664 = vmatpush1.xpose.msra.mxu0 0.0
        %5665 = vmatprep.subr.mxu0 0.0
        %5666 = vmatpush1.xpose.msra.mxu0 0.0
        %5667 = vmatprep.subr.mxu0 0.0
        %5668 = vmatpush1.xpose.msra.mxu0 0.0
        %5669 = vmatprep.subr.mxu0 0.0
        %5670 = vmatpush1.xpose.msra.mxu0 0.0
        %5671 = vmatprep.subr.mxu0 0.0
        %5672 = vmatpush1.xpose.msra.mxu0 0.0
        %5673 = vmatprep.subr.mxu0 0.0
        %5674 = vmatpush1.xpose.msra.mxu0 0.0
        %5675 = vmatprep.subr.mxu0 0.0
        %5676 = vmatpush1.xpose.msra.mxu0 0.0
        %5677 = vmatprep.subr.mxu0 0.0
        %5678 = vmatpush1.xpose.msra.mxu0 0.0
        %5679 = vmatprep.subr.mxu0 0.0
        %5680 = vmatpush1.xpose.msra.mxu0 0.0
        %5681 = vmatprep.subr.mxu0 0.0
        %5682 = vmatpush1.xpose.msra.mxu0 0.0
        %5683 = vmatprep.subr.mxu0 0.0
        %5684 = vmatpush1.xpose.msra.mxu0 0.0
        %5685 = vmatprep.subr.mxu0 0.0
        %5686 = vmatpush1.xpose.msra.mxu0 0.0
        %5687 = vmatprep.mubr.f32.mxu0 0.0
        %5688 = vmatmul.mubr.f32.gmra.mrb[0].mxu0 %v5615
        %v5689 = vpop.f32.mrb[0].mxu0
        %v5690 = vadd.f32 0.0, %v5689
        %v5691 = vpop.f32.mrb[0].mxu0
        %5692 = vmatprep.mubr.f32.mxu0 0.0
        %5693 = vmatmul.mubr.f32.gmra.mrb[0].mxu0 %v5617
        %v5694 = vpop.f32.mrb[0].mxu0
        %v5695 = vadd.f32 0.0, %v5694
        %v5696 = vpop.f32.mrb[0].mxu0
        %5697 = vdwg.mxu0
        %5700 = vrot.lane.b32.xlu0 %v5591, 104
        %v5701 = vpop.permute.xlu0 %5700
        %5702 = vrot.lane.b32.xlu0 %v5592, 104
        %v5703 = vpop.permute.xlu0 %5702
        %5704 = vrot.lane.b32.xlu0 %v5591, 72
        %v5705 = vpop.permute.xlu0 %5704
        %5706 = vrot.lane.b32.xlu0 %v5592, 72
        %v5707 = vpop.permute.xlu0 %5706
        %v5708 = vsel %vm519, %v5701, 0
        %v5710 = vsel %vm519, %v5703, 0
        %v5712 = vsel %vm519, %v5705, 0
        %v5714 = vsel %vm519, %v5707, 0
        %5716 = vmatprep.subr.mxu0 0.0
        %5717 = vmatpush1.xpose.msra.mxu0 %v5712
        %5718 = vmatprep.subr.mxu0 0.0
        %5719 = vmatpush1.xpose.msra.mxu0 %v5714
        %5720 = vmatprep.subr.mxu0 0.0
        %5721 = vmatpush1.xpose.msra.mxu0 0.0
        %5722 = vmatprep.subr.mxu0 0.0
        %5723 = vmatpush1.xpose.msra.mxu0 0.0
        %5724 = vmatprep.subr.mxu0 0.0
        %5725 = vmatpush1.xpose.msra.mxu0 0.0
        %5726 = vmatprep.subr.mxu0 0.0
        %5727 = vmatpush1.xpose.msra.mxu0 0.0
        %5728 = vmatprep.subr.mxu0 0.0
        %5729 = vmatpush1.xpose.msra.mxu0 0.0
        %5730 = vmatprep.subr.mxu0 0.0
        %5731 = vmatpush1.xpose.msra.mxu0 0.0
        %5732 = vmatprep.subr.mxu0 0.0
        %5733 = vmatpush1.xpose.msra.mxu0 0.0
        %5734 = vmatprep.subr.mxu0 0.0
        %5735 = vmatpush1.xpose.msra.mxu0 0.0
        %5736 = vmatprep.subr.mxu0 0.0
        %5737 = vmatpush1.xpose.msra.mxu0 0.0
        %5738 = vmatprep.subr.mxu0 0.0
        %5739 = vmatpush1.xpose.msra.mxu0 0.0
        %5740 = vmatprep.subr.mxu0 0.0
        %5741 = vmatpush1.xpose.msra.mxu0 0.0
        %5742 = vmatprep.subr.mxu0 0.0
        %5743 = vmatpush1.xpose.msra.mxu0 0.0
        %5744 = vmatprep.subr.mxu0 0.0
        %5745 = vmatpush1.xpose.msra.mxu0 0.0
        %5746 = vmatprep.subr.mxu0 0.0
        %5747 = vmatpush1.xpose.msra.mxu0 0.0
        %5748 = vmatprep.subr.mxu0 0.0
        %5749 = vmatpush1.xpose.msra.mxu0 0.0
        %5750 = vmatprep.subr.mxu0 0.0
        %5751 = vmatpush1.xpose.msra.mxu0 0.0
        %5752 = vmatprep.subr.mxu0 0.0
        %5753 = vmatpush1.xpose.msra.mxu0 0.0
        %5754 = vmatprep.subr.mxu0 0.0
        %5755 = vmatpush1.xpose.msra.mxu0 0.0
        %5756 = vmatprep.subr.mxu0 0.0
        %5757 = vmatpush1.xpose.msra.mxu0 0.0
        %5758 = vmatprep.subr.mxu0 0.0
        %5759 = vmatpush1.xpose.msra.mxu0 0.0
        %5760 = vmatprep.subr.mxu0 0.0
        %5761 = vmatpush1.xpose.msra.mxu0 0.0
        %5762 = vmatprep.subr.mxu0 0.0
        %5763 = vmatpush1.xpose.msra.mxu0 0.0
        %5764 = vmatprep.subr.mxu0 0.0
        %5765 = vmatpush1.xpose.msra.mxu0 0.0
        %5766 = vmatprep.subr.mxu0 0.0
        %5767 = vmatpush1.xpose.msra.mxu0 0.0
        %5768 = vmatprep.subr.mxu0 0.0
        %5769 = vmatpush1.xpose.msra.mxu0 0.0
        %5770 = vmatprep.subr.mxu0 0.0
        %5771 = vmatpush1.xpose.msra.mxu0 0.0
        %5772 = vmatprep.subr.mxu0 0.0
        %5773 = vmatpush1.xpose.msra.mxu0 0.0
        %5774 = vmatprep.subr.mxu0 0.0
        %5775 = vmatpush1.xpose.msra.mxu0 0.0
        %5776 = vmatprep.subr.mxu0 0.0
        %5777 = vmatpush1.xpose.msra.mxu0 0.0
        %5778 = vmatprep.subr.mxu0 0.0
        %5779 = vmatpush1.xpose.msra.mxu0 0.0
        %5780 = vmatprep.mubr.f32.mxu0 0.0
        %5781 = vmatmul.mubr.f32.gmra.mrb[0].mxu0 %v5708
        %v5782 = vpop.f32.mrb[0].mxu0
        %v5783 = vadd.f32 0.0, %v5782
        %v5784 = vpop.f32.mrb[0].mxu0
        %5785 = vmatprep.mubr.f32.mxu0 0.0
        %5786 = vmatmul.mubr.f32.gmra.mrb[0].mxu0 %v5710
        %v5787 = vpop.f32.mrb[0].mxu0
        %v5788 = vadd.f32 0.0, %v5787
        %v5789 = vpop.f32.mrb[0].mxu0
        %5790 = vdwg.mxu0
        %5793 = vrot.lane.b32.xlu0 %v5593, 104
        %v5794 = vpop.permute.xlu0 %5793
        %5795 = vrot.lane.b32.xlu0 %v5594, 104
        %v5796 = vpop.permute.xlu0 %5795
        %5797 = vrot.lane.b32.xlu0 %v5593, 72
        %v5798 = vpop.permute.xlu0 %5797
        %5799 = vrot.lane.b32.xlu0 %v5594, 72
        %v5800 = vpop.permute.xlu0 %5799
        %v5801 = vsel %vm519, %v5794, 0
        %v5803 = vsel %vm519, %v5796, 0
        %v5805 = vsel %vm519, %v5798, 0
        %v5807 = vsel %vm519, %v5800, 0
        %5809 = vmatprep.subr.mxu0 0.0
        %5810 = vmatpush1.xpose.msra.mxu0 %v5805
        %5811 = vmatprep.subr.mxu0 0.0
        %5812 = vmatpush1.xpose.msra.mxu0 %v5807
        %5813 = vmatprep.subr.mxu0 0.0
        %5814 = vmatpush1.xpose.msra.mxu0 0.0
        %5815 = vmatprep.subr.mxu0 0.0
        %5816 = vmatpush1.xpose.msra.mxu0 0.0
        %5817 = vmatprep.subr.mxu0 0.0
        %5818 = vmatpush1.xpose.msra.mxu0 0.0
        %5819 = vmatprep.subr.mxu0 0.0
        %5820 = vmatpush1.xpose.msra.mxu0 0.0
        %5821 = vmatprep.subr.mxu0 0.0
        %5822 = vmatpush1.xpose.msra.mxu0 0.0
        %5823 = vmatprep.subr.mxu0 0.0
        %5824 = vmatpush1.xpose.msra.mxu0 0.0
        %5825 = vmatprep.subr.mxu0 0.0
        %5826 = vmatpush1.xpose.msra.mxu0 0.0
        %5827 = vmatprep.subr.mxu0 0.0
        %5828 = vmatpush1.xpose.msra.mxu0 0.0
        %5829 = vmatprep.subr.mxu0 0.0
        %5830 = vmatpush1.xpose.msra.mxu0 0.0
        %5831 = vmatprep.subr.mxu0 0.0
        %5832 = vmatpush1.xpose.msra.mxu0 0.0
        %5833 = vmatprep.subr.mxu0 0.0
        %5834 = vmatpush1.xpose.msra.mxu0 0.0
        %5835 = vmatprep.subr.mxu0 0.0
        %5836 = vmatpush1.xpose.msra.mxu0 0.0
        %5837 = vmatprep.subr.mxu0 0.0
        %5838 = vmatpush1.xpose.msra.mxu0 0.0
        %5839 = vmatprep.subr.mxu0 0.0
        %5840 = vmatpush1.xpose.msra.mxu0 0.0
        %5841 = vmatprep.subr.mxu0 0.0
        %5842 = vmatpush1.xpose.msra.mxu0 0.0
        %5843 = vmatprep.subr.mxu0 0.0
        %5844 = vmatpush1.xpose.msra.mxu0 0.0
        %5845 = vmatprep.subr.mxu0 0.0
        %5846 = vmatpush1.xpose.msra.mxu0 0.0
        %5847 = vmatprep.subr.mxu0 0.0
        %5848 = vmatpush1.xpose.msra.mxu0 0.0
        %5849 = vmatprep.subr.mxu0 0.0
        %5850 = vmatpush1.xpose.msra.mxu0 0.0
        %5851 = vmatprep.subr.mxu0 0.0
        %5852 = vmatpush1.xpose.msra.mxu0 0.0
        %5853 = vmatprep.subr.mxu0 0.0
        %5854 = vmatpush1.xpose.msra.mxu0 0.0
        %5855 = vmatprep.subr.mxu0 0.0
        %5856 = vmatpush1.xpose.msra.mxu0 0.0
        %5857 = vmatprep.subr.mxu0 0.0
        %5858 = vmatpush1.xpose.msra.mxu0 0.0
        %5859 = vmatprep.subr.mxu0 0.0
        %5860 = vmatpush1.xpose.msra.mxu0 0.0
        %5861 = vmatprep.subr.mxu0 0.0
        %5862 = vmatpush1.xpose.msra.mxu0 0.0
        %5863 = vmatprep.subr.mxu0 0.0
        %5864 = vmatpush1.xpose.msra.mxu0 0.0
        %5865 = vmatprep.subr.mxu0 0.0
        %5866 = vmatpush1.xpose.msra.mxu0 0.0
        %5867 = vmatprep.subr.mxu0 0.0
        %5868 = vmatpush1.xpose.msra.mxu0 0.0
        %5869 = vmatprep.subr.mxu0 0.0
        %5870 = vmatpush1.xpose.msra.mxu0 0.0
        %5871 = vmatprep.subr.mxu0 0.0
        %5872 = vmatpush1.xpose.msra.mxu0 0.0
        %5873 = vmatprep.mubr.f32.mxu0 0.0
        %5874 = vmatmul.mubr.f32.gmra.mrb[0].mxu0 %v5801
        %v5875 = vpop.f32.mrb[0].mxu0
        %v5876 = vadd.f32 0.0, %v5875
        %v5877 = vpop.f32.mrb[0].mxu0
        %5878 = vmatprep.mubr.f32.mxu0 0.0
        %5879 = vmatmul.mubr.f32.gmra.mrb[0].mxu0 %v5803
        %v5880 = vpop.f32.mrb[0].mxu0
        %v5881 = vadd.f32 0.0, %v5880
        %v5882 = vpop.f32.mrb[0].mxu0
        %5883 = vdwg.mxu0
        %5886 = vrot.lane.b32.xlu0 %v5595, 104
        %v5887 = vpop.permute.xlu0 %5886
        %5888 = vrot.lane.b32.xlu0 %v5596, 104
        %v5889 = vpop.permute.xlu0 %5888
        %5890 = vrot.lane.b32.xlu0 %v5595, 72
        %v5891 = vpop.permute.xlu0 %5890
        %5892 = vrot.lane.b32.xlu0 %v5596, 72
        %v5893 = vpop.permute.xlu0 %5892
        %v5894 = vsel %vm519, %v5887, 0
        %v5896 = vsel %vm519, %v5889, 0
        %v5898 = vsel %vm519, %v5891, 0
        %v5900 = vsel %vm519, %v5893, 0
        %5902 = vmatprep.subr.mxu0 0.0
        %5903 = vmatpush1.xpose.msra.mxu0 %v5898
        %5904 = vmatprep.subr.mxu0 0.0
        %5905 = vmatpush1.xpose.msra.mxu0 %v5900
        %5906 = vmatprep.subr.mxu0 0.0
        %5907 = vmatpush1.xpose.msra.mxu0 0.0
        %5908 = vmatprep.subr.mxu0 0.0
        %5909 = vmatpush1.xpose.msra.mxu0 0.0
        %5910 = vmatprep.subr.mxu0 0.0
        %5911 = vmatpush1.xpose.msra.mxu0 0.0
        %5912 = vmatprep.subr.mxu0 0.0
        %5913 = vmatpush1.xpose.msra.mxu0 0.0
        %5914 = vmatprep.subr.mxu0 0.0
        %5915 = vmatpush1.xpose.msra.mxu0 0.0
        %5916 = vmatprep.subr.mxu0 0.0
        %5917 = vmatpush1.xpose.msra.mxu0 0.0
        %5918 = vmatprep.subr.mxu0 0.0
        %5919 = vmatpush1.xpose.msra.mxu0 0.0
        %5920 = vmatprep.subr.mxu0 0.0
        %5921 = vmatpush1.xpose.msra.mxu0 0.0
        %5922 = vmatprep.subr.mxu0 0.0
        %5923 = vmatpush1.xpose.msra.mxu0 0.0
        %5924 = vmatprep.subr.mxu0 0.0
        %5925 = vmatpush1.xpose.msra.mxu0 0.0
        %5926 = vmatprep.subr.mxu0 0.0
        %5927 = vmatpush1.xpose.msra.mxu0 0.0
        %5928 = vmatprep.subr.mxu0 0.0
        %5929 = vmatpush1.xpose.msra.mxu0 0.0
        %5930 = vmatprep.subr.mxu0 0.0
        %5931 = vmatpush1.xpose.msra.mxu0 0.0
        %5932 = vmatprep.subr.mxu0 0.0
        %5933 = vmatpush1.xpose.msra.mxu0 0.0
        %5934 = vmatprep.subr.mxu0 0.0
        %5935 = vmatpush1.xpose.msra.mxu0 0.0
        %5936 = vmatprep.subr.mxu0 0.0
        %5937 = vmatpush1.xpose.msra.mxu0 0.0
        %5938 = vmatprep.subr.mxu0 0.0
        %5939 = vmatpush1.xpose.msra.mxu0 0.0
        %5940 = vmatprep.subr.mxu0 0.0
        %5941 = vmatpush1.xpose.msra.mxu0 0.0
        %5942 = vmatprep.subr.mxu0 0.0
        %5943 = vmatpush1.xpose.msra.mxu0 0.0
        %5944 = vmatprep.subr.mxu0 0.0
        %5945 = vmatpush1.xpose.msra.mxu0 0.0
        %5946 = vmatprep.subr.mxu0 0.0
        %5947 = vmatpush1.xpose.msra.mxu0 0.0
        %5948 = vmatprep.subr.mxu0 0.0
        %5949 = vmatpush1.xpose.msra.mxu0 0.0
        %5950 = vmatprep.subr.mxu0 0.0
        %5951 = vmatpush1.xpose.msra.mxu0 0.0
        %5952 = vmatprep.subr.mxu0 0.0
        %5953 = vmatpush1.xpose.msra.mxu0 0.0
        %5954 = vmatprep.subr.mxu0 0.0
        %5955 = vmatpush1.xpose.msra.mxu0 0.0
        %5956 = vmatprep.subr.mxu0 0.0
        %5957 = vmatpush1.xpose.msra.mxu0 0.0
        %5958 = vmatprep.subr.mxu0 0.0
        %5959 = vmatpush1.xpose.msra.mxu0 0.0
        %5960 = vmatprep.subr.mxu0 0.0
        %5961 = vmatpush1.xpose.msra.mxu0 0.0
        %5962 = vmatprep.subr.mxu0 0.0
        %5963 = vmatpush1.xpose.msra.mxu0 0.0
        %5964 = vmatprep.subr.mxu0 0.0
        %5965 = vmatpush1.xpose.msra.mxu0 0.0
        %5966 = vmatprep.mubr.f32.mxu0 0.0
        %5967 = vmatmul.mubr.f32.gmra.mrb[0].mxu0 %v5894
        %v5968 = vpop.f32.mrb[0].mxu0
        %v5969 = vadd.f32 0.0, %v5968
        %v5970 = vpop.f32.mrb[0].mxu0
        %5971 = vmatprep.mubr.f32.mxu0 0.0
        %5972 = vmatmul.mubr.f32.gmra.mrb[0].mxu0 %v5896
        %v5973 = vpop.f32.mrb[0].mxu0
        %v5974 = vadd.f32 0.0, %v5973
        %v5975 = vpop.f32.mrb[0].mxu0
        %5976 = vdwg.mxu0
        %5979 = vrot.lane.b32.xlu0 %v5597, 104
        %v5980 = vpop.permute.xlu0 %5979
        %5981 = vrot.lane.b32.xlu0 %v5598, 104
        %v5982 = vpop.permute.xlu0 %5981
        %5983 = vrot.lane.b32.xlu0 %v5597, 72
        %v5984 = vpop.permute.xlu0 %5983
        %5985 = vrot.lane.b32.xlu0 %v5598, 72
        %v5986 = vpop.permute.xlu0 %5985
        %v5987 = vsel %vm519, %v5980, 0
        %v5989 = vsel %vm519, %v5982, 0
        %v5991 = vsel %vm519, %v5984, 0
        %v5993 = vsel %vm519, %v5986, 0
        %5995 = vmatprep.subr.mxu0 0.0
        %5996 = vmatpush1.xpose.msra.mxu0 %v5991
        %5997 = vmatprep.subr.mxu0 0.0
        %5998 = vmatpush1.xpose.msra.mxu0 %v5993
        %5999 = vmatprep.subr.mxu0 0.0
        %6000 = vmatpush1.xpose.msra.mxu0 0.0
        %6001 = vmatprep.subr.mxu0 0.0
        %6002 = vmatpush1.xpose.msra.mxu0 0.0
        %6003 = vmatprep.subr.mxu0 0.0
        %6004 = vmatpush1.xpose.msra.mxu0 0.0
        %6005 = vmatprep.subr.mxu0 0.0
        %6006 = vmatpush1.xpose.msra.mxu0 0.0
        %6007 = vmatprep.subr.mxu0 0.0
        %6008 = vmatpush1.xpose.msra.mxu0 0.0
        %6009 = vmatprep.subr.mxu0 0.0
        %6010 = vmatpush1.xpose.msra.mxu0 0.0
        %6011 = vmatprep.subr.mxu0 0.0
        %6012 = vmatpush1.xpose.msra.mxu0 0.0
        %6013 = vmatprep.subr.mxu0 0.0
        %6014 = vmatpush1.xpose.msra.mxu0 0.0
        %6015 = vmatprep.subr.mxu0 0.0
        %6016 = vmatpush1.xpose.msra.mxu0 0.0
        %6017 = vmatprep.subr.mxu0 0.0
        %6018 = vmatpush1.xpose.msra.mxu0 0.0
        %6019 = vmatprep.subr.mxu0 0.0
        %6020 = vmatpush1.xpose.msra.mxu0 0.0
        %6021 = vmatprep.subr.mxu0 0.0
        %6022 = vmatpush1.xpose.msra.mxu0 0.0
        %6023 = vmatprep.subr.mxu0 0.0
        %6024 = vmatpush1.xpose.msra.mxu0 0.0
        %6025 = vmatprep.subr.mxu0 0.0
        %6026 = vmatpush1.xpose.msra.mxu0 0.0
        %6027 = vmatprep.subr.mxu0 0.0
        %6028 = vmatpush1.xpose.msra.mxu0 0.0
        %6029 = vmatprep.subr.mxu0 0.0
        %6030 = vmatpush1.xpose.msra.mxu0 0.0
        %6031 = vmatprep.subr.mxu0 0.0
        %6032 = vmatpush1.xpose.msra.mxu0 0.0
        %6033 = vmatprep.subr.mxu0 0.0
        %6034 = vmatpush1.xpose.msra.mxu0 0.0
        %6035 = vmatprep.subr.mxu0 0.0
        %6036 = vmatpush1.xpose.msra.mxu0 0.0
        %6037 = vmatprep.subr.mxu0 0.0
        %6038 = vmatpush1.xpose.msra.mxu0 0.0
        %6039 = vmatprep.subr.mxu0 0.0
        %6040 = vmatpush1.xpose.msra.mxu0 0.0
        %6041 = vmatprep.subr.mxu0 0.0
        %6042 = vmatpush1.xpose.msra.mxu0 0.0
        %6043 = vmatprep.subr.mxu0 0.0
        %6044 = vmatpush1.xpose.msra.mxu0 0.0
        %6045 = vmatprep.subr.mxu0 0.0
        %6046 = vmatpush1.xpose.msra.mxu0 0.0
        %6047 = vmatprep.subr.mxu0 0.0
        %6048 = vmatpush1.xpose.msra.mxu0 0.0
        %6049 = vmatprep.subr.mxu0 0.0
        %6050 = vmatpush1.xpose.msra.mxu0 0.0
        %6051 = vmatprep.subr.mxu0 0.0
        %6052 = vmatpush1.xpose.msra.mxu0 0.0
        %6053 = vmatprep.subr.mxu0 0.0
        %6054 = vmatpush1.xpose.msra.mxu0 0.0
        %6055 = vmatprep.subr.mxu0 0.0
        %6056 = vmatpush1.xpose.msra.mxu0 0.0
        %6057 = vmatprep.subr.mxu0 0.0
        %6058 = vmatpush1.xpose.msra.mxu0 0.0
        %6059 = vmatprep.mubr.f32.mxu0 0.0
        %6060 = vmatmul.mubr.f32.gmra.mrb[0].mxu0 %v5987
        %v6061 = vpop.f32.mrb[0].mxu0
        %v6062 = vadd.f32 0.0, %v6061
        %v6063 = vpop.f32.mrb[0].mxu0
        %6064 = vmatprep.mubr.f32.mxu0 0.0
        %6065 = vmatmul.mubr.f32.gmra.mrb[0].mxu0 %v5989
        %v6066 = vpop.f32.mrb[0].mxu0
        %v6067 = vadd.f32 0.0, %v6066
        %v6068 = vpop.f32.mrb[0].mxu0
        %6069 = vdwg.mxu0
        %6072 = vrot.lane.b32.xlu0 %v5599, 104
        %v6073 = vpop.permute.xlu0 %6072
        %6074 = vrot.lane.b32.xlu0 %v5600, 104
        %v6075 = vpop.permute.xlu0 %6074
        %6076 = vrot.lane.b32.xlu0 %v5599, 72
        %v6077 = vpop.permute.xlu0 %6076
        %6078 = vrot.lane.b32.xlu0 %v5600, 72
        %v6079 = vpop.permute.xlu0 %6078
        %v6080 = vsel %vm519, %v6073, 0
        %v6082 = vsel %vm519, %v6075, 0
        %v6084 = vsel %vm519, %v6077, 0
        %v6086 = vsel %vm519, %v6079, 0
        %6088 = vmatprep.subr.mxu0 0.0
        %6089 = vmatpush1.xpose.msra.mxu0 %v6084
        %6090 = vmatprep.subr.mxu0 0.0
        %6091 = vmatpush1.xpose.msra.mxu0 %v6086
        %6092 = vmatprep.subr.mxu0 0.0
        %6093 = vmatpush1.xpose.msra.mxu0 0.0
        %6094 = vmatprep.subr.mxu0 0.0
        %6095 = vmatpush1.xpose.msra.mxu0 0.0
        %6096 = vmatprep.subr.mxu0 0.0
        %6097 = vmatpush1.xpose.msra.mxu0 0.0
        %6098 = vmatprep.subr.mxu0 0.0
        %6099 = vmatpush1.xpose.msra.mxu0 0.0
        %6100 = vmatprep.subr.mxu0 0.0
        %6101 = vmatpush1.xpose.msra.mxu0 0.0
        %6102 = vmatprep.subr.mxu0 0.0
        %6103 = vmatpush1.xpose.msra.mxu0 0.0
        %6104 = vmatprep.subr.mxu0 0.0
        %6105 = vmatpush1.xpose.msra.mxu0 0.0
        %6106 = vmatprep.subr.mxu0 0.0
        %6107 = vmatpush1.xpose.msra.mxu0 0.0
        %6108 = vmatprep.subr.mxu0 0.0
        %6109 = vmatpush1.xpose.msra.mxu0 0.0
        %6110 = vmatprep.subr.mxu0 0.0
        %6111 = vmatpush1.xpose.msra.mxu0 0.0
        %6112 = vmatprep.subr.mxu0 0.0
        %6113 = vmatpush1.xpose.msra.mxu0 0.0
        %6114 = vmatprep.subr.mxu0 0.0
        %6115 = vmatpush1.xpose.msra.mxu0 0.0
        %6116 = vmatprep.subr.mxu0 0.0
        %6117 = vmatpush1.xpose.msra.mxu0 0.0
        %6118 = vmatprep.subr.mxu0 0.0
        %6119 = vmatpush1.xpose.msra.mxu0 0.0
        %6120 = vmatprep.subr.mxu0 0.0
        %6121 = vmatpush1.xpose.msra.mxu0 0.0
        %6122 = vmatprep.subr.mxu0 0.0
        %6123 = vmatpush1.xpose.msra.mxu0 0.0
        %6124 = vmatprep.subr.mxu0 0.0
        %6125 = vmatpush1.xpose.msra.mxu0 0.0
        %6126 = vmatprep.subr.mxu0 0.0
        %6127 = vmatpush1.xpose.msra.mxu0 0.0
        %6128 = vmatprep.subr.mxu0 0.0
        %6129 = vmatpush1.xpose.msra.mxu0 0.0
        %6130 = vmatprep.subr.mxu0 0.0
        %6131 = vmatpush1.xpose.msra.mxu0 0.0
        %6132 = vmatprep.subr.mxu0 0.0
        %6133 = vmatpush1.xpose.msra.mxu0 0.0
        %6134 = vmatprep.subr.mxu0 0.0
        %6135 = vmatpush1.xpose.msra.mxu0 0.0
        %6136 = vmatprep.subr.mxu0 0.0
        %6137 = vmatpush1.xpose.msra.mxu0 0.0
        %6138 = vmatprep.subr.mxu0 0.0
        %6139 = vmatpush1.xpose.msra.mxu0 0.0
        %6140 = vmatprep.subr.mxu0 0.0
        %6141 = vmatpush1.xpose.msra.mxu0 0.0
        %6142 = vmatprep.subr.mxu0 0.0
        %6143 = vmatpush1.xpose.msra.mxu0 0.0
        %6144 = vmatprep.subr.mxu0 0.0
        %6145 = vmatpush1.xpose.msra.mxu0 0.0
        %6146 = vmatprep.subr.mxu0 0.0
        %6147 = vmatpush1.xpose.msra.mxu0 0.0
        %6148 = vmatprep.subr.mxu0 0.0
        %6149 = vmatpush1.xpose.msra.mxu0 0.0
        %6150 = vmatprep.subr.mxu0 0.0
        %6151 = vmatpush1.xpose.msra.mxu0 0.0
        %6152 = vmatprep.mubr.f32.mxu0 0.0
        %6153 = vmatmul.mubr.f32.gmra.mrb[0].mxu0 %v6080
        %v6154 = vpop.f32.mrb[0].mxu0
        %v6155 = vadd.f32 0.0, %v6154
        %v6156 = vpop.f32.mrb[0].mxu0
        %6157 = vmatprep.mubr.f32.mxu0 0.0
        %6158 = vmatmul.mubr.f32.gmra.mrb[0].mxu0 %v6082
        %v6159 = vpop.f32.mrb[0].mxu0
        %v6160 = vadd.f32 0.0, %v6159
        %v6161 = vpop.f32.mrb[0].mxu0
        %6162 = vdwg.mxu0
        %6165 = vrot.lane.b32.xlu0 %v5601, 104
        %v6166 = vpop.permute.xlu0 %6165
        %6167 = vrot.lane.b32.xlu0 %v5602, 104
        %v6168 = vpop.permute.xlu0 %6167
        %6169 = vrot.lane.b32.xlu0 %v5601, 72
        %v6170 = vpop.permute.xlu0 %6169
        %6171 = vrot.lane.b32.xlu0 %v5602, 72
        %v6172 = vpop.permute.xlu0 %6171
        %v6173 = vsel %vm519, %v6166, 0
        %v6175 = vsel %vm519, %v6168, 0
        %v6177 = vsel %vm519, %v6170, 0
        %v6179 = vsel %vm519, %v6172, 0
        %6181 = vmatprep.subr.mxu0 0.0
        %6182 = vmatpush1.xpose.msra.mxu0 %v6177
        %6183 = vmatprep.subr.mxu0 0.0
        %6184 = vmatpush1.xpose.msra.mxu0 %v6179
        %6185 = vmatprep.subr.mxu0 0.0
        %6186 = vmatpush1.xpose.msra.mxu0 0.0
        %6187 = vmatprep.subr.mxu0 0.0
        %6188 = vmatpush1.xpose.msra.mxu0 0.0
        %6189 = vmatprep.subr.mxu0 0.0
        %6190 = vmatpush1.xpose.msra.mxu0 0.0
        %6191 = vmatprep.subr.mxu0 0.0
        %6192 = vmatpush1.xpose.msra.mxu0 0.0
        %6193 = vmatprep.subr.mxu0 0.0
        %6194 = vmatpush1.xpose.msra.mxu0 0.0
        %6195 = vmatprep.subr.mxu0 0.0
        %6196 = vmatpush1.xpose.msra.mxu0 0.0
        %6197 = vmatprep.subr.mxu0 0.0
        %6198 = vmatpush1.xpose.msra.mxu0 0.0
        %6199 = vmatprep.subr.mxu0 0.0
        %6200 = vmatpush1.xpose.msra.mxu0 0.0
        %6201 = vmatprep.subr.mxu0 0.0
        %6202 = vmatpush1.xpose.msra.mxu0 0.0
        %6203 = vmatprep.subr.mxu0 0.0
        %6204 = vmatpush1.xpose.msra.mxu0 0.0
        %6205 = vmatprep.subr.mxu0 0.0
        %6206 = vmatpush1.xpose.msra.mxu0 0.0
        %6207 = vmatprep.subr.mxu0 0.0
        %6208 = vmatpush1.xpose.msra.mxu0 0.0
        %6209 = vmatprep.subr.mxu0 0.0
        %6210 = vmatpush1.xpose.msra.mxu0 0.0
        %6211 = vmatprep.subr.mxu0 0.0
        %6212 = vmatpush1.xpose.msra.mxu0 0.0
        %6213 = vmatprep.subr.mxu0 0.0
        %6214 = vmatpush1.xpose.msra.mxu0 0.0
        %6215 = vmatprep.subr.mxu0 0.0
        %6216 = vmatpush1.xpose.msra.mxu0 0.0
        %6217 = vmatprep.subr.mxu0 0.0
        %6218 = vmatpush1.xpose.msra.mxu0 0.0
        %6219 = vmatprep.subr.mxu0 0.0
        %6220 = vmatpush1.xpose.msra.mxu0 0.0
        %6221 = vmatprep.subr.mxu0 0.0
        %6222 = vmatpush1.xpose.msra.mxu0 0.0
        %6223 = vmatprep.subr.mxu0 0.0
        %6224 = vmatpush1.xpose.msra.mxu0 0.0
        %6225 = vmatprep.subr.mxu0 0.0
        %6226 = vmatpush1.xpose.msra.mxu0 0.0
        %6227 = vmatprep.subr.mxu0 0.0
        %6228 = vmatpush1.xpose.msra.mxu0 0.0
        %6229 = vmatprep.subr.mxu0 0.0
        %6230 = vmatpush1.xpose.msra.mxu0 0.0
        %6231 = vmatprep.subr.mxu0 0.0
        %6232 = vmatpush1.xpose.msra.mxu0 0.0
        %6233 = vmatprep.subr.mxu0 0.0
        %6234 = vmatpush1.xpose.msra.mxu0 0.0
        %6235 = vmatprep.subr.mxu0 0.0
        %6236 = vmatpush1.xpose.msra.mxu0 0.0
        %6237 = vmatprep.subr.mxu0 0.0
        %6238 = vmatpush1.xpose.msra.mxu0 0.0
        %6239 = vmatprep.subr.mxu0 0.0
        %6240 = vmatpush1.xpose.msra.mxu0 0.0
        %6241 = vmatprep.subr.mxu0 0.0
        %6242 = vmatpush1.xpose.msra.mxu0 0.0
        %6243 = vmatprep.subr.mxu0 0.0
        %6244 = vmatpush1.xpose.msra.mxu0 0.0
        %6245 = vmatprep.mubr.f32.mxu0 0.0
        %6246 = vmatmul.mubr.f32.gmra.mrb[0].mxu0 %v6173
        %v6247 = vpop.f32.mrb[0].mxu0
        %v6248 = vadd.f32 0.0, %v6247
        %v6249 = vpop.f32.mrb[0].mxu0
        %6250 = vmatprep.mubr.f32.mxu0 0.0
        %6251 = vmatmul.mubr.f32.gmra.mrb[0].mxu0 %v6175
        %v6252 = vpop.f32.mrb[0].mxu0
        %v6253 = vadd.f32 0.0, %v6252
        %v6254 = vpop.f32.mrb[0].mxu0
        %6255 = vdwg.mxu0
        %6258 = vrot.lane.b32.xlu0 %v5603, 104
        %v6259 = vpop.permute.xlu0 %6258
        %6260 = vrot.lane.b32.xlu0 %v5604, 104
        %v6261 = vpop.permute.xlu0 %6260
        %6262 = vrot.lane.b32.xlu0 %v5603, 72
        %v6263 = vpop.permute.xlu0 %6262
        %6264 = vrot.lane.b32.xlu0 %v5604, 72
        %v6265 = vpop.permute.xlu0 %6264
        %v6266 = vsel %vm519, %v6259, 0
        %v6268 = vsel %vm519, %v6261, 0
        %v6270 = vsel %vm519, %v6263, 0
        %v6272 = vsel %vm519, %v6265, 0
        %6274 = vmatprep.subr.mxu0 0.0
        %6275 = vmatpush1.xpose.msra.mxu0 %v6270
        %6276 = vmatprep.subr.mxu0 0.0
        %6277 = vmatpush1.xpose.msra.mxu0 %v6272
        %6278 = vmatprep.subr.mxu0 0.0
        %6279 = vmatpush1.xpose.msra.mxu0 0.0
        %6280 = vmatprep.subr.mxu0 0.0
        %6281 = vmatpush1.xpose.msra.mxu0 0.0
        %6282 = vmatprep.subr.mxu0 0.0
        %6283 = vmatpush1.xpose.msra.mxu0 0.0
        %6284 = vmatprep.subr.mxu0 0.0
        %6285 = vmatpush1.xpose.msra.mxu0 0.0
        %6286 = vmatprep.subr.mxu0 0.0
        %6287 = vmatpush1.xpose.msra.mxu0 0.0
        %6288 = vmatprep.subr.mxu0 0.0
        %6289 = vmatpush1.xpose.msra.mxu0 0.0
        %6290 = vmatprep.subr.mxu0 0.0
        %6291 = vmatpush1.xpose.msra.mxu0 0.0
        %6292 = vmatprep.subr.mxu0 0.0
        %6293 = vmatpush1.xpose.msra.mxu0 0.0
        %6294 = vmatprep.subr.mxu0 0.0
        %6295 = vmatpush1.xpose.msra.mxu0 0.0
        %6296 = vmatprep.subr.mxu0 0.0
        %6297 = vmatpush1.xpose.msra.mxu0 0.0
        %6298 = vmatprep.subr.mxu0 0.0
        %6299 = vmatpush1.xpose.msra.mxu0 0.0
        %6300 = vmatprep.subr.mxu0 0.0
        %6301 = vmatpush1.xpose.msra.mxu0 0.0
        %6302 = vmatprep.subr.mxu0 0.0
        %6303 = vmatpush1.xpose.msra.mxu0 0.0
        %6304 = vmatprep.subr.mxu0 0.0
        %6305 = vmatpush1.xpose.msra.mxu0 0.0
        %6306 = vmatprep.subr.mxu0 0.0
        %6307 = vmatpush1.xpose.msra.mxu0 0.0
        %6308 = vmatprep.subr.mxu0 0.0
        %6309 = vmatpush1.xpose.msra.mxu0 0.0
        %6310 = vmatprep.subr.mxu0 0.0
        %6311 = vmatpush1.xpose.msra.mxu0 0.0
        %6312 = vmatprep.subr.mxu0 0.0
        %6313 = vmatpush1.xpose.msra.mxu0 0.0
        %6314 = vmatprep.subr.mxu0 0.0
        %6315 = vmatpush1.xpose.msra.mxu0 0.0
        %6316 = vmatprep.subr.mxu0 0.0
        %6317 = vmatpush1.xpose.msra.mxu0 0.0
        %6318 = vmatprep.subr.mxu0 0.0
        %6319 = vmatpush1.xpose.msra.mxu0 0.0
        %6320 = vmatprep.subr.mxu0 0.0
        %6321 = vmatpush1.xpose.msra.mxu0 0.0
        %6322 = vmatprep.subr.mxu0 0.0
        %6323 = vmatpush1.xpose.msra.mxu0 0.0
        %6324 = vmatprep.subr.mxu0 0.0
        %6325 = vmatpush1.xpose.msra.mxu0 0.0
        %6326 = vmatprep.subr.mxu0 0.0
        %6327 = vmatpush1.xpose.msra.mxu0 0.0
        %6328 = vmatprep.subr.mxu0 0.0
        %6329 = vmatpush1.xpose.msra.mxu0 0.0
        %6330 = vmatprep.subr.mxu0 0.0
        %6331 = vmatpush1.xpose.msra.mxu0 0.0
        %6332 = vmatprep.subr.mxu0 0.0
        %6333 = vmatpush1.xpose.msra.mxu0 0.0
        %6334 = vmatprep.subr.mxu0 0.0
        %6335 = vmatpush1.xpose.msra.mxu0 0.0
        %6336 = vmatprep.subr.mxu0 0.0
        %6337 = vmatpush1.xpose.msra.mxu0 0.0
        %6338 = vmatprep.mubr.f32.mxu0 0.0
        %6339 = vmatmul.mubr.f32.gmra.mrb[0].mxu0 %v6266
        %v6340 = vpop.f32.mrb[0].mxu0
        %v6341 = vadd.f32 0.0, %v6340
        %v6342 = vpop.f32.mrb[0].mxu0
        %6343 = vmatprep.mubr.f32.mxu0 0.0
        %6344 = vmatmul.mubr.f32.gmra.mrb[0].mxu0 %v6268
        %v6345 = vpop.f32.mrb[0].mxu0
        %v6346 = vadd.f32 0.0, %v6345
        %v6347 = vpop.f32.mrb[0].mxu0
        %6348 = vdwg.mxu0
        %v6349 = vmul.f32 %v5690, 0.35355338
        %v6350 = vmul.f32 %v5695, 0.35355338
        %v6351 = vmul.f32 %v5783, 0.35355338
        %v6352 = vmul.f32 %v5788, 0.35355338
        %v6353 = vmul.f32 %v5876, 0.35355338
        %v6354 = vmul.f32 %v5881, 0.35355338
        %v6355 = vmul.f32 %v5969, 0.35355338
        %v6356 = vmul.f32 %v5974, 0.35355338
        %v6357 = vmul.f32 %v6062, 0.35355338
        %v6358 = vmul.f32 %v6067, 0.35355338
        %v6359 = vmul.f32 %v6155, 0.35355338
        %v6360 = vmul.f32 %v6160, 0.35355338
        %v6361 = vmul.f32 %v6248, 0.35355338
        %v6362 = vmul.f32 %v6253, 0.35355338
        %v6363 = vmul.f32 %v6341, 0.35355338
        %v6364 = vmul.f32 %v6346, 0.35355338
        %v6365 = vsel %vm1242, %v6349, -inf
        %6366 = vmax.xlane.f32.xlu0 %v6365
        %v6367 = vpop.xlane.xlu0 %6366
        %v6368 = vsel %vm1242, %v6350, -inf
        %6369 = vmax.xlane.f32.xlu0 %v6368
        %v6370 = vpop.xlane.xlu0 %6369
        %v6371 = vsel %vm1242, %v6351, -inf
        %6372 = vmax.xlane.f32.xlu0 %v6371
        %v6373 = vpop.xlane.xlu0 %6372
        %v6374 = vsel %vm1242, %v6352, -inf
        %6375 = vmax.xlane.f32.xlu0 %v6374
        %v6376 = vpop.xlane.xlu0 %6375
        %v6377 = vsel %vm1242, %v6353, -inf
        %6378 = vmax.xlane.f32.xlu0 %v6377
        %v6379 = vpop.xlane.xlu0 %6378
        %v6380 = vsel %vm1242, %v6354, -inf
        %6381 = vmax.xlane.f32.xlu0 %v6380
        %v6382 = vpop.xlane.xlu0 %6381
        %v6383 = vsel %vm1242, %v6355, -inf
        %6384 = vmax.xlane.f32.xlu0 %v6383
        %v6385 = vpop.xlane.xlu0 %6384
        %v6386 = vsel %vm1242, %v6356, -inf
        %6387 = vmax.xlane.f32.xlu0 %v6386
        %v6388 = vpop.xlane.xlu0 %6387
        %v6389 = vsel %vm1242, %v6357, -inf
        %6390 = vmax.xlane.f32.xlu0 %v6389
        %v6391 = vpop.xlane.xlu0 %6390
        %v6392 = vsel %vm1242, %v6358, -inf
        %6393 = vmax.xlane.f32.xlu0 %v6392
        %v6394 = vpop.xlane.xlu0 %6393
        %v6395 = vsel %vm1242, %v6359, -inf
        %6396 = vmax.xlane.f32.xlu0 %v6395
        %v6397 = vpop.xlane.xlu0 %6396
        %v6398 = vsel %vm1242, %v6360, -inf
        %6399 = vmax.xlane.f32.xlu0 %v6398
        %v6400 = vpop.xlane.xlu0 %6399
        %v6401 = vsel %vm1242, %v6361, -inf
        %6402 = vmax.xlane.f32.xlu0 %v6401
        %v6403 = vpop.xlane.xlu0 %6402
        %v6404 = vsel %vm1242, %v6362, -inf
        %6405 = vmax.xlane.f32.xlu0 %v6404
        %v6406 = vpop.xlane.xlu0 %6405
        %v6407 = vsel %vm1242, %v6363, -inf
        %6408 = vmax.xlane.f32.xlu0 %v6407
        %v6409 = vpop.xlane.xlu0 %6408
        %v6410 = vsel %vm1242, %v6364, -inf
        %6411 = vmax.xlane.f32.xlu0 %v6410
        %v6412 = vpop.xlane.xlu0 %6411
        %v6413 = vsub.f32 %v6349, %v6367
        %v6414 = vsub.f32 %v6350, %v6370
        %v6415 = vsub.f32 %v6351, %v6373
        %v6416 = vsub.f32 %v6352, %v6376
        %v6417 = vsub.f32 %v6353, %v6379
        %v6418 = vsub.f32 %v6354, %v6382
        %v6419 = vsub.f32 %v6355, %v6385
        %v6420 = vsub.f32 %v6356, %v6388
        %v6421 = vsub.f32 %v6357, %v6391
        %v6422 = vsub.f32 %v6358, %v6394
        %v6423 = vsub.f32 %v6359, %v6397
        %v6424 = vsub.f32 %v6360, %v6400
        %v6425 = vsub.f32 %v6361, %v6403
        %v6426 = vsub.f32 %v6362, %v6406
        %v6427 = vsub.f32 %v6363, %v6409
        %v6428 = vsub.f32 %v6364, %v6412
        %v6429 = vmul.f32 %v6413, 1.442695
        %v6430 = vpow.pop %v6429
        %v6431 = vmul.f32 %v6414, 1.442695
        %v6432 = vpow.pop %v6431
        %v6433 = vmul.f32 %v6415, 1.442695
        %v6434 = vpow.pop %v6433
        %v6435 = vmul.f32 %v6416, 1.442695
        %v6436 = vpow.pop %v6435
        %v6437 = vmul.f32 %v6417, 1.442695
        %v6438 = vpow.pop %v6437
        %v6439 = vmul.f32 %v6418, 1.442695
        %v6440 = vpow.pop %v6439
        %v6441 = vmul.f32 %v6419, 1.442695
        %v6442 = vpow.pop %v6441
        %v6443 = vmul.f32 %v6420, 1.442695
        %v6444 = vpow.pop %v6443
        %v6445 = vmul.f32 %v6421, 1.442695
        %v6446 = vpow.pop %v6445
        %v6447 = vmul.f32 %v6422, 1.442695
        %v6448 = vpow.pop %v6447
        %v6449 = vmul.f32 %v6423, 1.442695
        %v6450 = vpow.pop %v6449
        %v6451 = vmul.f32 %v6424, 1.442695
        %v6452 = vpow.pop %v6451
        %v6453 = vmul.f32 %v6425, 1.442695
        %v6454 = vpow.pop %v6453
        %v6455 = vmul.f32 %v6426, 1.442695
        %v6456 = vpow.pop %v6455
        %v6457 = vmul.f32 %v6427, 1.442695
        %v6458 = vpow.pop %v6457
        %v6459 = vmul.f32 %v6428, 1.442695
        %v6460 = vpow.pop %v6459
        %v6461 = vsel %vm1242, %v6430, 0.0
        %6462 = vadd.xlane.f32.xlu0 %v6461
        %v6463 = vpop.xlane.xlu0 %6462
        %v6464 = vsel %vm1242, %v6432, 0.0
        %6465 = vadd.xlane.f32.xlu0 %v6464
        %v6466 = vpop.xlane.xlu0 %6465
        %v6467 = vsel %vm1242, %v6434, 0.0
        %6468 = vadd.xlane.f32.xlu0 %v6467
        %v6469 = vpop.xlane.xlu0 %6468
        %v6470 = vsel %vm1242, %v6436, 0.0
        %6471 = vadd.xlane.f32.xlu0 %v6470
        %v6472 = vpop.xlane.xlu0 %6471
        %v6473 = vsel %vm1242, %v6438, 0.0
        %6474 = vadd.xlane.f32.xlu0 %v6473
        %v6475 = vpop.xlane.xlu0 %6474
        %v6476 = vsel %vm1242, %v6440, 0.0
        %6477 = vadd.xlane.f32.xlu0 %v6476
        %v6478 = vpop.xlane.xlu0 %6477
        %v6479 = vsel %vm1242, %v6442, 0.0
        %6480 = vadd.xlane.f32.xlu0 %v6479
        %v6481 = vpop.xlane.xlu0 %6480
        %v6482 = vsel %vm1242, %v6444, 0.0
        %6483 = vadd.xlane.f32.xlu0 %v6482
        %v6484 = vpop.xlane.xlu0 %6483
        %v6485 = vsel %vm1242, %v6446, 0.0
        %6486 = vadd.xlane.f32.xlu0 %v6485
        %v6487 = vpop.xlane.xlu0 %6486
        %v6488 = vsel %vm1242, %v6448, 0.0
        %6489 = vadd.xlane.f32.xlu0 %v6488
        %v6490 = vpop.xlane.xlu0 %6489
        %v6491 = vsel %vm1242, %v6450, 0.0
        %6492 = vadd.xlane.f32.xlu0 %v6491
        %v6493 = vpop.xlane.xlu0 %6492
        %v6494 = vsel %vm1242, %v6452, 0.0
        %6495 = vadd.xlane.f32.xlu0 %v6494
        %v6496 = vpop.xlane.xlu0 %6495
        %v6497 = vsel %vm1242, %v6454, 0.0
        %6498 = vadd.xlane.f32.xlu0 %v6497
        %v6499 = vpop.xlane.xlu0 %6498
        %v6500 = vsel %vm1242, %v6456, 0.0
        %6501 = vadd.xlane.f32.xlu0 %v6500
        %v6502 = vpop.xlane.xlu0 %6501
        %v6503 = vsel %vm1242, %v6458, 0.0
        %6504 = vadd.xlane.f32.xlu0 %v6503
        %v6505 = vpop.xlane.xlu0 %6504
        %v6506 = vsel %vm1242, %v6460, 0.0
        %6507 = vadd.xlane.f32.xlu0 %v6506
        %v6508 = vpop.xlane.xlu0 %6507
        %v6509 = vrcp.pop %v6463
        %v6510 = vrcp.pop %v6466
        %v6511 = vrcp.pop %v6469
        %v6512 = vrcp.pop %v6472
        %v6513 = vrcp.pop %v6475
        %v6514 = vrcp.pop %v6478
        %v6515 = vrcp.pop %v6481
        %v6516 = vrcp.pop %v6484
        %v6517 = vrcp.pop %v6487
        %v6518 = vrcp.pop %v6490
        %v6519 = vrcp.pop %v6493
        %v6520 = vrcp.pop %v6496
        %v6521 = vrcp.pop %v6499
        %v6522 = vrcp.pop %v6502
        %v6523 = vrcp.pop %v6505
        %v6524 = vrcp.pop %v6508
        %v6525 = vmul.f32 %v6430, %v6509
        %v6526 = vmul.f32 %v6432, %v6510
        %v6527 = vmul.f32 %v6434, %v6511
        %v6528 = vmul.f32 %v6436, %v6512
        %v6529 = vmul.f32 %v6438, %v6513
        %v6530 = vmul.f32 %v6440, %v6514
        %v6531 = vmul.f32 %v6442, %v6515
        %v6532 = vmul.f32 %v6444, %v6516
        %v6533 = vmul.f32 %v6446, %v6517
        %v6534 = vmul.f32 %v6448, %v6518
        %v6535 = vmul.f32 %v6450, %v6519
        %v6536 = vmul.f32 %v6452, %v6520
        %v6537 = vmul.f32 %v6454, %v6521
        %v6538 = vmul.f32 %v6456, %v6522
        %v6539 = vmul.f32 %v6458, %v6523
        %v6540 = vmul.f32 %v6460, %v6524
        %6541 = vrot.lane.b32.xlu0 %v5589, 40
        %v6542 = vpop.permute.xlu0 %6541
        %6543 = vrot.lane.b32.xlu0 %v5590, 40
        %v6544 = vpop.permute.xlu0 %6543
        %v6548 = vsel %vm1242, %v6525, 0
        %v6551 = vsel %vm1242, %v6526, 0
        %6553 = vmatprep.subr.mxu0 0.0
        %6554 = vmatpush1.msra.mxu0 %v6542
        %6555 = vmatprep.subr.mxu0 0.0
        %6556 = vmatpush1.msra.mxu0 %v6544
        %6557 = vmatprep.subr.mxu0 0.0
        %6558 = vmatpush1.msra.mxu0 0.0
        %6559 = vmatprep.subr.mxu0 0.0
        %6560 = vmatpush1.msra.mxu0 0.0
        %6561 = vmatprep.subr.mxu0 0.0
        %6562 = vmatpush1.msra.mxu0 0.0
        %6563 = vmatprep.subr.mxu0 0.0
        %6564 = vmatpush1.msra.mxu0 0.0
        %6565 = vmatprep.subr.mxu0 0.0
        %6566 = vmatpush1.msra.mxu0 0.0
        %6567 = vmatprep.subr.mxu0 0.0
        %6568 = vmatpush1.msra.mxu0 0.0
        %6569 = vmatprep.subr.mxu0 0.0
        %6570 = vmatpush1.msra.mxu0 0.0
        %6571 = vmatprep.subr.mxu0 0.0
        %6572 = vmatpush1.msra.mxu0 0.0
        %6573 = vmatprep.subr.mxu0 0.0
        %6574 = vmatpush1.msra.mxu0 0.0
        %6575 = vmatprep.subr.mxu0 0.0
        %6576 = vmatpush1.msra.mxu0 0.0
        %6577 = vmatprep.subr.mxu0 0.0
        %6578 = vmatpush1.msra.mxu0 0.0
        %6579 = vmatprep.subr.mxu0 0.0
        %6580 = vmatpush1.msra.mxu0 0.0
        %6581 = vmatprep.subr.mxu0 0.0
        %6582 = vmatpush1.msra.mxu0 0.0
        %6583 = vmatprep.subr.mxu0 0.0
        %6584 = vmatpush1.msra.mxu0 0.0
        %6585 = vmatprep.subr.mxu0 0.0
        %6586 = vmatpush1.msra.mxu0 0.0
        %6587 = vmatprep.subr.mxu0 0.0
        %6588 = vmatpush1.msra.mxu0 0.0
        %6589 = vmatprep.subr.mxu0 0.0
        %6590 = vmatpush1.msra.mxu0 0.0
        %6591 = vmatprep.subr.mxu0 0.0
        %6592 = vmatpush1.msra.mxu0 0.0
        %6593 = vmatprep.subr.mxu0 0.0
        %6594 = vmatpush1.msra.mxu0 0.0
        %6595 = vmatprep.subr.mxu0 0.0
        %6596 = vmatpush1.msra.mxu0 0.0
        %6597 = vmatprep.subr.mxu0 0.0
        %6598 = vmatpush1.msra.mxu0 0.0
        %6599 = vmatprep.subr.mxu0 0.0
        %6600 = vmatpush1.msra.mxu0 0.0
        %6601 = vmatprep.subr.mxu0 0.0
        %6602 = vmatpush1.msra.mxu0 0.0
        %6603 = vmatprep.subr.mxu0 0.0
        %6604 = vmatpush1.msra.mxu0 0.0
        %6605 = vmatprep.subr.mxu0 0.0
        %6606 = vmatpush1.msra.mxu0 0.0
        %6607 = vmatprep.subr.mxu0 0.0
        %6608 = vmatpush1.msra.mxu0 0.0
        %6609 = vmatprep.subr.mxu0 0.0
        %6610 = vmatpush1.msra.mxu0 0.0
        %6611 = vmatprep.subr.mxu0 0.0
        %6612 = vmatpush1.msra.mxu0 0.0
        %6613 = vmatprep.subr.mxu0 0.0
        %6614 = vmatpush1.msra.mxu0 0.0
        %6615 = vmatprep.subr.mxu0 0.0
        %6616 = vmatpush1.msra.mxu0 0.0
        %6617 = vmatprep.mubr.f32.mxu0 0.0
        %6618 = vmatmul.mubr.f32.gmra.mrb[0].mxu0 %v6548
        %v6619 = vpop.f32.mrb[0].mxu0
        %v6620 = vadd.f32 0.0, %v6619
        %v6621 = vpop.f32.mrb[0].mxu0
        %6622 = vmatprep.mubr.f32.mxu0 0.0
        %6623 = vmatmul.mubr.f32.gmra.mrb[0].mxu0 %v6551
        %v6624 = vpop.f32.mrb[0].mxu0
        %v6625 = vadd.f32 0.0, %v6624
        %v6626 = vpop.f32.mrb[0].mxu0
        %6627 = vdwg.mxu0
        %6628 = vrot.lane.b32.xlu0 %v5591, 40
        %v6629 = vpop.permute.xlu0 %6628
        %6630 = vrot.lane.b32.xlu0 %v5592, 40
        %v6631 = vpop.permute.xlu0 %6630
        %v6635 = vsel %vm1242, %v6527, 0
        %v6638 = vsel %vm1242, %v6528, 0
        %6640 = vmatprep.subr.mxu0 0.0
        %6641 = vmatpush1.msra.mxu0 %v6629
        %6642 = vmatprep.subr.mxu0 0.0
        %6643 = vmatpush1.msra.mxu0 %v6631
        %6644 = vmatprep.subr.mxu0 0.0
        %6645 = vmatpush1.msra.mxu0 0.0
        %6646 = vmatprep.subr.mxu0 0.0
        %6647 = vmatpush1.msra.mxu0 0.0
        %6648 = vmatprep.subr.mxu0 0.0
        %6649 = vmatpush1.msra.mxu0 0.0
        %6650 = vmatprep.subr.mxu0 0.0
        %6651 = vmatpush1.msra.mxu0 0.0
        %6652 = vmatprep.subr.mxu0 0.0
        %6653 = vmatpush1.msra.mxu0 0.0
        %6654 = vmatprep.subr.mxu0 0.0
        %6655 = vmatpush1.msra.mxu0 0.0
        %6656 = vmatprep.subr.mxu0 0.0
        %6657 = vmatpush1.msra.mxu0 0.0
        %6658 = vmatprep.subr.mxu0 0.0
        %6659 = vmatpush1.msra.mxu0 0.0
        %6660 = vmatprep.subr.mxu0 0.0
        %6661 = vmatpush1.msra.mxu0 0.0
        %6662 = vmatprep.subr.mxu0 0.0
        %6663 = vmatpush1.msra.mxu0 0.0
        %6664 = vmatprep.subr.mxu0 0.0
        %6665 = vmatpush1.msra.mxu0 0.0
        %6666 = vmatprep.subr.mxu0 0.0
        %6667 = vmatpush1.msra.mxu0 0.0
        %6668 = vmatprep.subr.mxu0 0.0
        %6669 = vmatpush1.msra.mxu0 0.0
        %6670 = vmatprep.subr.mxu0 0.0
        %6671 = vmatpush1.msra.mxu0 0.0
        %6672 = vmatprep.subr.mxu0 0.0
        %6673 = vmatpush1.msra.mxu0 0.0
        %6674 = vmatprep.subr.mxu0 0.0
        %6675 = vmatpush1.msra.mxu0 0.0
        %6676 = vmatprep.subr.mxu0 0.0
        %6677 = vmatpush1.msra.mxu0 0.0
        %6678 = vmatprep.subr.mxu0 0.0
        %6679 = vmatpush1.msra.mxu0 0.0
        %6680 = vmatprep.subr.mxu0 0.0
        %6681 = vmatpush1.msra.mxu0 0.0
        %6682 = vmatprep.subr.mxu0 0.0
        %6683 = vmatpush1.msra.mxu0 0.0
        %6684 = vmatprep.subr.mxu0 0.0
        %6685 = vmatpush1.msra.mxu0 0.0
        %6686 = vmatprep.subr.mxu0 0.0
        %6687 = vmatpush1.msra.mxu0 0.0
        %6688 = vmatprep.subr.mxu0 0.0
        %6689 = vmatpush1.msra.mxu0 0.0
        %6690 = vmatprep.subr.mxu0 0.0
        %6691 = vmatpush1.msra.mxu0 0.0
        %6692 = vmatprep.subr.mxu0 0.0
        %6693 = vmatpush1.msra.mxu0 0.0
        %6694 = vmatprep.subr.mxu0 0.0
        %6695 = vmatpush1.msra.mxu0 0.0
        %6696 = vmatprep.subr.mxu0 0.0
        %6697 = vmatpush1.msra.mxu0 0.0
        %6698 = vmatprep.subr.mxu0 0.0
        %6699 = vmatpush1.msra.mxu0 0.0
        %6700 = vmatprep.subr.mxu0 0.0
        %6701 = vmatpush1.msra.mxu0 0.0
        %6702 = vmatprep.subr.mxu0 0.0
        %6703 = vmatpush1.msra.mxu0 0.0
        %6704 = vmatprep.mubr.f32.mxu0 0.0
        %6705 = vmatmul.mubr.f32.gmra.mrb[0].mxu0 %v6635
        %v6706 = vpop.f32.mrb[0].mxu0
        %v6707 = vadd.f32 0.0, %v6706
        %v6708 = vpop.f32.mrb[0].mxu0
        %6709 = vmatprep.mubr.f32.mxu0 0.0
        %6710 = vmatmul.mubr.f32.gmra.mrb[0].mxu0 %v6638
        %v6711 = vpop.f32.mrb[0].mxu0
        %v6712 = vadd.f32 0.0, %v6711
        %v6713 = vpop.f32.mrb[0].mxu0
        %6714 = vdwg.mxu0
        %6715 = vrot.lane.b32.xlu0 %v5593, 40
        %v6716 = vpop.permute.xlu0 %6715
        %6717 = vrot.lane.b32.xlu0 %v5594, 40
        %v6718 = vpop.permute.xlu0 %6717
        %v6722 = vsel %vm1242, %v6529, 0
        %v6725 = vsel %vm1242, %v6530, 0
        %6727 = vmatprep.subr.mxu0 0.0
        %6728 = vmatpush1.msra.mxu0 %v6716
        %6729 = vmatprep.subr.mxu0 0.0
        %6730 = vmatpush1.msra.mxu0 %v6718
        %6731 = vmatprep.subr.mxu0 0.0
        %6732 = vmatpush1.msra.mxu0 0.0
        %6733 = vmatprep.subr.mxu0 0.0
        %6734 = vmatpush1.msra.mxu0 0.0
        %6735 = vmatprep.subr.mxu0 0.0
        %6736 = vmatpush1.msra.mxu0 0.0
        %6737 = vmatprep.subr.mxu0 0.0
        %6738 = vmatpush1.msra.mxu0 0.0
        %6739 = vmatprep.subr.mxu0 0.0
        %6740 = vmatpush1.msra.mxu0 0.0
        %6741 = vmatprep.subr.mxu0 0.0
        %6742 = vmatpush1.msra.mxu0 0.0
        %6743 = vmatprep.subr.mxu0 0.0
        %6744 = vmatpush1.msra.mxu0 0.0
        %6745 = vmatprep.subr.mxu0 0.0
        %6746 = vmatpush1.msra.mxu0 0.0
        %6747 = vmatprep.subr.mxu0 0.0
        %6748 = vmatpush1.msra.mxu0 0.0
        %6749 = vmatprep.subr.mxu0 0.0
        %6750 = vmatpush1.msra.mxu0 0.0
        %6751 = vmatprep.subr.mxu0 0.0
        %6752 = vmatpush1.msra.mxu0 0.0
        %6753 = vmatprep.subr.mxu0 0.0
        %6754 = vmatpush1.msra.mxu0 0.0
        %6755 = vmatprep.subr.mxu0 0.0
        %6756 = vmatpush1.msra.mxu0 0.0
        %6757 = vmatprep.subr.mxu0 0.0
        %6758 = vmatpush1.msra.mxu0 0.0
        %6759 = vmatprep.subr.mxu0 0.0
        %6760 = vmatpush1.msra.mxu0 0.0
        %6761 = vmatprep.subr.mxu0 0.0
        %6762 = vmatpush1.msra.mxu0 0.0
        %6763 = vmatprep.subr.mxu0 0.0
        %6764 = vmatpush1.msra.mxu0 0.0
        %6765 = vmatprep.subr.mxu0 0.0
        %6766 = vmatpush1.msra.mxu0 0.0
        %6767 = vmatprep.subr.mxu0 0.0
        %6768 = vmatpush1.msra.mxu0 0.0
        %6769 = vmatprep.subr.mxu0 0.0
        %6770 = vmatpush1.msra.mxu0 0.0
        %6771 = vmatprep.subr.mxu0 0.0
        %6772 = vmatpush1.msra.mxu0 0.0
        %6773 = vmatprep.subr.mxu0 0.0
        %6774 = vmatpush1.msra.mxu0 0.0
        %6775 = vmatprep.subr.mxu0 0.0
        %6776 = vmatpush1.msra.mxu0 0.0
        %6777 = vmatprep.subr.mxu0 0.0
        %6778 = vmatpush1.msra.mxu0 0.0
        %6779 = vmatprep.subr.mxu0 0.0
        %6780 = vmatpush1.msra.mxu0 0.0
        %6781 = vmatprep.subr.mxu0 0.0
        %6782 = vmatpush1.msra.mxu0 0.0
        %6783 = vmatprep.subr.mxu0 0.0
        %6784 = vmatpush1.msra.mxu0 0.0
        %6785 = vmatprep.subr.mxu0 0.0
        %6786 = vmatpush1.msra.mxu0 0.0
        %6787 = vmatprep.subr.mxu0 0.0
        %6788 = vmatpush1.msra.mxu0 0.0
        %6789 = vmatprep.subr.mxu0 0.0
        %6790 = vmatpush1.msra.mxu0 0.0
        %6791 = vmatprep.mubr.f32.mxu0 0.0
        %6792 = vmatmul.mubr.f32.gmra.mrb[0].mxu0 %v6722
        %v6793 = vpop.f32.mrb[0].mxu0
        %v6794 = vadd.f32 0.0, %v6793
        %v6795 = vpop.f32.mrb[0].mxu0
        %6796 = vmatprep.mubr.f32.mxu0 0.0
        %6797 = vmatmul.mubr.f32.gmra.mrb[0].mxu0 %v6725
        %v6798 = vpop.f32.mrb[0].mxu0
        %v6799 = vadd.f32 0.0, %v6798
        %v6800 = vpop.f32.mrb[0].mxu0
        %6801 = vdwg.mxu0
        %6802 = vrot.lane.b32.xlu0 %v5595, 40
        %v6803 = vpop.permute.xlu0 %6802
        %6804 = vrot.lane.b32.xlu0 %v5596, 40
        %v6805 = vpop.permute.xlu0 %6804
        %v6809 = vsel %vm1242, %v6531, 0
        %v6812 = vsel %vm1242, %v6532, 0
        %6814 = vmatprep.subr.mxu0 0.0
        %6815 = vmatpush1.msra.mxu0 %v6803
        %6816 = vmatprep.subr.mxu0 0.0
        %6817 = vmatpush1.msra.mxu0 %v6805
        %6818 = vmatprep.subr.mxu0 0.0
        %6819 = vmatpush1.msra.mxu0 0.0
        %6820 = vmatprep.subr.mxu0 0.0
        %6821 = vmatpush1.msra.mxu0 0.0
        %6822 = vmatprep.subr.mxu0 0.0
        %6823 = vmatpush1.msra.mxu0 0.0
        %6824 = vmatprep.subr.mxu0 0.0
        %6825 = vmatpush1.msra.mxu0 0.0
        %6826 = vmatprep.subr.mxu0 0.0
        %6827 = vmatpush1.msra.mxu0 0.0
        %6828 = vmatprep.subr.mxu0 0.0
        %6829 = vmatpush1.msra.mxu0 0.0
        %6830 = vmatprep.subr.mxu0 0.0
        %6831 = vmatpush1.msra.mxu0 0.0
        %6832 = vmatprep.subr.mxu0 0.0
        %6833 = vmatpush1.msra.mxu0 0.0
        %6834 = vmatprep.subr.mxu0 0.0
        %6835 = vmatpush1.msra.mxu0 0.0
        %6836 = vmatprep.subr.mxu0 0.0
        %6837 = vmatpush1.msra.mxu0 0.0
        %6838 = vmatprep.subr.mxu0 0.0
        %6839 = vmatpush1.msra.mxu0 0.0
        %6840 = vmatprep.subr.mxu0 0.0
        %6841 = vmatpush1.msra.mxu0 0.0
        %6842 = vmatprep.subr.mxu0 0.0
        %6843 = vmatpush1.msra.mxu0 0.0
        %6844 = vmatprep.subr.mxu0 0.0
        %6845 = vmatpush1.msra.mxu0 0.0
        %6846 = vmatprep.subr.mxu0 0.0
        %6847 = vmatpush1.msra.mxu0 0.0
        %6848 = vmatprep.subr.mxu0 0.0
        %6849 = vmatpush1.msra.mxu0 0.0
        %6850 = vmatprep.subr.mxu0 0.0
        %6851 = vmatpush1.msra.mxu0 0.0
        %6852 = vmatprep.subr.mxu0 0.0
        %6853 = vmatpush1.msra.mxu0 0.0
        %6854 = vmatprep.subr.mxu0 0.0
        %6855 = vmatpush1.msra.mxu0 0.0
        %6856 = vmatprep.subr.mxu0 0.0
        %6857 = vmatpush1.msra.mxu0 0.0
        %6858 = vmatprep.subr.mxu0 0.0
        %6859 = vmatpush1.msra.mxu0 0.0
        %6860 = vmatprep.subr.mxu0 0.0
        %6861 = vmatpush1.msra.mxu0 0.0
        %6862 = vmatprep.subr.mxu0 0.0
        %6863 = vmatpush1.msra.mxu0 0.0
        %6864 = vmatprep.subr.mxu0 0.0
        %6865 = vmatpush1.msra.mxu0 0.0
        %6866 = vmatprep.subr.mxu0 0.0
        %6867 = vmatpush1.msra.mxu0 0.0
        %6868 = vmatprep.subr.mxu0 0.0
        %6869 = vmatpush1.msra.mxu0 0.0
        %6870 = vmatprep.subr.mxu0 0.0
        %6871 = vmatpush1.msra.mxu0 0.0
        %6872 = vmatprep.subr.mxu0 0.0
        %6873 = vmatpush1.msra.mxu0 0.0
        %6874 = vmatprep.subr.mxu0 0.0
        %6875 = vmatpush1.msra.mxu0 0.0
        %6876 = vmatprep.subr.mxu0 0.0
        %6877 = vmatpush1.msra.mxu0 0.0
        %6878 = vmatprep.mubr.f32.mxu0 0.0
        %6879 = vmatmul.mubr.f32.gmra.mrb[0].mxu0 %v6809
        %v6880 = vpop.f32.mrb[0].mxu0
        %v6881 = vadd.f32 0.0, %v6880
        %v6882 = vpop.f32.mrb[0].mxu0
        %6883 = vmatprep.mubr.f32.mxu0 0.0
        %6884 = vmatmul.mubr.f32.gmra.mrb[0].mxu0 %v6812
        %v6885 = vpop.f32.mrb[0].mxu0
        %v6886 = vadd.f32 0.0, %v6885
        %v6887 = vpop.f32.mrb[0].mxu0
        %6888 = vdwg.mxu0
        %6889 = vrot.lane.b32.xlu0 %v5597, 40
        %v6890 = vpop.permute.xlu0 %6889
        %6891 = vrot.lane.b32.xlu0 %v5598, 40
        %v6892 = vpop.permute.xlu0 %6891
        %v6896 = vsel %vm1242, %v6533, 0
        %v6899 = vsel %vm1242, %v6534, 0
        %6901 = vmatprep.subr.mxu0 0.0
        %6902 = vmatpush1.msra.mxu0 %v6890
        %6903 = vmatprep.subr.mxu0 0.0
        %6904 = vmatpush1.msra.mxu0 %v6892
        %6905 = vmatprep.subr.mxu0 0.0
        %6906 = vmatpush1.msra.mxu0 0.0
        %6907 = vmatprep.subr.mxu0 0.0
        %6908 = vmatpush1.msra.mxu0 0.0
        %6909 = vmatprep.subr.mxu0 0.0
        %6910 = vmatpush1.msra.mxu0 0.0
        %6911 = vmatprep.subr.mxu0 0.0
        %6912 = vmatpush1.msra.mxu0 0.0
        %6913 = vmatprep.subr.mxu0 0.0
        %6914 = vmatpush1.msra.mxu0 0.0
        %6915 = vmatprep.subr.mxu0 0.0
        %6916 = vmatpush1.msra.mxu0 0.0
        %6917 = vmatprep.subr.mxu0 0.0
        %6918 = vmatpush1.msra.mxu0 0.0
        %6919 = vmatprep.subr.mxu0 0.0
        %6920 = vmatpush1.msra.mxu0 0.0
        %6921 = vmatprep.subr.mxu0 0.0
        %6922 = vmatpush1.msra.mxu0 0.0
        %6923 = vmatprep.subr.mxu0 0.0
        %6924 = vmatpush1.msra.mxu0 0.0
        %6925 = vmatprep.subr.mxu0 0.0
        %6926 = vmatpush1.msra.mxu0 0.0
        %6927 = vmatprep.subr.mxu0 0.0
        %6928 = vmatpush1.msra.mxu0 0.0
        %6929 = vmatprep.subr.mxu0 0.0
        %6930 = vmatpush1.msra.mxu0 0.0
        %6931 = vmatprep.subr.mxu0 0.0
        %6932 = vmatpush1.msra.mxu0 0.0
        %6933 = vmatprep.subr.mxu0 0.0
        %6934 = vmatpush1.msra.mxu0 0.0
        %6935 = vmatprep.subr.mxu0 0.0
        %6936 = vmatpush1.msra.mxu0 0.0
        %6937 = vmatprep.subr.mxu0 0.0
        %6938 = vmatpush1.msra.mxu0 0.0
        %6939 = vmatprep.subr.mxu0 0.0
        %6940 = vmatpush1.msra.mxu0 0.0
        %6941 = vmatprep.subr.mxu0 0.0
        %6942 = vmatpush1.msra.mxu0 0.0
        %6943 = vmatprep.subr.mxu0 0.0
        %6944 = vmatpush1.msra.mxu0 0.0
        %6945 = vmatprep.subr.mxu0 0.0
        %6946 = vmatpush1.msra.mxu0 0.0
        %6947 = vmatprep.subr.mxu0 0.0
        %6948 = vmatpush1.msra.mxu0 0.0
        %6949 = vmatprep.subr.mxu0 0.0
        %6950 = vmatpush1.msra.mxu0 0.0
        %6951 = vmatprep.subr.mxu0 0.0
        %6952 = vmatpush1.msra.mxu0 0.0
        %6953 = vmatprep.subr.mxu0 0.0
        %6954 = vmatpush1.msra.mxu0 0.0
        %6955 = vmatprep.subr.mxu0 0.0
        %6956 = vmatpush1.msra.mxu0 0.0
        %6957 = vmatprep.subr.mxu0 0.0
        %6958 = vmatpush1.msra.mxu0 0.0
        %6959 = vmatprep.subr.mxu0 0.0
        %6960 = vmatpush1.msra.mxu0 0.0
        %6961 = vmatprep.subr.mxu0 0.0
        %6962 = vmatpush1.msra.mxu0 0.0
        %6963 = vmatprep.subr.mxu0 0.0
        %6964 = vmatpush1.msra.mxu0 0.0
        %6965 = vmatprep.mubr.f32.mxu0 0.0
        %6966 = vmatmul.mubr.f32.gmra.mrb[0].mxu0 %v6896
        %v6967 = vpop.f32.mrb[0].mxu0
        %v6968 = vadd.f32 0.0, %v6967
        %v6969 = vpop.f32.mrb[0].mxu0
        %6970 = vmatprep.mubr.f32.mxu0 0.0
        %6971 = vmatmul.mubr.f32.gmra.mrb[0].mxu0 %v6899
        %v6972 = vpop.f32.mrb[0].mxu0
        %v6973 = vadd.f32 0.0, %v6972
        %v6974 = vpop.f32.mrb[0].mxu0
        %6975 = vdwg.mxu0
        %6976 = vrot.lane.b32.xlu0 %v5599, 40
        %v6977 = vpop.permute.xlu0 %6976
        %6978 = vrot.lane.b32.xlu0 %v5600, 40
        %v6979 = vpop.permute.xlu0 %6978
        %v6983 = vsel %vm1242, %v6535, 0
        %v6986 = vsel %vm1242, %v6536, 0
        %6988 = vmatprep.subr.mxu0 0.0
        %6989 = vmatpush1.msra.mxu0 %v6977
        %6990 = vmatprep.subr.mxu0 0.0
        %6991 = vmatpush1.msra.mxu0 %v6979
        %6992 = vmatprep.subr.mxu0 0.0
        %6993 = vmatpush1.msra.mxu0 0.0
        %6994 = vmatprep.subr.mxu0 0.0
        %6995 = vmatpush1.msra.mxu0 0.0
        %6996 = vmatprep.subr.mxu0 0.0
        %6997 = vmatpush1.msra.mxu0 0.0
        %6998 = vmatprep.subr.mxu0 0.0
        %6999 = vmatpush1.msra.mxu0 0.0
        %7000 = vmatprep.subr.mxu0 0.0
        %7001 = vmatpush1.msra.mxu0 0.0
        %7002 = vmatprep.subr.mxu0 0.0
        %7003 = vmatpush1.msra.mxu0 0.0
        %7004 = vmatprep.subr.mxu0 0.0
        %7005 = vmatpush1.msra.mxu0 0.0
        %7006 = vmatprep.subr.mxu0 0.0
        %7007 = vmatpush1.msra.mxu0 0.0
        %7008 = vmatprep.subr.mxu0 0.0
        %7009 = vmatpush1.msra.mxu0 0.0
        %7010 = vmatprep.subr.mxu0 0.0
        %7011 = vmatpush1.msra.mxu0 0.0
        %7012 = vmatprep.subr.mxu0 0.0
        %7013 = vmatpush1.msra.mxu0 0.0
        %7014 = vmatprep.subr.mxu0 0.0
        %7015 = vmatpush1.msra.mxu0 0.0
        %7016 = vmatprep.subr.mxu0 0.0
        %7017 = vmatpush1.msra.mxu0 0.0
        %7018 = vmatprep.subr.mxu0 0.0
        %7019 = vmatpush1.msra.mxu0 0.0
        %7020 = vmatprep.subr.mxu0 0.0
        %7021 = vmatpush1.msra.mxu0 0.0
        %7022 = vmatprep.subr.mxu0 0.0
        %7023 = vmatpush1.msra.mxu0 0.0
        %7024 = vmatprep.subr.mxu0 0.0
        %7025 = vmatpush1.msra.mxu0 0.0
        %7026 = vmatprep.subr.mxu0 0.0
        %7027 = vmatpush1.msra.mxu0 0.0
        %7028 = vmatprep.subr.mxu0 0.0
        %7029 = vmatpush1.msra.mxu0 0.0
        %7030 = vmatprep.subr.mxu0 0.0
        %7031 = vmatpush1.msra.mxu0 0.0
        %7032 = vmatprep.subr.mxu0 0.0
        %7033 = vmatpush1.msra.mxu0 0.0
        %7034 = vmatprep.subr.mxu0 0.0
        %7035 = vmatpush1.msra.mxu0 0.0
        %7036 = vmatprep.subr.mxu0 0.0
        %7037 = vmatpush1.msra.mxu0 0.0
        %7038 = vmatprep.subr.mxu0 0.0
        %7039 = vmatpush1.msra.mxu0 0.0
        %7040 = vmatprep.subr.mxu0 0.0
        %7041 = vmatpush1.msra.mxu0 0.0
        %7042 = vmatprep.subr.mxu0 0.0
        %7043 = vmatpush1.msra.mxu0 0.0
        %7044 = vmatprep.subr.mxu0 0.0
        %7045 = vmatpush1.msra.mxu0 0.0
        %7046 = vmatprep.subr.mxu0 0.0
        %7047 = vmatpush1.msra.mxu0 0.0
        %7048 = vmatprep.subr.mxu0 0.0
        %7049 = vmatpush1.msra.mxu0 0.0
        %7050 = vmatprep.subr.mxu0 0.0
        %7051 = vmatpush1.msra.mxu0 0.0
        %7052 = vmatprep.mubr.f32.mxu0 0.0
        %7053 = vmatmul.mubr.f32.gmra.mrb[0].mxu0 %v6983
        %v7054 = vpop.f32.mrb[0].mxu0
        %v7055 = vadd.f32 0.0, %v7054
        %v7056 = vpop.f32.mrb[0].mxu0
        %7057 = vmatprep.mubr.f32.mxu0 0.0
        %7058 = vmatmul.mubr.f32.gmra.mrb[0].mxu0 %v6986
        %v7059 = vpop.f32.mrb[0].mxu0
        %v7060 = vadd.f32 0.0, %v7059
        %v7061 = vpop.f32.mrb[0].mxu0
        %7062 = vdwg.mxu0
        %7063 = vrot.lane.b32.xlu0 %v5601, 40
        %v7064 = vpop.permute.xlu0 %7063
        %7065 = vrot.lane.b32.xlu0 %v5602, 40
        %v7066 = vpop.permute.xlu0 %7065
        %v7070 = vsel %vm1242, %v6537, 0
        %v7073 = vsel %vm1242, %v6538, 0
        %7075 = vmatprep.subr.mxu0 0.0
        %7076 = vmatpush1.msra.mxu0 %v7064
        %7077 = vmatprep.subr.mxu0 0.0
        %7078 = vmatpush1.msra.mxu0 %v7066
        %7079 = vmatprep.subr.mxu0 0.0
        %7080 = vmatpush1.msra.mxu0 0.0
        %7081 = vmatprep.subr.mxu0 0.0
        %7082 = vmatpush1.msra.mxu0 0.0
        %7083 = vmatprep.subr.mxu0 0.0
        %7084 = vmatpush1.msra.mxu0 0.0
        %7085 = vmatprep.subr.mxu0 0.0
        %7086 = vmatpush1.msra.mxu0 0.0
        %7087 = vmatprep.subr.mxu0 0.0
        %7088 = vmatpush1.msra.mxu0 0.0
        %7089 = vmatprep.subr.mxu0 0.0
        %7090 = vmatpush1.msra.mxu0 0.0
        %7091 = vmatprep.subr.mxu0 0.0
        %7092 = vmatpush1.msra.mxu0 0.0
        %7093 = vmatprep.subr.mxu0 0.0
        %7094 = vmatpush1.msra.mxu0 0.0
        %7095 = vmatprep.subr.mxu0 0.0
        %7096 = vmatpush1.msra.mxu0 0.0
        %7097 = vmatprep.subr.mxu0 0.0
        %7098 = vmatpush1.msra.mxu0 0.0
        %7099 = vmatprep.subr.mxu0 0.0
        %7100 = vmatpush1.msra.mxu0 0.0
        %7101 = vmatprep.subr.mxu0 0.0
        %7102 = vmatpush1.msra.mxu0 0.0
        %7103 = vmatprep.subr.mxu0 0.0
        %7104 = vmatpush1.msra.mxu0 0.0
        %7105 = vmatprep.subr.mxu0 0.0
        %7106 = vmatpush1.msra.mxu0 0.0
        %7107 = vmatprep.subr.mxu0 0.0
        %7108 = vmatpush1.msra.mxu0 0.0
        %7109 = vmatprep.subr.mxu0 0.0
        %7110 = vmatpush1.msra.mxu0 0.0
        %7111 = vmatprep.subr.mxu0 0.0
        %7112 = vmatpush1.msra.mxu0 0.0
        %7113 = vmatprep.subr.mxu0 0.0
        %7114 = vmatpush1.msra.mxu0 0.0
        %7115 = vmatprep.subr.mxu0 0.0
        %7116 = vmatpush1.msra.mxu0 0.0
        %7117 = vmatprep.subr.mxu0 0.0
        %7118 = vmatpush1.msra.mxu0 0.0
        %7119 = vmatprep.subr.mxu0 0.0
        %7120 = vmatpush1.msra.mxu0 0.0
        %7121 = vmatprep.subr.mxu0 0.0
        %7122 = vmatpush1.msra.mxu0 0.0
        %7123 = vmatprep.subr.mxu0 0.0
        %7124 = vmatpush1.msra.mxu0 0.0
        %7125 = vmatprep.subr.mxu0 0.0
        %7126 = vmatpush1.msra.mxu0 0.0
        %7127 = vmatprep.subr.mxu0 0.0
        %7128 = vmatpush1.msra.mxu0 0.0
        %7129 = vmatprep.subr.mxu0 0.0
        %7130 = vmatpush1.msra.mxu0 0.0
        %7131 = vmatprep.subr.mxu0 0.0
        %7132 = vmatpush1.msra.mxu0 0.0
        %7133 = vmatprep.subr.mxu0 0.0
        %7134 = vmatpush1.msra.mxu0 0.0
        %7135 = vmatprep.subr.mxu0 0.0
        %7136 = vmatpush1.msra.mxu0 0.0
        %7137 = vmatprep.subr.mxu0 0.0
        %7138 = vmatpush1.msra.mxu0 0.0
        %7139 = vmatprep.mubr.f32.mxu0 0.0
        %7140 = vmatmul.mubr.f32.gmra.mrb[0].mxu0 %v7070
        %v7141 = vpop.f32.mrb[0].mxu0
        %v7142 = vadd.f32 0.0, %v7141
        %v7143 = vpop.f32.mrb[0].mxu0
        %7144 = vmatprep.mubr.f32.mxu0 0.0
        %7145 = vmatmul.mubr.f32.gmra.mrb[0].mxu0 %v7073
        %v7146 = vpop.f32.mrb[0].mxu0
        %v7147 = vadd.f32 0.0, %v7146
        %v7148 = vpop.f32.mrb[0].mxu0
        %7149 = vdwg.mxu0
        %7150 = vrot.lane.b32.xlu0 %v5603, 40
        %v7151 = vpop.permute.xlu0 %7150
        %7152 = vrot.lane.b32.xlu0 %v5604, 40
        %v7153 = vpop.permute.xlu0 %7152
        %v7157 = vsel %vm1242, %v6539, 0
        %v7160 = vsel %vm1242, %v6540, 0
        %7162 = vmatprep.subr.mxu0 0.0
        %7163 = vmatpush1.msra.mxu0 %v7151
        %7164 = vmatprep.subr.mxu0 0.0
        %7165 = vmatpush1.msra.mxu0 %v7153
        %7166 = vmatprep.subr.mxu0 0.0
        %7167 = vmatpush1.msra.mxu0 0.0
        %7168 = vmatprep.subr.mxu0 0.0
        %7169 = vmatpush1.msra.mxu0 0.0
        %7170 = vmatprep.subr.mxu0 0.0
        %7171 = vmatpush1.msra.mxu0 0.0
        %7172 = vmatprep.subr.mxu0 0.0
        %7173 = vmatpush1.msra.mxu0 0.0
        %7174 = vmatprep.subr.mxu0 0.0
        %7175 = vmatpush1.msra.mxu0 0.0
        %7176 = vmatprep.subr.mxu0 0.0
        %7177 = vmatpush1.msra.mxu0 0.0
        %7178 = vmatprep.subr.mxu0 0.0
        %7179 = vmatpush1.msra.mxu0 0.0
        %7180 = vmatprep.subr.mxu0 0.0
        %7181 = vmatpush1.msra.mxu0 0.0
        %7182 = vmatprep.subr.mxu0 0.0
        %7183 = vmatpush1.msra.mxu0 0.0
        %7184 = vmatprep.subr.mxu0 0.0
        %7185 = vmatpush1.msra.mxu0 0.0
        %7186 = vmatprep.subr.mxu0 0.0
        %7187 = vmatpush1.msra.mxu0 0.0
        %7188 = vmatprep.subr.mxu0 0.0
        %7189 = vmatpush1.msra.mxu0 0.0
        %7190 = vmatprep.subr.mxu0 0.0
        %7191 = vmatpush1.msra.mxu0 0.0
        %7192 = vmatprep.subr.mxu0 0.0
        %7193 = vmatpush1.msra.mxu0 0.0
        %7194 = vmatprep.subr.mxu0 0.0
        %7195 = vmatpush1.msra.mxu0 0.0
        %7196 = vmatprep.subr.mxu0 0.0
        %7197 = vmatpush1.msra.mxu0 0.0
        %7198 = vmatprep.subr.mxu0 0.0
        %7199 = vmatpush1.msra.mxu0 0.0
        %7200 = vmatprep.subr.mxu0 0.0
        %7201 = vmatpush1.msra.mxu0 0.0
        %7202 = vmatprep.subr.mxu0 0.0
        %7203 = vmatpush1.msra.mxu0 0.0
        %7204 = vmatprep.subr.mxu0 0.0
        %7205 = vmatpush1.msra.mxu0 0.0
        %7206 = vmatprep.subr.mxu0 0.0
        %7207 = vmatpush1.msra.mxu0 0.0
        %7208 = vmatprep.subr.mxu0 0.0
        %7209 = vmatpush1.msra.mxu0 0.0
        %7210 = vmatprep.subr.mxu0 0.0
        %7211 = vmatpush1.msra.mxu0 0.0
        %7212 = vmatprep.subr.mxu0 0.0
        %7213 = vmatpush1.msra.mxu0 0.0
        %7214 = vmatprep.subr.mxu0 0.0
        %7215 = vmatpush1.msra.mxu0 0.0
        %7216 = vmatprep.subr.mxu0 0.0
        %7217 = vmatpush1.msra.mxu0 0.0
        %7218 = vmatprep.subr.mxu0 0.0
        %7219 = vmatpush1.msra.mxu0 0.0
        %7220 = vmatprep.subr.mxu0 0.0
        %7221 = vmatpush1.msra.mxu0 0.0
        %7222 = vmatprep.subr.mxu0 0.0
        %7223 = vmatpush1.msra.mxu0 0.0
        %7224 = vmatprep.subr.mxu0 0.0
        %7225 = vmatpush1.msra.mxu0 0.0
        %7226 = vmatprep.mubr.f32.mxu0 0.0
        %7227 = vmatmul.mubr.f32.gmra.mrb[0].mxu0 %v7157
        %v7228 = vpop.f32.mrb[0].mxu0
        %v7229 = vadd.f32 0.0, %v7228
        %v7230 = vpop.f32.mrb[0].mxu0
        %7231 = vmatprep.mubr.f32.mxu0 0.0
        %7232 = vmatmul.mubr.f32.gmra.mrb[0].mxu0 %v7160
        %v7233 = vpop.f32.mrb[0].mxu0
        %v7234 = vadd.f32 0.0, %v7233
        %v7235 = vpop.f32.mrb[0].mxu0
        %7236 = vdwg.mxu0
        %7253 = vrot.lane.b32.xlu0 %v6620, 24
        %v7254 = vpop.permute.xlu0 %7253
        %7255 = vrot.lane.b32.xlu0 %v6625, 24
        %v7256 = vpop.permute.xlu0 %7255
        %7257 = vrot.lane.b32.xlu0 %v6707, 24
        %v7258 = vpop.permute.xlu0 %7257
        %7259 = vrot.lane.b32.xlu0 %v6712, 24
        %v7260 = vpop.permute.xlu0 %7259
        %7261 = vrot.lane.b32.xlu0 %v6794, 24
        %v7262 = vpop.permute.xlu0 %7261
        %7263 = vrot.lane.b32.xlu0 %v6799, 24
        %v7264 = vpop.permute.xlu0 %7263
        %7265 = vrot.lane.b32.xlu0 %v6881, 24
        %v7266 = vpop.permute.xlu0 %7265
        %7267 = vrot.lane.b32.xlu0 %v6886, 24
        %v7268 = vpop.permute.xlu0 %7267
        %7269 = vrot.lane.b32.xlu0 %v6968, 24
        %v7270 = vpop.permute.xlu0 %7269
        %7271 = vrot.lane.b32.xlu0 %v6973, 24
        %v7272 = vpop.permute.xlu0 %7271
        %7273 = vrot.lane.b32.xlu0 %v7055, 24
        %v7274 = vpop.permute.xlu0 %7273
        %7275 = vrot.lane.b32.xlu0 %v7060, 24
        %v7276 = vpop.permute.xlu0 %7275
        %7277 = vrot.lane.b32.xlu0 %v7142, 24
        %v7278 = vpop.permute.xlu0 %7277
        %7279 = vrot.lane.b32.xlu0 %v7147, 24
        %v7280 = vpop.permute.xlu0 %7279
        %7281 = vrot.lane.b32.xlu0 %v7229, 24
        %v7282 = vpop.permute.xlu0 %7281
        %7283 = vrot.lane.b32.xlu0 %v7234, 24
        %v7284 = vpop.permute.xlu0 %7283
        %vm7301 = vcmask 261312
        %7302 = vst.msk [vmem:[#allocation3] sm:$0xff] %vm7301, %v7254
        %7303 = vst.msk [vmem:[#allocation3 + $0x8] sm:$0xff] %vm7301, %v7256
        %7304 = vst.msk [vmem:[#allocation3 + $0x10] sm:$0xff] %vm7301, %v7258
        %7305 = vst.msk [vmem:[#allocation3 + $0x18] sm:$0xff] %vm7301, %v7260
        %7306 = vst.msk [vmem:[#allocation3 + $0x20] sm:$0xff] %vm7301, %v7262
        %7307 = vst.msk [vmem:[#allocation3 + $0x28] sm:$0xff] %vm7301, %v7264
        %7308 = vst.msk [vmem:[#allocation3 + $0x30] sm:$0xff] %vm7301, %v7266
        %7309 = vst.msk [vmem:[#allocation3 + $0x38] sm:$0xff] %vm7301, %v7268
        %7310 = vst.msk [vmem:[#allocation3 + $0x40] sm:$0xff] %vm7301, %v7270
        %7311 = vst.msk [vmem:[#allocation3 + $0x48] sm:$0xff] %vm7301, %v7272
        %7312 = vst.msk [vmem:[#allocation3 + $0x50] sm:$0xff] %vm7301, %v7274
        %7313 = vst.msk [vmem:[#allocation3 + $0x58] sm:$0xff] %vm7301, %v7276
        %7314 = vst.msk [vmem:[#allocation3 + $0x60] sm:$0xff] %vm7301, %v7278
        %7315 = vst.msk [vmem:[#allocation3 + $0x68] sm:$0xff] %vm7301, %v7280
        %7316 = vst.msk [vmem:[#allocation3 + $0x70] sm:$0xff] %vm7301, %v7282
        %7317 = vst.msk [vmem:[#allocation3 + $0x78] sm:$0xff] %vm7301, %v7284
        %v7318 = vld [vmem:[#allocation3] sm:$0xff]
        %v7319 = vld [vmem:[#allocation3 + $0x8] sm:$0xff]
        %v7320 = vld [vmem:[#allocation3 + $0x10] sm:$0xff]
        %v7321 = vld [vmem:[#allocation3 + $0x18] sm:$0xff]
        %v7322 = vld [vmem:[#allocation3 + $0x20] sm:$0xff]
        %v7323 = vld [vmem:[#allocation3 + $0x28] sm:$0xff]
        %v7324 = vld [vmem:[#allocation3 + $0x30] sm:$0xff]
        %v7325 = vld [vmem:[#allocation3 + $0x38] sm:$0xff]
        %v7326 = vld [vmem:[#allocation3 + $0x40] sm:$0xff]
        %v7327 = vld [vmem:[#allocation3 + $0x48] sm:$0xff]
        %v7328 = vld [vmem:[#allocation3 + $0x50] sm:$0xff]
        %v7329 = vld [vmem:[#allocation3 + $0x58] sm:$0xff]
        %v7330 = vld [vmem:[#allocation3 + $0x60] sm:$0xff]
        %v7331 = vld [vmem:[#allocation3 + $0x68] sm:$0xff]
        %v7332 = vld [vmem:[#allocation3 + $0x70] sm:$0xff]
        %v7333 = vld [vmem:[#allocation3 + $0x78] sm:$0xff]
        %v7334 = vld [vmem:[#allocation9] sm:$0xff]
        %v7335 = vld [vmem:[#allocation9 + $0x8] sm:$0xff]
        %v7336 = vld [vmem:[#allocation9 + $0x10] sm:$0xff]
        %v7337 = vld [vmem:[#allocation9 + $0x18] sm:$0xff]
        %v7338 = vld [vmem:[%s3] sm:$0x1]
        %v7340 = vlaneseq
        %v7341 = vshrl.u32 %v7340, 7
        %v7342 = vsub.s32 0, %v7341
        %v7343 = vrot.slane %v7338, %v7342
        %v7346 = vsel %vm286, %v7318, 0
        %v7349 = vsel %vm286, %v7319, 0
        %v7352 = vsel %vm286, %v7320, 0
        %v7355 = vsel %vm286, %v7321, 0
        %v7358 = vsel %vm286, %v7322, 0
        %v7361 = vsel %vm286, %v7323, 0
        %v7364 = vsel %vm286, %v7324, 0
        %v7367 = vsel %vm286, %v7325, 0
        %v7370 = vsel %vm286, %v7326, 0
        %v7373 = vsel %vm286, %v7327, 0
        %v7376 = vsel %vm286, %v7328, 0
        %v7379 = vsel %vm286, %v7329, 0
        %v7382 = vsel %vm286, %v7330, 0
        %v7385 = vsel %vm286, %v7331, 0
        %v7388 = vsel %vm286, %v7332, 0
        %v7391 = vsel %vm286, %v7333, 0
        %7393 = vmatprep.subr.mxu0 0.0
        %7394 = vmatpush1.msra.mxu0 %v7334
        %7395 = vmatprep.subr.mxu0 0.0
        %7396 = vmatpush1.msra.mxu0 %v7335
        %7397 = vmatprep.subr.mxu0 0.0
        %7398 = vmatpush1.msra.mxu0 %v7336
        %7399 = vmatprep.subr.mxu0 0.0
        %7400 = vmatpush1.msra.mxu0 %v7337
        %7401 = vmatprep.subr.mxu0 0.0
        %7402 = vmatpush1.msra.mxu0 0.0
        %7403 = vmatprep.subr.mxu0 0.0
        %7404 = vmatpush1.msra.mxu0 0.0
        %7405 = vmatprep.subr.mxu0 0.0
        %7406 = vmatpush1.msra.mxu0 0.0
        %7407 = vmatprep.subr.mxu0 0.0
        %7408 = vmatpush1.msra.mxu0 0.0
        %7409 = vmatprep.subr.mxu0 0.0
        %7410 = vmatpush1.msra.mxu0 0.0
        %7411 = vmatprep.subr.mxu0 0.0
        %7412 = vmatpush1.msra.mxu0 0.0
        %7413 = vmatprep.subr.mxu0 0.0
        %7414 = vmatpush1.msra.mxu0 0.0
        %7415 = vmatprep.subr.mxu0 0.0
        %7416 = vmatpush1.msra.mxu0 0.0
        %7417 = vmatprep.subr.mxu0 0.0
        %7418 = vmatpush1.msra.mxu0 0.0
        %7419 = vmatprep.subr.mxu0 0.0
        %7420 = vmatpush1.msra.mxu0 0.0
        %7421 = vmatprep.subr.mxu0 0.0
        %7422 = vmatpush1.msra.mxu0 0.0
        %7423 = vmatprep.subr.mxu0 0.0
        %7424 = vmatpush1.msra.mxu0 0.0
        %7425 = vmatprep.subr.mxu0 0.0
        %7426 = vmatpush1.msra.mxu0 0.0
        %7427 = vmatprep.subr.mxu0 0.0
        %7428 = vmatpush1.msra.mxu0 0.0
        %7429 = vmatprep.subr.mxu0 0.0
        %7430 = vmatpush1.msra.mxu0 0.0
        %7431 = vmatprep.subr.mxu0 0.0
        %7432 = vmatpush1.msra.mxu0 0.0
        %7433 = vmatprep.subr.mxu0 0.0
        %7434 = vmatpush1.msra.mxu0 0.0
        %7435 = vmatprep.subr.mxu0 0.0
        %7436 = vmatpush1.msra.mxu0 0.0
        %7437 = vmatprep.subr.mxu0 0.0
        %7438 = vmatpush1.msra.mxu0 0.0
        %7439 = vmatprep.subr.mxu0 0.0
        %7440 = vmatpush1.msra.mxu0 0.0
        %7441 = vmatprep.subr.mxu0 0.0
        %7442 = vmatpush1.msra.mxu0 0.0
        %7443 = vmatprep.subr.mxu0 0.0
        %7444 = vmatpush1.msra.mxu0 0.0
        %7445 = vmatprep.subr.mxu0 0.0
        %7446 = vmatpush1.msra.mxu0 0.0
        %7447 = vmatprep.subr.mxu0 0.0
        %7448 = vmatpush1.msra.mxu0 0.0
        %7449 = vmatprep.subr.mxu0 0.0
        %7450 = vmatpush1.msra.mxu0 0.0
        %7451 = vmatprep.subr.mxu0 0.0
        %7452 = vmatpush1.msra.mxu0 0.0
        %7453 = vmatprep.subr.mxu0 0.0
        %7454 = vmatpush1.msra.mxu0 0.0
        %7455 = vmatprep.subr.mxu0 0.0
        %7456 = vmatpush1.msra.mxu0 0.0
        %7457 = vmatprep.mubr.f32.mxu0 0.0
        %7458 = vmatmul.mubr.f32.gmra.mrb[0].mxu0 %v7346
        %v7459 = vpop.f32.mrb[0].mxu0
        %v7460 = vadd.f32 %v7343, %v7459
        %v7461 = vpop.f32.mrb[0].mxu0
        %7462 = vmatprep.mubr.f32.mxu0 0.0
        %7463 = vmatmul.mubr.f32.gmra.mrb[0].mxu0 %v7349
        %v7464 = vpop.f32.mrb[0].mxu0
        %v7465 = vadd.f32 %v7343, %v7464
        %v7466 = vpop.f32.mrb[0].mxu0
        %7467 = vmatprep.mubr.f32.mxu0 0.0
        %7468 = vmatmul.mubr.f32.gmra.mrb[0].mxu0 %v7352
        %v7469 = vpop.f32.mrb[0].mxu0
        %v7470 = vadd.f32 %v7343, %v7469
        %v7471 = vpop.f32.mrb[0].mxu0
        %7472 = vmatprep.mubr.f32.mxu0 0.0
        %7473 = vmatmul.mubr.f32.gmra.mrb[0].mxu0 %v7355
        %v7474 = vpop.f32.mrb[0].mxu0
        %v7475 = vadd.f32 %v7343, %v7474
        %v7476 = vpop.f32.mrb[0].mxu0
        %7477 = vmatprep.mubr.f32.mxu0 0.0
        %7478 = vmatmul.mubr.f32.gmra.mrb[0].mxu0 %v7358
        %v7479 = vpop.f32.mrb[0].mxu0
        %v7480 = vadd.f32 %v7343, %v7479
        %v7481 = vpop.f32.mrb[0].mxu0
        %7482 = vmatprep.mubr.f32.mxu0 0.0
        %7483 = vmatmul.mubr.f32.gmra.mrb[0].mxu0 %v7361
        %v7484 = vpop.f32.mrb[0].mxu0
        %v7485 = vadd.f32 %v7343, %v7484
        %v7486 = vpop.f32.mrb[0].mxu0
        %7487 = vmatprep.mubr.f32.mxu0 0.0
        %7488 = vmatmul.mubr.f32.gmra.mrb[0].mxu0 %v7364
        %v7489 = vpop.f32.mrb[0].mxu0
        %v7490 = vadd.f32 %v7343, %v7489
        %v7491 = vpop.f32.mrb[0].mxu0
        %7492 = vmatprep.mubr.f32.mxu0 0.0
        %7493 = vmatmul.mubr.f32.gmra.mrb[0].mxu0 %v7367
        %v7494 = vpop.f32.mrb[0].mxu0
        %v7495 = vadd.f32 %v7343, %v7494
        %v7496 = vpop.f32.mrb[0].mxu0
        %7497 = vmatprep.mubr.f32.mxu0 0.0
        %7498 = vmatmul.mubr.f32.gmra.mrb[0].mxu0 %v7370
        %v7499 = vpop.f32.mrb[0].mxu0
        %v7500 = vadd.f32 %v7343, %v7499
        %v7501 = vpop.f32.mrb[0].mxu0
        %7502 = vmatprep.mubr.f32.mxu0 0.0
        %7503 = vmatmul.mubr.f32.gmra.mrb[0].mxu0 %v7373
        %v7504 = vpop.f32.mrb[0].mxu0
        %v7505 = vadd.f32 %v7343, %v7504
        %v7506 = vpop.f32.mrb[0].mxu0
        %7507 = vmatprep.mubr.f32.mxu0 0.0
        %7508 = vmatmul.mubr.f32.gmra.mrb[0].mxu0 %v7376
        %v7509 = vpop.f32.mrb[0].mxu0
        %v7510 = vadd.f32 %v7343, %v7509
        %v7511 = vpop.f32.mrb[0].mxu0
        %7512 = vmatprep.mubr.f32.mxu0 0.0
        %7513 = vmatmul.mubr.f32.gmra.mrb[0].mxu0 %v7379
        %v7514 = vpop.f32.mrb[0].mxu0
        %v7515 = vadd.f32 %v7343, %v7514
        %v7516 = vpop.f32.mrb[0].mxu0
        %7517 = vmatprep.mubr.f32.mxu0 0.0
        %7518 = vmatmul.mubr.f32.gmra.mrb[0].mxu0 %v7382
        %v7519 = vpop.f32.mrb[0].mxu0
        %v7520 = vadd.f32 %v7343, %v7519
        %v7521 = vpop.f32.mrb[0].mxu0
        %7522 = vmatprep.mubr.f32.mxu0 0.0
        %7523 = vmatmul.mubr.f32.gmra.mrb[0].mxu0 %v7385
        %v7524 = vpop.f32.mrb[0].mxu0
        %v7525 = vadd.f32 %v7343, %v7524
        %v7526 = vpop.f32.mrb[0].mxu0
        %7527 = vmatprep.mubr.f32.mxu0 0.0
        %7528 = vmatmul.mubr.f32.gmra.mrb[0].mxu0 %v7388
        %v7529 = vpop.f32.mrb[0].mxu0
        %v7530 = vadd.f32 %v7343, %v7529
        %v7531 = vpop.f32.mrb[0].mxu0
        %7532 = vmatprep.mubr.f32.mxu0 0.0
        %7533 = vmatmul.mubr.f32.gmra.mrb[0].mxu0 %v7391
        %v7534 = vpop.f32.mrb[0].mxu0
        %v7535 = vadd.f32 %v7343, %v7534
        %v7536 = vpop.f32.mrb[0].mxu0
        %7537 = vdwg.mxu0
        %7538 = vst.msk [vmem:[%s263] sm:$0xff] %vm286, %v7460
        %7539 = vst.msk [vmem:[%s263 + $0x8] sm:$0xff] %vm286, %v7465
        %7540 = vst.msk [vmem:[%s263 + $0x10] sm:$0xff] %vm286, %v7470
        %7541 = vst.msk [vmem:[%s263 + $0x18] sm:$0xff] %vm286, %v7475
        %7542 = vst.msk [vmem:[%s263 + $0x20] sm:$0xff] %vm286, %v7480
        %7543 = vst.msk [vmem:[%s263 + $0x28] sm:$0xff] %vm286, %v7485
        %7544 = vst.msk [vmem:[%s263 + $0x30] sm:$0xff] %vm286, %v7490
        %7545 = vst.msk [vmem:[%s263 + $0x38] sm:$0xff] %vm286, %v7495
        %7546 = vst.msk [vmem:[%s263 + $0x40] sm:$0xff] %vm286, %v7500
        %7547 = vst.msk [vmem:[%s263 + $0x48] sm:$0xff] %vm286, %v7505
        %7548 = vst.msk [vmem:[%s263 + $0x50] sm:$0xff] %vm286, %v7510
        %7549 = vst.msk [vmem:[%s263 + $0x58] sm:$0xff] %vm286, %v7515
        %7550 = vst.msk [vmem:[%s263 + $0x60] sm:$0xff] %vm286, %v7520
        %7551 = vst.msk [vmem:[%s263 + $0x68] sm:$0xff] %vm286, %v7525
        %7552 = vst.msk [vmem:[%s263 + $0x70] sm:$0xff] %vm286, %v7530
        %7553 = vst.msk [vmem:[%s263 + $0x78] sm:$0xff] %vm286, %v7535
        %s7554 = sand.u32 %s135, 1
        %s7555 = scalar_lea.sflag [#allocation6], %s7554
        %s7556 = sand.u32 %s135, 1
        %s7557 = smul.addr %s7556, 128
        %s7558 = scalar_lea.vmem [#allocation10], %s7557
        // Predicated region
        $region49: #{tpu_custom_call.1} parent=35 // pred_check
          %p7559 = pneg %p145
        $region50: #{tpu_custom_call.1} parent=35 // pred_check_branch
          %7561 = sbr.rel (%p7559) target = $region52
        $region51: #{tpu_custom_call.1} parent=35 // pred_region
          %s7562 = smul.u32 8, %s27
          %s7564 = ssub.s32 2048, 2048
          %7565 = vsyncadd %s7555, %s7564
          %s7566 = smul.addr %s7562, 2
          %s7567 = smul.addr %s26, 16
          %s7568 = sadd.s32 %s7566, %s7567
          %s7569 = smul.addr %s7568, 128
          %s7570 = scalar_lea.hbm %s4, %s7569
          %s7571 = sshll.u32 %s7558, 4
          %s7572 = int_to_ptr.vmem [resolvable:$true] %s7571
          %7577 = dma.vmem_to_hbm [thread:$0]  %s7572, 2048, %s7570, %s7555, 128, 128, 8
        $region52: #{tpu_custom_call.1} parent=35 // pred_fallthru
          _
      $region36: #{tpu_custom_call.1} parent=5 // pred_fallthru
        _
      %p7578 = scmp.le.s32.totalorder 2, %s17
      // Predicated region
      $region53: #{tpu_custom_call.1} parent=5 // pred_check
        %p7579 = pneg %p7578
      $region54: #{tpu_custom_call.1} parent=5 // pred_check_branch
        %7581 = sbr.rel (%p7579) target = $region56
      $region55: #{tpu_custom_call.1} parent=5 // pred_region
        %s7582 = ssub.s32 %s17, 2
        // Predicated region
        $region57: #{tpu_custom_call.1} parent=55 // pred_check
          %p7583 = pneg %p151
        $region58: #{tpu_custom_call.1} parent=55 // pred_check_branch
          %7585 = sbr.rel (%p7583) target = $region60
        $region59: #{tpu_custom_call.1} parent=55 // pred_region
          %s7586 = sand.u32 %s136, 1
          %s7587 = scalar_lea.sflag [#allocation6], %s7586
          %s7588 = sand.u32 %s136, 1
          %s7589 = smul.addr %s7588, 128
          %s7590 = scalar_lea.vmem [#allocation10], %s7589
          %7591 = dma.done %s7587, 2048
        $region60: #{tpu_custom_call.1} parent=55 // pred_fallthru
          _
      $region56: #{tpu_custom_call.1} parent=5 // pred_fallthru
        _
    $region6: #{tpu_custom_call.1} parent=1 // loop_footer
      %s21 = sadd.s32 1, %s17
    $region7: #{tpu_custom_call.1} parent=1 // loop_footer_branch
      %16 = sbr.rel target = $region3
    $region8: #{tpu_custom_call.1} parent=1 // loop_exit
      _
    %7592 = vsyncpa [#allocation5], 1
    %s7593 = scalar_lea.sflag [#allocation5], 1
    %7594 = vsyncpa %s7593, 1
    %7595 = vsyncpa [#allocation8], 1
    %7596 = vsyncpa [#allocation6], 1
    %s7597 = scalar_lea.sflag [#allocation6], 1
    %7598 = vsyncpa %s7597, 1

</llo_original>
